<compile_context>
chip_gen: v7x
topology: tpu7x:2x2x1
jax: 0.10.0
libtpu: 0.0.40
codegen_flags: <defaults>
</compile_context>

<pallas_src>
import jax
import jax.numpy as jnp
from jax.experimental import pallas as pl
from jax.experimental.pallas import tpu as pltpu

# ----------------------------- model dimensions ------------------------------
BATCH = 8            # params['batch_size']
SEQ = 8              # question length
TXT_EMB = 128        # params['txt_emb_size']  (LSTM input = hidden size)
IMG_FEAT = 128       # params['img_feature_size']
VOCAB = 32           # vocab size (synthetic)
NUM_IMAGES = 16      # number of precomputed image embeddings (synthetic)
CLS_HIDDEN = 2500    # classifier hidden width (as in the module)
CLS_OUT = 1000       # classifier output width (as in the module)
CLS_HIDDEN_PAD = 2560  # 2500 padded up to a multiple of 128 (lane-dense)
CLS_OUT_PAD = 1024     # 1000 padded up to a multiple of 128 (lane-dense)
CAT_FEAT = IMG_FEAT + TXT_EMB
W2_CHUNKS = 4                      # chunked W2 DMA / matmul pipeline depth
W2_CHUNK = CLS_OUT_PAD // W2_CHUNKS  # 256 output columns per chunk


# ------------------------------ fused kernel ---------------------------------
def fused_vqa_kernel(img_ref, x_ref, wih_ref, whh_ref, bias_ref,
                     b1_ref, b2_ref, w1_hbm, w2_hbm,
                     o_ref,
                     xw_s, h1_s, w1_v, w2_v, dma_sem):
    """LSTM recurrence + MLP classifier, fully fused.

    img_ref:  (B, IMG_FEAT)        f32   image embedding rows (VMEM)
    x_ref:    (T, B, E)            f32   time-major token embeddings (VMEM)
    wih_ref:  (E, 4E)              bf16  input->gates weights, order i,f,g,o (VMEM)
    whh_ref:  (E, 4E)              bf16  hidden->gates weights (VMEM)
    bias_ref: (1, 4E)              f32   combined bias b_ih + b_hh (VMEM)
    b1_ref:   (1, H_pad)           f32   classifier hidden bias (zero-padded)
    b2_ref:   (1, OUT_pad)         f32   classifier output bias (zero-padded)
    w1_hbm:   (CAT, H_pad)         bf16  classifier W1 in HBM (pl.ANY)
    w2_hbm:   (NC, H_pad, CHUNK)   bf16  classifier W2, column-chunked, HBM (pl.ANY)
    o_ref:    (B, OUT_pad)         f32   padded logits
    scratch:  xw_s (T*B, 4E) f32 hoisted x@W_ih, h1_s (B, H_pad) f32 partial,
              w1_v / w2_v bf16 landing buffers, dma_sem (1+NC,) DMA semaphores
    """
    T, B, E = x_ref.shape
    F_IMG = img_ref.shape[1]
    n_chunks = w2_hbm.shape[0]
    chunk = w2_hbm.shape[2]

    # (1) Kick off all classifier weight DMAs immediately; W1 first (needed
    #     earliest), then the W2 column chunks.  They overlap the entire LSTM
    #     below, and the per-chunk W2 waits in step (4) overlap the remaining
    #     transfer with the MXU weight streaming of earlier chunks.
    cp_w1 = pltpu.make_async_copy(w1_hbm, w1_v, dma_sem.at[0])
    cp_w1.start()
    cp_w2 = []
    for c in range(n_chunks):
        cp = pltpu.make_async_copy(w2_hbm.at[c], w2_v.at[c], dma_sem.at[1 + c])
        cp.start()
        cp_w2.append(cp)

    # (2) Hoisted input projection for all timesteps at once:
    #     one (T*B, E) x (E, 4E) bf16 MXU matmul + a single bias broadcast.
    x_all = x_ref[...].reshape(T * B, E).astype(jnp.bfloat16)
    xw_s[...] = (
        jnp.dot(x_all, wih_ref[...], preferred_element_type=jnp.float32)
        + bias_ref[...]
    )

    img_bf = img_ref[...].astype(jnp.bfloat16)

    # (3) LSTM recurrence with zero initial state.  T is a static Python int,
    #     so the loop is fully unrolled; h/c stay in vregs across steps.  The
    #     critical path per step is one (B,E)x(E,4E) bf16 h@W_hh matmul plus
    #     f32 gate math (EUP transcendentals).
    h = jnp.zeros((B, E), jnp.float32)
    c_state = jnp.zeros((B, E), jnp.float32)
    w1_wait_step = max(T - 3, 0)
    for t in range(T):
        gates = xw_s[t * B:(t + 1) * B, :] + jnp.dot(
            h.astype(jnp.bfloat16), whh_ref[...],
            preferred_element_type=jnp.float32,
        )                                              # (B, 4E) f32
        i_g = jax.nn.sigmoid(gates[:, 0 * E:1 * E])
        f_g = jax.nn.sigmoid(gates[:, 1 * E:2 * E])
        g_g = jnp.tanh(gates[:, 2 * E:3 * E])
        o_g = jax.nn.sigmoid(gates[:, 3 * E:4 * E])
        c_state = f_g * c_state + i_g * g_g
        h = o_g * jnp.tanh(c_state)

        if t == w1_wait_step:
            # W1 has had most of the recurrence to land.  Its image-side
            # partial product does not depend on the LSTM, so compute it here
            # and let its MXU weight streaming overlap the remaining steps.
            cp_w1.wait()
            h1_s[...] = (
                jnp.dot(img_bf, w1_v[0:F_IMG, :],
                        preferred_element_type=jnp.float32)
                + b1_ref[...]
            )

    # (4) Classifier tail: add the text-side W1 partial, ReLU, then the W2
    #     matmul chunk-by-chunk (wait -> dot -> lane-aligned 256-col store).
    h_bf = h.astype(jnp.bfloat16)
    h1 = h1_s[...] + jnp.dot(h_bf, w1_v[F_IMG:, :],
                             preferred_element_type=jnp.float32)
    h1_bf = jnp.maximum(h1, 0.0).astype(jnp.bfloat16)

    for cidx in range(n_chunks):
        cp_w2[cidx].wait()
        o_ref[:, cidx * chunk:(cidx + 1) * chunk] = (
            jnp.dot(h1_bf, w2_v[cidx], preferred_element_type=jnp.float32)
            + b2_ref[:, cidx * chunk:(cidx + 1) * chunk]
        )


def run_fused(img_emb, x_tbe, w_ih_t, w_hh_t, lstm_bias, b1, b2, w1, w2_chunks):
    T, B, E = x_tbe.shape
    vmem = pl.BlockSpec(memory_space=pltpu.MemorySpace.VMEM)
    hbm = pl.BlockSpec(memory_space=pl.ANY)
    return pl.pallas_call(
        fused_vqa_kernel,
        out_shape=jax.ShapeDtypeStruct((B, CLS_OUT_PAD), jnp.float32),
        in_specs=[vmem, vmem, vmem, vmem, vmem, vmem, vmem, hbm, hbm],
        out_specs=vmem,
        scratch_shapes=[
            pltpu.VMEM((T * B, 4 * E), jnp.float32),                   # hoisted x@W_ih
            pltpu.VMEM((B, CLS_HIDDEN_PAD), jnp.float32),              # img-side W1 partial
            pltpu.VMEM((CAT_FEAT, CLS_HIDDEN_PAD), jnp.bfloat16),      # W1 landing buf
            pltpu.VMEM((W2_CHUNKS, CLS_HIDDEN_PAD, W2_CHUNK), jnp.bfloat16),  # W2 chunks
            pltpu.SemaphoreType.DMA((1 + W2_CHUNKS,)),                 # W1 + per-chunk sems
        ],
    )(img_emb, x_tbe, w_ih_t, w_hh_t, lstm_bias, b1, b2, w1, w2_chunks)


# ------------------------------ full forward ---------------------------------
@jax.jit
def model_forward(params, img_ids, quest_ids):
    # Embedding lookups (frozen tables) — plain JAX gather glue.
    img_embedding = jnp.take(params["img_table"], img_ids, axis=0)          # (B, IMG_FEAT)
    token_embeddings = jnp.take(params["vocab_table"], quest_ids, axis=0)   # (B, T, E)

    # Time-major for the in-kernel recurrence.
    x_tbe = jnp.transpose(token_embeddings, (1, 0, 2))                      # (T, B, E)

    answer_padded = run_fused(
        img_embedding, x_tbe,
        params["w_ih_t"], params["w_hh_t"], params["lstm_bias"],
        params["b1"], params["b2"], params["w1"], params["w2"],
    )                                                                       # (B, 1024)
    return answer_padded[:, :CLS_OUT]                                       # (B, 1000)


# ----------------------------- pure-JAX reference ----------------------------
def reference_forward(params, img_ids, quest_ids):
    hi = jax.lax.Precision.HIGHEST
    img = jnp.take(params["img_table"], img_ids, axis=0)
    tok = jnp.take(params["vocab_table"], quest_ids, axis=0)                # (B, T, E)
    w_ih = params["w_ih_t"].astype(jnp.float32)
    w_hh = params["w_hh_t"].astype(jnp.float32)
    bias = params["lstm_bias"][0]
    B, T, E = tok.shape
    h = jnp.zeros((B, E), jnp.float32)
    c = jnp.zeros((B, E), jnp.float32)
    for t in range(T):
        g = tok[:, t, :] @ w_ih + h @ w_hh + bias
        i_g = jax.nn.sigmoid(g[:, 0 * E:1 * E])
        f_g = jax.nn.sigmoid(g[:, 1 * E:2 * E])
        g_g = jnp.tanh(g[:, 2 * E:3 * E])
        o_g = jax.nn.sigmoid(g[:, 3 * E:4 * E])
        c = f_g * c + i_g * g_g
        h = o_g * jnp.tanh(c)
    x = jnp.concatenate([img, h], axis=1)                                   # (B, CAT)
    w1 = params["w1"].astype(jnp.float32)                                   # (CAT, H_pad)
    w2 = jnp.transpose(params["w2"], (1, 0, 2)).reshape(
        CLS_HIDDEN_PAD, CLS_OUT_PAD).astype(jnp.float32)                    # (H_pad, OUT_pad)
    h1 = jnp.maximum(jnp.dot(x, w1, precision=hi) + params["b1"], 0.0)
    out = jnp.dot(h1, w2, precision=hi) + params["b2"]
    return out[:, :CLS_OUT]


# ---------------------------- parameter creation -----------------------------
def make_params(key):
    ks = jax.random.split(key, 10)
    scale = 0.05

    # Classifier at the true module sizes, then zero-padded to lane-aligned
    # widths; padded W1 cols / b1 entries are zero, so padded hidden units are
    # exactly 0 after ReLU and the padded output columns get sliced away.
    w1 = jax.random.normal(ks[5], (CAT_FEAT, CLS_HIDDEN), jnp.float32) * scale
    b1 = jax.random.normal(ks[6], (1, CLS_HIDDEN), jnp.float32) * scale
    w2 = jax.random.normal(ks[7], (CLS_HIDDEN, CLS_OUT), jnp.float32) * scale
    b2 = jax.random.normal(ks[8], (1, CLS_OUT), jnp.float32) * scale

    w1_pad = jnp.zeros((CAT_FEAT, CLS_HIDDEN_PAD), jnp.float32).at[:, :CLS_HIDDEN].set(w1)
    b1_pad = jnp.zeros((1, CLS_HIDDEN_PAD), jnp.float32).at[:, :CLS_HIDDEN].set(b1)
    w2_pad = jnp.zeros((CLS_HIDDEN_PAD, CLS_OUT_PAD), jnp.float32).at[:CLS_HIDDEN, :CLS_OUT].set(w2)
    b2_pad = jnp.zeros((1, CLS_OUT_PAD), jnp.float32).at[:, :CLS_OUT].set(b2)

    # W2 stored column-chunked and contiguous per chunk so each chunk DMA is a
    # single contiguous 1.31 MB HBM read: (H_pad, OUT_pad) -> (NC, H_pad, CHUNK).
    w2_chunked = jnp.transpose(
        w2_pad.reshape(CLS_HIDDEN_PAD, W2_CHUNKS, W2_CHUNK), (1, 0, 2))

    params = {
        # frozen "pretrained" embedding tables
        "img_table": jax.random.normal(ks[0], (NUM_IMAGES, IMG_FEAT), jnp.float32) * scale,
        "vocab_table": jax.random.normal(ks[1], (VOCAB, TXT_EMB), jnp.float32) * scale,
        # LSTM weights, PyTorch gate order (i, f, g, o), stored transposed as
        # (E, 4E) in bf16 so the MXU streams single-pass bf16 weights.
        "w_ih_t": (jax.random.normal(ks[2], (TXT_EMB, 4 * TXT_EMB), jnp.float32)
                   * scale).astype(jnp.bfloat16),
        "w_hh_t": (jax.random.normal(ks[3], (TXT_EMB, 4 * TXT_EMB), jnp.float32)
                   * scale).astype(jnp.bfloat16),
        # combined bias b_ih + b_hh, kept 2D and f32 (added post-accumulation)
        "lstm_bias": jax.random.normal(ks[4], (1, 4 * TXT_EMB), jnp.float32) * scale,
        # classifier: weights stored bf16 in HBM (halves the dominant DMA),
        # biases stay f32 (tiny, added post-accumulation).
        "w1": w1_pad.astype(jnp.bfloat16),
        "b1": b1_pad,
        "w2": w2_chunked.astype(jnp.bfloat16),
        "b2": b2_pad,
    }
    return params


if __name__ == "__main__":
    key = jax.random.PRNGKey(0)
    k_params, k_img, k_quest = jax.random.split(key, 3)
    params = make_params(k_params)

    img_ids = jax.random.randint(k_img, (BATCH,), 0, NUM_IMAGES, dtype=jnp.int32)
    quest_ids = jax.random.randint(k_quest, (BATCH, SEQ), 0, VOCAB, dtype=jnp.int32)

    answer = model_forward(params, img_ids, quest_ids)
    jax.block_until_ready(answer)

    assert answer.shape == (BATCH, CLS_OUT), answer.shape
    assert answer.dtype == jnp.float32
    assert bool(jnp.all(jnp.isfinite(answer)))

    # Numerical check vs. a pure-JAX f32 reference using the same (bf16-stored)
    # weights; the only divergence is the bf16 activation casts on the MXU path.
    ref = reference_forward(params, img_ids, quest_ids)
    assert bool(jnp.allclose(answer, ref, atol=5e-2, rtol=5e-2)), (
        float(jnp.max(jnp.abs(answer - ref))))

    print("KERNEL_OK")
</pallas_src>

<mosaic_0001>
module attributes {stable_mosaic.version = 11 : i64} {
  func.func @fused_vqa_kernel(%arg0: memref<8x128xf32, #tpu.memory_space<vmem>>, %arg1: memref<8x8x128xf32, #tpu.memory_space<vmem>>, %arg2: memref<128x512xbf16, #tpu.memory_space<vmem>>, %arg3: memref<128x512xbf16, #tpu.memory_space<vmem>>, %arg4: memref<1x512xf32, #tpu.memory_space<vmem>>, %arg5: memref<1x2560xf32, #tpu.memory_space<vmem>>, %arg6: memref<1x1024xf32, #tpu.memory_space<vmem>>, %arg7: memref<256x2560xbf16, #tpu.memory_space<any>>, %arg8: memref<4x2560x256xbf16, #tpu.memory_space<any>>, %arg9: memref<8x1024xf32, #tpu.memory_space<vmem>>, %arg10: memref<64x512xf32, #tpu.memory_space<vmem>>, %arg11: memref<8x2560xf32, #tpu.memory_space<vmem>>, %arg12: memref<256x2560xbf16, #tpu.memory_space<vmem>>, %arg13: memref<4x2560x256xbf16, #tpu.memory_space<vmem>>, %arg14: memref<5x!tpu.dma_semaphore, #tpu.memory_space<semaphore_mem>>) attributes {dimension_semantics = [], scalar_prefetch = 0 : i64, scratch_operands = 5 : i64, tpu.core_type = #tpu.core_type<tc>} {
    %c0_i32 = arith.constant 0 : i32
    %0 = tpu.memref_slice %arg14[%c0_i32] : memref<5x!tpu.dma_semaphore, #tpu.memory_space<semaphore_mem>> -> memref<1x!tpu.dma_semaphore, #tpu.memory_space<semaphore_mem>>
    %1 = tpu.memref_squeeze %0 : memref<1x!tpu.dma_semaphore, #tpu.memory_space<semaphore_mem>> -> memref<!tpu.dma_semaphore, #tpu.memory_space<semaphore_mem>>
    tpu.enqueue_dma source(%arg7 : memref<256x2560xbf16, #tpu.memory_space<any>>) target(%arg12 : memref<256x2560xbf16, #tpu.memory_space<vmem>>) target_semaphore(%1 : memref<!tpu.dma_semaphore, #tpu.memory_space<semaphore_mem>>)
    %c0_i32_0 = arith.constant 0 : i32
    %c0_i32_1 = arith.constant 0 : i32
    %c1_i32 = arith.constant 1 : i32
    %c0_i32_2 = arith.constant 0 : i32
    %c0_i32_3 = arith.constant 0 : i32
    %2 = tpu.memref_slice %arg8[%c0_i32_0, %c0_i32_2, %c0_i32_3] : memref<4x2560x256xbf16, #tpu.memory_space<any>> -> memref<1x2560x256xbf16, #tpu.memory_space<any>>
    %3 = tpu.memref_squeeze %2 : memref<1x2560x256xbf16, #tpu.memory_space<any>> -> memref<2560x256xbf16, #tpu.memory_space<any>>
    %c0_i32_4 = arith.constant 0 : i32
    %c0_i32_5 = arith.constant 0 : i32
    %4 = tpu.memref_slice %arg13[%c0_i32_1, %c0_i32_4, %c0_i32_5] : memref<4x2560x256xbf16, #tpu.memory_space<vmem>> -> memref<1x2560x256xbf16, #tpu.memory_space<vmem>>
    %5 = tpu.memref_squeeze %4 : memref<1x2560x256xbf16, #tpu.memory_space<vmem>> -> memref<2560x256xbf16, #tpu.memory_space<vmem>>
    %6 = tpu.memref_slice %arg14[%c1_i32] : memref<5x!tpu.dma_semaphore, #tpu.memory_space<semaphore_mem>> -> memref<1x!tpu.dma_semaphore, #tpu.memory_space<semaphore_mem>>
    %7 = tpu.memref_squeeze %6 : memref<1x!tpu.dma_semaphore, #tpu.memory_space<semaphore_mem>> -> memref<!tpu.dma_semaphore, #tpu.memory_space<semaphore_mem>>
    tpu.enqueue_dma source(%3 : memref<2560x256xbf16, #tpu.memory_space<any>>) target(%5 : memref<2560x256xbf16, #tpu.memory_space<vmem>>) target_semaphore(%7 : memref<!tpu.dma_semaphore, #tpu.memory_space<semaphore_mem>>)
    %c1_i32_6 = arith.constant 1 : i32
    %c1_i32_7 = arith.constant 1 : i32
    %c2_i32 = arith.constant 2 : i32
    %c0_i32_8 = arith.constant 0 : i32
    %c0_i32_9 = arith.constant 0 : i32
    %8 = tpu.memref_slice %arg8[%c1_i32_6, %c0_i32_8, %c0_i32_9] : memref<4x2560x256xbf16, #tpu.memory_space<any>> -> memref<1x2560x256xbf16, #tpu.memory_space<any>>
    %9 = tpu.memref_squeeze %8 : memref<1x2560x256xbf16, #tpu.memory_space<any>> -> memref<2560x256xbf16, #tpu.memory_space<any>>
    %c0_i32_10 = arith.constant 0 : i32
    %c0_i32_11 = arith.constant 0 : i32
    %10 = tpu.memref_slice %arg13[%c1_i32_7, %c0_i32_10, %c0_i32_11] : memref<4x2560x256xbf16, #tpu.memory_space<vmem>> -> memref<1x2560x256xbf16, #tpu.memory_space<vmem>>
    %11 = tpu.memref_squeeze %10 : memref<1x2560x256xbf16, #tpu.memory_space<vmem>> -> memref<2560x256xbf16, #tpu.memory_space<vmem>>
    %12 = tpu.memref_slice %arg14[%c2_i32] : memref<5x!tpu.dma_semaphore, #tpu.memory_space<semaphore_mem>> -> memref<1x!tpu.dma_semaphore, #tpu.memory_space<semaphore_mem>>
    %13 = tpu.memref_squeeze %12 : memref<1x!tpu.dma_semaphore, #tpu.memory_space<semaphore_mem>> -> memref<!tpu.dma_semaphore, #tpu.memory_space<semaphore_mem>>
    tpu.enqueue_dma source(%9 : memref<2560x256xbf16, #tpu.memory_space<any>>) target(%11 : memref<2560x256xbf16, #tpu.memory_space<vmem>>) target_semaphore(%13 : memref<!tpu.dma_semaphore, #tpu.memory_space<semaphore_mem>>)
    %c2_i32_12 = arith.constant 2 : i32
    %c2_i32_13 = arith.constant 2 : i32
    %c3_i32 = arith.constant 3 : i32
    %c0_i32_14 = arith.constant 0 : i32
    %c0_i32_15 = arith.constant 0 : i32
    %14 = tpu.memref_slice %arg8[%c2_i32_12, %c0_i32_14, %c0_i32_15] : memref<4x2560x256xbf16, #tpu.memory_space<any>> -> memref<1x2560x256xbf16, #tpu.memory_space<any>>
    %15 = tpu.memref_squeeze %14 : memref<1x2560x256xbf16, #tpu.memory_space<any>> -> memref<2560x256xbf16, #tpu.memory_space<any>>
    %c0_i32_16 = arith.constant 0 : i32
    %c0_i32_17 = arith.constant 0 : i32
    %16 = tpu.memref_slice %arg13[%c2_i32_13, %c0_i32_16, %c0_i32_17] : memref<4x2560x256xbf16, #tpu.memory_space<vmem>> -> memref<1x2560x256xbf16, #tpu.memory_space<vmem>>
    %17 = tpu.memref_squeeze %16 : memref<1x2560x256xbf16, #tpu.memory_space<vmem>> -> memref<2560x256xbf16, #tpu.memory_space<vmem>>
    %18 = tpu.memref_slice %arg14[%c3_i32] : memref<5x!tpu.dma_semaphore, #tpu.memory_space<semaphore_mem>> -> memref<1x!tpu.dma_semaphore, #tpu.memory_space<semaphore_mem>>
    %19 = tpu.memref_squeeze %18 : memref<1x!tpu.dma_semaphore, #tpu.memory_space<semaphore_mem>> -> memref<!tpu.dma_semaphore, #tpu.memory_space<semaphore_mem>>
    tpu.enqueue_dma source(%15 : memref<2560x256xbf16, #tpu.memory_space<any>>) target(%17 : memref<2560x256xbf16, #tpu.memory_space<vmem>>) target_semaphore(%19 : memref<!tpu.dma_semaphore, #tpu.memory_space<semaphore_mem>>)
    %c3_i32_18 = arith.constant 3 : i32
    %c3_i32_19 = arith.constant 3 : i32
    %c4_i32 = arith.constant 4 : i32
    %c0_i32_20 = arith.constant 0 : i32
    %c0_i32_21 = arith.constant 0 : i32
    %20 = tpu.memref_slice %arg8[%c3_i32_18, %c0_i32_20, %c0_i32_21] : memref<4x2560x256xbf16, #tpu.memory_space<any>> -> memref<1x2560x256xbf16, #tpu.memory_space<any>>
    %21 = tpu.memref_squeeze %20 : memref<1x2560x256xbf16, #tpu.memory_space<any>> -> memref<2560x256xbf16, #tpu.memory_space<any>>
    %c0_i32_22 = arith.constant 0 : i32
    %c0_i32_23 = arith.constant 0 : i32
    %22 = tpu.memref_slice %arg13[%c3_i32_19, %c0_i32_22, %c0_i32_23] : memref<4x2560x256xbf16, #tpu.memory_space<vmem>> -> memref<1x2560x256xbf16, #tpu.memory_space<vmem>>
    %23 = tpu.memref_squeeze %22 : memref<1x2560x256xbf16, #tpu.memory_space<vmem>> -> memref<2560x256xbf16, #tpu.memory_space<vmem>>
    %24 = tpu.memref_slice %arg14[%c4_i32] : memref<5x!tpu.dma_semaphore, #tpu.memory_space<semaphore_mem>> -> memref<1x!tpu.dma_semaphore, #tpu.memory_space<semaphore_mem>>
    %25 = tpu.memref_squeeze %24 : memref<1x!tpu.dma_semaphore, #tpu.memory_space<semaphore_mem>> -> memref<!tpu.dma_semaphore, #tpu.memory_space<semaphore_mem>>
    tpu.enqueue_dma source(%21 : memref<2560x256xbf16, #tpu.memory_space<any>>) target(%23 : memref<2560x256xbf16, #tpu.memory_space<vmem>>) target_semaphore(%25 : memref<!tpu.dma_semaphore, #tpu.memory_space<semaphore_mem>>)
    %c0 = arith.constant 0 : index
    %c0_24 = arith.constant 0 : index
    %c0_25 = arith.constant 0 : index
    %26 = vector.load %arg1[%c0, %c0_24, %c0_25] : memref<8x8x128xf32, #tpu.memory_space<vmem>>, vector<8x8x128xf32>
    %27 = vector.shape_cast %26 : vector<8x8x128xf32> to vector<64x128xf32>
    %28 = arith.truncf %27 : vector<64x128xf32> to vector<64x128xbf16>
    %c0_26 = arith.constant 0 : index
    %c0_27 = arith.constant 0 : index
    %29 = vector.load %arg2[%c0_26, %c0_27] : memref<128x512xbf16, #tpu.memory_space<vmem>>, vector<128x512xbf16>
    %cst = arith.constant dense<0.000000e+00> : vector<64x512xf32>
    %30 = tpu.matmul %28, %29, %cst {dimension_numbers = #tpu.dot_dimension_numbers<[1], [0], [0], [1], [0, 0, 1, 1], [], []>} : vector<64x128xbf16>, vector<128x512xbf16>, vector<64x512xf32> -> vector<64x512xf32>
    %c0_28 = arith.constant 0 : index
    %c0_29 = arith.constant 0 : index
    %31 = vector.load %arg4[%c0_28, %c0_29] : memref<1x512xf32, #tpu.memory_space<vmem>>, vector<1x512xf32>
    %32 = vector.broadcast %31 : vector<1x512xf32> to vector<64x512xf32>
    %33 = arith.addf %30, %32 : vector<64x512xf32>
    %c0_30 = arith.constant 0 : index
    %c0_31 = arith.constant 0 : index
    %34 = vector.load %arg10[%c0_30, %c0_31] : memref<64x512xf32, #tpu.memory_space<vmem>>, vector<64x512xf32>
    tpu.vector_store %arg10[%c0_30, %c0_31], %33 {strides = array<i32>} : memref<64x512xf32, #tpu.memory_space<vmem>>, vector<64x512xf32>,
    %c0_32 = arith.constant 0 : index
    %c0_33 = arith.constant 0 : index
    %35 = vector.load %arg0[%c0_32, %c0_33] : memref<8x128xf32, #tpu.memory_space<vmem>>, vector<8x128xf32>
    %36 = arith.truncf %35 : vector<8x128xf32> to vector<8x128xbf16>
    %cst_34 = arith.constant 0.000000e+00 : f32
    %37 = vector.broadcast %cst_34 : f32 to vector<8x128xf32>
    %cst_35 = arith.constant 0.000000e+00 : f32
    %38 = vector.broadcast %cst_35 : f32 to vector<8x128xf32>
    %c0_36 = arith.constant 0 : index
    %c0_37 = arith.constant 0 : index
    %39 = vector.load %arg10[%c0_36, %c0_37] : memref<64x512xf32, #tpu.memory_space<vmem>>, vector<8x512xf32>
    %40 = arith.truncf %37 : vector<8x128xf32> to vector<8x128xbf16>
    %c0_38 = arith.constant 0 : index
    %c0_39 = arith.constant 0 : index
    %41 = vector.load %arg3[%c0_38, %c0_39] : memref<128x512xbf16, #tpu.memory_space<vmem>>, vector<128x512xbf16>
    %cst_40 = arith.constant dense<0.000000e+00> : vector<8x512xf32>
    %42 = tpu.matmul %40, %41, %cst_40 {dimension_numbers = #tpu.dot_dimension_numbers<[1], [0], [0], [1], [0, 0, 1, 1], [], []>} : vector<8x128xbf16>, vector<128x512xbf16>, vector<8x512xf32> -> vector<8x512xf32>
    %43 = arith.addf %39, %42 : vector<8x512xf32>
    %44 = vector.extract_strided_slice %43 {offsets = [0, 0], sizes = [8, 128], strides = [1, 1]} : vector<8x512xf32> to vector<8x128xf32>
    %45 = arith.negf %44 : vector<8x128xf32>
    %46 = math.exp %45 : vector<8x128xf32>
    %cst_41 = arith.constant 1.000000e+00 : f32
    %47 = vector.broadcast %cst_41 : f32 to vector<8x128xf32>
    %48 = arith.addf %47, %46 : vector<8x128xf32>
    %49 = arith.divf %47, %48 : vector<8x128xf32>
    %50 = vector.extract_strided_slice %43 {offsets = [0, 128], sizes = [8, 128], strides = [1, 1]} : vector<8x512xf32> to vector<8x128xf32>
    %51 = arith.negf %50 : vector<8x128xf32>
    %52 = math.exp %51 : vector<8x128xf32>
    %cst_42 = arith.constant 1.000000e+00 : f32
    %53 = vector.broadcast %cst_42 : f32 to vector<8x128xf32>
    %54 = arith.addf %53, %52 : vector<8x128xf32>
    %55 = arith.divf %53, %54 : vector<8x128xf32>
    %56 = vector.extract_strided_slice %43 {offsets = [0, 256], sizes = [8, 128], strides = [1, 1]} : vector<8x512xf32> to vector<8x128xf32>
    %57 = math.tanh %56 : vector<8x128xf32>
    %58 = vector.extract_strided_slice %43 {offsets = [0, 384], sizes = [8, 128], strides = [1, 1]} : vector<8x512xf32> to vector<8x128xf32>
    %59 = arith.negf %58 : vector<8x128xf32>
    %60 = math.exp %59 : vector<8x128xf32>
    %cst_43 = arith.constant 1.000000e+00 : f32
    %61 = vector.broadcast %cst_43 : f32 to vector<8x128xf32>
    %62 = arith.addf %61, %60 : vector<8x128xf32>
    %63 = arith.divf %61, %62 : vector<8x128xf32>
    %64 = arith.mulf %55, %38 : vector<8x128xf32>
    %65 = arith.mulf %49, %57 : vector<8x128xf32>
    %66 = arith.addf %64, %65 : vector<8x128xf32>
    %67 = math.tanh %66 : vector<8x128xf32>
    %68 = arith.mulf %63, %67 : vector<8x128xf32>
    %c8 = arith.constant 8 : index
    %c0_44 = arith.constant 0 : index
    %69 = vector.load %arg10[%c8, %c0_44] : memref<64x512xf32, #tpu.memory_space<vmem>>, vector<8x512xf32>
    %70 = arith.truncf %68 : vector<8x128xf32> to vector<8x128xbf16>
    %c0_45 = arith.constant 0 : index
    %c0_46 = arith.constant 0 : index
    %71 = vector.load %arg3[%c0_45, %c0_46] : memref<128x512xbf16, #tpu.memory_space<vmem>>, vector<128x512xbf16>
    %cst_47 = arith.constant dense<0.000000e+00> : vector<8x512xf32>
    %72 = tpu.matmul %70, %71, %cst_47 {dimension_numbers = #tpu.dot_dimension_numbers<[1], [0], [0], [1], [0, 0, 1, 1], [], []>} : vector<8x128xbf16>, vector<128x512xbf16>, vector<8x512xf32> -> vector<8x512xf32>
    %73 = arith.addf %69, %72 : vector<8x512xf32>
    %74 = vector.extract_strided_slice %73 {offsets = [0, 0], sizes = [8, 128], strides = [1, 1]} : vector<8x512xf32> to vector<8x128xf32>
    %75 = arith.negf %74 : vector<8x128xf32>
    %76 = math.exp %75 : vector<8x128xf32>
    %cst_48 = arith.constant 1.000000e+00 : f32
    %77 = vector.broadcast %cst_48 : f32 to vector<8x128xf32>
    %78 = arith.addf %77, %76 : vector<8x128xf32>
    %79 = arith.divf %77, %78 : vector<8x128xf32>
    %80 = vector.extract_strided_slice %73 {offsets = [0, 128], sizes = [8, 128], strides = [1, 1]} : vector<8x512xf32> to vector<8x128xf32>
    %81 = arith.negf %80 : vector<8x128xf32>
    %82 = math.exp %81 : vector<8x128xf32>
    %cst_49 = arith.constant 1.000000e+00 : f32
    %83 = vector.broadcast %cst_49 : f32 to vector<8x128xf32>
    %84 = arith.addf %83, %82 : vector<8x128xf32>
    %85 = arith.divf %83, %84 : vector<8x128xf32>
    %86 = vector.extract_strided_slice %73 {offsets = [0, 256], sizes = [8, 128], strides = [1, 1]} : vector<8x512xf32> to vector<8x128xf32>
    %87 = math.tanh %86 : vector<8x128xf32>
    %88 = vector.extract_strided_slice %73 {offsets = [0, 384], sizes = [8, 128], strides = [1, 1]} : vector<8x512xf32> to vector<8x128xf32>
    %89 = arith.negf %88 : vector<8x128xf32>
    %90 = math.exp %89 : vector<8x128xf32>
    %cst_50 = arith.constant 1.000000e+00 : f32
    %91 = vector.broadcast %cst_50 : f32 to vector<8x128xf32>
    %92 = arith.addf %91, %90 : vector<8x128xf32>
    %93 = arith.divf %91, %92 : vector<8x128xf32>
    %94 = arith.mulf %85, %66 : vector<8x128xf32>
    %95 = arith.mulf %79, %87 : vector<8x128xf32>
    %96 = arith.addf %94, %95 : vector<8x128xf32>
    %97 = math.tanh %96 : vector<8x128xf32>
    %98 = arith.mulf %93, %97 : vector<8x128xf32>
    %c16 = arith.constant 16 : index
    %c0_51 = arith.constant 0 : index
    %99 = vector.load %arg10[%c16, %c0_51] : memref<64x512xf32, #tpu.memory_space<vmem>>, vector<8x512xf32>
    %100 = arith.truncf %98 : vector<8x128xf32> to vector<8x128xbf16>
    %c0_52 = arith.constant 0 : index
    %c0_53 = arith.constant 0 : index
    %101 = vector.load %arg3[%c0_52, %c0_53] : memref<128x512xbf16, #tpu.memory_space<vmem>>, vector<128x512xbf16>
    %cst_54 = arith.constant dense<0.000000e+00> : vector<8x512xf32>
    %102 = tpu.matmul %100, %101, %cst_54 {dimension_numbers = #tpu.dot_dimension_numbers<[1], [0], [0], [1], [0, 0, 1, 1], [], []>} : vector<8x128xbf16>, vector<128x512xbf16>, vector<8x512xf32> -> vector<8x512xf32>
    %103 = arith.addf %99, %102 : vector<8x512xf32>
    %104 = vector.extract_strided_slice %103 {offsets = [0, 0], sizes = [8, 128], strides = [1, 1]} : vector<8x512xf32> to vector<8x128xf32>
    %105 = arith.negf %104 : vector<8x128xf32>
    %106 = math.exp %105 : vector<8x128xf32>
    %cst_55 = arith.constant 1.000000e+00 : f32
    %107 = vector.broadcast %cst_55 : f32 to vector<8x128xf32>
    %108 = arith.addf %107, %106 : vector<8x128xf32>
    %109 = arith.divf %107, %108 : vector<8x128xf32>
    %110 = vector.extract_strided_slice %103 {offsets = [0, 128], sizes = [8, 128], strides = [1, 1]} : vector<8x512xf32> to vector<8x128xf32>
    %111 = arith.negf %110 : vector<8x128xf32>
    %112 = math.exp %111 : vector<8x128xf32>
    %cst_56 = arith.constant 1.000000e+00 : f32
    %113 = vector.broadcast %cst_56 : f32 to vector<8x128xf32>
    %114 = arith.addf %113, %112 : vector<8x128xf32>
    %115 = arith.divf %113, %114 : vector<8x128xf32>
    %116 = vector.extract_strided_slice %103 {offsets = [0, 256], sizes = [8, 128], strides = [1, 1]} : vector<8x512xf32> to vector<8x128xf32>
    %117 = math.tanh %116 : vector<8x128xf32>
    %118 = vector.extract_strided_slice %103 {offsets = [0, 384], sizes = [8, 128], strides = [1, 1]} : vector<8x512xf32> to vector<8x128xf32>
    %119 = arith.negf %118 : vector<8x128xf32>
    %120 = math.exp %119 : vector<8x128xf32>
    %cst_57 = arith.constant 1.000000e+00 : f32
    %121 = vector.broadcast %cst_57 : f32 to vector<8x128xf32>
    %122 = arith.addf %121, %120 : vector<8x128xf32>
    %123 = arith.divf %121, %122 : vector<8x128xf32>
    %124 = arith.mulf %115, %96 : vector<8x128xf32>
    %125 = arith.mulf %109, %117 : vector<8x128xf32>
    %126 = arith.addf %124, %125 : vector<8x128xf32>
    %127 = math.tanh %126 : vector<8x128xf32>
    %128 = arith.mulf %123, %127 : vector<8x128xf32>
    %c24 = arith.constant 24 : index
    %c0_58 = arith.constant 0 : index
    %129 = vector.load %arg10[%c24, %c0_58] : memref<64x512xf32, #tpu.memory_space<vmem>>, vector<8x512xf32>
    %130 = arith.truncf %128 : vector<8x128xf32> to vector<8x128xbf16>
    %c0_59 = arith.constant 0 : index
    %c0_60 = arith.constant 0 : index
    %131 = vector.load %arg3[%c0_59, %c0_60] : memref<128x512xbf16, #tpu.memory_space<vmem>>, vector<128x512xbf16>
    %cst_61 = arith.constant dense<0.000000e+00> : vector<8x512xf32>
    %132 = tpu.matmul %130, %131, %cst_61 {dimension_numbers = #tpu.dot_dimension_numbers<[1], [0], [0], [1], [0, 0, 1, 1], [], []>} : vector<8x128xbf16>, vector<128x512xbf16>, vector<8x512xf32> -> vector<8x512xf32>
    %133 = arith.addf %129, %132 : vector<8x512xf32>
    %134 = vector.extract_strided_slice %133 {offsets = [0, 0], sizes = [8, 128], strides = [1, 1]} : vector<8x512xf32> to vector<8x128xf32>
    %135 = arith.negf %134 : vector<8x128xf32>
    %136 = math.exp %135 : vector<8x128xf32>
    %cst_62 = arith.constant 1.000000e+00 : f32
    %137 = vector.broadcast %cst_62 : f32 to vector<8x128xf32>
    %138 = arith.addf %137, %136 : vector<8x128xf32>
    %139 = arith.divf %137, %138 : vector<8x128xf32>
    %140 = vector.extract_strided_slice %133 {offsets = [0, 128], sizes = [8, 128], strides = [1, 1]} : vector<8x512xf32> to vector<8x128xf32>
    %141 = arith.negf %140 : vector<8x128xf32>
    %142 = math.exp %141 : vector<8x128xf32>
    %cst_63 = arith.constant 1.000000e+00 : f32
    %143 = vector.broadcast %cst_63 : f32 to vector<8x128xf32>
    %144 = arith.addf %143, %142 : vector<8x128xf32>
    %145 = arith.divf %143, %144 : vector<8x128xf32>
    %146 = vector.extract_strided_slice %133 {offsets = [0, 256], sizes = [8, 128], strides = [1, 1]} : vector<8x512xf32> to vector<8x128xf32>
    %147 = math.tanh %146 : vector<8x128xf32>
    %148 = vector.extract_strided_slice %133 {offsets = [0, 384], sizes = [8, 128], strides = [1, 1]} : vector<8x512xf32> to vector<8x128xf32>
    %149 = arith.negf %148 : vector<8x128xf32>
    %150 = math.exp %149 : vector<8x128xf32>
    %cst_64 = arith.constant 1.000000e+00 : f32
    %151 = vector.broadcast %cst_64 : f32 to vector<8x128xf32>
    %152 = arith.addf %151, %150 : vector<8x128xf32>
    %153 = arith.divf %151, %152 : vector<8x128xf32>
    %154 = arith.mulf %145, %126 : vector<8x128xf32>
    %155 = arith.mulf %139, %147 : vector<8x128xf32>
    %156 = arith.addf %154, %155 : vector<8x128xf32>
    %157 = math.tanh %156 : vector<8x128xf32>
    %158 = arith.mulf %153, %157 : vector<8x128xf32>
    %c32 = arith.constant 32 : index
    %c0_65 = arith.constant 0 : index
    %159 = vector.load %arg10[%c32, %c0_65] : memref<64x512xf32, #tpu.memory_space<vmem>>, vector<8x512xf32>
    %160 = arith.truncf %158 : vector<8x128xf32> to vector<8x128xbf16>
    %c0_66 = arith.constant 0 : index
    %c0_67 = arith.constant 0 : index
    %161 = vector.load %arg3[%c0_66, %c0_67] : memref<128x512xbf16, #tpu.memory_space<vmem>>, vector<128x512xbf16>
    %cst_68 = arith.constant dense<0.000000e+00> : vector<8x512xf32>
    %162 = tpu.matmul %160, %161, %cst_68 {dimension_numbers = #tpu.dot_dimension_numbers<[1], [0], [0], [1], [0, 0, 1, 1], [], []>} : vector<8x128xbf16>, vector<128x512xbf16>, vector<8x512xf32> -> vector<8x512xf32>
    %163 = arith.addf %159, %162 : vector<8x512xf32>
    %164 = vector.extract_strided_slice %163 {offsets = [0, 0], sizes = [8, 128], strides = [1, 1]} : vector<8x512xf32> to vector<8x128xf32>
    %165 = arith.negf %164 : vector<8x128xf32>
    %166 = math.exp %165 : vector<8x128xf32>
    %cst_69 = arith.constant 1.000000e+00 : f32
    %167 = vector.broadcast %cst_69 : f32 to vector<8x128xf32>
    %168 = arith.addf %167, %166 : vector<8x128xf32>
    %169 = arith.divf %167, %168 : vector<8x128xf32>
    %170 = vector.extract_strided_slice %163 {offsets = [0, 128], sizes = [8, 128], strides = [1, 1]} : vector<8x512xf32> to vector<8x128xf32>
    %171 = arith.negf %170 : vector<8x128xf32>
    %172 = math.exp %171 : vector<8x128xf32>
    %cst_70 = arith.constant 1.000000e+00 : f32
    %173 = vector.broadcast %cst_70 : f32 to vector<8x128xf32>
    %174 = arith.addf %173, %172 : vector<8x128xf32>
    %175 = arith.divf %173, %174 : vector<8x128xf32>
    %176 = vector.extract_strided_slice %163 {offsets = [0, 256], sizes = [8, 128], strides = [1, 1]} : vector<8x512xf32> to vector<8x128xf32>
    %177 = math.tanh %176 : vector<8x128xf32>
    %178 = vector.extract_strided_slice %163 {offsets = [0, 384], sizes = [8, 128], strides = [1, 1]} : vector<8x512xf32> to vector<8x128xf32>
    %179 = arith.negf %178 : vector<8x128xf32>
    %180 = math.exp %179 : vector<8x128xf32>
    %cst_71 = arith.constant 1.000000e+00 : f32
    %181 = vector.broadcast %cst_71 : f32 to vector<8x128xf32>
    %182 = arith.addf %181, %180 : vector<8x128xf32>
    %183 = arith.divf %181, %182 : vector<8x128xf32>
    %184 = arith.mulf %175, %156 : vector<8x128xf32>
    %185 = arith.mulf %169, %177 : vector<8x128xf32>
    %186 = arith.addf %184, %185 : vector<8x128xf32>
    %187 = math.tanh %186 : vector<8x128xf32>
    %188 = arith.mulf %183, %187 : vector<8x128xf32>
    %c40 = arith.constant 40 : index
    %c0_72 = arith.constant 0 : index
    %189 = vector.load %arg10[%c40, %c0_72] : memref<64x512xf32, #tpu.memory_space<vmem>>, vector<8x512xf32>
    %190 = arith.truncf %188 : vector<8x128xf32> to vector<8x128xbf16>
    %c0_73 = arith.constant 0 : index
    %c0_74 = arith.constant 0 : index
    %191 = vector.load %arg3[%c0_73, %c0_74] : memref<128x512xbf16, #tpu.memory_space<vmem>>, vector<128x512xbf16>
    %cst_75 = arith.constant dense<0.000000e+00> : vector<8x512xf32>
    %192 = tpu.matmul %190, %191, %cst_75 {dimension_numbers = #tpu.dot_dimension_numbers<[1], [0], [0], [1], [0, 0, 1, 1], [], []>} : vector<8x128xbf16>, vector<128x512xbf16>, vector<8x512xf32> -> vector<8x512xf32>
    %193 = arith.addf %189, %192 : vector<8x512xf32>
    %194 = vector.extract_strided_slice %193 {offsets = [0, 0], sizes = [8, 128], strides = [1, 1]} : vector<8x512xf32> to vector<8x128xf32>
    %195 = arith.negf %194 : vector<8x128xf32>
    %196 = math.exp %195 : vector<8x128xf32>
    %cst_76 = arith.constant 1.000000e+00 : f32
    %197 = vector.broadcast %cst_76 : f32 to vector<8x128xf32>
    %198 = arith.addf %197, %196 : vector<8x128xf32>
    %199 = arith.divf %197, %198 : vector<8x128xf32>
    %200 = vector.extract_strided_slice %193 {offsets = [0, 128], sizes = [8, 128], strides = [1, 1]} : vector<8x512xf32> to vector<8x128xf32>
    %201 = arith.negf %200 : vector<8x128xf32>
    %202 = math.exp %201 : vector<8x128xf32>
    %cst_77 = arith.constant 1.000000e+00 : f32
    %203 = vector.broadcast %cst_77 : f32 to vector<8x128xf32>
    %204 = arith.addf %203, %202 : vector<8x128xf32>
    %205 = arith.divf %203, %204 : vector<8x128xf32>
    %206 = vector.extract_strided_slice %193 {offsets = [0, 256], sizes = [8, 128], strides = [1, 1]} : vector<8x512xf32> to vector<8x128xf32>
    %207 = math.tanh %206 : vector<8x128xf32>
    %208 = vector.extract_strided_slice %193 {offsets = [0, 384], sizes = [8, 128], strides = [1, 1]} : vector<8x512xf32> to vector<8x128xf32>
    %209 = arith.negf %208 : vector<8x128xf32>
    %210 = math.exp %209 : vector<8x128xf32>
    %cst_78 = arith.constant 1.000000e+00 : f32
    %211 = vector.broadcast %cst_78 : f32 to vector<8x128xf32>
    %212 = arith.addf %211, %210 : vector<8x128xf32>
    %213 = arith.divf %211, %212 : vector<8x128xf32>
    %214 = arith.mulf %205, %186 : vector<8x128xf32>
    %215 = arith.mulf %199, %207 : vector<8x128xf32>
    %216 = arith.addf %214, %215 : vector<8x128xf32>
    %217 = math.tanh %216 : vector<8x128xf32>
    %218 = arith.mulf %213, %217 : vector<8x128xf32>
    %c0_i32_79 = arith.constant 0 : i32
    %219 = tpu.memref_slice %arg14[%c0_i32_79] : memref<5x!tpu.dma_semaphore, #tpu.memory_space<semaphore_mem>> -> memref<1x!tpu.dma_semaphore, #tpu.memory_space<semaphore_mem>>
    %220 = tpu.memref_squeeze %219 : memref<1x!tpu.dma_semaphore, #tpu.memory_space<semaphore_mem>> -> memref<!tpu.dma_semaphore, #tpu.memory_space<semaphore_mem>>
    tpu.wait_dma2 semaphore(%220 : memref<!tpu.dma_semaphore, #tpu.memory_space<semaphore_mem>>) src(%arg7 : memref<256x2560xbf16, #tpu.memory_space<any>>) dst(%arg12 : memref<256x2560xbf16, #tpu.memory_space<vmem>>)
    %c0_80 = arith.constant 0 : index
    %c0_81 = arith.constant 0 : index
    %221 = vector.load %arg12[%c0_80, %c0_81] : memref<256x2560xbf16, #tpu.memory_space<vmem>>, vector<128x2560xbf16>
    %cst_82 = arith.constant dense<0.000000e+00> : vector<8x2560xf32>
    %222 = tpu.matmul %36, %221, %cst_82 {dimension_numbers = #tpu.dot_dimension_numbers<[1], [0], [0], [1], [0, 0, 1, 1], [], []>} : vector<8x128xbf16>, vector<128x2560xbf16>, vector<8x2560xf32> -> vector<8x2560xf32>
    %c0_83 = arith.constant 0 : index
    %c0_84 = arith.constant 0 : index
    %223 = vector.load %arg5[%c0_83, %c0_84] : memref<1x2560xf32, #tpu.memory_space<vmem>>, vector<1x2560xf32>
    %224 = vector.broadcast %223 : vector<1x2560xf32> to vector<8x2560xf32>
    %225 = arith.addf %222, %224 : vector<8x2560xf32>
    %c0_85 = arith.constant 0 : index
    %c0_86 = arith.constant 0 : index
    %226 = vector.load %arg11[%c0_85, %c0_86] : memref<8x2560xf32, #tpu.memory_space<vmem>>, vector<8x2560xf32>
    tpu.vector_store %arg11[%c0_85, %c0_86], %225 {strides = array<i32>} : memref<8x2560xf32, #tpu.memory_space<vmem>>, vector<8x2560xf32>,
    %c48 = arith.constant 48 : index
    %c0_87 = arith.constant 0 : index
    %227 = vector.load %arg10[%c48, %c0_87] : memref<64x512xf32, #tpu.memory_space<vmem>>, vector<8x512xf32>
    %228 = arith.truncf %218 : vector<8x128xf32> to vector<8x128xbf16>
    %c0_88 = arith.constant 0 : index
    %c0_89 = arith.constant 0 : index
    %229 = vector.load %arg3[%c0_88, %c0_89] : memref<128x512xbf16, #tpu.memory_space<vmem>>, vector<128x512xbf16>
    %cst_90 = arith.constant dense<0.000000e+00> : vector<8x512xf32>
    %230 = tpu.matmul %228, %229, %cst_90 {dimension_numbers = #tpu.dot_dimension_numbers<[1], [0], [0], [1], [0, 0, 1, 1], [], []>} : vector<8x128xbf16>, vector<128x512xbf16>, vector<8x512xf32> -> vector<8x512xf32>
    %231 = arith.addf %227, %230 : vector<8x512xf32>
    %232 = vector.extract_strided_slice %231 {offsets = [0, 0], sizes = [8, 128], strides = [1, 1]} : vector<8x512xf32> to vector<8x128xf32>
    %233 = arith.negf %232 : vector<8x128xf32>
    %234 = math.exp %233 : vector<8x128xf32>
    %cst_91 = arith.constant 1.000000e+00 : f32
    %235 = vector.broadcast %cst_91 : f32 to vector<8x128xf32>
    %236 = arith.addf %235, %234 : vector<8x128xf32>
    %237 = arith.divf %235, %236 : vector<8x128xf32>
    %238 = vector.extract_strided_slice %231 {offsets = [0, 128], sizes = [8, 128], strides = [1, 1]} : vector<8x512xf32> to vector<8x128xf32>
    %239 = arith.negf %238 : vector<8x128xf32>
    %240 = math.exp %239 : vector<8x128xf32>
    %cst_92 = arith.constant 1.000000e+00 : f32
    %241 = vector.broadcast %cst_92 : f32 to vector<8x128xf32>
    %242 = arith.addf %241, %240 : vector<8x128xf32>
    %243 = arith.divf %241, %242 : vector<8x128xf32>
    %244 = vector.extract_strided_slice %231 {offsets = [0, 256], sizes = [8, 128], strides = [1, 1]} : vector<8x512xf32> to vector<8x128xf32>
    %245 = math.tanh %244 : vector<8x128xf32>
    %246 = vector.extract_strided_slice %231 {offsets = [0, 384], sizes = [8, 128], strides = [1, 1]} : vector<8x512xf32> to vector<8x128xf32>
    %247 = arith.negf %246 : vector<8x128xf32>
    %248 = math.exp %247 : vector<8x128xf32>
    %cst_93 = arith.constant 1.000000e+00 : f32
    %249 = vector.broadcast %cst_93 : f32 to vector<8x128xf32>
    %250 = arith.addf %249, %248 : vector<8x128xf32>
    %251 = arith.divf %249, %250 : vector<8x128xf32>
    %252 = arith.mulf %243, %216 : vector<8x128xf32>
    %253 = arith.mulf %237, %245 : vector<8x128xf32>
    %254 = arith.addf %252, %253 : vector<8x128xf32>
    %255 = math.tanh %254 : vector<8x128xf32>
    %256 = arith.mulf %251, %255 : vector<8x128xf32>
    %c56 = arith.constant 56 : index
    %c0_94 = arith.constant 0 : index
    %257 = vector.load %arg10[%c56, %c0_94] : memref<64x512xf32, #tpu.memory_space<vmem>>, vector<8x512xf32>
    %258 = arith.truncf %256 : vector<8x128xf32> to vector<8x128xbf16>
    %c0_95 = arith.constant 0 : index
    %c0_96 = arith.constant 0 : index
    %259 = vector.load %arg3[%c0_95, %c0_96] : memref<128x512xbf16, #tpu.memory_space<vmem>>, vector<128x512xbf16>
    %cst_97 = arith.constant dense<0.000000e+00> : vector<8x512xf32>
    %260 = tpu.matmul %258, %259, %cst_97 {dimension_numbers = #tpu.dot_dimension_numbers<[1], [0], [0], [1], [0, 0, 1, 1], [], []>} : vector<8x128xbf16>, vector<128x512xbf16>, vector<8x512xf32> -> vector<8x512xf32>
    %261 = arith.addf %257, %260 : vector<8x512xf32>
    %262 = vector.extract_strided_slice %261 {offsets = [0, 0], sizes = [8, 128], strides = [1, 1]} : vector<8x512xf32> to vector<8x128xf32>
    %263 = arith.negf %262 : vector<8x128xf32>
    %264 = math.exp %263 : vector<8x128xf32>
    %cst_98 = arith.constant 1.000000e+00 : f32
    %265 = vector.broadcast %cst_98 : f32 to vector<8x128xf32>
    %266 = arith.addf %265, %264 : vector<8x128xf32>
    %267 = arith.divf %265, %266 : vector<8x128xf32>
    %268 = vector.extract_strided_slice %261 {offsets = [0, 128], sizes = [8, 128], strides = [1, 1]} : vector<8x512xf32> to vector<8x128xf32>
    %269 = arith.negf %268 : vector<8x128xf32>
    %270 = math.exp %269 : vector<8x128xf32>
    %cst_99 = arith.constant 1.000000e+00 : f32
    %271 = vector.broadcast %cst_99 : f32 to vector<8x128xf32>
    %272 = arith.addf %271, %270 : vector<8x128xf32>
    %273 = arith.divf %271, %272 : vector<8x128xf32>
    %274 = vector.extract_strided_slice %261 {offsets = [0, 256], sizes = [8, 128], strides = [1, 1]} : vector<8x512xf32> to vector<8x128xf32>
    %275 = math.tanh %274 : vector<8x128xf32>
    %276 = vector.extract_strided_slice %261 {offsets = [0, 384], sizes = [8, 128], strides = [1, 1]} : vector<8x512xf32> to vector<8x128xf32>
    %277 = arith.negf %276 : vector<8x128xf32>
    %278 = math.exp %277 : vector<8x128xf32>
    %cst_100 = arith.constant 1.000000e+00 : f32
    %279 = vector.broadcast %cst_100 : f32 to vector<8x128xf32>
    %280 = arith.addf %279, %278 : vector<8x128xf32>
    %281 = arith.divf %279, %280 : vector<8x128xf32>
    %282 = arith.mulf %273, %254 : vector<8x128xf32>
    %283 = arith.mulf %267, %275 : vector<8x128xf32>
    %284 = arith.addf %282, %283 : vector<8x128xf32>
    %285 = math.tanh %284 : vector<8x128xf32>
    %286 = arith.mulf %281, %285 : vector<8x128xf32>
    %287 = arith.truncf %286 : vector<8x128xf32> to vector<8x128xbf16>
    %c0_101 = arith.constant 0 : index
    %c0_102 = arith.constant 0 : index
    %288 = vector.load %arg11[%c0_101, %c0_102] : memref<8x2560xf32, #tpu.memory_space<vmem>>, vector<8x2560xf32>
    %c128 = arith.constant 128 : index
    %c0_103 = arith.constant 0 : index
    %289 = vector.load %arg12[%c128, %c0_103] : memref<256x2560xbf16, #tpu.memory_space<vmem>>, vector<128x2560xbf16>
    %cst_104 = arith.constant dense<0.000000e+00> : vector<8x2560xf32>
    %290 = tpu.matmul %287, %289, %cst_104 {dimension_numbers = #tpu.dot_dimension_numbers<[1], [0], [0], [1], [0, 0, 1, 1], [], []>} : vector<8x128xbf16>, vector<128x2560xbf16>, vector<8x2560xf32> -> vector<8x2560xf32>
    %291 = arith.addf %288, %290 : vector<8x2560xf32>
    %cst_105 = arith.constant 0.000000e+00 : f32
    %292 = vector.broadcast %cst_105 : f32 to vector<8x2560xf32>
    %293 = arith.maximumf %291, %292 : vector<8x2560xf32>
    %294 = arith.truncf %293 : vector<8x2560xf32> to vector<8x2560xbf16>
    %c0_i32_106 = arith.constant 0 : i32
    %c0_i32_107 = arith.constant 0 : i32
    %c1_i32_108 = arith.constant 1 : i32
    %c0_i32_109 = arith.constant 0 : i32
    %c0_i32_110 = arith.constant 0 : i32
    %295 = tpu.memref_slice %arg8[%c0_i32_106, %c0_i32_109, %c0_i32_110] : memref<4x2560x256xbf16, #tpu.memory_space<any>> -> memref<1x2560x256xbf16, #tpu.memory_space<any>>
    %296 = tpu.memref_squeeze %295 : memref<1x2560x256xbf16, #tpu.memory_space<any>> -> memref<2560x256xbf16, #tpu.memory_space<any>>
    %c0_i32_111 = arith.constant 0 : i32
    %c0_i32_112 = arith.constant 0 : i32
    %297 = tpu.memref_slice %arg13[%c0_i32_107, %c0_i32_111, %c0_i32_112] : memref<4x2560x256xbf16, #tpu.memory_space<vmem>> -> memref<1x2560x256xbf16, #tpu.memory_space<vmem>>
    %298 = tpu.memref_squeeze %297 : memref<1x2560x256xbf16, #tpu.memory_space<vmem>> -> memref<2560x256xbf16, #tpu.memory_space<vmem>>
    %299 = tpu.memref_slice %arg14[%c1_i32_108] : memref<5x!tpu.dma_semaphore, #tpu.memory_space<semaphore_mem>> -> memref<1x!tpu.dma_semaphore, #tpu.memory_space<semaphore_mem>>
    %300 = tpu.memref_squeeze %299 : memref<1x!tpu.dma_semaphore, #tpu.memory_space<semaphore_mem>> -> memref<!tpu.dma_semaphore, #tpu.memory_space<semaphore_mem>>
    tpu.wait_dma2 semaphore(%300 : memref<!tpu.dma_semaphore, #tpu.memory_space<semaphore_mem>>) src(%296 : memref<2560x256xbf16, #tpu.memory_space<any>>) dst(%298 : memref<2560x256xbf16, #tpu.memory_space<vmem>>)
    %c0_113 = arith.constant 0 : index
    %c0_114 = arith.constant 0 : index
    %c0_115 = arith.constant 0 : index
    %301 = vector.load %arg13[%c0_113, %c0_114, %c0_115] : memref<4x2560x256xbf16, #tpu.memory_space<vmem>>, vector<1x2560x256xbf16>
    %302 = vector.shape_cast %301 : vector<1x2560x256xbf16> to vector<2560x256xbf16>
    %cst_116 = arith.constant dense<0.000000e+00> : vector<8x256xf32>
    %303 = tpu.matmul %294, %302, %cst_116 {dimension_numbers = #tpu.dot_dimension_numbers<[1], [0], [0], [1], [0, 0, 1, 1], [], []>} : vector<8x2560xbf16>, vector<2560x256xbf16>, vector<8x256xf32> -> vector<8x256xf32>
    %c0_117 = arith.constant 0 : index
    %c0_118 = arith.constant 0 : index
    %304 = vector.load %arg6[%c0_117, %c0_118] : memref<1x1024xf32, #tpu.memory_space<vmem>>, vector<1x256xf32>
    %305 = vector.broadcast %304 : vector<1x256xf32> to vector<8x256xf32>
    %306 = arith.addf %303, %305 : vector<8x256xf32>
    %c0_119 = arith.constant 0 : index
    %c0_120 = arith.constant 0 : index
    %307 = vector.load %arg9[%c0_119, %c0_120] : memref<8x1024xf32, #tpu.memory_space<vmem>>, vector<8x256xf32>
    tpu.vector_store %arg9[%c0_119, %c0_120], %306 {strides = array<i32>} : memref<8x1024xf32, #tpu.memory_space<vmem>>, vector<8x256xf32>,
    %c1_i32_121 = arith.constant 1 : i32
    %c1_i32_122 = arith.constant 1 : i32
    %c2_i32_123 = arith.constant 2 : i32
    %c0_i32_124 = arith.constant 0 : i32
    %c0_i32_125 = arith.constant 0 : i32
    %308 = tpu.memref_slice %arg8[%c1_i32_121, %c0_i32_124, %c0_i32_125] : memref<4x2560x256xbf16, #tpu.memory_space<any>> -> memref<1x2560x256xbf16, #tpu.memory_space<any>>
    %309 = tpu.memref_squeeze %308 : memref<1x2560x256xbf16, #tpu.memory_space<any>> -> memref<2560x256xbf16, #tpu.memory_space<any>>
    %c0_i32_126 = arith.constant 0 : i32
    %c0_i32_127 = arith.constant 0 : i32
    %310 = tpu.memref_slice %arg13[%c1_i32_122, %c0_i32_126, %c0_i32_127] : memref<4x2560x256xbf16, #tpu.memory_space<vmem>> -> memref<1x2560x256xbf16, #tpu.memory_space<vmem>>
    %311 = tpu.memref_squeeze %310 : memref<1x2560x256xbf16, #tpu.memory_space<vmem>> -> memref<2560x256xbf16, #tpu.memory_space<vmem>>
    %312 = tpu.memref_slice %arg14[%c2_i32_123] : memref<5x!tpu.dma_semaphore, #tpu.memory_space<semaphore_mem>> -> memref<1x!tpu.dma_semaphore, #tpu.memory_space<semaphore_mem>>
    %313 = tpu.memref_squeeze %312 : memref<1x!tpu.dma_semaphore, #tpu.memory_space<semaphore_mem>> -> memref<!tpu.dma_semaphore, #tpu.memory_space<semaphore_mem>>
    tpu.wait_dma2 semaphore(%313 : memref<!tpu.dma_semaphore, #tpu.memory_space<semaphore_mem>>) src(%309 : memref<2560x256xbf16, #tpu.memory_space<any>>) dst(%311 : memref<2560x256xbf16, #tpu.memory_space<vmem>>)
    %c1 = arith.constant 1 : index
    %c0_128 = arith.constant 0 : index
    %c0_129 = arith.constant 0 : index
    %314 = vector.load %arg13[%c1, %c0_128, %c0_129] : memref<4x2560x256xbf16, #tpu.memory_space<vmem>>, vector<1x2560x256xbf16>
    %315 = vector.shape_cast %314 : vector<1x2560x256xbf16> to vector<2560x256xbf16>
    %cst_130 = arith.constant dense<0.000000e+00> : vector<8x256xf32>
    %316 = tpu.matmul %294, %315, %cst_130 {dimension_numbers = #tpu.dot_dimension_numbers<[1], [0], [0], [1], [0, 0, 1, 1], [], []>} : vector<8x2560xbf16>, vector<2560x256xbf16>, vector<8x256xf32> -> vector<8x256xf32>
    %c0_131 = arith.constant 0 : index
    %c256 = arith.constant 256 : index
    %317 = vector.load %arg6[%c0_131, %c256] : memref<1x1024xf32, #tpu.memory_space<vmem>>, vector<1x256xf32>
    %318 = vector.broadcast %317 : vector<1x256xf32> to vector<8x256xf32>
    %319 = arith.addf %316, %318 : vector<8x256xf32>
    %c0_132 = arith.constant 0 : index
    %c256_133 = arith.constant 256 : index
    %320 = vector.load %arg9[%c0_132, %c256_133] : memref<8x1024xf32, #tpu.memory_space<vmem>>, vector<8x256xf32>
    tpu.vector_store %arg9[%c0_132, %c256_133], %319 {strides = array<i32>} : memref<8x1024xf32, #tpu.memory_space<vmem>>, vector<8x256xf32>,
    %c2_i32_134 = arith.constant 2 : i32
    %c2_i32_135 = arith.constant 2 : i32
    %c3_i32_136 = arith.constant 3 : i32
    %c0_i32_137 = arith.constant 0 : i32
    %c0_i32_138 = arith.constant 0 : i32
    %321 = tpu.memref_slice %arg8[%c2_i32_134, %c0_i32_137, %c0_i32_138] : memref<4x2560x256xbf16, #tpu.memory_space<any>> -> memref<1x2560x256xbf16, #tpu.memory_space<any>>
    %322 = tpu.memref_squeeze %321 : memref<1x2560x256xbf16, #tpu.memory_space<any>> -> memref<2560x256xbf16, #tpu.memory_space<any>>
    %c0_i32_139 = arith.constant 0 : i32
    %c0_i32_140 = arith.constant 0 : i32
    %323 = tpu.memref_slice %arg13[%c2_i32_135, %c0_i32_139, %c0_i32_140] : memref<4x2560x256xbf16, #tpu.memory_space<vmem>> -> memref<1x2560x256xbf16, #tpu.memory_space<vmem>>
    %324 = tpu.memref_squeeze %323 : memref<1x2560x256xbf16, #tpu.memory_space<vmem>> -> memref<2560x256xbf16, #tpu.memory_space<vmem>>
    %325 = tpu.memref_slice %arg14[%c3_i32_136] : memref<5x!tpu.dma_semaphore, #tpu.memory_space<semaphore_mem>> -> memref<1x!tpu.dma_semaphore, #tpu.memory_space<semaphore_mem>>
    %326 = tpu.memref_squeeze %325 : memref<1x!tpu.dma_semaphore, #tpu.memory_space<semaphore_mem>> -> memref<!tpu.dma_semaphore, #tpu.memory_space<semaphore_mem>>
    tpu.wait_dma2 semaphore(%326 : memref<!tpu.dma_semaphore, #tpu.memory_space<semaphore_mem>>) src(%322 : memref<2560x256xbf16, #tpu.memory_space<any>>) dst(%324 : memref<2560x256xbf16, #tpu.memory_space<vmem>>)
    %c2 = arith.constant 2 : index
    %c0_141 = arith.constant 0 : index
    %c0_142 = arith.constant 0 : index
    %327 = vector.load %arg13[%c2, %c0_141, %c0_142] : memref<4x2560x256xbf16, #tpu.memory_space<vmem>>, vector<1x2560x256xbf16>
    %328 = vector.shape_cast %327 : vector<1x2560x256xbf16> to vector<2560x256xbf16>
    %cst_143 = arith.constant dense<0.000000e+00> : vector<8x256xf32>
    %329 = tpu.matmul %294, %328, %cst_143 {dimension_numbers = #tpu.dot_dimension_numbers<[1], [0], [0], [1], [0, 0, 1, 1], [], []>} : vector<8x2560xbf16>, vector<2560x256xbf16>, vector<8x256xf32> -> vector<8x256xf32>
    %c0_144 = arith.constant 0 : index
    %c512 = arith.constant 512 : index
    %330 = vector.load %arg6[%c0_144, %c512] : memref<1x1024xf32, #tpu.memory_space<vmem>>, vector<1x256xf32>
    %331 = vector.broadcast %330 : vector<1x256xf32> to vector<8x256xf32>
    %332 = arith.addf %329, %331 : vector<8x256xf32>
    %c0_145 = arith.constant 0 : index
    %c512_146 = arith.constant 512 : index
    %333 = vector.load %arg9[%c0_145, %c512_146] : memref<8x1024xf32, #tpu.memory_space<vmem>>, vector<8x256xf32>
    tpu.vector_store %arg9[%c0_145, %c512_146], %332 {strides = array<i32>} : memref<8x1024xf32, #tpu.memory_space<vmem>>, vector<8x256xf32>,
    %c3_i32_147 = arith.constant 3 : i32
    %c3_i32_148 = arith.constant 3 : i32
    %c4_i32_149 = arith.constant 4 : i32
    %c0_i32_150 = arith.constant 0 : i32
    %c0_i32_151 = arith.constant 0 : i32
    %334 = tpu.memref_slice %arg8[%c3_i32_147, %c0_i32_150, %c0_i32_151] : memref<4x2560x256xbf16, #tpu.memory_space<any>> -> memref<1x2560x256xbf16, #tpu.memory_space<any>>
    %335 = tpu.memref_squeeze %334 : memref<1x2560x256xbf16, #tpu.memory_space<any>> -> memref<2560x256xbf16, #tpu.memory_space<any>>
    %c0_i32_152 = arith.constant 0 : i32
    %c0_i32_153 = arith.constant 0 : i32
    %336 = tpu.memref_slice %arg13[%c3_i32_148, %c0_i32_152, %c0_i32_153] : memref<4x2560x256xbf16, #tpu.memory_space<vmem>> -> memref<1x2560x256xbf16, #tpu.memory_space<vmem>>
    %337 = tpu.memref_squeeze %336 : memref<1x2560x256xbf16, #tpu.memory_space<vmem>> -> memref<2560x256xbf16, #tpu.memory_space<vmem>>
    %338 = tpu.memref_slice %arg14[%c4_i32_149] : memref<5x!tpu.dma_semaphore, #tpu.memory_space<semaphore_mem>> -> memref<1x!tpu.dma_semaphore, #tpu.memory_space<semaphore_mem>>
    %339 = tpu.memref_squeeze %338 : memref<1x!tpu.dma_semaphore, #tpu.memory_space<semaphore_mem>> -> memref<!tpu.dma_semaphore, #tpu.memory_space<semaphore_mem>>
    tpu.wait_dma2 semaphore(%339 : memref<!tpu.dma_semaphore, #tpu.memory_space<semaphore_mem>>) src(%335 : memref<2560x256xbf16, #tpu.memory_space<any>>) dst(%337 : memref<2560x256xbf16, #tpu.memory_space<vmem>>)
    %c3 = arith.constant 3 : index
    %c0_154 = arith.constant 0 : index
    %c0_155 = arith.constant 0 : index
    %340 = vector.load %arg13[%c3, %c0_154, %c0_155] : memref<4x2560x256xbf16, #tpu.memory_space<vmem>>, vector<1x2560x256xbf16>
    %341 = vector.shape_cast %340 : vector<1x2560x256xbf16> to vector<2560x256xbf16>
    %cst_156 = arith.constant dense<0.000000e+00> : vector<8x256xf32>
    %342 = tpu.matmul %294, %341, %cst_156 {dimension_numbers = #tpu.dot_dimension_numbers<[1], [0], [0], [1], [0, 0, 1, 1], [], []>} : vector<8x2560xbf16>, vector<2560x256xbf16>, vector<8x256xf32> -> vector<8x256xf32>
    %c0_157 = arith.constant 0 : index
    %c768 = arith.constant 768 : index
    %343 = vector.load %arg6[%c0_157, %c768] : memref<1x1024xf32, #tpu.memory_space<vmem>>, vector<1x256xf32>
    %344 = vector.broadcast %343 : vector<1x256xf32> to vector<8x256xf32>
    %345 = arith.addf %342, %344 : vector<8x256xf32>
    %c0_158 = arith.constant 0 : index
    %c768_159 = arith.constant 768 : index
    %346 = vector.load %arg9[%c0_158, %c768_159] : memref<8x1024xf32, #tpu.memory_space<vmem>>, vector<8x256xf32>
    tpu.vector_store %arg9[%c0_158, %c768_159], %345 {strides = array<i32>} : memref<8x1024xf32, #tpu.memory_space<vmem>>, vector<8x256xf32>,
    return
  }
}

</mosaic_0001>

<llo_original>
// kernel: model_forward.1
$region0: #{model_forward.1}
  #allocation0 [shape = 'u32[]', space=smem, size = 0x4, offset = 0x4, fixed_abs, tag = 'smem constant byte address 0x4 - core index']
  #allocation1 [shape = 'u32[144,128]{1,0:T(1,128)}', space=vmem, size = 0x12000, scoped, tag = 'internal scratch']
  #allocation2 [shape = 'f32[64,512]{1,0:T(8,128)}', space=vmem, size = 0x20000, scoped, tag = 'scratch operand']
  #allocation3 [shape = 'f32[8,2560]{1,0:T(8,128)}', space=vmem, size = 0x14000, scoped, tag = 'scratch operand']
  #allocation4 [shape = 'bf16[256,2560]{1,0:T(16,128)(2,1)}', space=vmem, size = 0x140000, scoped, tag = 'scratch operand']
  #allocation5 [shape = 'bf16[4,2560,256]{2,1,0:T(16,128)(2,1)}', space=vmem, size = 0x500000, scoped, tag = 'scratch operand']
  #allocation6 [shape = 's32[5]{0}', space=sflag, size = 0x14, scoped, tag = 'scratch operand']
  #allocation17 [shape = 's32[]', space=sflag, size = 0x4, offset = 0, fixed_abs, tag = 'sflag constant byte address 0x0 - dummy sync flag']
  #allocation19 [shape = 's32[]', space=sflag, size = 0x4, offset = 0, fixed_abs, tag = 'sflag constant byte address 0x0 - dummy sync flag']
  #allocation21 [shape = 's32[]', space=sflag, size = 0x4, offset = 0, fixed_abs, tag = 'sflag constant byte address 0x0 - dummy sync flag']
  #allocation23 [shape = 's32[]', space=sflag, size = 0x4, offset = 0, fixed_abs, tag = 'sflag constant byte address 0x0 - dummy sync flag']
  #allocation25 [shape = 's32[]', space=sflag, size = 0x4, offset = 0, fixed_abs, tag = 'sflag constant byte address 0x0 - dummy sync flag']
  %s0 = inlined_call_operand.vmem [shape: f32[8,128], index: 0, kind: input, shape index: {}]
  %s1 = inlined_call_operand.vmem [shape: f32[8,8,128], index: 1, kind: input, shape index: {}]
  %s2 = inlined_call_operand.hbm [shape: bf16[128,512], index: 2, kind: input, shape index: {}]
  %s3 = inlined_call_operand.hbm [shape: bf16[128,512], index: 3, kind: input, shape index: {}]
  %s4 = inlined_call_operand.hbm [shape: f32[1,512], index: 4, kind: input, shape index: {}]
  %s5 = inlined_call_operand.hbm [shape: f32[1,2560], index: 5, kind: input, shape index: {}]
  %s6 = inlined_call_operand.hbm [shape: f32[1,1024], index: 6, kind: input, shape index: {}]
  %s7 = inlined_call_operand.hbm [shape: bf16[256,2560], index: 7, kind: input, shape index: {}]
  %s8 = inlined_call_operand.hbm [shape: bf16[4,2560,256], index: 8, kind: input, shape index: {}]
  %s9 = inlined_call_operand.hbm [shape: f32[8,1024], index: 9, kind: output, shape index: {}]
  %s10 = sld [smem:[#allocation0]]
  $region58: #{model_forward.1} parent=0
    _
  %s12 = ssub.s32 1, %s10
  %s13 = scalar_select 0, %s12, %s10
  $region1: #{model_forward.1} parent=0
    #allocation7 [shape = 'u8[131072]{0}', space=vmem, size = 0x20000, scoped, tag = 'input window, operand 2, single buffered']
    #allocation8 [shape = 's32[1]{0}', space=sflag, size = 0x4, scoped, tag = 'scoped memory for model_forward.1']
    #allocation9 [shape = 's32[1]{0}', space=sflag, size = 0x4, scoped, tag = 'scoped memory for model_forward.1']
    #allocation10 [shape = 'u8[131072]{0}', space=vmem, size = 0x20000, scoped, tag = 'input window, operand 3, single buffered']
    #allocation11 [shape = 's32[1]{0}', space=sflag, size = 0x4, scoped, tag = 'scoped memory for model_forward.1']
    #allocation12 [shape = 'u8[2048]{0}', space=vmem, size = 0x800, scoped, tag = 'input window, operand 4, single buffered']
    #allocation13 [shape = 'u8[10240]{0}', space=vmem, size = 0x2800, scoped, tag = 'input window, operand 5, single buffered']
    #allocation14 [shape = 's32[1]{0}', space=sflag, size = 0x4, scoped, tag = 'scoped memory for model_forward.1']
    #allocation15 [shape = 'u8[4096]{0}', space=vmem, size = 0x1000, scoped, tag = 'input window, operand 6, single buffered']
    #allocation16 [shape = 'u8[32768]{0}', space=vmem, size = 0x8000, scoped, tag = 'output window, operand 0, single buffered']
    #allocation18 [shape = 'u32[9]{0}', space=smem, size = 0x24, scoped, tag = 'DMA stride descriptor']
    #allocation20 [shape = 'u32[9]{0}', space=smem, size = 0x24, scoped, tag = 'DMA stride descriptor']
    #allocation22 [shape = 'u32[9]{0}', space=smem, size = 0x24, scoped, tag = 'DMA stride descriptor']
    #allocation24 [shape = 'u32[9]{0}', space=smem, size = 0x24, scoped, tag = 'DMA stride descriptor']
    #allocation26 [shape = 'u32[9]{0}', space=smem, size = 0x24, scoped, tag = 'DMA stride descriptor']
    %14 = vsyncpa [#allocation8], 0
    %15 = vsyncpa [#allocation11], 0
    %16 = vsyncpa [#allocation14], 0
    %17 = vsyncpa [#allocation9], 0
    // Predicated region
    $region2: #{model_forward.1} parent=1 // pred_check
      _
    $region3: #{model_forward.1} parent=1 // pred_check_branch
      %19 = sbr.rel (0) target = $region5
    $region4: #{model_forward.1} parent=1 // pred_region
      _
    $region5: #{model_forward.1} parent=1 // pred_fallthru
      _
    // Predicated region
    $region6: #{model_forward.1} parent=1 // pred_check
      _
    $region7: #{model_forward.1} parent=1 // pred_check_branch
      %21 = sbr.rel (0) target = $region9
    $region8: #{model_forward.1} parent=1 // pred_region
      _
    $region9: #{model_forward.1} parent=1 // pred_fallthru
      _
    // Predicated region
    $region10: #{model_forward.1} parent=1 // pred_check
      _
    $region11: #{model_forward.1} parent=1 // pred_check_branch
      %23 = sbr.rel (0) target = $region13
    $region12: #{model_forward.1} parent=1 // pred_region
      %s25 = ssub.s32 4096, 4096
      %26 = vsyncadd [#allocation8], %s25
      %s27 = sshll.u32 [#allocation7], 4
      %s28 = int_to_ptr.vmem [resolvable:$true] %s27
      %33 = dma.hbm_to_vmem [thread:$0]  %s2, 4096, %s28, [#allocation8], 256, 256, 16
    $region13: #{model_forward.1} parent=1 // pred_fallthru
      _
    // Predicated region
    $region14: #{model_forward.1} parent=1 // pred_check
      _
    $region15: #{model_forward.1} parent=1 // pred_check_branch
      %35 = sbr.rel (0) target = $region17
    $region16: #{model_forward.1} parent=1 // pred_region
      %s37 = ssub.s32 4096, 4096
      %38 = vsyncadd [#allocation11], %s37
      %s39 = sshll.u32 [#allocation10], 4
      %s40 = int_to_ptr.vmem [resolvable:$true] %s39
      %45 = dma.hbm_to_vmem [thread:$0]  %s3, 4096, %s40, [#allocation11], 256, 256, 16
    $region17: #{model_forward.1} parent=1 // pred_fallthru
      _
    // Predicated region
    $region18: #{model_forward.1} parent=1 // pred_check
      _
    $region19: #{model_forward.1} parent=1 // pred_check_branch
      %47 = sbr.rel (0) target = $region21
    $region20: #{model_forward.1} parent=1 // pred_region
      %s49 = ssub.s32 64, 64
      %50 = vsyncadd [#allocation11], %s49
      %s52 = sshll.u32 [#allocation12], 4
      %s53 = int_to_ptr.vmem [resolvable:$true] %s52
      %55 = dma.hbm_to_vmem [thread:$0]  %s4, 64, %s53, [#allocation11]
    $region21: #{model_forward.1} parent=1 // pred_fallthru
      _
    // Predicated region
    $region22: #{model_forward.1} parent=1 // pred_check
      _
    $region23: #{model_forward.1} parent=1 // pred_check_branch
      %57 = sbr.rel (0) target = $region25
    $region24: #{model_forward.1} parent=1 // pred_region
      %s59 = ssub.s32 320, 320
      %60 = vsyncadd [#allocation14], %s59
      %s62 = sshll.u32 [#allocation13], 4
      %s63 = int_to_ptr.vmem [resolvable:$true] %s62
      %65 = dma.hbm_to_vmem [thread:$0]  %s5, 320, %s63, [#allocation14]
    $region25: #{model_forward.1} parent=1 // pred_fallthru
      _
    // Predicated region
    $region26: #{model_forward.1} parent=1 // pred_check
      _
    $region27: #{model_forward.1} parent=1 // pred_check_branch
      %67 = sbr.rel (0) target = $region29
    $region28: #{model_forward.1} parent=1 // pred_region
      %s69 = ssub.s32 128, 128
      %70 = vsyncadd [#allocation14], %s69
      %s72 = sshll.u32 [#allocation15], 4
      %s73 = int_to_ptr.vmem [resolvable:$true] %s72
      %75 = dma.hbm_to_vmem [thread:$0]  %s6, 128, %s73, [#allocation14]
    $region29: #{model_forward.1} parent=1 // pred_fallthru
      _
    // Predicated region
    $region30: #{model_forward.1} parent=1 // pred_check
      _
    $region31: #{model_forward.1} parent=1 // pred_check_branch
      %77 = sbr.rel (0) target = $region33
    $region32: #{model_forward.1} parent=1 // pred_region
      %78 = dma.done [#allocation8], 4096
    $region33: #{model_forward.1} parent=1 // pred_fallthru
      _
    // Predicated region
    $region34: #{model_forward.1} parent=1 // pred_check
      _
    $region35: #{model_forward.1} parent=1 // pred_check_branch
      %80 = sbr.rel (0) target = $region37
    $region36: #{model_forward.1} parent=1 // pred_region
      %81 = dma.done [#allocation11], 4096
    $region37: #{model_forward.1} parent=1 // pred_fallthru
      _
    // Predicated region
    $region38: #{model_forward.1} parent=1 // pred_check
      _
    $region39: #{model_forward.1} parent=1 // pred_check_branch
      %83 = sbr.rel (0) target = $region41
    $region40: #{model_forward.1} parent=1 // pred_region
      %84 = dma.done [#allocation11], 64
    $region41: #{model_forward.1} parent=1 // pred_fallthru
      _
    // Predicated region
    $region42: #{model_forward.1} parent=1 // pred_check
      _
    $region43: #{model_forward.1} parent=1 // pred_check_branch
      %86 = sbr.rel (0) target = $region45
    $region44: #{model_forward.1} parent=1 // pred_region
      %87 = dma.done [#allocation14], 320
    $region45: #{model_forward.1} parent=1 // pred_fallthru
      _
    // Predicated region
    $region46: #{model_forward.1} parent=1 // pred_check
      _
    $region47: #{model_forward.1} parent=1 // pred_check_branch
      %89 = sbr.rel (0) target = $region49
    $region48: #{model_forward.1} parent=1 // pred_region
      %90 = dma.done [#allocation14], 128
    $region49: #{model_forward.1} parent=1 // pred_fallthru
      _
    %s93 = sshll.u32 1, 14
    %s94 = sxor.u32 4294967295, %s93
    %s96 = sld [smem:[#allocation0]]
    %s97 = sadd.s32 2, %s96
    %s99 = sshll.u32 7, 26
    %s100 = sxor.u32 4294967295, %s99
    %s101 = sand.u32 0, %s100
    %s102 = sshll.u32 %s97, 26
    %s103 = sor.u32 %s101, %s102
    %s104 = sshll.u32 [#allocation4], 4
    %s105 = int_to_ptr.vmem [resolvable:$true] %s104
    %108 = sst [smem:[#allocation18]] 2560
    %s109 = scalar_lea.smem [#allocation18], 1
    %110 = sst [smem:[%s109]] 2560
    %s111 = scalar_lea.smem [#allocation18], 2
    %112 = sst [smem:[%s111]] 20
    %s113 = scalar_lea.smem [#allocation18], 3
    %114 = sst [smem:[%s113]] 64
    %s115 = scalar_lea.smem [#allocation18], 4
    %116 = sst [smem:[%s115]] 128
    %s117 = scalar_lea.smem [#allocation18], 5
    %118 = sst [smem:[%s117]] 2
    %s119 = scalar_lea.smem [#allocation18], 6
    %120 = sst [smem:[%s119]] 1280
    %s121 = scalar_lea.smem [#allocation18], 7
    %122 = sst [smem:[%s121]] 64
    %s123 = scalar_lea.smem [#allocation18], 8
    %124 = sst [smem:[%s123]] 4
    %126 = dma.general %s7, 40960, %s105, [#allocation6], [#allocation17], [#allocation18], %s103, 0
    %s127 = scalar_lea.sflag [#allocation6], 1
    %s129 = sshll.u32 1, 14
    %s130 = sxor.u32 4294967295, %s129
    %s132 = sadd.s32 2, %s96
    %s134 = sshll.u32 7, 26
    %s135 = sxor.u32 4294967295, %s134
    %s136 = sand.u32 0, %s135
    %s137 = sshll.u32 %s132, 26
    %s138 = sor.u32 %s136, %s137
    %s139 = sshll.u32 [#allocation5], 4
    %s140 = int_to_ptr.vmem [resolvable:$true] %s139
    %143 = sst [smem:[#allocation20]] 256
    %s144 = scalar_lea.smem [#allocation20], 1
    %145 = sst [smem:[%s144]] 256
    %s146 = scalar_lea.smem [#allocation20], 2
    %147 = sst [smem:[%s146]] 2
    %s148 = scalar_lea.smem [#allocation20], 3
    %149 = sst [smem:[%s148]] 64
    %s150 = scalar_lea.smem [#allocation20], 4
    %151 = sst [smem:[%s150]] 128
    %s152 = scalar_lea.smem [#allocation20], 5
    %153 = sst [smem:[%s152]] 2
    %s154 = scalar_lea.smem [#allocation20], 6
    %155 = sst [smem:[%s154]] 128
    %s156 = scalar_lea.smem [#allocation20], 7
    %157 = sst [smem:[%s156]] 64
    %s158 = scalar_lea.smem [#allocation20], 8
    %159 = sst [smem:[%s158]] 4
    %161 = dma.general %s8, 40960, %s140, %s127, [#allocation19], [#allocation20], %s138, 0
    %s162 = scalar_lea.hbm %s8, 40960
    %s163 = scalar_lea.vmem [#allocation5], 2560
    %s164 = scalar_lea.sflag [#allocation6], 2
    %s166 = sshll.u32 1, 14
    %s167 = sxor.u32 4294967295, %s166
    %s169 = sadd.s32 2, %s96
    %s171 = sshll.u32 7, 26
    %s172 = sxor.u32 4294967295, %s171
    %s173 = sand.u32 0, %s172
    %s174 = sshll.u32 %s169, 26
    %s175 = sor.u32 %s173, %s174
    %s176 = sshll.u32 %s163, 4
    %s177 = int_to_ptr.vmem [resolvable:$true] %s176
    %180 = sst [smem:[#allocation22]] 256
    %s181 = scalar_lea.smem [#allocation22], 1
    %182 = sst [smem:[%s181]] 256
    %s183 = scalar_lea.smem [#allocation22], 2
    %184 = sst [smem:[%s183]] 2
    %s185 = scalar_lea.smem [#allocation22], 3
    %186 = sst [smem:[%s185]] 64
    %s187 = scalar_lea.smem [#allocation22], 4
    %188 = sst [smem:[%s187]] 128
    %s189 = scalar_lea.smem [#allocation22], 5
    %190 = sst [smem:[%s189]] 2
    %s191 = scalar_lea.smem [#allocation22], 6
    %192 = sst [smem:[%s191]] 128
    %s193 = scalar_lea.smem [#allocation22], 7
    %194 = sst [smem:[%s193]] 64
    %s195 = scalar_lea.smem [#allocation22], 8
    %196 = sst [smem:[%s195]] 4
    %198 = dma.general %s162, 40960, %s177, %s164, [#allocation21], [#allocation22], %s175, 0
    %s199 = scalar_lea.hbm %s8, 81920
    %s200 = scalar_lea.vmem [#allocation5], 5120
    %s201 = scalar_lea.sflag [#allocation6], 3
    %s203 = sshll.u32 1, 14
    %s204 = sxor.u32 4294967295, %s203
    %s206 = sadd.s32 2, %s96
    %s208 = sshll.u32 7, 26
    %s209 = sxor.u32 4294967295, %s208
    %s210 = sand.u32 0, %s209
    %s211 = sshll.u32 %s206, 26
    %s212 = sor.u32 %s210, %s211
    %s213 = sshll.u32 %s200, 4
    %s214 = int_to_ptr.vmem [resolvable:$true] %s213
    %217 = sst [smem:[#allocation24]] 256
    %s218 = scalar_lea.smem [#allocation24], 1
    %219 = sst [smem:[%s218]] 256
    %s220 = scalar_lea.smem [#allocation24], 2
    %221 = sst [smem:[%s220]] 2
    %s222 = scalar_lea.smem [#allocation24], 3
    %223 = sst [smem:[%s222]] 64
    %s224 = scalar_lea.smem [#allocation24], 4
    %225 = sst [smem:[%s224]] 128
    %s226 = scalar_lea.smem [#allocation24], 5
    %227 = sst [smem:[%s226]] 2
    %s228 = scalar_lea.smem [#allocation24], 6
    %229 = sst [smem:[%s228]] 128
    %s230 = scalar_lea.smem [#allocation24], 7
    %231 = sst [smem:[%s230]] 64
    %s232 = scalar_lea.smem [#allocation24], 8
    %233 = sst [smem:[%s232]] 4
    %235 = dma.general %s199, 40960, %s214, %s201, [#allocation23], [#allocation24], %s212, 0
    %s236 = scalar_lea.hbm %s8, 122880
    %s237 = scalar_lea.vmem [#allocation5], 7680
    %s238 = scalar_lea.sflag [#allocation6], 4
    %s240 = sshll.u32 1, 14
    %s241 = sxor.u32 4294967295, %s240
    %s243 = sadd.s32 2, %s96
    %s245 = sshll.u32 7, 26
    %s246 = sxor.u32 4294967295, %s245
    %s247 = sand.u32 0, %s246
    %s248 = sshll.u32 %s243, 26
    %s249 = sor.u32 %s247, %s248
    %s250 = sshll.u32 %s237, 4
    %s251 = int_to_ptr.vmem [resolvable:$true] %s250
    %254 = sst [smem:[#allocation26]] 256
    %s255 = scalar_lea.smem [#allocation26], 1
    %256 = sst [smem:[%s255]] 256
    %s257 = scalar_lea.smem [#allocation26], 2
    %258 = sst [smem:[%s257]] 2
    %s259 = scalar_lea.smem [#allocation26], 3
    %260 = sst [smem:[%s259]] 64
    %s261 = scalar_lea.smem [#allocation26], 4
    %262 = sst [smem:[%s261]] 128
    %s263 = scalar_lea.smem [#allocation26], 5
    %264 = sst [smem:[%s263]] 2
    %s265 = scalar_lea.smem [#allocation26], 6
    %266 = sst [smem:[%s265]] 128
    %s267 = scalar_lea.smem [#allocation26], 7
    %268 = sst [smem:[%s267]] 64
    %s269 = scalar_lea.smem [#allocation26], 8
    %270 = sst [smem:[%s269]] 4
    %272 = dma.general %s236, 40960, %s251, %s238, [#allocation25], [#allocation26], %s249, 0
    %v273 = vld [vmem:[%s1] sm:$0xff]
    %v274 = vld [vmem:[%s1 + $0x8] sm:$0xff]
    %v275 = vld [vmem:[%s1 + $0x10] sm:$0xff]
    %v276 = vld [vmem:[%s1 + $0x18] sm:$0xff]
    %v277 = vld [vmem:[%s1 + $0x20] sm:$0xff]
    %v278 = vld [vmem:[%s1 + $0x28] sm:$0xff]
    %v279 = vld [vmem:[%s1 + $0x30] sm:$0xff]
    %v280 = vld [vmem:[%s1 + $0x38] sm:$0xff]
    %v281 = vpack.c.bf16 %v274, %v273
    %v282 = vpack.c.bf16 %v276, %v275
    %v283 = vpack.c.bf16 %v278, %v277
    %v284 = vpack.c.bf16 %v280, %v279
    %v285 = vld [vmem:[#allocation7] sm:$0xff]
    %v286 = vld [vmem:[#allocation7 + $0x8] sm:$0xff]
    %v287 = vld [vmem:[#allocation7 + $0x10] sm:$0xff]
    %v288 = vld [vmem:[#allocation7 + $0x18] sm:$0xff]
    %v289 = vld [vmem:[#allocation7 + $0x20] sm:$0xff]
    %v290 = vld [vmem:[#allocation7 + $0x28] sm:$0xff]
    %v291 = vld [vmem:[#allocation7 + $0x30] sm:$0xff]
    %v292 = vld [vmem:[#allocation7 + $0x38] sm:$0xff]
    %v293 = vld [vmem:[#allocation7 + $0x40] sm:$0xff]
    %v294 = vld [vmem:[#allocation7 + $0x48] sm:$0xff]
    %v295 = vld [vmem:[#allocation7 + $0x50] sm:$0xff]
    %v296 = vld [vmem:[#allocation7 + $0x58] sm:$0xff]
    %v297 = vld [vmem:[#allocation7 + $0x60] sm:$0xff]
    %v298 = vld [vmem:[#allocation7 + $0x68] sm:$0xff]
    %v299 = vld [vmem:[#allocation7 + $0x70] sm:$0xff]
    %v300 = vld [vmem:[#allocation7 + $0x78] sm:$0xff]
    %v301 = vld [vmem:[#allocation7 + $0x80] sm:$0xff]
    %v302 = vld [vmem:[#allocation7 + $0x88] sm:$0xff]
    %v303 = vld [vmem:[#allocation7 + $0x90] sm:$0xff]
    %v304 = vld [vmem:[#allocation7 + $0x98] sm:$0xff]
    %v305 = vld [vmem:[#allocation7 + $0xa0] sm:$0xff]
    %v306 = vld [vmem:[#allocation7 + $0xa8] sm:$0xff]
    %v307 = vld [vmem:[#allocation7 + $0xb0] sm:$0xff]
    %v308 = vld [vmem:[#allocation7 + $0xb8] sm:$0xff]
    %v309 = vld [vmem:[#allocation7 + $0xc0] sm:$0xff]
    %v310 = vld [vmem:[#allocation7 + $0xc8] sm:$0xff]
    %v311 = vld [vmem:[#allocation7 + $0xd0] sm:$0xff]
    %v312 = vld [vmem:[#allocation7 + $0xd8] sm:$0xff]
    %v313 = vld [vmem:[#allocation7 + $0xe0] sm:$0xff]
    %v314 = vld [vmem:[#allocation7 + $0xe8] sm:$0xff]
    %v315 = vld [vmem:[#allocation7 + $0xf0] sm:$0xff]
    %v316 = vld [vmem:[#allocation7 + $0xf8] sm:$0xff]
    %v317 = vld [vmem:[#allocation12] sm:$0xf]
    %v319 = vlaneseq
    %v320 = vshrl.u32 %v319, 7
    %v321 = vsub.s32 0, %v320
    %v322 = vrot.slane %v317, %v321
    %v323 = vlaneseq
    %v324 = vshrl.u32 %v323, 7
    %v325 = vsub.s32 1, %v324
    %v326 = vrot.slane %v317, %v325
    %v327 = vlaneseq
    %v328 = vshrl.u32 %v327, 7
    %v329 = vsub.s32 2, %v328
    %v330 = vrot.slane %v317, %v329
    %v331 = vlaneseq
    %v332 = vshrl.u32 %v331, 7
    %v333 = vsub.s32 3, %v332
    %v334 = vrot.slane %v317, %v333
    %v371 = vunpack.c.l.b16 %v285
    %v372 = vunpack.c.h.b16 %v285
    %v373 = vunpack.c.l.b16 %v286
    %v374 = vunpack.c.h.b16 %v286
    %v375 = vunpack.c.l.b16 %v287
    %v376 = vunpack.c.h.b16 %v287
    %v377 = vunpack.c.l.b16 %v288
    %v378 = vunpack.c.h.b16 %v288
    %v379 = vunpack.c.l.b16 %v289
    %v380 = vunpack.c.h.b16 %v289
    %v381 = vunpack.c.l.b16 %v290
    %v382 = vunpack.c.h.b16 %v290
    %v383 = vunpack.c.l.b16 %v291
    %v384 = vunpack.c.h.b16 %v291
    %v385 = vunpack.c.l.b16 %v292
    %v386 = vunpack.c.h.b16 %v292
    %v387 = vunpack.c.l.b16 %v293
    %v388 = vunpack.c.h.b16 %v293
    %v389 = vunpack.c.l.b16 %v294
    %v390 = vunpack.c.h.b16 %v294
    %v391 = vunpack.c.l.b16 %v295
    %v392 = vunpack.c.h.b16 %v295
    %v393 = vunpack.c.l.b16 %v296
    %v394 = vunpack.c.h.b16 %v296
    %v395 = vunpack.c.l.b16 %v297
    %v396 = vunpack.c.h.b16 %v297
    %v397 = vunpack.c.l.b16 %v298
    %v398 = vunpack.c.h.b16 %v298
    %v399 = vunpack.c.l.b16 %v299
    %v400 = vunpack.c.h.b16 %v299
    %v401 = vunpack.c.l.b16 %v300
    %v402 = vunpack.c.h.b16 %v300
    %v403 = vunpack.c.l.b16 %v301
    %v404 = vunpack.c.h.b16 %v301
    %v405 = vunpack.c.l.b16 %v302
    %v406 = vunpack.c.h.b16 %v302
    %v407 = vunpack.c.l.b16 %v303
    %v408 = vunpack.c.h.b16 %v303
    %v409 = vunpack.c.l.b16 %v304
    %v410 = vunpack.c.h.b16 %v304
    %v411 = vunpack.c.l.b16 %v305
    %v412 = vunpack.c.h.b16 %v305
    %v413 = vunpack.c.l.b16 %v306
    %v414 = vunpack.c.h.b16 %v306
    %v415 = vunpack.c.l.b16 %v307
    %v416 = vunpack.c.h.b16 %v307
    %v417 = vunpack.c.l.b16 %v308
    %v418 = vunpack.c.h.b16 %v308
    %v419 = vunpack.c.l.b16 %v309
    %v420 = vunpack.c.h.b16 %v309
    %v421 = vunpack.c.l.b16 %v310
    %v422 = vunpack.c.h.b16 %v310
    %v423 = vunpack.c.l.b16 %v311
    %v424 = vunpack.c.h.b16 %v311
    %v425 = vunpack.c.l.b16 %v312
    %v426 = vunpack.c.h.b16 %v312
    %v427 = vunpack.c.l.b16 %v313
    %v428 = vunpack.c.h.b16 %v313
    %v429 = vunpack.c.l.b16 %v314
    %v430 = vunpack.c.h.b16 %v314
    %v431 = vunpack.c.l.b16 %v315
    %v432 = vunpack.c.h.b16 %v315
    %v433 = vunpack.c.l.b16 %v316
    %v434 = vunpack.c.h.b16 %v316
    %v435 = vpack.c.b16 %v375, %v371
    %v436 = vpack.c.b16 %v376, %v372
    %v437 = vpack.c.b16 %v377, %v373
    %v438 = vpack.c.b16 %v378, %v374
    %v439 = vpack.c.b16 %v383, %v379
    %v440 = vpack.c.b16 %v384, %v380
    %v441 = vpack.c.b16 %v385, %v381
    %v442 = vpack.c.b16 %v386, %v382
    %v443 = vpack.c.b16 %v391, %v387
    %v444 = vpack.c.b16 %v392, %v388
    %v445 = vpack.c.b16 %v393, %v389
    %v446 = vpack.c.b16 %v394, %v390
    %v447 = vpack.c.b16 %v399, %v395
    %v448 = vpack.c.b16 %v400, %v396
    %v449 = vpack.c.b16 %v401, %v397
    %v450 = vpack.c.b16 %v402, %v398
    %v451 = vpack.c.b16 %v407, %v403
    %v452 = vpack.c.b16 %v408, %v404
    %v453 = vpack.c.b16 %v409, %v405
    %v454 = vpack.c.b16 %v410, %v406
    %v455 = vpack.c.b16 %v415, %v411
    %v456 = vpack.c.b16 %v416, %v412
    %v457 = vpack.c.b16 %v417, %v413
    %v458 = vpack.c.b16 %v418, %v414
    %v459 = vpack.c.b16 %v423, %v419
    %v460 = vpack.c.b16 %v424, %v420
    %v461 = vpack.c.b16 %v425, %v421
    %v462 = vpack.c.b16 %v426, %v422
    %v463 = vpack.c.b16 %v431, %v427
    %v464 = vpack.c.b16 %v432, %v428
    %v465 = vpack.c.b16 %v433, %v429
    %v466 = vpack.c.b16 %v434, %v430
    %499 = vmatprep.subr.bf16.mxu0 %v436
    %500 = vmatpush1.bf16.msra.mxu0 %v435
    %501 = vmatprep.subr.bf16.mxu0 %v440
    %502 = vmatpush1.bf16.msra.mxu0 %v439
    %503 = vmatprep.subr.bf16.mxu0 %v444
    %504 = vmatpush1.bf16.msra.mxu0 %v443
    %505 = vmatprep.subr.bf16.mxu0 %v448
    %506 = vmatpush1.bf16.msra.mxu0 %v447
    %507 = vmatprep.subr.bf16.mxu0 %v452
    %508 = vmatpush1.bf16.msra.mxu0 %v451
    %509 = vmatprep.subr.bf16.mxu0 %v456
    %510 = vmatpush1.bf16.msra.mxu0 %v455
    %511 = vmatprep.subr.bf16.mxu0 %v460
    %512 = vmatpush1.bf16.msra.mxu0 %v459
    %513 = vmatprep.subr.bf16.mxu0 %v464
    %514 = vmatpush1.bf16.msra.mxu0 %v463
    %515 = vmatprep.subr.bf16.mxu0 0
    %516 = vmatpush1.bf16.msra.mxu0 0
    %517 = vmatprep.subr.bf16.mxu0 0
    %518 = vmatpush1.bf16.msra.mxu0 0
    %519 = vmatprep.subr.bf16.mxu0 0
    %520 = vmatpush1.bf16.msra.mxu0 0
    %521 = vmatprep.subr.bf16.mxu0 0
    %522 = vmatpush1.bf16.msra.mxu0 0
    %523 = vmatprep.subr.bf16.mxu0 0
    %524 = vmatpush1.bf16.msra.mxu0 0
    %525 = vmatprep.subr.bf16.mxu0 0
    %526 = vmatpush1.bf16.msra.mxu0 0
    %527 = vmatprep.subr.bf16.mxu0 0
    %528 = vmatpush1.bf16.msra.mxu0 0
    %529 = vmatprep.subr.bf16.mxu0 0
    %530 = vmatpush1.bf16.msra.mxu0 0
    %531 = vmatprep.mubr.bf16.mxu0 0
    %532 = vmatmul.mubr.bf16.gmra.mrb[0].mxu0 %v281
    %v533 = vpop.f32.mrb[0].mxu0
    %v534 = vadd.f32 %v322, %v533
    %v535 = vpop.f32.mrb[0].mxu0
    %v536 = vadd.f32 %v326, %v535
    %v537 = vpop.f32.mrb[0].mxu0
    %v538 = vadd.f32 %v322, %v537
    %v539 = vpop.f32.mrb[0].mxu0
    %v540 = vadd.f32 %v326, %v539
    %541 = vmatprep.mubr.bf16.mxu0 0
    %542 = vmatmul.mubr.bf16.gmra.mrb[0].mxu0 %v282
    %v543 = vpop.f32.mrb[0].mxu0
    %v544 = vadd.f32 %v322, %v543
    %v545 = vpop.f32.mrb[0].mxu0
    %v546 = vadd.f32 %v326, %v545
    %v547 = vpop.f32.mrb[0].mxu0
    %v548 = vadd.f32 %v322, %v547
    %v549 = vpop.f32.mrb[0].mxu0
    %v550 = vadd.f32 %v326, %v549
    %551 = vmatprep.mubr.bf16.mxu0 0
    %552 = vmatmul.mubr.bf16.gmra.mrb[0].mxu0 %v283
    %v553 = vpop.f32.mrb[0].mxu0
    %v554 = vadd.f32 %v322, %v553
    %v555 = vpop.f32.mrb[0].mxu0
    %v556 = vadd.f32 %v326, %v555
    %v557 = vpop.f32.mrb[0].mxu0
    %v558 = vadd.f32 %v322, %v557
    %v559 = vpop.f32.mrb[0].mxu0
    %v560 = vadd.f32 %v326, %v559
    %561 = vmatprep.mubr.bf16.mxu0 0
    %562 = vmatmul.mubr.bf16.gmra.mrb[0].mxu0 %v284
    %v563 = vpop.f32.mrb[0].mxu0
    %v564 = vadd.f32 %v322, %v563
    %v565 = vpop.f32.mrb[0].mxu0
    %v566 = vadd.f32 %v326, %v565
    %v567 = vpop.f32.mrb[0].mxu0
    %v568 = vadd.f32 %v322, %v567
    %v569 = vpop.f32.mrb[0].mxu0
    %v570 = vadd.f32 %v326, %v569
    %571 = vdwg.mxu0
    %572 = vmatprep.subr.bf16.mxu0 %v438
    %573 = vmatpush1.bf16.msra.mxu0 %v437
    %574 = vmatprep.subr.bf16.mxu0 %v442
    %575 = vmatpush1.bf16.msra.mxu0 %v441
    %576 = vmatprep.subr.bf16.mxu0 %v446
    %577 = vmatpush1.bf16.msra.mxu0 %v445
    %578 = vmatprep.subr.bf16.mxu0 %v450
    %579 = vmatpush1.bf16.msra.mxu0 %v449
    %580 = vmatprep.subr.bf16.mxu0 %v454
    %581 = vmatpush1.bf16.msra.mxu0 %v453
    %582 = vmatprep.subr.bf16.mxu0 %v458
    %583 = vmatpush1.bf16.msra.mxu0 %v457
    %584 = vmatprep.subr.bf16.mxu0 %v462
    %585 = vmatpush1.bf16.msra.mxu0 %v461
    %586 = vmatprep.subr.bf16.mxu0 %v466
    %587 = vmatpush1.bf16.msra.mxu0 %v465
    %588 = vmatprep.subr.bf16.mxu0 0
    %589 = vmatpush1.bf16.msra.mxu0 0
    %590 = vmatprep.subr.bf16.mxu0 0
    %591 = vmatpush1.bf16.msra.mxu0 0
    %592 = vmatprep.subr.bf16.mxu0 0
    %593 = vmatpush1.bf16.msra.mxu0 0
    %594 = vmatprep.subr.bf16.mxu0 0
    %595 = vmatpush1.bf16.msra.mxu0 0
    %596 = vmatprep.subr.bf16.mxu0 0
    %597 = vmatpush1.bf16.msra.mxu0 0
    %598 = vmatprep.subr.bf16.mxu0 0
    %599 = vmatpush1.bf16.msra.mxu0 0
    %600 = vmatprep.subr.bf16.mxu0 0
    %601 = vmatpush1.bf16.msra.mxu0 0
    %602 = vmatprep.subr.bf16.mxu0 0
    %603 = vmatpush1.bf16.msra.mxu0 0
    %604 = vmatprep.mubr.bf16.mxu0 0
    %605 = vmatmul.mubr.bf16.gmra.mrb[0].mxu0 %v281
    %v606 = vpop.f32.mrb[0].mxu0
    %v607 = vadd.f32 %v330, %v606
    %v608 = vpop.f32.mrb[0].mxu0
    %v609 = vadd.f32 %v334, %v608
    %v610 = vpop.f32.mrb[0].mxu0
    %v611 = vadd.f32 %v330, %v610
    %v612 = vpop.f32.mrb[0].mxu0
    %v613 = vadd.f32 %v334, %v612
    %614 = vmatprep.mubr.bf16.mxu0 0
    %615 = vmatmul.mubr.bf16.gmra.mrb[0].mxu0 %v282
    %v616 = vpop.f32.mrb[0].mxu0
    %v617 = vadd.f32 %v330, %v616
    %v618 = vpop.f32.mrb[0].mxu0
    %v619 = vadd.f32 %v334, %v618
    %v620 = vpop.f32.mrb[0].mxu0
    %v621 = vadd.f32 %v330, %v620
    %v622 = vpop.f32.mrb[0].mxu0
    %v623 = vadd.f32 %v334, %v622
    %624 = vmatprep.mubr.bf16.mxu0 0
    %625 = vmatmul.mubr.bf16.gmra.mrb[0].mxu0 %v283
    %v626 = vpop.f32.mrb[0].mxu0
    %v627 = vadd.f32 %v330, %v626
    %v628 = vpop.f32.mrb[0].mxu0
    %v629 = vadd.f32 %v334, %v628
    %v630 = vpop.f32.mrb[0].mxu0
    %v631 = vadd.f32 %v330, %v630
    %v632 = vpop.f32.mrb[0].mxu0
    %v633 = vadd.f32 %v334, %v632
    %634 = vmatprep.mubr.bf16.mxu0 0
    %635 = vmatmul.mubr.bf16.gmra.mrb[0].mxu0 %v284
    %v636 = vpop.f32.mrb[0].mxu0
    %v637 = vadd.f32 %v330, %v636
    %v638 = vpop.f32.mrb[0].mxu0
    %v639 = vadd.f32 %v334, %v638
    %v640 = vpop.f32.mrb[0].mxu0
    %v641 = vadd.f32 %v330, %v640
    %v642 = vpop.f32.mrb[0].mxu0
    %v643 = vadd.f32 %v334, %v642
    %644 = vdwg.mxu0
    %645 = vst [vmem:[#allocation2] sm:$0xff] %v534
    %646 = vst [vmem:[#allocation2 + $0x8] sm:$0xff] %v536
    %647 = vst [vmem:[#allocation2 + $0x10] sm:$0xff] %v607
    %648 = vst [vmem:[#allocation2 + $0x18] sm:$0xff] %v609
    %649 = vst [vmem:[#allocation2 + $0x20] sm:$0xff] %v538
    %650 = vst [vmem:[#allocation2 + $0x28] sm:$0xff] %v540
    %651 = vst [vmem:[#allocation2 + $0x30] sm:$0xff] %v611
    %652 = vst [vmem:[#allocation2 + $0x38] sm:$0xff] %v613
    %653 = vst [vmem:[#allocation2 + $0x40] sm:$0xff] %v544
    %654 = vst [vmem:[#allocation2 + $0x48] sm:$0xff] %v546
    %655 = vst [vmem:[#allocation2 + $0x50] sm:$0xff] %v617
    %656 = vst [vmem:[#allocation2 + $0x58] sm:$0xff] %v619
    %657 = vst [vmem:[#allocation2 + $0x60] sm:$0xff] %v548
    %658 = vst [vmem:[#allocation2 + $0x68] sm:$0xff] %v550
    %659 = vst [vmem:[#allocation2 + $0x70] sm:$0xff] %v621
    %660 = vst [vmem:[#allocation2 + $0x78] sm:$0xff] %v623
    %661 = vst [vmem:[#allocation2 + $0x80] sm:$0xff] %v554
    %662 = vst [vmem:[#allocation2 + $0x88] sm:$0xff] %v556
    %663 = vst [vmem:[#allocation2 + $0x90] sm:$0xff] %v627
    %664 = vst [vmem:[#allocation2 + $0x98] sm:$0xff] %v629
    %665 = vst [vmem:[#allocation2 + $0xa0] sm:$0xff] %v558
    %666 = vst [vmem:[#allocation2 + $0xa8] sm:$0xff] %v560
    %667 = vst [vmem:[#allocation2 + $0xb0] sm:$0xff] %v631
    %668 = vst [vmem:[#allocation2 + $0xb8] sm:$0xff] %v633
    %669 = vst [vmem:[#allocation2 + $0xc0] sm:$0xff] %v564
    %670 = vst [vmem:[#allocation2 + $0xc8] sm:$0xff] %v566
    %671 = vst [vmem:[#allocation2 + $0xd0] sm:$0xff] %v637
    %672 = vst [vmem:[#allocation2 + $0xd8] sm:$0xff] %v639
    %673 = vst [vmem:[#allocation2 + $0xe0] sm:$0xff] %v568
    %674 = vst [vmem:[#allocation2 + $0xe8] sm:$0xff] %v570
    %675 = vst [vmem:[#allocation2 + $0xf0] sm:$0xff] %v641
    %676 = vst [vmem:[#allocation2 + $0xf8] sm:$0xff] %v643
    %v677 = vld [vmem:[%s0] sm:$0xff]
    %v678 = vpack.c.bf16 %v677, %v677
    %v679 = vld [vmem:[#allocation2] sm:$0xff]
    %v680 = vld [vmem:[#allocation2 + $0x8] sm:$0xff]
    %v681 = vld [vmem:[#allocation2 + $0x10] sm:$0xff]
    %v682 = vld [vmem:[#allocation2 + $0x18] sm:$0xff]
    %v683 = vld [vmem:[#allocation10] sm:$0xff]
    %v684 = vld [vmem:[#allocation10 + $0x8] sm:$0xff]
    %v685 = vld [vmem:[#allocation10 + $0x10] sm:$0xff]
    %v686 = vld [vmem:[#allocation10 + $0x18] sm:$0xff]
    %v687 = vld [vmem:[#allocation10 + $0x20] sm:$0xff]
    %v688 = vld [vmem:[#allocation10 + $0x28] sm:$0xff]
    %v689 = vld [vmem:[#allocation10 + $0x30] sm:$0xff]
    %v690 = vld [vmem:[#allocation10 + $0x38] sm:$0xff]
    %v691 = vld [vmem:[#allocation10 + $0x40] sm:$0xff]
    %v692 = vld [vmem:[#allocation10 + $0x48] sm:$0xff]
    %v693 = vld [vmem:[#allocation10 + $0x50] sm:$0xff]
    %v694 = vld [vmem:[#allocation10 + $0x58] sm:$0xff]
    %v695 = vld [vmem:[#allocation10 + $0x60] sm:$0xff]
    %v696 = vld [vmem:[#allocation10 + $0x68] sm:$0xff]
    %v697 = vld [vmem:[#allocation10 + $0x70] sm:$0xff]
    %v698 = vld [vmem:[#allocation10 + $0x78] sm:$0xff]
    %v699 = vld [vmem:[#allocation10 + $0x80] sm:$0xff]
    %v700 = vld [vmem:[#allocation10 + $0x88] sm:$0xff]
    %v701 = vld [vmem:[#allocation10 + $0x90] sm:$0xff]
    %v702 = vld [vmem:[#allocation10 + $0x98] sm:$0xff]
    %v703 = vld [vmem:[#allocation10 + $0xa0] sm:$0xff]
    %v704 = vld [vmem:[#allocation10 + $0xa8] sm:$0xff]
    %v705 = vld [vmem:[#allocation10 + $0xb0] sm:$0xff]
    %v706 = vld [vmem:[#allocation10 + $0xb8] sm:$0xff]
    %v707 = vld [vmem:[#allocation10 + $0xc0] sm:$0xff]
    %v708 = vld [vmem:[#allocation10 + $0xc8] sm:$0xff]
    %v709 = vld [vmem:[#allocation10 + $0xd0] sm:$0xff]
    %v710 = vld [vmem:[#allocation10 + $0xd8] sm:$0xff]
    %v711 = vld [vmem:[#allocation10 + $0xe0] sm:$0xff]
    %v712 = vld [vmem:[#allocation10 + $0xe8] sm:$0xff]
    %v713 = vld [vmem:[#allocation10 + $0xf0] sm:$0xff]
    %v714 = vld [vmem:[#allocation10 + $0xf8] sm:$0xff]
    %v747 = vunpack.c.l.b16 %v683
    %v748 = vunpack.c.h.b16 %v683
    %v749 = vunpack.c.l.b16 %v684
    %v750 = vunpack.c.h.b16 %v684
    %v751 = vunpack.c.l.b16 %v685
    %v752 = vunpack.c.h.b16 %v685
    %v753 = vunpack.c.l.b16 %v686
    %v754 = vunpack.c.h.b16 %v686
    %v755 = vunpack.c.l.b16 %v687
    %v756 = vunpack.c.h.b16 %v687
    %v757 = vunpack.c.l.b16 %v688
    %v758 = vunpack.c.h.b16 %v688
    %v759 = vunpack.c.l.b16 %v689
    %v760 = vunpack.c.h.b16 %v689
    %v761 = vunpack.c.l.b16 %v690
    %v762 = vunpack.c.h.b16 %v690
    %v763 = vunpack.c.l.b16 %v691
    %v764 = vunpack.c.h.b16 %v691
    %v765 = vunpack.c.l.b16 %v692
    %v766 = vunpack.c.h.b16 %v692
    %v767 = vunpack.c.l.b16 %v693
    %v768 = vunpack.c.h.b16 %v693
    %v769 = vunpack.c.l.b16 %v694
    %v770 = vunpack.c.h.b16 %v694
    %v771 = vunpack.c.l.b16 %v695
    %v772 = vunpack.c.h.b16 %v695
    %v773 = vunpack.c.l.b16 %v696
    %v774 = vunpack.c.h.b16 %v696
    %v775 = vunpack.c.l.b16 %v697
    %v776 = vunpack.c.h.b16 %v697
    %v777 = vunpack.c.l.b16 %v698
    %v778 = vunpack.c.h.b16 %v698
    %v779 = vunpack.c.l.b16 %v699
    %v780 = vunpack.c.h.b16 %v699
    %v781 = vunpack.c.l.b16 %v700
    %v782 = vunpack.c.h.b16 %v700
    %v783 = vunpack.c.l.b16 %v701
    %v784 = vunpack.c.h.b16 %v701
    %v785 = vunpack.c.l.b16 %v702
    %v786 = vunpack.c.h.b16 %v702
    %v787 = vunpack.c.l.b16 %v703
    %v788 = vunpack.c.h.b16 %v703
    %v789 = vunpack.c.l.b16 %v704
    %v790 = vunpack.c.h.b16 %v704
    %v791 = vunpack.c.l.b16 %v705
    %v792 = vunpack.c.h.b16 %v705
    %v793 = vunpack.c.l.b16 %v706
    %v794 = vunpack.c.h.b16 %v706
    %v795 = vunpack.c.l.b16 %v707
    %v796 = vunpack.c.h.b16 %v707
    %v797 = vunpack.c.l.b16 %v708
    %v798 = vunpack.c.h.b16 %v708
    %v799 = vunpack.c.l.b16 %v709
    %v800 = vunpack.c.h.b16 %v709
    %v801 = vunpack.c.l.b16 %v710
    %v802 = vunpack.c.h.b16 %v710
    %v803 = vunpack.c.l.b16 %v711
    %v804 = vunpack.c.h.b16 %v711
    %v805 = vunpack.c.l.b16 %v712
    %v806 = vunpack.c.h.b16 %v712
    %v807 = vunpack.c.l.b16 %v713
    %v808 = vunpack.c.h.b16 %v713
    %v809 = vunpack.c.l.b16 %v714
    %v810 = vunpack.c.h.b16 %v714
    %v811 = vpack.c.b16 %v751, %v747
    %v812 = vpack.c.b16 %v752, %v748
    %v813 = vpack.c.b16 %v753, %v749
    %v814 = vpack.c.b16 %v754, %v750
    %v815 = vpack.c.b16 %v759, %v755
    %v816 = vpack.c.b16 %v760, %v756
    %v817 = vpack.c.b16 %v761, %v757
    %v818 = vpack.c.b16 %v762, %v758
    %v819 = vpack.c.b16 %v767, %v763
    %v820 = vpack.c.b16 %v768, %v764
    %v821 = vpack.c.b16 %v769, %v765
    %v822 = vpack.c.b16 %v770, %v766
    %v823 = vpack.c.b16 %v775, %v771
    %v824 = vpack.c.b16 %v776, %v772
    %v825 = vpack.c.b16 %v777, %v773
    %v826 = vpack.c.b16 %v778, %v774
    %v827 = vpack.c.b16 %v783, %v779
    %v828 = vpack.c.b16 %v784, %v780
    %v829 = vpack.c.b16 %v785, %v781
    %v830 = vpack.c.b16 %v786, %v782
    %v831 = vpack.c.b16 %v791, %v787
    %v832 = vpack.c.b16 %v792, %v788
    %v833 = vpack.c.b16 %v793, %v789
    %v834 = vpack.c.b16 %v794, %v790
    %v835 = vpack.c.b16 %v799, %v795
    %v836 = vpack.c.b16 %v800, %v796
    %v837 = vpack.c.b16 %v801, %v797
    %v838 = vpack.c.b16 %v802, %v798
    %v839 = vpack.c.b16 %v807, %v803
    %v840 = vpack.c.b16 %v808, %v804
    %v841 = vpack.c.b16 %v809, %v805
    %v842 = vpack.c.b16 %v810, %v806
    %875 = vmatprep.subr.bf16.mxu0 %v812
    %876 = vmatpush1.bf16.msra.mxu0 %v811
    %877 = vmatprep.subr.bf16.mxu0 %v816
    %878 = vmatpush1.bf16.msra.mxu0 %v815
    %879 = vmatprep.subr.bf16.mxu0 %v820
    %880 = vmatpush1.bf16.msra.mxu0 %v819
    %881 = vmatprep.subr.bf16.mxu0 %v824
    %882 = vmatpush1.bf16.msra.mxu0 %v823
    %883 = vmatprep.subr.bf16.mxu0 %v828
    %884 = vmatpush1.bf16.msra.mxu0 %v827
    %885 = vmatprep.subr.bf16.mxu0 %v832
    %886 = vmatpush1.bf16.msra.mxu0 %v831
    %887 = vmatprep.subr.bf16.mxu0 %v836
    %888 = vmatpush1.bf16.msra.mxu0 %v835
    %889 = vmatprep.subr.bf16.mxu0 %v840
    %890 = vmatpush1.bf16.msra.mxu0 %v839
    %891 = vmatprep.subr.bf16.mxu0 0
    %892 = vmatpush1.bf16.msra.mxu0 0
    %893 = vmatprep.subr.bf16.mxu0 0
    %894 = vmatpush1.bf16.msra.mxu0 0
    %895 = vmatprep.subr.bf16.mxu0 0
    %896 = vmatpush1.bf16.msra.mxu0 0
    %897 = vmatprep.subr.bf16.mxu0 0
    %898 = vmatpush1.bf16.msra.mxu0 0
    %899 = vmatprep.subr.bf16.mxu0 0
    %900 = vmatpush1.bf16.msra.mxu0 0
    %901 = vmatprep.subr.bf16.mxu0 0
    %902 = vmatpush1.bf16.msra.mxu0 0
    %903 = vmatprep.subr.bf16.mxu0 0
    %904 = vmatpush1.bf16.msra.mxu0 0
    %905 = vmatprep.subr.bf16.mxu0 0
    %906 = vmatpush1.bf16.msra.mxu0 0
    %907 = vmatprep.mubr.bf16.mxu0 0
    %908 = vmatmul.mubr.bf16.gmra.mrb[0].mxu0 0
    %v909 = vpop.f32.mrb[0].mxu0
    %v910 = vadd.f32 0.0, %v909
    %v911 = vpop.f32.mrb[0].mxu0
    %v912 = vadd.f32 0.0, %v911
    %v913 = vpop.f32.mrb[0].mxu0
    %v914 = vpop.f32.mrb[0].mxu0
    %915 = vdwg.mxu0
    %916 = vmatprep.subr.bf16.mxu0 %v814
    %917 = vmatpush1.bf16.msra.mxu0 %v813
    %918 = vmatprep.subr.bf16.mxu0 %v818
    %919 = vmatpush1.bf16.msra.mxu0 %v817
    %920 = vmatprep.subr.bf16.mxu0 %v822
    %921 = vmatpush1.bf16.msra.mxu0 %v821
    %922 = vmatprep.subr.bf16.mxu0 %v826
    %923 = vmatpush1.bf16.msra.mxu0 %v825
    %924 = vmatprep.subr.bf16.mxu0 %v830
    %925 = vmatpush1.bf16.msra.mxu0 %v829
    %926 = vmatprep.subr.bf16.mxu0 %v834
    %927 = vmatpush1.bf16.msra.mxu0 %v833
    %928 = vmatprep.subr.bf16.mxu0 %v838
    %929 = vmatpush1.bf16.msra.mxu0 %v837
    %930 = vmatprep.subr.bf16.mxu0 %v842
    %931 = vmatpush1.bf16.msra.mxu0 %v841
    %932 = vmatprep.subr.bf16.mxu0 0
    %933 = vmatpush1.bf16.msra.mxu0 0
    %934 = vmatprep.subr.bf16.mxu0 0
    %935 = vmatpush1.bf16.msra.mxu0 0
    %936 = vmatprep.subr.bf16.mxu0 0
    %937 = vmatpush1.bf16.msra.mxu0 0
    %938 = vmatprep.subr.bf16.mxu0 0
    %939 = vmatpush1.bf16.msra.mxu0 0
    %940 = vmatprep.subr.bf16.mxu0 0
    %941 = vmatpush1.bf16.msra.mxu0 0
    %942 = vmatprep.subr.bf16.mxu0 0
    %943 = vmatpush1.bf16.msra.mxu0 0
    %944 = vmatprep.subr.bf16.mxu0 0
    %945 = vmatpush1.bf16.msra.mxu0 0
    %946 = vmatprep.subr.bf16.mxu0 0
    %947 = vmatpush1.bf16.msra.mxu0 0
    %948 = vmatprep.mubr.bf16.mxu0 0
    %949 = vmatmul.mubr.bf16.gmra.mrb[0].mxu0 0
    %v950 = vpop.f32.mrb[0].mxu0
    %v951 = vadd.f32 0.0, %v950
    %v952 = vpop.f32.mrb[0].mxu0
    %v953 = vadd.f32 0.0, %v952
    %v954 = vpop.f32.mrb[0].mxu0
    %v955 = vpop.f32.mrb[0].mxu0
    %956 = vdwg.mxu0
    %v957 = vadd.f32 %v679, %v910
    %v958 = vadd.f32 %v680, %v912
    %v959 = vadd.f32 %v681, %v951
    %v960 = vadd.f32 %v682, %v953
    %v961 = vxor.u32 %v957, 2147483648
    %v962 = vmul.f32 %v961, 1.442695
    %v963 = vpow.pop %v962
    %v964 = vadd.f32 %v963, 1.0
    %v965 = vrcp.pop %v964
    %v966 = vmul.f32 1.0, %v965
    %v967 = vxor.u32 %v958, 2147483648
    %v968 = vmul.f32 %v967, 1.442695
    %v969 = vpow.pop %v968
    %v970 = vadd.f32 %v969, 1.0
    %v971 = vrcp.pop %v970
    %v972 = vmul.f32 1.0, %v971
    %v973 = vtanh.pop %v959
    %v974 = vxor.u32 %v960, 2147483648
    %v975 = vmul.f32 %v974, 1.442695
    %v976 = vpow.pop %v975
    %v977 = vadd.f32 %v976, 1.0
    %v978 = vrcp.pop %v977
    %v979 = vmul.f32 1.0, %v978
    %v980 = vmul.f32 %v972, 0.0
    %v981 = vmul.f32 %v966, %v973
    %v982 = vadd.f32 %v980, %v981
    %v983 = vtanh.pop %v982
    %v984 = vmul.f32 %v979, %v983
    %v985 = vld [vmem:[#allocation2 + $0x20] sm:$0xff]
    %v986 = vld [vmem:[#allocation2 + $0x28] sm:$0xff]
    %v987 = vld [vmem:[#allocation2 + $0x30] sm:$0xff]
    %v988 = vld [vmem:[#allocation2 + $0x38] sm:$0xff]
    %v989 = vpack.c.bf16 %v984, %v984
    %990 = vmatprep.subr.bf16.mxu0 %v812
    %991 = vmatpush1.bf16.msra.mxu0 %v811
    %992 = vmatprep.subr.bf16.mxu0 %v816
    %993 = vmatpush1.bf16.msra.mxu0 %v815
    %994 = vmatprep.subr.bf16.mxu0 %v820
    %995 = vmatpush1.bf16.msra.mxu0 %v819
    %996 = vmatprep.subr.bf16.mxu0 %v824
    %997 = vmatpush1.bf16.msra.mxu0 %v823
    %998 = vmatprep.subr.bf16.mxu0 %v828
    %999 = vmatpush1.bf16.msra.mxu0 %v827
    %1000 = vmatprep.subr.bf16.mxu0 %v832
    %1001 = vmatpush1.bf16.msra.mxu0 %v831
    %1002 = vmatprep.subr.bf16.mxu0 %v836
    %1003 = vmatpush1.bf16.msra.mxu0 %v835
    %1004 = vmatprep.subr.bf16.mxu0 %v840
    %1005 = vmatpush1.bf16.msra.mxu0 %v839
    %1006 = vmatprep.subr.bf16.mxu0 0
    %1007 = vmatpush1.bf16.msra.mxu0 0
    %1008 = vmatprep.subr.bf16.mxu0 0
    %1009 = vmatpush1.bf16.msra.mxu0 0
    %1010 = vmatprep.subr.bf16.mxu0 0
    %1011 = vmatpush1.bf16.msra.mxu0 0
    %1012 = vmatprep.subr.bf16.mxu0 0
    %1013 = vmatpush1.bf16.msra.mxu0 0
    %1014 = vmatprep.subr.bf16.mxu0 0
    %1015 = vmatpush1.bf16.msra.mxu0 0
    %1016 = vmatprep.subr.bf16.mxu0 0
    %1017 = vmatpush1.bf16.msra.mxu0 0
    %1018 = vmatprep.subr.bf16.mxu0 0
    %1019 = vmatpush1.bf16.msra.mxu0 0
    %1020 = vmatprep.subr.bf16.mxu0 0
    %1021 = vmatpush1.bf16.msra.mxu0 0
    %1022 = vmatprep.mubr.bf16.mxu0 0
    %1023 = vmatmul.mubr.bf16.gmra.mrb[0].mxu0 %v989
    %v1024 = vpop.f32.mrb[0].mxu0
    %v1025 = vadd.f32 0.0, %v1024
    %v1026 = vpop.f32.mrb[0].mxu0
    %v1027 = vadd.f32 0.0, %v1026
    %v1028 = vpop.f32.mrb[0].mxu0
    %v1029 = vpop.f32.mrb[0].mxu0
    %1030 = vdwg.mxu0
    %1031 = vmatprep.subr.bf16.mxu0 %v814
    %1032 = vmatpush1.bf16.msra.mxu0 %v813
    %1033 = vmatprep.subr.bf16.mxu0 %v818
    %1034 = vmatpush1.bf16.msra.mxu0 %v817
    %1035 = vmatprep.subr.bf16.mxu0 %v822
    %1036 = vmatpush1.bf16.msra.mxu0 %v821
    %1037 = vmatprep.subr.bf16.mxu0 %v826
    %1038 = vmatpush1.bf16.msra.mxu0 %v825
    %1039 = vmatprep.subr.bf16.mxu0 %v830
    %1040 = vmatpush1.bf16.msra.mxu0 %v829
    %1041 = vmatprep.subr.bf16.mxu0 %v834
    %1042 = vmatpush1.bf16.msra.mxu0 %v833
    %1043 = vmatprep.subr.bf16.mxu0 %v838
    %1044 = vmatpush1.bf16.msra.mxu0 %v837
    %1045 = vmatprep.subr.bf16.mxu0 %v842
    %1046 = vmatpush1.bf16.msra.mxu0 %v841
    %1047 = vmatprep.subr.bf16.mxu0 0
    %1048 = vmatpush1.bf16.msra.mxu0 0
    %1049 = vmatprep.subr.bf16.mxu0 0
    %1050 = vmatpush1.bf16.msra.mxu0 0
    %1051 = vmatprep.subr.bf16.mxu0 0
    %1052 = vmatpush1.bf16.msra.mxu0 0
    %1053 = vmatprep.subr.bf16.mxu0 0
    %1054 = vmatpush1.bf16.msra.mxu0 0
    %1055 = vmatprep.subr.bf16.mxu0 0
    %1056 = vmatpush1.bf16.msra.mxu0 0
    %1057 = vmatprep.subr.bf16.mxu0 0
    %1058 = vmatpush1.bf16.msra.mxu0 0
    %1059 = vmatprep.subr.bf16.mxu0 0
    %1060 = vmatpush1.bf16.msra.mxu0 0
    %1061 = vmatprep.subr.bf16.mxu0 0
    %1062 = vmatpush1.bf16.msra.mxu0 0
    %1063 = vmatprep.mubr.bf16.mxu0 0
    %1064 = vmatmul.mubr.bf16.gmra.mrb[0].mxu0 %v989
    %v1065 = vpop.f32.mrb[0].mxu0
    %v1066 = vadd.f32 0.0, %v1065
    %v1067 = vpop.f32.mrb[0].mxu0
    %v1068 = vadd.f32 0.0, %v1067
    %v1069 = vpop.f32.mrb[0].mxu0
    %v1070 = vpop.f32.mrb[0].mxu0
    %1071 = vdwg.mxu0
    %v1072 = vadd.f32 %v985, %v1025
    %v1073 = vadd.f32 %v986, %v1027
    %v1074 = vadd.f32 %v987, %v1066
    %v1075 = vadd.f32 %v988, %v1068
    %v1076 = vxor.u32 %v1072, 2147483648
    %v1077 = vmul.f32 %v1076, 1.442695
    %v1078 = vpow.pop %v1077
    %v1079 = vadd.f32 %v1078, 1.0
    %v1080 = vrcp.pop %v1079
    %v1081 = vmul.f32 1.0, %v1080
    %v1082 = vxor.u32 %v1073, 2147483648
    %v1083 = vmul.f32 %v1082, 1.442695
    %v1084 = vpow.pop %v1083
    %v1085 = vadd.f32 %v1084, 1.0
    %v1086 = vrcp.pop %v1085
    %v1087 = vmul.f32 1.0, %v1086
    %v1088 = vtanh.pop %v1074
    %v1089 = vxor.u32 %v1075, 2147483648
    %v1090 = vmul.f32 %v1089, 1.442695
    %v1091 = vpow.pop %v1090
    %v1092 = vadd.f32 %v1091, 1.0
    %v1093 = vrcp.pop %v1092
    %v1094 = vmul.f32 1.0, %v1093
    %v1095 = vmul.f32 %v1087, %v982
    %v1096 = vmul.f32 %v1081, %v1088
    %v1097 = vadd.f32 %v1095, %v1096
    %v1098 = vtanh.pop %v1097
    %v1099 = vmul.f32 %v1094, %v1098
    %v1100 = vld [vmem:[#allocation2 + $0x40] sm:$0xff]
    %v1101 = vld [vmem:[#allocation2 + $0x48] sm:$0xff]
    %v1102 = vld [vmem:[#allocation2 + $0x50] sm:$0xff]
    %v1103 = vld [vmem:[#allocation2 + $0x58] sm:$0xff]
    %v1104 = vpack.c.bf16 %v1099, %v1099
    %1105 = vmatprep.subr.bf16.mxu0 %v812
    %1106 = vmatpush1.bf16.msra.mxu0 %v811
    %1107 = vmatprep.subr.bf16.mxu0 %v816
    %1108 = vmatpush1.bf16.msra.mxu0 %v815
    %1109 = vmatprep.subr.bf16.mxu0 %v820
    %1110 = vmatpush1.bf16.msra.mxu0 %v819
    %1111 = vmatprep.subr.bf16.mxu0 %v824
    %1112 = vmatpush1.bf16.msra.mxu0 %v823
    %1113 = vmatprep.subr.bf16.mxu0 %v828
    %1114 = vmatpush1.bf16.msra.mxu0 %v827
    %1115 = vmatprep.subr.bf16.mxu0 %v832
    %1116 = vmatpush1.bf16.msra.mxu0 %v831
    %1117 = vmatprep.subr.bf16.mxu0 %v836
    %1118 = vmatpush1.bf16.msra.mxu0 %v835
    %1119 = vmatprep.subr.bf16.mxu0 %v840
    %1120 = vmatpush1.bf16.msra.mxu0 %v839
    %1121 = vmatprep.subr.bf16.mxu0 0
    %1122 = vmatpush1.bf16.msra.mxu0 0
    %1123 = vmatprep.subr.bf16.mxu0 0
    %1124 = vmatpush1.bf16.msra.mxu0 0
    %1125 = vmatprep.subr.bf16.mxu0 0
    %1126 = vmatpush1.bf16.msra.mxu0 0
    %1127 = vmatprep.subr.bf16.mxu0 0
    %1128 = vmatpush1.bf16.msra.mxu0 0
    %1129 = vmatprep.subr.bf16.mxu0 0
    %1130 = vmatpush1.bf16.msra.mxu0 0
    %1131 = vmatprep.subr.bf16.mxu0 0
    %1132 = vmatpush1.bf16.msra.mxu0 0
    %1133 = vmatprep.subr.bf16.mxu0 0
    %1134 = vmatpush1.bf16.msra.mxu0 0
    %1135 = vmatprep.subr.bf16.mxu0 0
    %1136 = vmatpush1.bf16.msra.mxu0 0
    %1137 = vmatprep.mubr.bf16.mxu0 0
    %1138 = vmatmul.mubr.bf16.gmra.mrb[0].mxu0 %v1104
    %v1139 = vpop.f32.mrb[0].mxu0
    %v1140 = vadd.f32 0.0, %v1139
    %v1141 = vpop.f32.mrb[0].mxu0
    %v1142 = vadd.f32 0.0, %v1141
    %v1143 = vpop.f32.mrb[0].mxu0
    %v1144 = vpop.f32.mrb[0].mxu0
    %1145 = vdwg.mxu0
    %1146 = vmatprep.subr.bf16.mxu0 %v814
    %1147 = vmatpush1.bf16.msra.mxu0 %v813
    %1148 = vmatprep.subr.bf16.mxu0 %v818
    %1149 = vmatpush1.bf16.msra.mxu0 %v817
    %1150 = vmatprep.subr.bf16.mxu0 %v822
    %1151 = vmatpush1.bf16.msra.mxu0 %v821
    %1152 = vmatprep.subr.bf16.mxu0 %v826
    %1153 = vmatpush1.bf16.msra.mxu0 %v825
    %1154 = vmatprep.subr.bf16.mxu0 %v830
    %1155 = vmatpush1.bf16.msra.mxu0 %v829
    %1156 = vmatprep.subr.bf16.mxu0 %v834
    %1157 = vmatpush1.bf16.msra.mxu0 %v833
    %1158 = vmatprep.subr.bf16.mxu0 %v838
    %1159 = vmatpush1.bf16.msra.mxu0 %v837
    %1160 = vmatprep.subr.bf16.mxu0 %v842
    %1161 = vmatpush1.bf16.msra.mxu0 %v841
    %1162 = vmatprep.subr.bf16.mxu0 0
    %1163 = vmatpush1.bf16.msra.mxu0 0
    %1164 = vmatprep.subr.bf16.mxu0 0
    %1165 = vmatpush1.bf16.msra.mxu0 0
    %1166 = vmatprep.subr.bf16.mxu0 0
    %1167 = vmatpush1.bf16.msra.mxu0 0
    %1168 = vmatprep.subr.bf16.mxu0 0
    %1169 = vmatpush1.bf16.msra.mxu0 0
    %1170 = vmatprep.subr.bf16.mxu0 0
    %1171 = vmatpush1.bf16.msra.mxu0 0
    %1172 = vmatprep.subr.bf16.mxu0 0
    %1173 = vmatpush1.bf16.msra.mxu0 0
    %1174 = vmatprep.subr.bf16.mxu0 0
    %1175 = vmatpush1.bf16.msra.mxu0 0
    %1176 = vmatprep.subr.bf16.mxu0 0
    %1177 = vmatpush1.bf16.msra.mxu0 0
    %1178 = vmatprep.mubr.bf16.mxu0 0
    %1179 = vmatmul.mubr.bf16.gmra.mrb[0].mxu0 %v1104
    %v1180 = vpop.f32.mrb[0].mxu0
    %v1181 = vadd.f32 0.0, %v1180
    %v1182 = vpop.f32.mrb[0].mxu0
    %v1183 = vadd.f32 0.0, %v1182
    %v1184 = vpop.f32.mrb[0].mxu0
    %v1185 = vpop.f32.mrb[0].mxu0
    %1186 = vdwg.mxu0
    %v1187 = vadd.f32 %v1100, %v1140
    %v1188 = vadd.f32 %v1101, %v1142
    %v1189 = vadd.f32 %v1102, %v1181
    %v1190 = vadd.f32 %v1103, %v1183
    %v1191 = vxor.u32 %v1187, 2147483648
    %v1192 = vmul.f32 %v1191, 1.442695
    %v1193 = vpow.pop %v1192
    %v1194 = vadd.f32 %v1193, 1.0
    %v1195 = vrcp.pop %v1194
    %v1196 = vmul.f32 1.0, %v1195
    %v1197 = vxor.u32 %v1188, 2147483648
    %v1198 = vmul.f32 %v1197, 1.442695
    %v1199 = vpow.pop %v1198
    %v1200 = vadd.f32 %v1199, 1.0
    %v1201 = vrcp.pop %v1200
    %v1202 = vmul.f32 1.0, %v1201
    %v1203 = vtanh.pop %v1189
    %v1204 = vxor.u32 %v1190, 2147483648
    %v1205 = vmul.f32 %v1204, 1.442695
    %v1206 = vpow.pop %v1205
    %v1207 = vadd.f32 %v1206, 1.0
    %v1208 = vrcp.pop %v1207
    %v1209 = vmul.f32 1.0, %v1208
    %v1210 = vmul.f32 %v1202, %v1097
    %v1211 = vmul.f32 %v1196, %v1203
    %v1212 = vadd.f32 %v1210, %v1211
    %v1213 = vtanh.pop %v1212
    %v1214 = vmul.f32 %v1209, %v1213
    %v1215 = vld [vmem:[#allocation2 + $0x60] sm:$0xff]
    %v1216 = vld [vmem:[#allocation2 + $0x68] sm:$0xff]
    %v1217 = vld [vmem:[#allocation2 + $0x70] sm:$0xff]
    %v1218 = vld [vmem:[#allocation2 + $0x78] sm:$0xff]
    %v1219 = vpack.c.bf16 %v1214, %v1214
    %1220 = vmatprep.subr.bf16.mxu0 %v812
    %1221 = vmatpush1.bf16.msra.mxu0 %v811
    %1222 = vmatprep.subr.bf16.mxu0 %v816
    %1223 = vmatpush1.bf16.msra.mxu0 %v815
    %1224 = vmatprep.subr.bf16.mxu0 %v820
    %1225 = vmatpush1.bf16.msra.mxu0 %v819
    %1226 = vmatprep.subr.bf16.mxu0 %v824
    %1227 = vmatpush1.bf16.msra.mxu0 %v823
    %1228 = vmatprep.subr.bf16.mxu0 %v828
    %1229 = vmatpush1.bf16.msra.mxu0 %v827
    %1230 = vmatprep.subr.bf16.mxu0 %v832
    %1231 = vmatpush1.bf16.msra.mxu0 %v831
    %1232 = vmatprep.subr.bf16.mxu0 %v836
    %1233 = vmatpush1.bf16.msra.mxu0 %v835
    %1234 = vmatprep.subr.bf16.mxu0 %v840
    %1235 = vmatpush1.bf16.msra.mxu0 %v839
    %1236 = vmatprep.subr.bf16.mxu0 0
    %1237 = vmatpush1.bf16.msra.mxu0 0
    %1238 = vmatprep.subr.bf16.mxu0 0
    %1239 = vmatpush1.bf16.msra.mxu0 0
    %1240 = vmatprep.subr.bf16.mxu0 0
    %1241 = vmatpush1.bf16.msra.mxu0 0
    %1242 = vmatprep.subr.bf16.mxu0 0
    %1243 = vmatpush1.bf16.msra.mxu0 0
    %1244 = vmatprep.subr.bf16.mxu0 0
    %1245 = vmatpush1.bf16.msra.mxu0 0
    %1246 = vmatprep.subr.bf16.mxu0 0
    %1247 = vmatpush1.bf16.msra.mxu0 0
    %1248 = vmatprep.subr.bf16.mxu0 0
    %1249 = vmatpush1.bf16.msra.mxu0 0
    %1250 = vmatprep.subr.bf16.mxu0 0
    %1251 = vmatpush1.bf16.msra.mxu0 0
    %1252 = vmatprep.mubr.bf16.mxu0 0
    %1253 = vmatmul.mubr.bf16.gmra.mrb[0].mxu0 %v1219
    %v1254 = vpop.f32.mrb[0].mxu0
    %v1255 = vadd.f32 0.0, %v1254
    %v1256 = vpop.f32.mrb[0].mxu0
    %v1257 = vadd.f32 0.0, %v1256
    %v1258 = vpop.f32.mrb[0].mxu0
    %v1259 = vpop.f32.mrb[0].mxu0
    %1260 = vdwg.mxu0
    %1261 = vmatprep.subr.bf16.mxu0 %v814
    %1262 = vmatpush1.bf16.msra.mxu0 %v813
    %1263 = vmatprep.subr.bf16.mxu0 %v818
    %1264 = vmatpush1.bf16.msra.mxu0 %v817
    %1265 = vmatprep.subr.bf16.mxu0 %v822
    %1266 = vmatpush1.bf16.msra.mxu0 %v821
    %1267 = vmatprep.subr.bf16.mxu0 %v826
    %1268 = vmatpush1.bf16.msra.mxu0 %v825
    %1269 = vmatprep.subr.bf16.mxu0 %v830
    %1270 = vmatpush1.bf16.msra.mxu0 %v829
    %1271 = vmatprep.subr.bf16.mxu0 %v834
    %1272 = vmatpush1.bf16.msra.mxu0 %v833
    %1273 = vmatprep.subr.bf16.mxu0 %v838
    %1274 = vmatpush1.bf16.msra.mxu0 %v837
    %1275 = vmatprep.subr.bf16.mxu0 %v842
    %1276 = vmatpush1.bf16.msra.mxu0 %v841
    %1277 = vmatprep.subr.bf16.mxu0 0
    %1278 = vmatpush1.bf16.msra.mxu0 0
    %1279 = vmatprep.subr.bf16.mxu0 0
    %1280 = vmatpush1.bf16.msra.mxu0 0
    %1281 = vmatprep.subr.bf16.mxu0 0
    %1282 = vmatpush1.bf16.msra.mxu0 0
    %1283 = vmatprep.subr.bf16.mxu0 0
    %1284 = vmatpush1.bf16.msra.mxu0 0
    %1285 = vmatprep.subr.bf16.mxu0 0
    %1286 = vmatpush1.bf16.msra.mxu0 0
    %1287 = vmatprep.subr.bf16.mxu0 0
    %1288 = vmatpush1.bf16.msra.mxu0 0
    %1289 = vmatprep.subr.bf16.mxu0 0
    %1290 = vmatpush1.bf16.msra.mxu0 0
    %1291 = vmatprep.subr.bf16.mxu0 0
    %1292 = vmatpush1.bf16.msra.mxu0 0
    %1293 = vmatprep.mubr.bf16.mxu0 0
    %1294 = vmatmul.mubr.bf16.gmra.mrb[0].mxu0 %v1219
    %v1295 = vpop.f32.mrb[0].mxu0
    %v1296 = vadd.f32 0.0, %v1295
    %v1297 = vpop.f32.mrb[0].mxu0
    %v1298 = vadd.f32 0.0, %v1297
    %v1299 = vpop.f32.mrb[0].mxu0
    %v1300 = vpop.f32.mrb[0].mxu0
    %1301 = vdwg.mxu0
    %v1302 = vadd.f32 %v1215, %v1255
    %v1303 = vadd.f32 %v1216, %v1257
    %v1304 = vadd.f32 %v1217, %v1296
    %v1305 = vadd.f32 %v1218, %v1298
    %v1306 = vxor.u32 %v1302, 2147483648
    %v1307 = vmul.f32 %v1306, 1.442695
    %v1308 = vpow.pop %v1307
    %v1309 = vadd.f32 %v1308, 1.0
    %v1310 = vrcp.pop %v1309
    %v1311 = vmul.f32 1.0, %v1310
    %v1312 = vxor.u32 %v1303, 2147483648
    %v1313 = vmul.f32 %v1312, 1.442695
    %v1314 = vpow.pop %v1313
    %v1315 = vadd.f32 %v1314, 1.0
    %v1316 = vrcp.pop %v1315
    %v1317 = vmul.f32 1.0, %v1316
    %v1318 = vtanh.pop %v1304
    %v1319 = vxor.u32 %v1305, 2147483648
    %v1320 = vmul.f32 %v1319, 1.442695
    %v1321 = vpow.pop %v1320
    %v1322 = vadd.f32 %v1321, 1.0
    %v1323 = vrcp.pop %v1322
    %v1324 = vmul.f32 1.0, %v1323
    %v1325 = vmul.f32 %v1317, %v1212
    %v1326 = vmul.f32 %v1311, %v1318
    %v1327 = vadd.f32 %v1325, %v1326
    %v1328 = vtanh.pop %v1327
    %v1329 = vmul.f32 %v1324, %v1328
    %v1330 = vld [vmem:[#allocation2 + $0x80] sm:$0xff]
    %v1331 = vld [vmem:[#allocation2 + $0x88] sm:$0xff]
    %v1332 = vld [vmem:[#allocation2 + $0x90] sm:$0xff]
    %v1333 = vld [vmem:[#allocation2 + $0x98] sm:$0xff]
    %v1334 = vpack.c.bf16 %v1329, %v1329
    %1335 = vmatprep.subr.bf16.mxu0 %v812
    %1336 = vmatpush1.bf16.msra.mxu0 %v811
    %1337 = vmatprep.subr.bf16.mxu0 %v816
    %1338 = vmatpush1.bf16.msra.mxu0 %v815
    %1339 = vmatprep.subr.bf16.mxu0 %v820
    %1340 = vmatpush1.bf16.msra.mxu0 %v819
    %1341 = vmatprep.subr.bf16.mxu0 %v824
    %1342 = vmatpush1.bf16.msra.mxu0 %v823
    %1343 = vmatprep.subr.bf16.mxu0 %v828
    %1344 = vmatpush1.bf16.msra.mxu0 %v827
    %1345 = vmatprep.subr.bf16.mxu0 %v832
    %1346 = vmatpush1.bf16.msra.mxu0 %v831
    %1347 = vmatprep.subr.bf16.mxu0 %v836
    %1348 = vmatpush1.bf16.msra.mxu0 %v835
    %1349 = vmatprep.subr.bf16.mxu0 %v840
    %1350 = vmatpush1.bf16.msra.mxu0 %v839
    %1351 = vmatprep.subr.bf16.mxu0 0
    %1352 = vmatpush1.bf16.msra.mxu0 0
    %1353 = vmatprep.subr.bf16.mxu0 0
    %1354 = vmatpush1.bf16.msra.mxu0 0
    %1355 = vmatprep.subr.bf16.mxu0 0
    %1356 = vmatpush1.bf16.msra.mxu0 0
    %1357 = vmatprep.subr.bf16.mxu0 0
    %1358 = vmatpush1.bf16.msra.mxu0 0
    %1359 = vmatprep.subr.bf16.mxu0 0
    %1360 = vmatpush1.bf16.msra.mxu0 0
    %1361 = vmatprep.subr.bf16.mxu0 0
    %1362 = vmatpush1.bf16.msra.mxu0 0
    %1363 = vmatprep.subr.bf16.mxu0 0
    %1364 = vmatpush1.bf16.msra.mxu0 0
    %1365 = vmatprep.subr.bf16.mxu0 0
    %1366 = vmatpush1.bf16.msra.mxu0 0
    %1367 = vmatprep.mubr.bf16.mxu0 0
    %1368 = vmatmul.mubr.bf16.gmra.mrb[0].mxu0 %v1334
    %v1369 = vpop.f32.mrb[0].mxu0
    %v1370 = vadd.f32 0.0, %v1369
    %v1371 = vpop.f32.mrb[0].mxu0
    %v1372 = vadd.f32 0.0, %v1371
    %v1373 = vpop.f32.mrb[0].mxu0
    %v1374 = vpop.f32.mrb[0].mxu0
    %1375 = vdwg.mxu0
    %1376 = vmatprep.subr.bf16.mxu0 %v814
    %1377 = vmatpush1.bf16.msra.mxu0 %v813
    %1378 = vmatprep.subr.bf16.mxu0 %v818
    %1379 = vmatpush1.bf16.msra.mxu0 %v817
    %1380 = vmatprep.subr.bf16.mxu0 %v822
    %1381 = vmatpush1.bf16.msra.mxu0 %v821
    %1382 = vmatprep.subr.bf16.mxu0 %v826
    %1383 = vmatpush1.bf16.msra.mxu0 %v825
    %1384 = vmatprep.subr.bf16.mxu0 %v830
    %1385 = vmatpush1.bf16.msra.mxu0 %v829
    %1386 = vmatprep.subr.bf16.mxu0 %v834
    %1387 = vmatpush1.bf16.msra.mxu0 %v833
    %1388 = vmatprep.subr.bf16.mxu0 %v838
    %1389 = vmatpush1.bf16.msra.mxu0 %v837
    %1390 = vmatprep.subr.bf16.mxu0 %v842
    %1391 = vmatpush1.bf16.msra.mxu0 %v841
    %1392 = vmatprep.subr.bf16.mxu0 0
    %1393 = vmatpush1.bf16.msra.mxu0 0
    %1394 = vmatprep.subr.bf16.mxu0 0
    %1395 = vmatpush1.bf16.msra.mxu0 0
    %1396 = vmatprep.subr.bf16.mxu0 0
    %1397 = vmatpush1.bf16.msra.mxu0 0
    %1398 = vmatprep.subr.bf16.mxu0 0
    %1399 = vmatpush1.bf16.msra.mxu0 0
    %1400 = vmatprep.subr.bf16.mxu0 0
    %1401 = vmatpush1.bf16.msra.mxu0 0
    %1402 = vmatprep.subr.bf16.mxu0 0
    %1403 = vmatpush1.bf16.msra.mxu0 0
    %1404 = vmatprep.subr.bf16.mxu0 0
    %1405 = vmatpush1.bf16.msra.mxu0 0
    %1406 = vmatprep.subr.bf16.mxu0 0
    %1407 = vmatpush1.bf16.msra.mxu0 0
    %1408 = vmatprep.mubr.bf16.mxu0 0
    %1409 = vmatmul.mubr.bf16.gmra.mrb[0].mxu0 %v1334
    %v1410 = vpop.f32.mrb[0].mxu0
    %v1411 = vadd.f32 0.0, %v1410
    %v1412 = vpop.f32.mrb[0].mxu0
    %v1413 = vadd.f32 0.0, %v1412
    %v1414 = vpop.f32.mrb[0].mxu0
    %v1415 = vpop.f32.mrb[0].mxu0
    %1416 = vdwg.mxu0
    %v1417 = vadd.f32 %v1330, %v1370
    %v1418 = vadd.f32 %v1331, %v1372
    %v1419 = vadd.f32 %v1332, %v1411
    %v1420 = vadd.f32 %v1333, %v1413
    %v1421 = vxor.u32 %v1417, 2147483648
    %v1422 = vmul.f32 %v1421, 1.442695
    %v1423 = vpow.pop %v1422
    %v1424 = vadd.f32 %v1423, 1.0
    %v1425 = vrcp.pop %v1424
    %v1426 = vmul.f32 1.0, %v1425
    %v1427 = vxor.u32 %v1418, 2147483648
    %v1428 = vmul.f32 %v1427, 1.442695
    %v1429 = vpow.pop %v1428
    %v1430 = vadd.f32 %v1429, 1.0
    %v1431 = vrcp.pop %v1430
    %v1432 = vmul.f32 1.0, %v1431
    %v1433 = vtanh.pop %v1419
    %v1434 = vxor.u32 %v1420, 2147483648
    %v1435 = vmul.f32 %v1434, 1.442695
    %v1436 = vpow.pop %v1435
    %v1437 = vadd.f32 %v1436, 1.0
    %v1438 = vrcp.pop %v1437
    %v1439 = vmul.f32 1.0, %v1438
    %v1440 = vmul.f32 %v1432, %v1327
    %v1441 = vmul.f32 %v1426, %v1433
    %v1442 = vadd.f32 %v1440, %v1441
    %v1443 = vtanh.pop %v1442
    %v1444 = vmul.f32 %v1439, %v1443
    %v1445 = vld [vmem:[#allocation2 + $0xa0] sm:$0xff]
    %v1446 = vld [vmem:[#allocation2 + $0xa8] sm:$0xff]
    %v1447 = vld [vmem:[#allocation2 + $0xb0] sm:$0xff]
    %v1448 = vld [vmem:[#allocation2 + $0xb8] sm:$0xff]
    %v1449 = vpack.c.bf16 %v1444, %v1444
    %1450 = vmatprep.subr.bf16.mxu0 %v812
    %1451 = vmatpush1.bf16.msra.mxu0 %v811
    %1452 = vmatprep.subr.bf16.mxu0 %v816
    %1453 = vmatpush1.bf16.msra.mxu0 %v815
    %1454 = vmatprep.subr.bf16.mxu0 %v820
    %1455 = vmatpush1.bf16.msra.mxu0 %v819
    %1456 = vmatprep.subr.bf16.mxu0 %v824
    %1457 = vmatpush1.bf16.msra.mxu0 %v823
    %1458 = vmatprep.subr.bf16.mxu0 %v828
    %1459 = vmatpush1.bf16.msra.mxu0 %v827
    %1460 = vmatprep.subr.bf16.mxu0 %v832
    %1461 = vmatpush1.bf16.msra.mxu0 %v831
    %1462 = vmatprep.subr.bf16.mxu0 %v836
    %1463 = vmatpush1.bf16.msra.mxu0 %v835
    %1464 = vmatprep.subr.bf16.mxu0 %v840
    %1465 = vmatpush1.bf16.msra.mxu0 %v839
    %1466 = vmatprep.subr.bf16.mxu0 0
    %1467 = vmatpush1.bf16.msra.mxu0 0
    %1468 = vmatprep.subr.bf16.mxu0 0
    %1469 = vmatpush1.bf16.msra.mxu0 0
    %1470 = vmatprep.subr.bf16.mxu0 0
    %1471 = vmatpush1.bf16.msra.mxu0 0
    %1472 = vmatprep.subr.bf16.mxu0 0
    %1473 = vmatpush1.bf16.msra.mxu0 0
    %1474 = vmatprep.subr.bf16.mxu0 0
    %1475 = vmatpush1.bf16.msra.mxu0 0
    %1476 = vmatprep.subr.bf16.mxu0 0
    %1477 = vmatpush1.bf16.msra.mxu0 0
    %1478 = vmatprep.subr.bf16.mxu0 0
    %1479 = vmatpush1.bf16.msra.mxu0 0
    %1480 = vmatprep.subr.bf16.mxu0 0
    %1481 = vmatpush1.bf16.msra.mxu0 0
    %1482 = vmatprep.mubr.bf16.mxu0 0
    %1483 = vmatmul.mubr.bf16.gmra.mrb[0].mxu0 %v1449
    %v1484 = vpop.f32.mrb[0].mxu0
    %v1485 = vadd.f32 0.0, %v1484
    %v1486 = vpop.f32.mrb[0].mxu0
    %v1487 = vadd.f32 0.0, %v1486
    %v1488 = vpop.f32.mrb[0].mxu0
    %v1489 = vpop.f32.mrb[0].mxu0
    %1490 = vdwg.mxu0
    %1491 = vmatprep.subr.bf16.mxu0 %v814
    %1492 = vmatpush1.bf16.msra.mxu0 %v813
    %1493 = vmatprep.subr.bf16.mxu0 %v818
    %1494 = vmatpush1.bf16.msra.mxu0 %v817
    %1495 = vmatprep.subr.bf16.mxu0 %v822
    %1496 = vmatpush1.bf16.msra.mxu0 %v821
    %1497 = vmatprep.subr.bf16.mxu0 %v826
    %1498 = vmatpush1.bf16.msra.mxu0 %v825
    %1499 = vmatprep.subr.bf16.mxu0 %v830
    %1500 = vmatpush1.bf16.msra.mxu0 %v829
    %1501 = vmatprep.subr.bf16.mxu0 %v834
    %1502 = vmatpush1.bf16.msra.mxu0 %v833
    %1503 = vmatprep.subr.bf16.mxu0 %v838
    %1504 = vmatpush1.bf16.msra.mxu0 %v837
    %1505 = vmatprep.subr.bf16.mxu0 %v842
    %1506 = vmatpush1.bf16.msra.mxu0 %v841
    %1507 = vmatprep.subr.bf16.mxu0 0
    %1508 = vmatpush1.bf16.msra.mxu0 0
    %1509 = vmatprep.subr.bf16.mxu0 0
    %1510 = vmatpush1.bf16.msra.mxu0 0
    %1511 = vmatprep.subr.bf16.mxu0 0
    %1512 = vmatpush1.bf16.msra.mxu0 0
    %1513 = vmatprep.subr.bf16.mxu0 0
    %1514 = vmatpush1.bf16.msra.mxu0 0
    %1515 = vmatprep.subr.bf16.mxu0 0
    %1516 = vmatpush1.bf16.msra.mxu0 0
    %1517 = vmatprep.subr.bf16.mxu0 0
    %1518 = vmatpush1.bf16.msra.mxu0 0
    %1519 = vmatprep.subr.bf16.mxu0 0
    %1520 = vmatpush1.bf16.msra.mxu0 0
    %1521 = vmatprep.subr.bf16.mxu0 0
    %1522 = vmatpush1.bf16.msra.mxu0 0
    %1523 = vmatprep.mubr.bf16.mxu0 0
    %1524 = vmatmul.mubr.bf16.gmra.mrb[0].mxu0 %v1449
    %v1525 = vpop.f32.mrb[0].mxu0
    %v1526 = vadd.f32 0.0, %v1525
    %v1527 = vpop.f32.mrb[0].mxu0
    %v1528 = vadd.f32 0.0, %v1527
    %v1529 = vpop.f32.mrb[0].mxu0
    %v1530 = vpop.f32.mrb[0].mxu0
    %1531 = vdwg.mxu0
    %v1532 = vadd.f32 %v1445, %v1485
    %v1533 = vadd.f32 %v1446, %v1487
    %v1534 = vadd.f32 %v1447, %v1526
    %v1535 = vadd.f32 %v1448, %v1528
    %v1536 = vxor.u32 %v1532, 2147483648
    %v1537 = vmul.f32 %v1536, 1.442695
    %v1538 = vpow.pop %v1537
    %v1539 = vadd.f32 %v1538, 1.0
    %v1540 = vrcp.pop %v1539
    %v1541 = vmul.f32 1.0, %v1540
    %v1542 = vxor.u32 %v1533, 2147483648
    %v1543 = vmul.f32 %v1542, 1.442695
    %v1544 = vpow.pop %v1543
    %v1545 = vadd.f32 %v1544, 1.0
    %v1546 = vrcp.pop %v1545
    %v1547 = vmul.f32 1.0, %v1546
    %v1548 = vtanh.pop %v1534
    %v1549 = vxor.u32 %v1535, 2147483648
    %v1550 = vmul.f32 %v1549, 1.442695
    %v1551 = vpow.pop %v1550
    %v1552 = vadd.f32 %v1551, 1.0
    %v1553 = vrcp.pop %v1552
    %v1554 = vmul.f32 1.0, %v1553
    %v1555 = vmul.f32 %v1547, %v1442
    %v1556 = vmul.f32 %v1541, %v1548
    %v1557 = vadd.f32 %v1555, %v1556
    %v1558 = vtanh.pop %v1557
    %v1559 = vmul.f32 %v1554, %v1558
    %s1560 = smul.u32 4, 32
    %s1561 = smul.u32 %s1560, 20
    %s1562 = sshll.u32 %s1561, 4
    %1563 = dma.done [#allocation6], %s1562
    %v1564 = vld [vmem:[#allocation4] sm:$0xff]
    %v1565 = vld [vmem:[#allocation4 + $0x8] sm:$0xff]
    %v1566 = vld [vmem:[#allocation4 + $0x10] sm:$0xff]
    %v1567 = vld [vmem:[#allocation4 + $0x18] sm:$0xff]
    %v1568 = vld [vmem:[#allocation4 + $0x20] sm:$0xff]
    %v1569 = vld [vmem:[#allocation4 + $0x28] sm:$0xff]
    %v1570 = vld [vmem:[#allocation4 + $0x30] sm:$0xff]
    %v1571 = vld [vmem:[#allocation4 + $0x38] sm:$0xff]
    %v1572 = vld [vmem:[#allocation4 + $0x40] sm:$0xff]
    %v1573 = vld [vmem:[#allocation4 + $0x48] sm:$0xff]
    %v1574 = vld [vmem:[#allocation4 + $0x50] sm:$0xff]
    %v1575 = vld [vmem:[#allocation4 + $0x58] sm:$0xff]
    %v1576 = vld [vmem:[#allocation4 + $0x60] sm:$0xff]
    %v1577 = vld [vmem:[#allocation4 + $0x68] sm:$0xff]
    %v1578 = vld [vmem:[#allocation4 + $0x70] sm:$0xff]
    %v1579 = vld [vmem:[#allocation4 + $0x78] sm:$0xff]
    %v1580 = vld [vmem:[#allocation4 + $0x80] sm:$0xff]
    %v1581 = vld [vmem:[#allocation4 + $0x88] sm:$0xff]
    %v1582 = vld [vmem:[#allocation4 + $0x90] sm:$0xff]
    %v1583 = vld [vmem:[#allocation4 + $0x98] sm:$0xff]
    %v1584 = vld [vmem:[#allocation4 + $0xa0] sm:$0xff]
    %v1585 = vld [vmem:[#allocation4 + $0xa8] sm:$0xff]
    %v1586 = vld [vmem:[#allocation4 + $0xb0] sm:$0xff]
    %v1587 = vld [vmem:[#allocation4 + $0xb8] sm:$0xff]
    %v1588 = vld [vmem:[#allocation4 + $0xc0] sm:$0xff]
    %v1589 = vld [vmem:[#allocation4 + $0xc8] sm:$0xff]
    %v1590 = vld [vmem:[#allocation4 + $0xd0] sm:$0xff]
    %v1591 = vld [vmem:[#allocation4 + $0xd8] sm:$0xff]
    %v1592 = vld [vmem:[#allocation4 + $0xe0] sm:$0xff]
    %v1593 = vld [vmem:[#allocation4 + $0xe8] sm:$0xff]
    %v1594 = vld [vmem:[#allocation4 + $0xf0] sm:$0xff]
    %v1595 = vld [vmem:[#allocation4 + $0xf8] sm:$0xff]
    %v1596 = vld [vmem:[#allocation4 + $0x100] sm:$0xff]
    %v1597 = vld [vmem:[#allocation4 + $0x108] sm:$0xff]
    %v1598 = vld [vmem:[#allocation4 + $0x110] sm:$0xff]
    %v1599 = vld [vmem:[#allocation4 + $0x118] sm:$0xff]
    %v1600 = vld [vmem:[#allocation4 + $0x120] sm:$0xff]
    %v1601 = vld [vmem:[#allocation4 + $0x128] sm:$0xff]
    %v1602 = vld [vmem:[#allocation4 + $0x130] sm:$0xff]
    %v1603 = vld [vmem:[#allocation4 + $0x138] sm:$0xff]
    %v1604 = vld [vmem:[#allocation4 + $0x140] sm:$0xff]
    %v1605 = vld [vmem:[#allocation4 + $0x148] sm:$0xff]
    %v1606 = vld [vmem:[#allocation4 + $0x150] sm:$0xff]
    %v1607 = vld [vmem:[#allocation4 + $0x158] sm:$0xff]
    %v1608 = vld [vmem:[#allocation4 + $0x160] sm:$0xff]
    %v1609 = vld [vmem:[#allocation4 + $0x168] sm:$0xff]
    %v1610 = vld [vmem:[#allocation4 + $0x170] sm:$0xff]
    %v1611 = vld [vmem:[#allocation4 + $0x178] sm:$0xff]
    %v1612 = vld [vmem:[#allocation4 + $0x180] sm:$0xff]
    %v1613 = vld [vmem:[#allocation4 + $0x188] sm:$0xff]
    %v1614 = vld [vmem:[#allocation4 + $0x190] sm:$0xff]
    %v1615 = vld [vmem:[#allocation4 + $0x198] sm:$0xff]
    %v1616 = vld [vmem:[#allocation4 + $0x1a0] sm:$0xff]
    %v1617 = vld [vmem:[#allocation4 + $0x1a8] sm:$0xff]
    %v1618 = vld [vmem:[#allocation4 + $0x1b0] sm:$0xff]
    %v1619 = vld [vmem:[#allocation4 + $0x1b8] sm:$0xff]
    %v1620 = vld [vmem:[#allocation4 + $0x1c0] sm:$0xff]
    %v1621 = vld [vmem:[#allocation4 + $0x1c8] sm:$0xff]
    %v1622 = vld [vmem:[#allocation4 + $0x1d0] sm:$0xff]
    %v1623 = vld [vmem:[#allocation4 + $0x1d8] sm:$0xff]
    %v1624 = vld [vmem:[#allocation4 + $0x1e0] sm:$0xff]
    %v1625 = vld [vmem:[#allocation4 + $0x1e8] sm:$0xff]
    %v1626 = vld [vmem:[#allocation4 + $0x1f0] sm:$0xff]
    %v1627 = vld [vmem:[#allocation4 + $0x1f8] sm:$0xff]
    %v1628 = vld [vmem:[#allocation4 + $0x200] sm:$0xff]
    %v1629 = vld [vmem:[#allocation4 + $0x208] sm:$0xff]
    %v1630 = vld [vmem:[#allocation4 + $0x210] sm:$0xff]
    %v1631 = vld [vmem:[#allocation4 + $0x218] sm:$0xff]
    %v1632 = vld [vmem:[#allocation4 + $0x220] sm:$0xff]
    %v1633 = vld [vmem:[#allocation4 + $0x228] sm:$0xff]
    %v1634 = vld [vmem:[#allocation4 + $0x230] sm:$0xff]
    %v1635 = vld [vmem:[#allocation4 + $0x238] sm:$0xff]
    %v1636 = vld [vmem:[#allocation4 + $0x240] sm:$0xff]
    %v1637 = vld [vmem:[#allocation4 + $0x248] sm:$0xff]
    %v1638 = vld [vmem:[#allocation4 + $0x250] sm:$0xff]
    %v1639 = vld [vmem:[#allocation4 + $0x258] sm:$0xff]
    %v1640 = vld [vmem:[#allocation4 + $0x260] sm:$0xff]
    %v1641 = vld [vmem:[#allocation4 + $0x268] sm:$0xff]
    %v1642 = vld [vmem:[#allocation4 + $0x270] sm:$0xff]
    %v1643 = vld [vmem:[#allocation4 + $0x278] sm:$0xff]
    %v1644 = vld [vmem:[#allocation4 + $0x280] sm:$0xff]
    %v1645 = vld [vmem:[#allocation4 + $0x288] sm:$0xff]
    %v1646 = vld [vmem:[#allocation4 + $0x290] sm:$0xff]
    %v1647 = vld [vmem:[#allocation4 + $0x298] sm:$0xff]
    %v1648 = vld [vmem:[#allocation4 + $0x2a0] sm:$0xff]
    %v1649 = vld [vmem:[#allocation4 + $0x2a8] sm:$0xff]
    %v1650 = vld [vmem:[#allocation4 + $0x2b0] sm:$0xff]
    %v1651 = vld [vmem:[#allocation4 + $0x2b8] sm:$0xff]
    %v1652 = vld [vmem:[#allocation4 + $0x2c0] sm:$0xff]
    %v1653 = vld [vmem:[#allocation4 + $0x2c8] sm:$0xff]
    %v1654 = vld [vmem:[#allocation4 + $0x2d0] sm:$0xff]
    %v1655 = vld [vmem:[#allocation4 + $0x2d8] sm:$0xff]
    %v1656 = vld [vmem:[#allocation4 + $0x2e0] sm:$0xff]
    %v1657 = vld [vmem:[#allocation4 + $0x2e8] sm:$0xff]
    %v1658 = vld [vmem:[#allocation4 + $0x2f0] sm:$0xff]
    %v1659 = vld [vmem:[#allocation4 + $0x2f8] sm:$0xff]
    %v1660 = vld [vmem:[#allocation4 + $0x300] sm:$0xff]
    %v1661 = vld [vmem:[#allocation4 + $0x308] sm:$0xff]
    %v1662 = vld [vmem:[#allocation4 + $0x310] sm:$0xff]
    %v1663 = vld [vmem:[#allocation4 + $0x318] sm:$0xff]
    %v1664 = vld [vmem:[#allocation4 + $0x320] sm:$0xff]
    %v1665 = vld [vmem:[#allocation4 + $0x328] sm:$0xff]
    %v1666 = vld [vmem:[#allocation4 + $0x330] sm:$0xff]
    %v1667 = vld [vmem:[#allocation4 + $0x338] sm:$0xff]
    %v1668 = vld [vmem:[#allocation4 + $0x340] sm:$0xff]
    %v1669 = vld [vmem:[#allocation4 + $0x348] sm:$0xff]
    %v1670 = vld [vmem:[#allocation4 + $0x350] sm:$0xff]
    %v1671 = vld [vmem:[#allocation4 + $0x358] sm:$0xff]
    %v1672 = vld [vmem:[#allocation4 + $0x360] sm:$0xff]
    %v1673 = vld [vmem:[#allocation4 + $0x368] sm:$0xff]
    %v1674 = vld [vmem:[#allocation4 + $0x370] sm:$0xff]
    %v1675 = vld [vmem:[#allocation4 + $0x378] sm:$0xff]
    %v1676 = vld [vmem:[#allocation4 + $0x380] sm:$0xff]
    %v1677 = vld [vmem:[#allocation4 + $0x388] sm:$0xff]
    %v1678 = vld [vmem:[#allocation4 + $0x390] sm:$0xff]
    %v1679 = vld [vmem:[#allocation4 + $0x398] sm:$0xff]
    %v1680 = vld [vmem:[#allocation4 + $0x3a0] sm:$0xff]
    %v1681 = vld [vmem:[#allocation4 + $0x3a8] sm:$0xff]
    %v1682 = vld [vmem:[#allocation4 + $0x3b0] sm:$0xff]
    %v1683 = vld [vmem:[#allocation4 + $0x3b8] sm:$0xff]
    %v1684 = vld [vmem:[#allocation4 + $0x3c0] sm:$0xff]
    %v1685 = vld [vmem:[#allocation4 + $0x3c8] sm:$0xff]
    %v1686 = vld [vmem:[#allocation4 + $0x3d0] sm:$0xff]
    %v1687 = vld [vmem:[#allocation4 + $0x3d8] sm:$0xff]
    %v1688 = vld [vmem:[#allocation4 + $0x3e0] sm:$0xff]
    %v1689 = vld [vmem:[#allocation4 + $0x3e8] sm:$0xff]
    %v1690 = vld [vmem:[#allocation4 + $0x3f0] sm:$0xff]
    %v1691 = vld [vmem:[#allocation4 + $0x3f8] sm:$0xff]
    %v1692 = vld [vmem:[#allocation4 + $0x400] sm:$0xff]
    %v1693 = vld [vmem:[#allocation4 + $0x408] sm:$0xff]
    %v1694 = vld [vmem:[#allocation4 + $0x410] sm:$0xff]
    %v1695 = vld [vmem:[#allocation4 + $0x418] sm:$0xff]
    %v1696 = vld [vmem:[#allocation4 + $0x420] sm:$0xff]
    %v1697 = vld [vmem:[#allocation4 + $0x428] sm:$0xff]
    %v1698 = vld [vmem:[#allocation4 + $0x430] sm:$0xff]
    %v1699 = vld [vmem:[#allocation4 + $0x438] sm:$0xff]
    %v1700 = vld [vmem:[#allocation4 + $0x440] sm:$0xff]
    %v1701 = vld [vmem:[#allocation4 + $0x448] sm:$0xff]
    %v1702 = vld [vmem:[#allocation4 + $0x450] sm:$0xff]
    %v1703 = vld [vmem:[#allocation4 + $0x458] sm:$0xff]
    %v1704 = vld [vmem:[#allocation4 + $0x460] sm:$0xff]
    %v1705 = vld [vmem:[#allocation4 + $0x468] sm:$0xff]
    %v1706 = vld [vmem:[#allocation4 + $0x470] sm:$0xff]
    %v1707 = vld [vmem:[#allocation4 + $0x478] sm:$0xff]
    %v1708 = vld [vmem:[#allocation4 + $0x480] sm:$0xff]
    %v1709 = vld [vmem:[#allocation4 + $0x488] sm:$0xff]
    %v1710 = vld [vmem:[#allocation4 + $0x490] sm:$0xff]
    %v1711 = vld [vmem:[#allocation4 + $0x498] sm:$0xff]
    %v1712 = vld [vmem:[#allocation4 + $0x4a0] sm:$0xff]
    %v1713 = vld [vmem:[#allocation4 + $0x4a8] sm:$0xff]
    %v1714 = vld [vmem:[#allocation4 + $0x4b0] sm:$0xff]
    %v1715 = vld [vmem:[#allocation4 + $0x4b8] sm:$0xff]
    %v1716 = vld [vmem:[#allocation4 + $0x4c0] sm:$0xff]
    %v1717 = vld [vmem:[#allocation4 + $0x4c8] sm:$0xff]
    %v1718 = vld [vmem:[#allocation4 + $0x4d0] sm:$0xff]
    %v1719 = vld [vmem:[#allocation4 + $0x4d8] sm:$0xff]
    %v1720 = vld [vmem:[#allocation4 + $0x4e0] sm:$0xff]
    %v1721 = vld [vmem:[#allocation4 + $0x4e8] sm:$0xff]
    %v1722 = vld [vmem:[#allocation4 + $0x4f0] sm:$0xff]
    %v1723 = vld [vmem:[#allocation4 + $0x4f8] sm:$0xff]
    %v1724 = vld [vmem:[#allocation13] sm:$0xff]
    %v1725 = vld [vmem:[#allocation13 + $0x8] sm:$0xff]
    %v1726 = vld [vmem:[#allocation13 + $0x10] sm:$0xf]
    %v1730 = vlaneseq
    %v1731 = vshrl.u32 %v1730, 7
    %v1732 = vsub.s32 0, %v1731
    %v1733 = vrot.slane %v1724, %v1732
    %v1734 = vlaneseq
    %v1735 = vshrl.u32 %v1734, 7
    %v1736 = vsub.s32 1, %v1735
    %v1737 = vrot.slane %v1724, %v1736
    %v1738 = vlaneseq
    %v1739 = vshrl.u32 %v1738, 7
    %v1740 = vsub.s32 2, %v1739
    %v1741 = vrot.slane %v1724, %v1740
    %v1742 = vlaneseq
    %v1743 = vshrl.u32 %v1742, 7
    %v1744 = vsub.s32 3, %v1743
    %v1745 = vrot.slane %v1724, %v1744
    %v1746 = vlaneseq
    %v1747 = vshrl.u32 %v1746, 7
    %v1748 = vsub.s32 4, %v1747
    %v1749 = vrot.slane %v1724, %v1748
    %v1750 = vlaneseq
    %v1751 = vshrl.u32 %v1750, 7
    %v1752 = vsub.s32 5, %v1751
    %v1753 = vrot.slane %v1724, %v1752
    %v1754 = vlaneseq
    %v1755 = vshrl.u32 %v1754, 7
    %v1756 = vsub.s32 6, %v1755
    %v1757 = vrot.slane %v1724, %v1756
    %v1758 = vlaneseq
    %v1759 = vshrl.u32 %v1758, 7
    %v1760 = vsub.s32 7, %v1759
    %v1761 = vrot.slane %v1724, %v1760
    %v1762 = vlaneseq
    %v1763 = vshrl.u32 %v1762, 7
    %v1764 = vsub.s32 0, %v1763
    %v1765 = vrot.slane %v1725, %v1764
    %v1766 = vlaneseq
    %v1767 = vshrl.u32 %v1766, 7
    %v1768 = vsub.s32 1, %v1767
    %v1769 = vrot.slane %v1725, %v1768
    %v1770 = vlaneseq
    %v1771 = vshrl.u32 %v1770, 7
    %v1772 = vsub.s32 2, %v1771
    %v1773 = vrot.slane %v1725, %v1772
    %v1774 = vlaneseq
    %v1775 = vshrl.u32 %v1774, 7
    %v1776 = vsub.s32 3, %v1775
    %v1777 = vrot.slane %v1725, %v1776
    %v1778 = vlaneseq
    %v1779 = vshrl.u32 %v1778, 7
    %v1780 = vsub.s32 4, %v1779
    %v1781 = vrot.slane %v1725, %v1780
    %v1782 = vlaneseq
    %v1783 = vshrl.u32 %v1782, 7
    %v1784 = vsub.s32 5, %v1783
    %v1785 = vrot.slane %v1725, %v1784
    %v1786 = vlaneseq
    %v1787 = vshrl.u32 %v1786, 7
    %v1788 = vsub.s32 6, %v1787
    %v1789 = vrot.slane %v1725, %v1788
    %v1790 = vlaneseq
    %v1791 = vshrl.u32 %v1790, 7
    %v1792 = vsub.s32 7, %v1791
    %v1793 = vrot.slane %v1725, %v1792
    %v1794 = vlaneseq
    %v1795 = vshrl.u32 %v1794, 7
    %v1796 = vsub.s32 0, %v1795
    %v1797 = vrot.slane %v1726, %v1796
    %v1798 = vlaneseq
    %v1799 = vshrl.u32 %v1798, 7
    %v1800 = vsub.s32 1, %v1799
    %v1801 = vrot.slane %v1726, %v1800
    %v1802 = vlaneseq
    %v1803 = vshrl.u32 %v1802, 7
    %v1804 = vsub.s32 2, %v1803
    %v1805 = vrot.slane %v1726, %v1804
    %v1806 = vlaneseq
    %v1807 = vshrl.u32 %v1806, 7
    %v1808 = vsub.s32 3, %v1807
    %v1809 = vrot.slane %v1726, %v1808
    %1830 = vmatprep.subr.bf16.mxu0 %v1565
    %1831 = vmatpush1.bf16.msra.mxu0 %v1564
    %1832 = vmatprep.subr.bf16.mxu0 %v1585
    %1833 = vmatpush1.bf16.msra.mxu0 %v1584
    %1834 = vmatprep.subr.bf16.mxu0 %v1605
    %1835 = vmatpush1.bf16.msra.mxu0 %v1604
    %1836 = vmatprep.subr.bf16.mxu0 %v1625
    %1837 = vmatpush1.bf16.msra.mxu0 %v1624
    %1838 = vmatprep.subr.bf16.mxu0 %v1645
    %1839 = vmatpush1.bf16.msra.mxu0 %v1644
    %1840 = vmatprep.subr.bf16.mxu0 %v1665
    %1841 = vmatpush1.bf16.msra.mxu0 %v1664
    %1842 = vmatprep.subr.bf16.mxu0 %v1685
    %1843 = vmatpush1.bf16.msra.mxu0 %v1684
    %1844 = vmatprep.subr.bf16.mxu0 %v1705
    %1845 = vmatpush1.bf16.msra.mxu0 %v1704
    %1846 = vmatprep.subr.bf16.mxu0 0
    %1847 = vmatpush1.bf16.msra.mxu0 0
    %1848 = vmatprep.subr.bf16.mxu0 0
    %1849 = vmatpush1.bf16.msra.mxu0 0
    %1850 = vmatprep.subr.bf16.mxu0 0
    %1851 = vmatpush1.bf16.msra.mxu0 0
    %1852 = vmatprep.subr.bf16.mxu0 0
    %1853 = vmatpush1.bf16.msra.mxu0 0
    %1854 = vmatprep.subr.bf16.mxu0 0
    %1855 = vmatpush1.bf16.msra.mxu0 0
    %1856 = vmatprep.subr.bf16.mxu0 0
    %1857 = vmatpush1.bf16.msra.mxu0 0
    %1858 = vmatprep.subr.bf16.mxu0 0
    %1859 = vmatpush1.bf16.msra.mxu0 0
    %1860 = vmatprep.subr.bf16.mxu0 0
    %1861 = vmatpush1.bf16.msra.mxu0 0
    %1862 = vmatprep.mubr.bf16.mxu0 0
    %1863 = vmatmul.mubr.bf16.gmra.mrb[0].mxu0 %v678
    %v1864 = vpop.f32.mrb[0].mxu0
    %v1865 = vadd.f32 %v1733, %v1864
    %v1866 = vpop.f32.mrb[0].mxu0
    %v1867 = vadd.f32 %v1737, %v1866
    %v1868 = vpop.f32.mrb[0].mxu0
    %v1869 = vpop.f32.mrb[0].mxu0
    %1870 = vdwg.mxu0
    %1871 = vmatprep.subr.bf16.mxu0 %v1567
    %1872 = vmatpush1.bf16.msra.mxu0 %v1566
    %1873 = vmatprep.subr.bf16.mxu0 %v1587
    %1874 = vmatpush1.bf16.msra.mxu0 %v1586
    %1875 = vmatprep.subr.bf16.mxu0 %v1607
    %1876 = vmatpush1.bf16.msra.mxu0 %v1606
    %1877 = vmatprep.subr.bf16.mxu0 %v1627
    %1878 = vmatpush1.bf16.msra.mxu0 %v1626
    %1879 = vmatprep.subr.bf16.mxu0 %v1647
    %1880 = vmatpush1.bf16.msra.mxu0 %v1646
    %1881 = vmatprep.subr.bf16.mxu0 %v1667
    %1882 = vmatpush1.bf16.msra.mxu0 %v1666
    %1883 = vmatprep.subr.bf16.mxu0 %v1687
    %1884 = vmatpush1.bf16.msra.mxu0 %v1686
    %1885 = vmatprep.subr.bf16.mxu0 %v1707
    %1886 = vmatpush1.bf16.msra.mxu0 %v1706
    %1887 = vmatprep.subr.bf16.mxu0 0
    %1888 = vmatpush1.bf16.msra.mxu0 0
    %1889 = vmatprep.subr.bf16.mxu0 0
    %1890 = vmatpush1.bf16.msra.mxu0 0
    %1891 = vmatprep.subr.bf16.mxu0 0
    %1892 = vmatpush1.bf16.msra.mxu0 0
    %1893 = vmatprep.subr.bf16.mxu0 0
    %1894 = vmatpush1.bf16.msra.mxu0 0
    %1895 = vmatprep.subr.bf16.mxu0 0
    %1896 = vmatpush1.bf16.msra.mxu0 0
    %1897 = vmatprep.subr.bf16.mxu0 0
    %1898 = vmatpush1.bf16.msra.mxu0 0
    %1899 = vmatprep.subr.bf16.mxu0 0
    %1900 = vmatpush1.bf16.msra.mxu0 0
    %1901 = vmatprep.subr.bf16.mxu0 0
    %1902 = vmatpush1.bf16.msra.mxu0 0
    %1903 = vmatprep.mubr.bf16.mxu0 0
    %1904 = vmatmul.mubr.bf16.gmra.mrb[0].mxu0 %v678
    %v1905 = vpop.f32.mrb[0].mxu0
    %v1906 = vadd.f32 %v1741, %v1905
    %v1907 = vpop.f32.mrb[0].mxu0
    %v1908 = vadd.f32 %v1745, %v1907
    %v1909 = vpop.f32.mrb[0].mxu0
    %v1910 = vpop.f32.mrb[0].mxu0
    %1911 = vdwg.mxu0
    %1912 = vmatprep.subr.bf16.mxu0 %v1569
    %1913 = vmatpush1.bf16.msra.mxu0 %v1568
    %1914 = vmatprep.subr.bf16.mxu0 %v1589
    %1915 = vmatpush1.bf16.msra.mxu0 %v1588
    %1916 = vmatprep.subr.bf16.mxu0 %v1609
    %1917 = vmatpush1.bf16.msra.mxu0 %v1608
    %1918 = vmatprep.subr.bf16.mxu0 %v1629
    %1919 = vmatpush1.bf16.msra.mxu0 %v1628
    %1920 = vmatprep.subr.bf16.mxu0 %v1649
    %1921 = vmatpush1.bf16.msra.mxu0 %v1648
    %1922 = vmatprep.subr.bf16.mxu0 %v1669
    %1923 = vmatpush1.bf16.msra.mxu0 %v1668
    %1924 = vmatprep.subr.bf16.mxu0 %v1689
    %1925 = vmatpush1.bf16.msra.mxu0 %v1688
    %1926 = vmatprep.subr.bf16.mxu0 %v1709
    %1927 = vmatpush1.bf16.msra.mxu0 %v1708
    %1928 = vmatprep.subr.bf16.mxu0 0
    %1929 = vmatpush1.bf16.msra.mxu0 0
    %1930 = vmatprep.subr.bf16.mxu0 0
    %1931 = vmatpush1.bf16.msra.mxu0 0
    %1932 = vmatprep.subr.bf16.mxu0 0
    %1933 = vmatpush1.bf16.msra.mxu0 0
    %1934 = vmatprep.subr.bf16.mxu0 0
    %1935 = vmatpush1.bf16.msra.mxu0 0
    %1936 = vmatprep.subr.bf16.mxu0 0
    %1937 = vmatpush1.bf16.msra.mxu0 0
    %1938 = vmatprep.subr.bf16.mxu0 0
    %1939 = vmatpush1.bf16.msra.mxu0 0
    %1940 = vmatprep.subr.bf16.mxu0 0
    %1941 = vmatpush1.bf16.msra.mxu0 0
    %1942 = vmatprep.subr.bf16.mxu0 0
    %1943 = vmatpush1.bf16.msra.mxu0 0
    %1944 = vmatprep.mubr.bf16.mxu0 0
    %1945 = vmatmul.mubr.bf16.gmra.mrb[0].mxu0 %v678
    %v1946 = vpop.f32.mrb[0].mxu0
    %v1947 = vadd.f32 %v1749, %v1946
    %v1948 = vpop.f32.mrb[0].mxu0
    %v1949 = vadd.f32 %v1753, %v1948
    %v1950 = vpop.f32.mrb[0].mxu0
    %v1951 = vpop.f32.mrb[0].mxu0
    %1952 = vdwg.mxu0
    %1953 = vmatprep.subr.bf16.mxu0 %v1571
    %1954 = vmatpush1.bf16.msra.mxu0 %v1570
    %1955 = vmatprep.subr.bf16.mxu0 %v1591
    %1956 = vmatpush1.bf16.msra.mxu0 %v1590
    %1957 = vmatprep.subr.bf16.mxu0 %v1611
    %1958 = vmatpush1.bf16.msra.mxu0 %v1610
    %1959 = vmatprep.subr.bf16.mxu0 %v1631
    %1960 = vmatpush1.bf16.msra.mxu0 %v1630
    %1961 = vmatprep.subr.bf16.mxu0 %v1651
    %1962 = vmatpush1.bf16.msra.mxu0 %v1650
    %1963 = vmatprep.subr.bf16.mxu0 %v1671
    %1964 = vmatpush1.bf16.msra.mxu0 %v1670
    %1965 = vmatprep.subr.bf16.mxu0 %v1691
    %1966 = vmatpush1.bf16.msra.mxu0 %v1690
    %1967 = vmatprep.subr.bf16.mxu0 %v1711
    %1968 = vmatpush1.bf16.msra.mxu0 %v1710
    %1969 = vmatprep.subr.bf16.mxu0 0
    %1970 = vmatpush1.bf16.msra.mxu0 0
    %1971 = vmatprep.subr.bf16.mxu0 0
    %1972 = vmatpush1.bf16.msra.mxu0 0
    %1973 = vmatprep.subr.bf16.mxu0 0
    %1974 = vmatpush1.bf16.msra.mxu0 0
    %1975 = vmatprep.subr.bf16.mxu0 0
    %1976 = vmatpush1.bf16.msra.mxu0 0
    %1977 = vmatprep.subr.bf16.mxu0 0
    %1978 = vmatpush1.bf16.msra.mxu0 0
    %1979 = vmatprep.subr.bf16.mxu0 0
    %1980 = vmatpush1.bf16.msra.mxu0 0
    %1981 = vmatprep.subr.bf16.mxu0 0
    %1982 = vmatpush1.bf16.msra.mxu0 0
    %1983 = vmatprep.subr.bf16.mxu0 0
    %1984 = vmatpush1.bf16.msra.mxu0 0
    %1985 = vmatprep.mubr.bf16.mxu0 0
    %1986 = vmatmul.mubr.bf16.gmra.mrb[0].mxu0 %v678
    %v1987 = vpop.f32.mrb[0].mxu0
    %v1988 = vadd.f32 %v1757, %v1987
    %v1989 = vpop.f32.mrb[0].mxu0
    %v1990 = vadd.f32 %v1761, %v1989
    %v1991 = vpop.f32.mrb[0].mxu0
    %v1992 = vpop.f32.mrb[0].mxu0
    %1993 = vdwg.mxu0
    %1994 = vmatprep.subr.bf16.mxu0 %v1573
    %1995 = vmatpush1.bf16.msra.mxu0 %v1572
    %1996 = vmatprep.subr.bf16.mxu0 %v1593
    %1997 = vmatpush1.bf16.msra.mxu0 %v1592
    %1998 = vmatprep.subr.bf16.mxu0 %v1613
    %1999 = vmatpush1.bf16.msra.mxu0 %v1612
    %2000 = vmatprep.subr.bf16.mxu0 %v1633
    %2001 = vmatpush1.bf16.msra.mxu0 %v1632
    %2002 = vmatprep.subr.bf16.mxu0 %v1653
    %2003 = vmatpush1.bf16.msra.mxu0 %v1652
    %2004 = vmatprep.subr.bf16.mxu0 %v1673
    %2005 = vmatpush1.bf16.msra.mxu0 %v1672
    %2006 = vmatprep.subr.bf16.mxu0 %v1693
    %2007 = vmatpush1.bf16.msra.mxu0 %v1692
    %2008 = vmatprep.subr.bf16.mxu0 %v1713
    %2009 = vmatpush1.bf16.msra.mxu0 %v1712
    %2010 = vmatprep.subr.bf16.mxu0 0
    %2011 = vmatpush1.bf16.msra.mxu0 0
    %2012 = vmatprep.subr.bf16.mxu0 0
    %2013 = vmatpush1.bf16.msra.mxu0 0
    %2014 = vmatprep.subr.bf16.mxu0 0
    %2015 = vmatpush1.bf16.msra.mxu0 0
    %2016 = vmatprep.subr.bf16.mxu0 0
    %2017 = vmatpush1.bf16.msra.mxu0 0
    %2018 = vmatprep.subr.bf16.mxu0 0
    %2019 = vmatpush1.bf16.msra.mxu0 0
    %2020 = vmatprep.subr.bf16.mxu0 0
    %2021 = vmatpush1.bf16.msra.mxu0 0
    %2022 = vmatprep.subr.bf16.mxu0 0
    %2023 = vmatpush1.bf16.msra.mxu0 0
    %2024 = vmatprep.subr.bf16.mxu0 0
    %2025 = vmatpush1.bf16.msra.mxu0 0
    %2026 = vmatprep.mubr.bf16.mxu0 0
    %2027 = vmatmul.mubr.bf16.gmra.mrb[0].mxu0 %v678
    %v2028 = vpop.f32.mrb[0].mxu0
    %v2029 = vadd.f32 %v1765, %v2028
    %v2030 = vpop.f32.mrb[0].mxu0
    %v2031 = vadd.f32 %v1769, %v2030
    %v2032 = vpop.f32.mrb[0].mxu0
    %v2033 = vpop.f32.mrb[0].mxu0
    %2034 = vdwg.mxu0
    %2035 = vmatprep.subr.bf16.mxu0 %v1575
    %2036 = vmatpush1.bf16.msra.mxu0 %v1574
    %2037 = vmatprep.subr.bf16.mxu0 %v1595
    %2038 = vmatpush1.bf16.msra.mxu0 %v1594
    %2039 = vmatprep.subr.bf16.mxu0 %v1615
    %2040 = vmatpush1.bf16.msra.mxu0 %v1614
    %2041 = vmatprep.subr.bf16.mxu0 %v1635
    %2042 = vmatpush1.bf16.msra.mxu0 %v1634
    %2043 = vmatprep.subr.bf16.mxu0 %v1655
    %2044 = vmatpush1.bf16.msra.mxu0 %v1654
    %2045 = vmatprep.subr.bf16.mxu0 %v1675
    %2046 = vmatpush1.bf16.msra.mxu0 %v1674
    %2047 = vmatprep.subr.bf16.mxu0 %v1695
    %2048 = vmatpush1.bf16.msra.mxu0 %v1694
    %2049 = vmatprep.subr.bf16.mxu0 %v1715
    %2050 = vmatpush1.bf16.msra.mxu0 %v1714
    %2051 = vmatprep.subr.bf16.mxu0 0
    %2052 = vmatpush1.bf16.msra.mxu0 0
    %2053 = vmatprep.subr.bf16.mxu0 0
    %2054 = vmatpush1.bf16.msra.mxu0 0
    %2055 = vmatprep.subr.bf16.mxu0 0
    %2056 = vmatpush1.bf16.msra.mxu0 0
    %2057 = vmatprep.subr.bf16.mxu0 0
    %2058 = vmatpush1.bf16.msra.mxu0 0
    %2059 = vmatprep.subr.bf16.mxu0 0
    %2060 = vmatpush1.bf16.msra.mxu0 0
    %2061 = vmatprep.subr.bf16.mxu0 0
    %2062 = vmatpush1.bf16.msra.mxu0 0
    %2063 = vmatprep.subr.bf16.mxu0 0
    %2064 = vmatpush1.bf16.msra.mxu0 0
    %2065 = vmatprep.subr.bf16.mxu0 0
    %2066 = vmatpush1.bf16.msra.mxu0 0
    %2067 = vmatprep.mubr.bf16.mxu0 0
    %2068 = vmatmul.mubr.bf16.gmra.mrb[0].mxu0 %v678
    %v2069 = vpop.f32.mrb[0].mxu0
    %v2070 = vadd.f32 %v1773, %v2069
    %v2071 = vpop.f32.mrb[0].mxu0
    %v2072 = vadd.f32 %v1777, %v2071
    %v2073 = vpop.f32.mrb[0].mxu0
    %v2074 = vpop.f32.mrb[0].mxu0
    %2075 = vdwg.mxu0
    %2076 = vmatprep.subr.bf16.mxu0 %v1577
    %2077 = vmatpush1.bf16.msra.mxu0 %v1576
    %2078 = vmatprep.subr.bf16.mxu0 %v1597
    %2079 = vmatpush1.bf16.msra.mxu0 %v1596
    %2080 = vmatprep.subr.bf16.mxu0 %v1617
    %2081 = vmatpush1.bf16.msra.mxu0 %v1616
    %2082 = vmatprep.subr.bf16.mxu0 %v1637
    %2083 = vmatpush1.bf16.msra.mxu0 %v1636
    %2084 = vmatprep.subr.bf16.mxu0 %v1657
    %2085 = vmatpush1.bf16.msra.mxu0 %v1656
    %2086 = vmatprep.subr.bf16.mxu0 %v1677
    %2087 = vmatpush1.bf16.msra.mxu0 %v1676
    %2088 = vmatprep.subr.bf16.mxu0 %v1697
    %2089 = vmatpush1.bf16.msra.mxu0 %v1696
    %2090 = vmatprep.subr.bf16.mxu0 %v1717
    %2091 = vmatpush1.bf16.msra.mxu0 %v1716
    %2092 = vmatprep.subr.bf16.mxu0 0
    %2093 = vmatpush1.bf16.msra.mxu0 0
    %2094 = vmatprep.subr.bf16.mxu0 0
    %2095 = vmatpush1.bf16.msra.mxu0 0
    %2096 = vmatprep.subr.bf16.mxu0 0
    %2097 = vmatpush1.bf16.msra.mxu0 0
    %2098 = vmatprep.subr.bf16.mxu0 0
    %2099 = vmatpush1.bf16.msra.mxu0 0
    %2100 = vmatprep.subr.bf16.mxu0 0
    %2101 = vmatpush1.bf16.msra.mxu0 0
    %2102 = vmatprep.subr.bf16.mxu0 0
    %2103 = vmatpush1.bf16.msra.mxu0 0
    %2104 = vmatprep.subr.bf16.mxu0 0
    %2105 = vmatpush1.bf16.msra.mxu0 0
    %2106 = vmatprep.subr.bf16.mxu0 0
    %2107 = vmatpush1.bf16.msra.mxu0 0
    %2108 = vmatprep.mubr.bf16.mxu0 0
    %2109 = vmatmul.mubr.bf16.gmra.mrb[0].mxu0 %v678
    %v2110 = vpop.f32.mrb[0].mxu0
    %v2111 = vadd.f32 %v1781, %v2110
    %v2112 = vpop.f32.mrb[0].mxu0
    %v2113 = vadd.f32 %v1785, %v2112
    %v2114 = vpop.f32.mrb[0].mxu0
    %v2115 = vpop.f32.mrb[0].mxu0
    %2116 = vdwg.mxu0
    %2117 = vmatprep.subr.bf16.mxu0 %v1579
    %2118 = vmatpush1.bf16.msra.mxu0 %v1578
    %2119 = vmatprep.subr.bf16.mxu0 %v1599
    %2120 = vmatpush1.bf16.msra.mxu0 %v1598
    %2121 = vmatprep.subr.bf16.mxu0 %v1619
    %2122 = vmatpush1.bf16.msra.mxu0 %v1618
    %2123 = vmatprep.subr.bf16.mxu0 %v1639
    %2124 = vmatpush1.bf16.msra.mxu0 %v1638
    %2125 = vmatprep.subr.bf16.mxu0 %v1659
    %2126 = vmatpush1.bf16.msra.mxu0 %v1658
    %2127 = vmatprep.subr.bf16.mxu0 %v1679
    %2128 = vmatpush1.bf16.msra.mxu0 %v1678
    %2129 = vmatprep.subr.bf16.mxu0 %v1699
    %2130 = vmatpush1.bf16.msra.mxu0 %v1698
    %2131 = vmatprep.subr.bf16.mxu0 %v1719
    %2132 = vmatpush1.bf16.msra.mxu0 %v1718
    %2133 = vmatprep.subr.bf16.mxu0 0
    %2134 = vmatpush1.bf16.msra.mxu0 0
    %2135 = vmatprep.subr.bf16.mxu0 0
    %2136 = vmatpush1.bf16.msra.mxu0 0
    %2137 = vmatprep.subr.bf16.mxu0 0
    %2138 = vmatpush1.bf16.msra.mxu0 0
    %2139 = vmatprep.subr.bf16.mxu0 0
    %2140 = vmatpush1.bf16.msra.mxu0 0
    %2141 = vmatprep.subr.bf16.mxu0 0
    %2142 = vmatpush1.bf16.msra.mxu0 0
    %2143 = vmatprep.subr.bf16.mxu0 0
    %2144 = vmatpush1.bf16.msra.mxu0 0
    %2145 = vmatprep.subr.bf16.mxu0 0
    %2146 = vmatpush1.bf16.msra.mxu0 0
    %2147 = vmatprep.subr.bf16.mxu0 0
    %2148 = vmatpush1.bf16.msra.mxu0 0
    %2149 = vmatprep.mubr.bf16.mxu0 0
    %2150 = vmatmul.mubr.bf16.gmra.mrb[0].mxu0 %v678
    %v2151 = vpop.f32.mrb[0].mxu0
    %v2152 = vadd.f32 %v1789, %v2151
    %v2153 = vpop.f32.mrb[0].mxu0
    %v2154 = vadd.f32 %v1793, %v2153
    %v2155 = vpop.f32.mrb[0].mxu0
    %v2156 = vpop.f32.mrb[0].mxu0
    %2157 = vdwg.mxu0
    %2158 = vmatprep.subr.bf16.mxu0 %v1581
    %2159 = vmatpush1.bf16.msra.mxu0 %v1580
    %2160 = vmatprep.subr.bf16.mxu0 %v1601
    %2161 = vmatpush1.bf16.msra.mxu0 %v1600
    %2162 = vmatprep.subr.bf16.mxu0 %v1621
    %2163 = vmatpush1.bf16.msra.mxu0 %v1620
    %2164 = vmatprep.subr.bf16.mxu0 %v1641
    %2165 = vmatpush1.bf16.msra.mxu0 %v1640
    %2166 = vmatprep.subr.bf16.mxu0 %v1661
    %2167 = vmatpush1.bf16.msra.mxu0 %v1660
    %2168 = vmatprep.subr.bf16.mxu0 %v1681
    %2169 = vmatpush1.bf16.msra.mxu0 %v1680
    %2170 = vmatprep.subr.bf16.mxu0 %v1701
    %2171 = vmatpush1.bf16.msra.mxu0 %v1700
    %2172 = vmatprep.subr.bf16.mxu0 %v1721
    %2173 = vmatpush1.bf16.msra.mxu0 %v1720
    %2174 = vmatprep.subr.bf16.mxu0 0
    %2175 = vmatpush1.bf16.msra.mxu0 0
    %2176 = vmatprep.subr.bf16.mxu0 0
    %2177 = vmatpush1.bf16.msra.mxu0 0
    %2178 = vmatprep.subr.bf16.mxu0 0
    %2179 = vmatpush1.bf16.msra.mxu0 0
    %2180 = vmatprep.subr.bf16.mxu0 0
    %2181 = vmatpush1.bf16.msra.mxu0 0
    %2182 = vmatprep.subr.bf16.mxu0 0
    %2183 = vmatpush1.bf16.msra.mxu0 0
    %2184 = vmatprep.subr.bf16.mxu0 0
    %2185 = vmatpush1.bf16.msra.mxu0 0
    %2186 = vmatprep.subr.bf16.mxu0 0
    %2187 = vmatpush1.bf16.msra.mxu0 0
    %2188 = vmatprep.subr.bf16.mxu0 0
    %2189 = vmatpush1.bf16.msra.mxu0 0
    %2190 = vmatprep.mubr.bf16.mxu0 0
    %2191 = vmatmul.mubr.bf16.gmra.mrb[0].mxu0 %v678
    %v2192 = vpop.f32.mrb[0].mxu0
    %v2193 = vadd.f32 %v1797, %v2192
    %v2194 = vpop.f32.mrb[0].mxu0
    %v2195 = vadd.f32 %v1801, %v2194
    %v2196 = vpop.f32.mrb[0].mxu0
    %v2197 = vpop.f32.mrb[0].mxu0
    %2198 = vdwg.mxu0
    %2199 = vmatprep.subr.bf16.mxu0 %v1583
    %2200 = vmatpush1.bf16.msra.mxu0 %v1582
    %2201 = vmatprep.subr.bf16.mxu0 %v1603
    %2202 = vmatpush1.bf16.msra.mxu0 %v1602
    %2203 = vmatprep.subr.bf16.mxu0 %v1623
    %2204 = vmatpush1.bf16.msra.mxu0 %v1622
    %2205 = vmatprep.subr.bf16.mxu0 %v1643
    %2206 = vmatpush1.bf16.msra.mxu0 %v1642
    %2207 = vmatprep.subr.bf16.mxu0 %v1663
    %2208 = vmatpush1.bf16.msra.mxu0 %v1662
    %2209 = vmatprep.subr.bf16.mxu0 %v1683
    %2210 = vmatpush1.bf16.msra.mxu0 %v1682
    %2211 = vmatprep.subr.bf16.mxu0 %v1703
    %2212 = vmatpush1.bf16.msra.mxu0 %v1702
    %2213 = vmatprep.subr.bf16.mxu0 %v1723
    %2214 = vmatpush1.bf16.msra.mxu0 %v1722
    %2215 = vmatprep.subr.bf16.mxu0 0
    %2216 = vmatpush1.bf16.msra.mxu0 0
    %2217 = vmatprep.subr.bf16.mxu0 0
    %2218 = vmatpush1.bf16.msra.mxu0 0
    %2219 = vmatprep.subr.bf16.mxu0 0
    %2220 = vmatpush1.bf16.msra.mxu0 0
    %2221 = vmatprep.subr.bf16.mxu0 0
    %2222 = vmatpush1.bf16.msra.mxu0 0
    %2223 = vmatprep.subr.bf16.mxu0 0
    %2224 = vmatpush1.bf16.msra.mxu0 0
    %2225 = vmatprep.subr.bf16.mxu0 0
    %2226 = vmatpush1.bf16.msra.mxu0 0
    %2227 = vmatprep.subr.bf16.mxu0 0
    %2228 = vmatpush1.bf16.msra.mxu0 0
    %2229 = vmatprep.subr.bf16.mxu0 0
    %2230 = vmatpush1.bf16.msra.mxu0 0
    %2231 = vmatprep.mubr.bf16.mxu0 0
    %2232 = vmatmul.mubr.bf16.gmra.mrb[0].mxu0 %v678
    %v2233 = vpop.f32.mrb[0].mxu0
    %v2234 = vadd.f32 %v1805, %v2233
    %v2235 = vpop.f32.mrb[0].mxu0
    %v2236 = vadd.f32 %v1809, %v2235
    %v2237 = vpop.f32.mrb[0].mxu0
    %v2238 = vpop.f32.mrb[0].mxu0
    %2239 = vdwg.mxu0
    %2240 = vst [vmem:[#allocation3] sm:$0xff] %v1865
    %2241 = vst [vmem:[#allocation3 + $0x8] sm:$0xff] %v1867
    %2242 = vst [vmem:[#allocation3 + $0x10] sm:$0xff] %v1906
    %2243 = vst [vmem:[#allocation3 + $0x18] sm:$0xff] %v1908
    %2244 = vst [vmem:[#allocation3 + $0x20] sm:$0xff] %v1947
    %2245 = vst [vmem:[#allocation3 + $0x28] sm:$0xff] %v1949
    %2246 = vst [vmem:[#allocation3 + $0x30] sm:$0xff] %v1988
    %2247 = vst [vmem:[#allocation3 + $0x38] sm:$0xff] %v1990
    %2248 = vst [vmem:[#allocation3 + $0x40] sm:$0xff] %v2029
    %2249 = vst [vmem:[#allocation3 + $0x48] sm:$0xff] %v2031
    %2250 = vst [vmem:[#allocation3 + $0x50] sm:$0xff] %v2070
    %2251 = vst [vmem:[#allocation3 + $0x58] sm:$0xff] %v2072
    %2252 = vst [vmem:[#allocation3 + $0x60] sm:$0xff] %v2111
    %2253 = vst [vmem:[#allocation3 + $0x68] sm:$0xff] %v2113
    %2254 = vst [vmem:[#allocation3 + $0x70] sm:$0xff] %v2152
    %2255 = vst [vmem:[#allocation3 + $0x78] sm:$0xff] %v2154
    %2256 = vst [vmem:[#allocation3 + $0x80] sm:$0xff] %v2193
    %2257 = vst [vmem:[#allocation3 + $0x88] sm:$0xff] %v2195
    %2258 = vst [vmem:[#allocation3 + $0x90] sm:$0xff] %v2234
    %2259 = vst [vmem:[#allocation3 + $0x98] sm:$0xff] %v2236
    %v2260 = vld [vmem:[#allocation2 + $0xc0] sm:$0xff]
    %v2261 = vld [vmem:[#allocation2 + $0xc8] sm:$0xff]
    %v2262 = vld [vmem:[#allocation2 + $0xd0] sm:$0xff]
    %v2263 = vld [vmem:[#allocation2 + $0xd8] sm:$0xff]
    %v2264 = vpack.c.bf16 %v1559, %v1559
    %v2265 = vld [vmem:[#allocation10] sm:$0xff]
    %v2266 = vld [vmem:[#allocation10 + $0x8] sm:$0xff]
    %v2267 = vld [vmem:[#allocation10 + $0x10] sm:$0xff]
    %v2268 = vld [vmem:[#allocation10 + $0x18] sm:$0xff]
    %v2269 = vld [vmem:[#allocation10 + $0x20] sm:$0xff]
    %v2270 = vld [vmem:[#allocation10 + $0x28] sm:$0xff]
    %v2271 = vld [vmem:[#allocation10 + $0x30] sm:$0xff]
    %v2272 = vld [vmem:[#allocation10 + $0x38] sm:$0xff]
    %v2273 = vld [vmem:[#allocation10 + $0x40] sm:$0xff]
    %v2274 = vld [vmem:[#allocation10 + $0x48] sm:$0xff]
    %v2275 = vld [vmem:[#allocation10 + $0x50] sm:$0xff]
    %v2276 = vld [vmem:[#allocation10 + $0x58] sm:$0xff]
    %v2277 = vld [vmem:[#allocation10 + $0x60] sm:$0xff]
    %v2278 = vld [vmem:[#allocation10 + $0x68] sm:$0xff]
    %v2279 = vld [vmem:[#allocation10 + $0x70] sm:$0xff]
    %v2280 = vld [vmem:[#allocation10 + $0x78] sm:$0xff]
    %v2281 = vld [vmem:[#allocation10 + $0x80] sm:$0xff]
    %v2282 = vld [vmem:[#allocation10 + $0x88] sm:$0xff]
    %v2283 = vld [vmem:[#allocation10 + $0x90] sm:$0xff]
    %v2284 = vld [vmem:[#allocation10 + $0x98] sm:$0xff]
    %v2285 = vld [vmem:[#allocation10 + $0xa0] sm:$0xff]
    %v2286 = vld [vmem:[#allocation10 + $0xa8] sm:$0xff]
    %v2287 = vld [vmem:[#allocation10 + $0xb0] sm:$0xff]
    %v2288 = vld [vmem:[#allocation10 + $0xb8] sm:$0xff]
    %v2289 = vld [vmem:[#allocation10 + $0xc0] sm:$0xff]
    %v2290 = vld [vmem:[#allocation10 + $0xc8] sm:$0xff]
    %v2291 = vld [vmem:[#allocation10 + $0xd0] sm:$0xff]
    %v2292 = vld [vmem:[#allocation10 + $0xd8] sm:$0xff]
    %v2293 = vld [vmem:[#allocation10 + $0xe0] sm:$0xff]
    %v2294 = vld [vmem:[#allocation10 + $0xe8] sm:$0xff]
    %v2295 = vld [vmem:[#allocation10 + $0xf0] sm:$0xff]
    %v2296 = vld [vmem:[#allocation10 + $0xf8] sm:$0xff]
    %v2329 = vunpack.c.l.b16 %v2265
    %v2330 = vunpack.c.h.b16 %v2265
    %v2331 = vunpack.c.l.b16 %v2266
    %v2332 = vunpack.c.h.b16 %v2266
    %v2333 = vunpack.c.l.b16 %v2267
    %v2334 = vunpack.c.h.b16 %v2267
    %v2335 = vunpack.c.l.b16 %v2268
    %v2336 = vunpack.c.h.b16 %v2268
    %v2337 = vunpack.c.l.b16 %v2269
    %v2338 = vunpack.c.h.b16 %v2269
    %v2339 = vunpack.c.l.b16 %v2270
    %v2340 = vunpack.c.h.b16 %v2270
    %v2341 = vunpack.c.l.b16 %v2271
    %v2342 = vunpack.c.h.b16 %v2271
    %v2343 = vunpack.c.l.b16 %v2272
    %v2344 = vunpack.c.h.b16 %v2272
    %v2345 = vunpack.c.l.b16 %v2273
    %v2346 = vunpack.c.h.b16 %v2273
    %v2347 = vunpack.c.l.b16 %v2274
    %v2348 = vunpack.c.h.b16 %v2274
    %v2349 = vunpack.c.l.b16 %v2275
    %v2350 = vunpack.c.h.b16 %v2275
    %v2351 = vunpack.c.l.b16 %v2276
    %v2352 = vunpack.c.h.b16 %v2276
    %v2353 = vunpack.c.l.b16 %v2277
    %v2354 = vunpack.c.h.b16 %v2277
    %v2355 = vunpack.c.l.b16 %v2278
    %v2356 = vunpack.c.h.b16 %v2278
    %v2357 = vunpack.c.l.b16 %v2279
    %v2358 = vunpack.c.h.b16 %v2279
    %v2359 = vunpack.c.l.b16 %v2280
    %v2360 = vunpack.c.h.b16 %v2280
    %v2361 = vunpack.c.l.b16 %v2281
    %v2362 = vunpack.c.h.b16 %v2281
    %v2363 = vunpack.c.l.b16 %v2282
    %v2364 = vunpack.c.h.b16 %v2282
    %v2365 = vunpack.c.l.b16 %v2283
    %v2366 = vunpack.c.h.b16 %v2283
    %v2367 = vunpack.c.l.b16 %v2284
    %v2368 = vunpack.c.h.b16 %v2284
    %v2369 = vunpack.c.l.b16 %v2285
    %v2370 = vunpack.c.h.b16 %v2285
    %v2371 = vunpack.c.l.b16 %v2286
    %v2372 = vunpack.c.h.b16 %v2286
    %v2373 = vunpack.c.l.b16 %v2287
    %v2374 = vunpack.c.h.b16 %v2287
    %v2375 = vunpack.c.l.b16 %v2288
    %v2376 = vunpack.c.h.b16 %v2288
    %v2377 = vunpack.c.l.b16 %v2289
    %v2378 = vunpack.c.h.b16 %v2289
    %v2379 = vunpack.c.l.b16 %v2290
    %v2380 = vunpack.c.h.b16 %v2290
    %v2381 = vunpack.c.l.b16 %v2291
    %v2382 = vunpack.c.h.b16 %v2291
    %v2383 = vunpack.c.l.b16 %v2292
    %v2384 = vunpack.c.h.b16 %v2292
    %v2385 = vunpack.c.l.b16 %v2293
    %v2386 = vunpack.c.h.b16 %v2293
    %v2387 = vunpack.c.l.b16 %v2294
    %v2388 = vunpack.c.h.b16 %v2294
    %v2389 = vunpack.c.l.b16 %v2295
    %v2390 = vunpack.c.h.b16 %v2295
    %v2391 = vunpack.c.l.b16 %v2296
    %v2392 = vunpack.c.h.b16 %v2296
    %v2393 = vpack.c.b16 %v2333, %v2329
    %v2394 = vpack.c.b16 %v2334, %v2330
    %v2395 = vpack.c.b16 %v2335, %v2331
    %v2396 = vpack.c.b16 %v2336, %v2332
    %v2397 = vpack.c.b16 %v2341, %v2337
    %v2398 = vpack.c.b16 %v2342, %v2338
    %v2399 = vpack.c.b16 %v2343, %v2339
    %v2400 = vpack.c.b16 %v2344, %v2340
    %v2401 = vpack.c.b16 %v2349, %v2345
    %v2402 = vpack.c.b16 %v2350, %v2346
    %v2403 = vpack.c.b16 %v2351, %v2347
    %v2404 = vpack.c.b16 %v2352, %v2348
    %v2405 = vpack.c.b16 %v2357, %v2353
    %v2406 = vpack.c.b16 %v2358, %v2354
    %v2407 = vpack.c.b16 %v2359, %v2355
    %v2408 = vpack.c.b16 %v2360, %v2356
    %v2409 = vpack.c.b16 %v2365, %v2361
    %v2410 = vpack.c.b16 %v2366, %v2362
    %v2411 = vpack.c.b16 %v2367, %v2363
    %v2412 = vpack.c.b16 %v2368, %v2364
    %v2413 = vpack.c.b16 %v2373, %v2369
    %v2414 = vpack.c.b16 %v2374, %v2370
    %v2415 = vpack.c.b16 %v2375, %v2371
    %v2416 = vpack.c.b16 %v2376, %v2372
    %v2417 = vpack.c.b16 %v2381, %v2377
    %v2418 = vpack.c.b16 %v2382, %v2378
    %v2419 = vpack.c.b16 %v2383, %v2379
    %v2420 = vpack.c.b16 %v2384, %v2380
    %v2421 = vpack.c.b16 %v2389, %v2385
    %v2422 = vpack.c.b16 %v2390, %v2386
    %v2423 = vpack.c.b16 %v2391, %v2387
    %v2424 = vpack.c.b16 %v2392, %v2388
    %2457 = vmatprep.subr.bf16.mxu0 %v2394
    %2458 = vmatpush1.bf16.msra.mxu0 %v2393
    %2459 = vmatprep.subr.bf16.mxu0 %v2398
    %2460 = vmatpush1.bf16.msra.mxu0 %v2397
    %2461 = vmatprep.subr.bf16.mxu0 %v2402
    %2462 = vmatpush1.bf16.msra.mxu0 %v2401
    %2463 = vmatprep.subr.bf16.mxu0 %v2406
    %2464 = vmatpush1.bf16.msra.mxu0 %v2405
    %2465 = vmatprep.subr.bf16.mxu0 %v2410
    %2466 = vmatpush1.bf16.msra.mxu0 %v2409
    %2467 = vmatprep.subr.bf16.mxu0 %v2414
    %2468 = vmatpush1.bf16.msra.mxu0 %v2413
    %2469 = vmatprep.subr.bf16.mxu0 %v2418
    %2470 = vmatpush1.bf16.msra.mxu0 %v2417
    %2471 = vmatprep.subr.bf16.mxu0 %v2422
    %2472 = vmatpush1.bf16.msra.mxu0 %v2421
    %2473 = vmatprep.subr.bf16.mxu0 0
    %2474 = vmatpush1.bf16.msra.mxu0 0
    %2475 = vmatprep.subr.bf16.mxu0 0
    %2476 = vmatpush1.bf16.msra.mxu0 0
    %2477 = vmatprep.subr.bf16.mxu0 0
    %2478 = vmatpush1.bf16.msra.mxu0 0
    %2479 = vmatprep.subr.bf16.mxu0 0
    %2480 = vmatpush1.bf16.msra.mxu0 0
    %2481 = vmatprep.subr.bf16.mxu0 0
    %2482 = vmatpush1.bf16.msra.mxu0 0
    %2483 = vmatprep.subr.bf16.mxu0 0
    %2484 = vmatpush1.bf16.msra.mxu0 0
    %2485 = vmatprep.subr.bf16.mxu0 0
    %2486 = vmatpush1.bf16.msra.mxu0 0
    %2487 = vmatprep.subr.bf16.mxu0 0
    %2488 = vmatpush1.bf16.msra.mxu0 0
    %2489 = vmatprep.mubr.bf16.mxu0 0
    %2490 = vmatmul.mubr.bf16.gmra.mrb[0].mxu0 %v2264
    %v2491 = vpop.f32.mrb[0].mxu0
    %v2492 = vadd.f32 0.0, %v2491
    %v2493 = vpop.f32.mrb[0].mxu0
    %v2494 = vadd.f32 0.0, %v2493
    %v2495 = vpop.f32.mrb[0].mxu0
    %v2496 = vpop.f32.mrb[0].mxu0
    %2497 = vdwg.mxu0
    %2498 = vmatprep.subr.bf16.mxu0 %v2396
    %2499 = vmatpush1.bf16.msra.mxu0 %v2395
    %2500 = vmatprep.subr.bf16.mxu0 %v2400
    %2501 = vmatpush1.bf16.msra.mxu0 %v2399
    %2502 = vmatprep.subr.bf16.mxu0 %v2404
    %2503 = vmatpush1.bf16.msra.mxu0 %v2403
    %2504 = vmatprep.subr.bf16.mxu0 %v2408
    %2505 = vmatpush1.bf16.msra.mxu0 %v2407
    %2506 = vmatprep.subr.bf16.mxu0 %v2412
    %2507 = vmatpush1.bf16.msra.mxu0 %v2411
    %2508 = vmatprep.subr.bf16.mxu0 %v2416
    %2509 = vmatpush1.bf16.msra.mxu0 %v2415
    %2510 = vmatprep.subr.bf16.mxu0 %v2420
    %2511 = vmatpush1.bf16.msra.mxu0 %v2419
    %2512 = vmatprep.subr.bf16.mxu0 %v2424
    %2513 = vmatpush1.bf16.msra.mxu0 %v2423
    %2514 = vmatprep.subr.bf16.mxu0 0
    %2515 = vmatpush1.bf16.msra.mxu0 0
    %2516 = vmatprep.subr.bf16.mxu0 0
    %2517 = vmatpush1.bf16.msra.mxu0 0
    %2518 = vmatprep.subr.bf16.mxu0 0
    %2519 = vmatpush1.bf16.msra.mxu0 0
    %2520 = vmatprep.subr.bf16.mxu0 0
    %2521 = vmatpush1.bf16.msra.mxu0 0
    %2522 = vmatprep.subr.bf16.mxu0 0
    %2523 = vmatpush1.bf16.msra.mxu0 0
    %2524 = vmatprep.subr.bf16.mxu0 0
    %2525 = vmatpush1.bf16.msra.mxu0 0
    %2526 = vmatprep.subr.bf16.mxu0 0
    %2527 = vmatpush1.bf16.msra.mxu0 0
    %2528 = vmatprep.subr.bf16.mxu0 0
    %2529 = vmatpush1.bf16.msra.mxu0 0
    %2530 = vmatprep.mubr.bf16.mxu0 0
    %2531 = vmatmul.mubr.bf16.gmra.mrb[0].mxu0 %v2264
    %v2532 = vpop.f32.mrb[0].mxu0
    %v2533 = vadd.f32 0.0, %v2532
    %v2534 = vpop.f32.mrb[0].mxu0
    %v2535 = vadd.f32 0.0, %v2534
    %v2536 = vpop.f32.mrb[0].mxu0
    %v2537 = vpop.f32.mrb[0].mxu0
    %2538 = vdwg.mxu0
    %v2539 = vadd.f32 %v2260, %v2492
    %v2540 = vadd.f32 %v2261, %v2494
    %v2541 = vadd.f32 %v2262, %v2533
    %v2542 = vadd.f32 %v2263, %v2535
    %v2543 = vxor.u32 %v2539, 2147483648
    %v2544 = vmul.f32 %v2543, 1.442695
    %v2545 = vpow.pop %v2544
    %v2546 = vadd.f32 %v2545, 1.0
    %v2547 = vrcp.pop %v2546
    %v2548 = vmul.f32 1.0, %v2547
    %v2549 = vxor.u32 %v2540, 2147483648
    %v2550 = vmul.f32 %v2549, 1.442695
    %v2551 = vpow.pop %v2550
    %v2552 = vadd.f32 %v2551, 1.0
    %v2553 = vrcp.pop %v2552
    %v2554 = vmul.f32 1.0, %v2553
    %v2555 = vtanh.pop %v2541
    %v2556 = vxor.u32 %v2542, 2147483648
    %v2557 = vmul.f32 %v2556, 1.442695
    %v2558 = vpow.pop %v2557
    %v2559 = vadd.f32 %v2558, 1.0
    %v2560 = vrcp.pop %v2559
    %v2561 = vmul.f32 1.0, %v2560
    %v2562 = vmul.f32 %v2554, %v1557
    %v2563 = vmul.f32 %v2548, %v2555
    %v2564 = vadd.f32 %v2562, %v2563
    %v2565 = vtanh.pop %v2564
    %v2566 = vmul.f32 %v2561, %v2565
    %v2567 = vld [vmem:[#allocation2 + $0xe0] sm:$0xff]
    %v2568 = vld [vmem:[#allocation2 + $0xe8] sm:$0xff]
    %v2569 = vld [vmem:[#allocation2 + $0xf0] sm:$0xff]
    %v2570 = vld [vmem:[#allocation2 + $0xf8] sm:$0xff]
    %v2571 = vpack.c.bf16 %v2566, %v2566
    %2572 = vmatprep.subr.bf16.mxu0 %v2394
    %2573 = vmatpush1.bf16.msra.mxu0 %v2393
    %2574 = vmatprep.subr.bf16.mxu0 %v2398
    %2575 = vmatpush1.bf16.msra.mxu0 %v2397
    %2576 = vmatprep.subr.bf16.mxu0 %v2402
    %2577 = vmatpush1.bf16.msra.mxu0 %v2401
    %2578 = vmatprep.subr.bf16.mxu0 %v2406
    %2579 = vmatpush1.bf16.msra.mxu0 %v2405
    %2580 = vmatprep.subr.bf16.mxu0 %v2410
    %2581 = vmatpush1.bf16.msra.mxu0 %v2409
    %2582 = vmatprep.subr.bf16.mxu0 %v2414
    %2583 = vmatpush1.bf16.msra.mxu0 %v2413
    %2584 = vmatprep.subr.bf16.mxu0 %v2418
    %2585 = vmatpush1.bf16.msra.mxu0 %v2417
    %2586 = vmatprep.subr.bf16.mxu0 %v2422
    %2587 = vmatpush1.bf16.msra.mxu0 %v2421
    %2588 = vmatprep.subr.bf16.mxu0 0
    %2589 = vmatpush1.bf16.msra.mxu0 0
    %2590 = vmatprep.subr.bf16.mxu0 0
    %2591 = vmatpush1.bf16.msra.mxu0 0
    %2592 = vmatprep.subr.bf16.mxu0 0
    %2593 = vmatpush1.bf16.msra.mxu0 0
    %2594 = vmatprep.subr.bf16.mxu0 0
    %2595 = vmatpush1.bf16.msra.mxu0 0
    %2596 = vmatprep.subr.bf16.mxu0 0
    %2597 = vmatpush1.bf16.msra.mxu0 0
    %2598 = vmatprep.subr.bf16.mxu0 0
    %2599 = vmatpush1.bf16.msra.mxu0 0
    %2600 = vmatprep.subr.bf16.mxu0 0
    %2601 = vmatpush1.bf16.msra.mxu0 0
    %2602 = vmatprep.subr.bf16.mxu0 0
    %2603 = vmatpush1.bf16.msra.mxu0 0
    %2604 = vmatprep.mubr.bf16.mxu0 0
    %2605 = vmatmul.mubr.bf16.gmra.mrb[0].mxu0 %v2571
    %v2606 = vpop.f32.mrb[0].mxu0
    %v2607 = vadd.f32 0.0, %v2606
    %v2608 = vpop.f32.mrb[0].mxu0
    %v2609 = vadd.f32 0.0, %v2608
    %v2610 = vpop.f32.mrb[0].mxu0
    %v2611 = vpop.f32.mrb[0].mxu0
    %2612 = vdwg.mxu0
    %2613 = vmatprep.subr.bf16.mxu0 %v2396
    %2614 = vmatpush1.bf16.msra.mxu0 %v2395
    %2615 = vmatprep.subr.bf16.mxu0 %v2400
    %2616 = vmatpush1.bf16.msra.mxu0 %v2399
    %2617 = vmatprep.subr.bf16.mxu0 %v2404
    %2618 = vmatpush1.bf16.msra.mxu0 %v2403
    %2619 = vmatprep.subr.bf16.mxu0 %v2408
    %2620 = vmatpush1.bf16.msra.mxu0 %v2407
    %2621 = vmatprep.subr.bf16.mxu0 %v2412
    %2622 = vmatpush1.bf16.msra.mxu0 %v2411
    %2623 = vmatprep.subr.bf16.mxu0 %v2416
    %2624 = vmatpush1.bf16.msra.mxu0 %v2415
    %2625 = vmatprep.subr.bf16.mxu0 %v2420
    %2626 = vmatpush1.bf16.msra.mxu0 %v2419
    %2627 = vmatprep.subr.bf16.mxu0 %v2424
    %2628 = vmatpush1.bf16.msra.mxu0 %v2423
    %2629 = vmatprep.subr.bf16.mxu0 0
    %2630 = vmatpush1.bf16.msra.mxu0 0
    %2631 = vmatprep.subr.bf16.mxu0 0
    %2632 = vmatpush1.bf16.msra.mxu0 0
    %2633 = vmatprep.subr.bf16.mxu0 0
    %2634 = vmatpush1.bf16.msra.mxu0 0
    %2635 = vmatprep.subr.bf16.mxu0 0
    %2636 = vmatpush1.bf16.msra.mxu0 0
    %2637 = vmatprep.subr.bf16.mxu0 0
    %2638 = vmatpush1.bf16.msra.mxu0 0
    %2639 = vmatprep.subr.bf16.mxu0 0
    %2640 = vmatpush1.bf16.msra.mxu0 0
    %2641 = vmatprep.subr.bf16.mxu0 0
    %2642 = vmatpush1.bf16.msra.mxu0 0
    %2643 = vmatprep.subr.bf16.mxu0 0
    %2644 = vmatpush1.bf16.msra.mxu0 0
    %2645 = vmatprep.mubr.bf16.mxu0 0
    %2646 = vmatmul.mubr.bf16.gmra.mrb[0].mxu0 %v2571
    %v2647 = vpop.f32.mrb[0].mxu0
    %v2648 = vadd.f32 0.0, %v2647
    %v2649 = vpop.f32.mrb[0].mxu0
    %v2650 = vadd.f32 0.0, %v2649
    %v2651 = vpop.f32.mrb[0].mxu0
    %v2652 = vpop.f32.mrb[0].mxu0
    %2653 = vdwg.mxu0
    %v2654 = vadd.f32 %v2567, %v2607
    %v2655 = vadd.f32 %v2568, %v2609
    %v2656 = vadd.f32 %v2569, %v2648
    %v2657 = vadd.f32 %v2570, %v2650
    %v2658 = vxor.u32 %v2654, 2147483648
    %v2659 = vmul.f32 %v2658, 1.442695
    %v2660 = vpow.pop %v2659
    %v2661 = vadd.f32 %v2660, 1.0
    %v2662 = vrcp.pop %v2661
    %v2663 = vmul.f32 1.0, %v2662
    %v2664 = vxor.u32 %v2655, 2147483648
    %v2665 = vmul.f32 %v2664, 1.442695
    %v2666 = vpow.pop %v2665
    %v2667 = vadd.f32 %v2666, 1.0
    %v2668 = vrcp.pop %v2667
    %v2669 = vmul.f32 1.0, %v2668
    %v2670 = vtanh.pop %v2656
    %v2671 = vxor.u32 %v2657, 2147483648
    %v2672 = vmul.f32 %v2671, 1.442695
    %v2673 = vpow.pop %v2672
    %v2674 = vadd.f32 %v2673, 1.0
    %v2675 = vrcp.pop %v2674
    %v2676 = vmul.f32 1.0, %v2675
    %v2677 = vmul.f32 %v2669, %v2564
    %v2678 = vmul.f32 %v2663, %v2670
    %v2679 = vadd.f32 %v2677, %v2678
    %v2680 = vtanh.pop %v2679
    %v2681 = vmul.f32 %v2676, %v2680
    %v2682 = vpack.c.bf16 %v2681, %v2681
    %v2683 = vld [vmem:[#allocation3] sm:$0xff]
    %v2684 = vld [vmem:[#allocation3 + $0x8] sm:$0xff]
    %v2685 = vld [vmem:[#allocation3 + $0x10] sm:$0xff]
    %v2686 = vld [vmem:[#allocation3 + $0x18] sm:$0xff]
    %v2687 = vld [vmem:[#allocation3 + $0x20] sm:$0xff]
    %v2688 = vld [vmem:[#allocation3 + $0x28] sm:$0xff]
    %v2689 = vld [vmem:[#allocation3 + $0x30] sm:$0xff]
    %v2690 = vld [vmem:[#allocation3 + $0x38] sm:$0xff]
    %v2691 = vld [vmem:[#allocation3 + $0x40] sm:$0xff]
    %v2692 = vld [vmem:[#allocation3 + $0x48] sm:$0xff]
    %v2693 = vld [vmem:[#allocation3 + $0x50] sm:$0xff]
    %v2694 = vld [vmem:[#allocation3 + $0x58] sm:$0xff]
    %v2695 = vld [vmem:[#allocation3 + $0x60] sm:$0xff]
    %v2696 = vld [vmem:[#allocation3 + $0x68] sm:$0xff]
    %v2697 = vld [vmem:[#allocation3 + $0x70] sm:$0xff]
    %v2698 = vld [vmem:[#allocation3 + $0x78] sm:$0xff]
    %v2699 = vld [vmem:[#allocation3 + $0x80] sm:$0xff]
    %v2700 = vld [vmem:[#allocation3 + $0x88] sm:$0xff]
    %v2701 = vld [vmem:[#allocation3 + $0x90] sm:$0xff]
    %v2702 = vld [vmem:[#allocation3 + $0x98] sm:$0xff]
    %v2703 = vld [vmem:[#allocation4 + $0x500] sm:$0xff]
    %v2704 = vld [vmem:[#allocation4 + $0x508] sm:$0xff]
    %v2705 = vld [vmem:[#allocation4 + $0x510] sm:$0xff]
    %v2706 = vld [vmem:[#allocation4 + $0x518] sm:$0xff]
    %v2707 = vld [vmem:[#allocation4 + $0x520] sm:$0xff]
    %v2708 = vld [vmem:[#allocation4 + $0x528] sm:$0xff]
    %v2709 = vld [vmem:[#allocation4 + $0x530] sm:$0xff]
    %v2710 = vld [vmem:[#allocation4 + $0x538] sm:$0xff]
    %v2711 = vld [vmem:[#allocation4 + $0x540] sm:$0xff]
    %v2712 = vld [vmem:[#allocation4 + $0x548] sm:$0xff]
    %v2713 = vld [vmem:[#allocation4 + $0x550] sm:$0xff]
    %v2714 = vld [vmem:[#allocation4 + $0x558] sm:$0xff]
    %v2715 = vld [vmem:[#allocation4 + $0x560] sm:$0xff]
    %v2716 = vld [vmem:[#allocation4 + $0x568] sm:$0xff]
    %v2717 = vld [vmem:[#allocation4 + $0x570] sm:$0xff]
    %v2718 = vld [vmem:[#allocation4 + $0x578] sm:$0xff]
    %v2719 = vld [vmem:[#allocation4 + $0x580] sm:$0xff]
    %v2720 = vld [vmem:[#allocation4 + $0x588] sm:$0xff]
    %v2721 = vld [vmem:[#allocation4 + $0x590] sm:$0xff]
    %v2722 = vld [vmem:[#allocation4 + $0x598] sm:$0xff]
    %v2723 = vld [vmem:[#allocation4 + $0x5a0] sm:$0xff]
    %v2724 = vld [vmem:[#allocation4 + $0x5a8] sm:$0xff]
    %v2725 = vld [vmem:[#allocation4 + $0x5b0] sm:$0xff]
    %v2726 = vld [vmem:[#allocation4 + $0x5b8] sm:$0xff]
    %v2727 = vld [vmem:[#allocation4 + $0x5c0] sm:$0xff]
    %v2728 = vld [vmem:[#allocation4 + $0x5c8] sm:$0xff]
    %v2729 = vld [vmem:[#allocation4 + $0x5d0] sm:$0xff]
    %v2730 = vld [vmem:[#allocation4 + $0x5d8] sm:$0xff]
    %v2731 = vld [vmem:[#allocation4 + $0x5e0] sm:$0xff]
    %v2732 = vld [vmem:[#allocation4 + $0x5e8] sm:$0xff]
    %v2733 = vld [vmem:[#allocation4 + $0x5f0] sm:$0xff]
    %v2734 = vld [vmem:[#allocation4 + $0x5f8] sm:$0xff]
    %v2735 = vld [vmem:[#allocation4 + $0x600] sm:$0xff]
    %v2736 = vld [vmem:[#allocation4 + $0x608] sm:$0xff]
    %v2737 = vld [vmem:[#allocation4 + $0x610] sm:$0xff]
    %v2738 = vld [vmem:[#allocation4 + $0x618] sm:$0xff]
    %v2739 = vld [vmem:[#allocation4 + $0x620] sm:$0xff]
    %v2740 = vld [vmem:[#allocation4 + $0x628] sm:$0xff]
    %v2741 = vld [vmem:[#allocation4 + $0x630] sm:$0xff]
    %v2742 = vld [vmem:[#allocation4 + $0x638] sm:$0xff]
    %v2743 = vld [vmem:[#allocation4 + $0x640] sm:$0xff]
    %v2744 = vld [vmem:[#allocation4 + $0x648] sm:$0xff]
    %v2745 = vld [vmem:[#allocation4 + $0x650] sm:$0xff]
    %v2746 = vld [vmem:[#allocation4 + $0x658] sm:$0xff]
    %v2747 = vld [vmem:[#allocation4 + $0x660] sm:$0xff]
    %v2748 = vld [vmem:[#allocation4 + $0x668] sm:$0xff]
    %v2749 = vld [vmem:[#allocation4 + $0x670] sm:$0xff]
    %v2750 = vld [vmem:[#allocation4 + $0x678] sm:$0xff]
    %v2751 = vld [vmem:[#allocation4 + $0x680] sm:$0xff]
    %v2752 = vld [vmem:[#allocation4 + $0x688] sm:$0xff]
    %v2753 = vld [vmem:[#allocation4 + $0x690] sm:$0xff]
    %v2754 = vld [vmem:[#allocation4 + $0x698] sm:$0xff]
    %v2755 = vld [vmem:[#allocation4 + $0x6a0] sm:$0xff]
    %v2756 = vld [vmem:[#allocation4 + $0x6a8] sm:$0xff]
    %v2757 = vld [vmem:[#allocation4 + $0x6b0] sm:$0xff]
    %v2758 = vld [vmem:[#allocation4 + $0x6b8] sm:$0xff]
    %v2759 = vld [vmem:[#allocation4 + $0x6c0] sm:$0xff]
    %v2760 = vld [vmem:[#allocation4 + $0x6c8] sm:$0xff]
    %v2761 = vld [vmem:[#allocation4 + $0x6d0] sm:$0xff]
    %v2762 = vld [vmem:[#allocation4 + $0x6d8] sm:$0xff]
    %v2763 = vld [vmem:[#allocation4 + $0x6e0] sm:$0xff]
    %v2764 = vld [vmem:[#allocation4 + $0x6e8] sm:$0xff]
    %v2765 = vld [vmem:[#allocation4 + $0x6f0] sm:$0xff]
    %v2766 = vld [vmem:[#allocation4 + $0x6f8] sm:$0xff]
    %v2767 = vld [vmem:[#allocation4 + $0x700] sm:$0xff]
    %v2768 = vld [vmem:[#allocation4 + $0x708] sm:$0xff]
    %v2769 = vld [vmem:[#allocation4 + $0x710] sm:$0xff]
    %v2770 = vld [vmem:[#allocation4 + $0x718] sm:$0xff]
    %v2771 = vld [vmem:[#allocation4 + $0x720] sm:$0xff]
    %v2772 = vld [vmem:[#allocation4 + $0x728] sm:$0xff]
    %v2773 = vld [vmem:[#allocation4 + $0x730] sm:$0xff]
    %v2774 = vld [vmem:[#allocation4 + $0x738] sm:$0xff]
    %v2775 = vld [vmem:[#allocation4 + $0x740] sm:$0xff]
    %v2776 = vld [vmem:[#allocation4 + $0x748] sm:$0xff]
    %v2777 = vld [vmem:[#allocation4 + $0x750] sm:$0xff]
    %v2778 = vld [vmem:[#allocation4 + $0x758] sm:$0xff]
    %v2779 = vld [vmem:[#allocation4 + $0x760] sm:$0xff]
    %v2780 = vld [vmem:[#allocation4 + $0x768] sm:$0xff]
    %v2781 = vld [vmem:[#allocation4 + $0x770] sm:$0xff]
    %v2782 = vld [vmem:[#allocation4 + $0x778] sm:$0xff]
    %v2783 = vld [vmem:[#allocation4 + $0x780] sm:$0xff]
    %v2784 = vld [vmem:[#allocation4 + $0x788] sm:$0xff]
    %v2785 = vld [vmem:[#allocation4 + $0x790] sm:$0xff]
    %v2786 = vld [vmem:[#allocation4 + $0x798] sm:$0xff]
    %v2787 = vld [vmem:[#allocation4 + $0x7a0] sm:$0xff]
    %v2788 = vld [vmem:[#allocation4 + $0x7a8] sm:$0xff]
    %v2789 = vld [vmem:[#allocation4 + $0x7b0] sm:$0xff]
    %v2790 = vld [vmem:[#allocation4 + $0x7b8] sm:$0xff]
    %v2791 = vld [vmem:[#allocation4 + $0x7c0] sm:$0xff]
    %v2792 = vld [vmem:[#allocation4 + $0x7c8] sm:$0xff]
    %v2793 = vld [vmem:[#allocation4 + $0x7d0] sm:$0xff]
    %v2794 = vld [vmem:[#allocation4 + $0x7d8] sm:$0xff]
    %v2795 = vld [vmem:[#allocation4 + $0x7e0] sm:$0xff]
    %v2796 = vld [vmem:[#allocation4 + $0x7e8] sm:$0xff]
    %v2797 = vld [vmem:[#allocation4 + $0x7f0] sm:$0xff]
    %v2798 = vld [vmem:[#allocation4 + $0x7f8] sm:$0xff]
    %v2799 = vld [vmem:[#allocation4 + $0x800] sm:$0xff]
    %v2800 = vld [vmem:[#allocation4 + $0x808] sm:$0xff]
    %v2801 = vld [vmem:[#allocation4 + $0x810] sm:$0xff]
    %v2802 = vld [vmem:[#allocation4 + $0x818] sm:$0xff]
    %v2803 = vld [vmem:[#allocation4 + $0x820] sm:$0xff]
    %v2804 = vld [vmem:[#allocation4 + $0x828] sm:$0xff]
    %v2805 = vld [vmem:[#allocation4 + $0x830] sm:$0xff]
    %v2806 = vld [vmem:[#allocation4 + $0x838] sm:$0xff]
    %v2807 = vld [vmem:[#allocation4 + $0x840] sm:$0xff]
    %v2808 = vld [vmem:[#allocation4 + $0x848] sm:$0xff]
    %v2809 = vld [vmem:[#allocation4 + $0x850] sm:$0xff]
    %v2810 = vld [vmem:[#allocation4 + $0x858] sm:$0xff]
    %v2811 = vld [vmem:[#allocation4 + $0x860] sm:$0xff]
    %v2812 = vld [vmem:[#allocation4 + $0x868] sm:$0xff]
    %v2813 = vld [vmem:[#allocation4 + $0x870] sm:$0xff]
    %v2814 = vld [vmem:[#allocation4 + $0x878] sm:$0xff]
    %v2815 = vld [vmem:[#allocation4 + $0x880] sm:$0xff]
    %v2816 = vld [vmem:[#allocation4 + $0x888] sm:$0xff]
    %v2817 = vld [vmem:[#allocation4 + $0x890] sm:$0xff]
    %v2818 = vld [vmem:[#allocation4 + $0x898] sm:$0xff]
    %v2819 = vld [vmem:[#allocation4 + $0x8a0] sm:$0xff]
    %v2820 = vld [vmem:[#allocation4 + $0x8a8] sm:$0xff]
    %v2821 = vld [vmem:[#allocation4 + $0x8b0] sm:$0xff]
    %v2822 = vld [vmem:[#allocation4 + $0x8b8] sm:$0xff]
    %v2823 = vld [vmem:[#allocation4 + $0x8c0] sm:$0xff]
    %v2824 = vld [vmem:[#allocation4 + $0x8c8] sm:$0xff]
    %v2825 = vld [vmem:[#allocation4 + $0x8d0] sm:$0xff]
    %v2826 = vld [vmem:[#allocation4 + $0x8d8] sm:$0xff]
    %v2827 = vld [vmem:[#allocation4 + $0x8e0] sm:$0xff]
    %v2828 = vld [vmem:[#allocation4 + $0x8e8] sm:$0xff]
    %v2829 = vld [vmem:[#allocation4 + $0x8f0] sm:$0xff]
    %v2830 = vld [vmem:[#allocation4 + $0x8f8] sm:$0xff]
    %v2831 = vld [vmem:[#allocation4 + $0x900] sm:$0xff]
    %v2832 = vld [vmem:[#allocation4 + $0x908] sm:$0xff]
    %v2833 = vld [vmem:[#allocation4 + $0x910] sm:$0xff]
    %v2834 = vld [vmem:[#allocation4 + $0x918] sm:$0xff]
    %v2835 = vld [vmem:[#allocation4 + $0x920] sm:$0xff]
    %v2836 = vld [vmem:[#allocation4 + $0x928] sm:$0xff]
    %v2837 = vld [vmem:[#allocation4 + $0x930] sm:$0xff]
    %v2838 = vld [vmem:[#allocation4 + $0x938] sm:$0xff]
    %v2839 = vld [vmem:[#allocation4 + $0x940] sm:$0xff]
    %v2840 = vld [vmem:[#allocation4 + $0x948] sm:$0xff]
    %v2841 = vld [vmem:[#allocation4 + $0x950] sm:$0xff]
    %v2842 = vld [vmem:[#allocation4 + $0x958] sm:$0xff]
    %v2843 = vld [vmem:[#allocation4 + $0x960] sm:$0xff]
    %v2844 = vld [vmem:[#allocation4 + $0x968] sm:$0xff]
    %v2845 = vld [vmem:[#allocation4 + $0x970] sm:$0xff]
    %v2846 = vld [vmem:[#allocation4 + $0x978] sm:$0xff]
    %v2847 = vld [vmem:[#allocation4 + $0x980] sm:$0xff]
    %v2848 = vld [vmem:[#allocation4 + $0x988] sm:$0xff]
    %v2849 = vld [vmem:[#allocation4 + $0x990] sm:$0xff]
    %v2850 = vld [vmem:[#allocation4 + $0x998] sm:$0xff]
    %v2851 = vld [vmem:[#allocation4 + $0x9a0] sm:$0xff]
    %v2852 = vld [vmem:[#allocation4 + $0x9a8] sm:$0xff]
    %v2853 = vld [vmem:[#allocation4 + $0x9b0] sm:$0xff]
    %v2854 = vld [vmem:[#allocation4 + $0x9b8] sm:$0xff]
    %v2855 = vld [vmem:[#allocation4 + $0x9c0] sm:$0xff]
    %v2856 = vld [vmem:[#allocation4 + $0x9c8] sm:$0xff]
    %v2857 = vld [vmem:[#allocation4 + $0x9d0] sm:$0xff]
    %v2858 = vld [vmem:[#allocation4 + $0x9d8] sm:$0xff]
    %v2859 = vld [vmem:[#allocation4 + $0x9e0] sm:$0xff]
    %v2860 = vld [vmem:[#allocation4 + $0x9e8] sm:$0xff]
    %v2861 = vld [vmem:[#allocation4 + $0x9f0] sm:$0xff]
    %v2862 = vld [vmem:[#allocation4 + $0x9f8] sm:$0xff]
    %2863 = vmatprep.subr.bf16.mxu0 %v2704
    %2864 = vmatpush1.bf16.msra.mxu0 %v2703
    %2865 = vmatprep.subr.bf16.mxu0 %v2724
    %2866 = vmatpush1.bf16.msra.mxu0 %v2723
    %2867 = vmatprep.subr.bf16.mxu0 %v2744
    %2868 = vmatpush1.bf16.msra.mxu0 %v2743
    %2869 = vmatprep.subr.bf16.mxu0 %v2764
    %2870 = vmatpush1.bf16.msra.mxu0 %v2763
    %2871 = vmatprep.subr.bf16.mxu0 %v2784
    %2872 = vmatpush1.bf16.msra.mxu0 %v2783
    %2873 = vmatprep.subr.bf16.mxu0 %v2804
    %2874 = vmatpush1.bf16.msra.mxu0 %v2803
    %2875 = vmatprep.subr.bf16.mxu0 %v2824
    %2876 = vmatpush1.bf16.msra.mxu0 %v2823
    %2877 = vmatprep.subr.bf16.mxu0 %v2844
    %2878 = vmatpush1.bf16.msra.mxu0 %v2843
    %2879 = vmatprep.subr.bf16.mxu0 0
    %2880 = vmatpush1.bf16.msra.mxu0 0
    %2881 = vmatprep.subr.bf16.mxu0 0
    %2882 = vmatpush1.bf16.msra.mxu0 0
    %2883 = vmatprep.subr.bf16.mxu0 0
    %2884 = vmatpush1.bf16.msra.mxu0 0
    %2885 = vmatprep.subr.bf16.mxu0 0
    %2886 = vmatpush1.bf16.msra.mxu0 0
    %2887 = vmatprep.subr.bf16.mxu0 0
    %2888 = vmatpush1.bf16.msra.mxu0 0
    %2889 = vmatprep.subr.bf16.mxu0 0
    %2890 = vmatpush1.bf16.msra.mxu0 0
    %2891 = vmatprep.subr.bf16.mxu0 0
    %2892 = vmatpush1.bf16.msra.mxu0 0
    %2893 = vmatprep.subr.bf16.mxu0 0
    %2894 = vmatpush1.bf16.msra.mxu0 0
    %2895 = vmatprep.mubr.bf16.mxu0 0
    %2896 = vmatmul.mubr.bf16.gmra.mrb[0].mxu0 %v2682
    %v2897 = vpop.f32.mrb[0].mxu0
    %v2898 = vadd.f32 0.0, %v2897
    %v2899 = vpop.f32.mrb[0].mxu0
    %v2900 = vadd.f32 0.0, %v2899
    %v2901 = vpop.f32.mrb[0].mxu0
    %v2902 = vpop.f32.mrb[0].mxu0
    %2903 = vdwg.mxu0
    %2904 = vmatprep.subr.bf16.mxu0 %v2706
    %2905 = vmatpush1.bf16.msra.mxu0 %v2705
    %2906 = vmatprep.subr.bf16.mxu0 %v2726
    %2907 = vmatpush1.bf16.msra.mxu0 %v2725
    %2908 = vmatprep.subr.bf16.mxu0 %v2746
    %2909 = vmatpush1.bf16.msra.mxu0 %v2745
    %2910 = vmatprep.subr.bf16.mxu0 %v2766
    %2911 = vmatpush1.bf16.msra.mxu0 %v2765
    %2912 = vmatprep.subr.bf16.mxu0 %v2786
    %2913 = vmatpush1.bf16.msra.mxu0 %v2785
    %2914 = vmatprep.subr.bf16.mxu0 %v2806
    %2915 = vmatpush1.bf16.msra.mxu0 %v2805
    %2916 = vmatprep.subr.bf16.mxu0 %v2826
    %2917 = vmatpush1.bf16.msra.mxu0 %v2825
    %2918 = vmatprep.subr.bf16.mxu0 %v2846
    %2919 = vmatpush1.bf16.msra.mxu0 %v2845
    %2920 = vmatprep.subr.bf16.mxu0 0
    %2921 = vmatpush1.bf16.msra.mxu0 0
    %2922 = vmatprep.subr.bf16.mxu0 0
    %2923 = vmatpush1.bf16.msra.mxu0 0
    %2924 = vmatprep.subr.bf16.mxu0 0
    %2925 = vmatpush1.bf16.msra.mxu0 0
    %2926 = vmatprep.subr.bf16.mxu0 0
    %2927 = vmatpush1.bf16.msra.mxu0 0
    %2928 = vmatprep.subr.bf16.mxu0 0
    %2929 = vmatpush1.bf16.msra.mxu0 0
    %2930 = vmatprep.subr.bf16.mxu0 0
    %2931 = vmatpush1.bf16.msra.mxu0 0
    %2932 = vmatprep.subr.bf16.mxu0 0
    %2933 = vmatpush1.bf16.msra.mxu0 0
    %2934 = vmatprep.subr.bf16.mxu0 0
    %2935 = vmatpush1.bf16.msra.mxu0 0
    %2936 = vmatprep.mubr.bf16.mxu0 0
    %2937 = vmatmul.mubr.bf16.gmra.mrb[0].mxu0 %v2682
    %v2938 = vpop.f32.mrb[0].mxu0
    %v2939 = vadd.f32 0.0, %v2938
    %v2940 = vpop.f32.mrb[0].mxu0
    %v2941 = vadd.f32 0.0, %v2940
    %v2942 = vpop.f32.mrb[0].mxu0
    %v2943 = vpop.f32.mrb[0].mxu0
    %2944 = vdwg.mxu0
    %2945 = vmatprep.subr.bf16.mxu0 %v2708
    %2946 = vmatpush1.bf16.msra.mxu0 %v2707
    %2947 = vmatprep.subr.bf16.mxu0 %v2728
    %2948 = vmatpush1.bf16.msra.mxu0 %v2727
    %2949 = vmatprep.subr.bf16.mxu0 %v2748
    %2950 = vmatpush1.bf16.msra.mxu0 %v2747
    %2951 = vmatprep.subr.bf16.mxu0 %v2768
    %2952 = vmatpush1.bf16.msra.mxu0 %v2767
    %2953 = vmatprep.subr.bf16.mxu0 %v2788
    %2954 = vmatpush1.bf16.msra.mxu0 %v2787
    %2955 = vmatprep.subr.bf16.mxu0 %v2808
    %2956 = vmatpush1.bf16.msra.mxu0 %v2807
    %2957 = vmatprep.subr.bf16.mxu0 %v2828
    %2958 = vmatpush1.bf16.msra.mxu0 %v2827
    %2959 = vmatprep.subr.bf16.mxu0 %v2848
    %2960 = vmatpush1.bf16.msra.mxu0 %v2847
    %2961 = vmatprep.subr.bf16.mxu0 0
    %2962 = vmatpush1.bf16.msra.mxu0 0
    %2963 = vmatprep.subr.bf16.mxu0 0
    %2964 = vmatpush1.bf16.msra.mxu0 0
    %2965 = vmatprep.subr.bf16.mxu0 0
    %2966 = vmatpush1.bf16.msra.mxu0 0
    %2967 = vmatprep.subr.bf16.mxu0 0
    %2968 = vmatpush1.bf16.msra.mxu0 0
    %2969 = vmatprep.subr.bf16.mxu0 0
    %2970 = vmatpush1.bf16.msra.mxu0 0
    %2971 = vmatprep.subr.bf16.mxu0 0
    %2972 = vmatpush1.bf16.msra.mxu0 0
    %2973 = vmatprep.subr.bf16.mxu0 0
    %2974 = vmatpush1.bf16.msra.mxu0 0
    %2975 = vmatprep.subr.bf16.mxu0 0
    %2976 = vmatpush1.bf16.msra.mxu0 0
    %2977 = vmatprep.mubr.bf16.mxu0 0
    %2978 = vmatmul.mubr.bf16.gmra.mrb[0].mxu0 %v2682
    %v2979 = vpop.f32.mrb[0].mxu0
    %v2980 = vadd.f32 0.0, %v2979
    %v2981 = vpop.f32.mrb[0].mxu0
    %v2982 = vadd.f32 0.0, %v2981
    %v2983 = vpop.f32.mrb[0].mxu0
    %v2984 = vpop.f32.mrb[0].mxu0
    %2985 = vdwg.mxu0
    %2986 = vmatprep.subr.bf16.mxu0 %v2710
    %2987 = vmatpush1.bf16.msra.mxu0 %v2709
    %2988 = vmatprep.subr.bf16.mxu0 %v2730
    %2989 = vmatpush1.bf16.msra.mxu0 %v2729
    %2990 = vmatprep.subr.bf16.mxu0 %v2750
    %2991 = vmatpush1.bf16.msra.mxu0 %v2749
    %2992 = vmatprep.subr.bf16.mxu0 %v2770
    %2993 = vmatpush1.bf16.msra.mxu0 %v2769
    %2994 = vmatprep.subr.bf16.mxu0 %v2790
    %2995 = vmatpush1.bf16.msra.mxu0 %v2789
    %2996 = vmatprep.subr.bf16.mxu0 %v2810
    %2997 = vmatpush1.bf16.msra.mxu0 %v2809
    %2998 = vmatprep.subr.bf16.mxu0 %v2830
    %2999 = vmatpush1.bf16.msra.mxu0 %v2829
    %3000 = vmatprep.subr.bf16.mxu0 %v2850
    %3001 = vmatpush1.bf16.msra.mxu0 %v2849
    %3002 = vmatprep.subr.bf16.mxu0 0
    %3003 = vmatpush1.bf16.msra.mxu0 0
    %3004 = vmatprep.subr.bf16.mxu0 0
    %3005 = vmatpush1.bf16.msra.mxu0 0
    %3006 = vmatprep.subr.bf16.mxu0 0
    %3007 = vmatpush1.bf16.msra.mxu0 0
    %3008 = vmatprep.subr.bf16.mxu0 0
    %3009 = vmatpush1.bf16.msra.mxu0 0
    %3010 = vmatprep.subr.bf16.mxu0 0
    %3011 = vmatpush1.bf16.msra.mxu0 0
    %3012 = vmatprep.subr.bf16.mxu0 0
    %3013 = vmatpush1.bf16.msra.mxu0 0
    %3014 = vmatprep.subr.bf16.mxu0 0
    %3015 = vmatpush1.bf16.msra.mxu0 0
    %3016 = vmatprep.subr.bf16.mxu0 0
    %3017 = vmatpush1.bf16.msra.mxu0 0
    %3018 = vmatprep.mubr.bf16.mxu0 0
    %3019 = vmatmul.mubr.bf16.gmra.mrb[0].mxu0 %v2682
    %v3020 = vpop.f32.mrb[0].mxu0
    %v3021 = vadd.f32 0.0, %v3020
    %v3022 = vpop.f32.mrb[0].mxu0
    %v3023 = vadd.f32 0.0, %v3022
    %v3024 = vpop.f32.mrb[0].mxu0
    %v3025 = vpop.f32.mrb[0].mxu0
    %3026 = vdwg.mxu0
    %3027 = vmatprep.subr.bf16.mxu0 %v2712
    %3028 = vmatpush1.bf16.msra.mxu0 %v2711
    %3029 = vmatprep.subr.bf16.mxu0 %v2732
    %3030 = vmatpush1.bf16.msra.mxu0 %v2731
    %3031 = vmatprep.subr.bf16.mxu0 %v2752
    %3032 = vmatpush1.bf16.msra.mxu0 %v2751
    %3033 = vmatprep.subr.bf16.mxu0 %v2772
    %3034 = vmatpush1.bf16.msra.mxu0 %v2771
    %3035 = vmatprep.subr.bf16.mxu0 %v2792
    %3036 = vmatpush1.bf16.msra.mxu0 %v2791
    %3037 = vmatprep.subr.bf16.mxu0 %v2812
    %3038 = vmatpush1.bf16.msra.mxu0 %v2811
    %3039 = vmatprep.subr.bf16.mxu0 %v2832
    %3040 = vmatpush1.bf16.msra.mxu0 %v2831
    %3041 = vmatprep.subr.bf16.mxu0 %v2852
    %3042 = vmatpush1.bf16.msra.mxu0 %v2851
    %3043 = vmatprep.subr.bf16.mxu0 0
    %3044 = vmatpush1.bf16.msra.mxu0 0
    %3045 = vmatprep.subr.bf16.mxu0 0
    %3046 = vmatpush1.bf16.msra.mxu0 0
    %3047 = vmatprep.subr.bf16.mxu0 0
    %3048 = vmatpush1.bf16.msra.mxu0 0
    %3049 = vmatprep.subr.bf16.mxu0 0
    %3050 = vmatpush1.bf16.msra.mxu0 0
    %3051 = vmatprep.subr.bf16.mxu0 0
    %3052 = vmatpush1.bf16.msra.mxu0 0
    %3053 = vmatprep.subr.bf16.mxu0 0
    %3054 = vmatpush1.bf16.msra.mxu0 0
    %3055 = vmatprep.subr.bf16.mxu0 0
    %3056 = vmatpush1.bf16.msra.mxu0 0
    %3057 = vmatprep.subr.bf16.mxu0 0
    %3058 = vmatpush1.bf16.msra.mxu0 0
    %3059 = vmatprep.mubr.bf16.mxu0 0
    %3060 = vmatmul.mubr.bf16.gmra.mrb[0].mxu0 %v2682
    %v3061 = vpop.f32.mrb[0].mxu0
    %v3062 = vadd.f32 0.0, %v3061
    %v3063 = vpop.f32.mrb[0].mxu0
    %v3064 = vadd.f32 0.0, %v3063
    %v3065 = vpop.f32.mrb[0].mxu0
    %v3066 = vpop.f32.mrb[0].mxu0
    %3067 = vdwg.mxu0
    %3068 = vmatprep.subr.bf16.mxu0 %v2714
    %3069 = vmatpush1.bf16.msra.mxu0 %v2713
    %3070 = vmatprep.subr.bf16.mxu0 %v2734
    %3071 = vmatpush1.bf16.msra.mxu0 %v2733
    %3072 = vmatprep.subr.bf16.mxu0 %v2754
    %3073 = vmatpush1.bf16.msra.mxu0 %v2753
    %3074 = vmatprep.subr.bf16.mxu0 %v2774
    %3075 = vmatpush1.bf16.msra.mxu0 %v2773
    %3076 = vmatprep.subr.bf16.mxu0 %v2794
    %3077 = vmatpush1.bf16.msra.mxu0 %v2793
    %3078 = vmatprep.subr.bf16.mxu0 %v2814
    %3079 = vmatpush1.bf16.msra.mxu0 %v2813
    %3080 = vmatprep.subr.bf16.mxu0 %v2834
    %3081 = vmatpush1.bf16.msra.mxu0 %v2833
    %3082 = vmatprep.subr.bf16.mxu0 %v2854
    %3083 = vmatpush1.bf16.msra.mxu0 %v2853
    %3084 = vmatprep.subr.bf16.mxu0 0
    %3085 = vmatpush1.bf16.msra.mxu0 0
    %3086 = vmatprep.subr.bf16.mxu0 0
    %3087 = vmatpush1.bf16.msra.mxu0 0
    %3088 = vmatprep.subr.bf16.mxu0 0
    %3089 = vmatpush1.bf16.msra.mxu0 0
    %3090 = vmatprep.subr.bf16.mxu0 0
    %3091 = vmatpush1.bf16.msra.mxu0 0
    %3092 = vmatprep.subr.bf16.mxu0 0
    %3093 = vmatpush1.bf16.msra.mxu0 0
    %3094 = vmatprep.subr.bf16.mxu0 0
    %3095 = vmatpush1.bf16.msra.mxu0 0
    %3096 = vmatprep.subr.bf16.mxu0 0
    %3097 = vmatpush1.bf16.msra.mxu0 0
    %3098 = vmatprep.subr.bf16.mxu0 0
    %3099 = vmatpush1.bf16.msra.mxu0 0
    %3100 = vmatprep.mubr.bf16.mxu0 0
    %3101 = vmatmul.mubr.bf16.gmra.mrb[0].mxu0 %v2682
    %v3102 = vpop.f32.mrb[0].mxu0
    %v3103 = vadd.f32 0.0, %v3102
    %v3104 = vpop.f32.mrb[0].mxu0
    %v3105 = vadd.f32 0.0, %v3104
    %v3106 = vpop.f32.mrb[0].mxu0
    %v3107 = vpop.f32.mrb[0].mxu0
    %3108 = vdwg.mxu0
    %3109 = vmatprep.subr.bf16.mxu0 %v2716
    %3110 = vmatpush1.bf16.msra.mxu0 %v2715
    %3111 = vmatprep.subr.bf16.mxu0 %v2736
    %3112 = vmatpush1.bf16.msra.mxu0 %v2735
    %3113 = vmatprep.subr.bf16.mxu0 %v2756
    %3114 = vmatpush1.bf16.msra.mxu0 %v2755
    %3115 = vmatprep.subr.bf16.mxu0 %v2776
    %3116 = vmatpush1.bf16.msra.mxu0 %v2775
    %3117 = vmatprep.subr.bf16.mxu0 %v2796
    %3118 = vmatpush1.bf16.msra.mxu0 %v2795
    %3119 = vmatprep.subr.bf16.mxu0 %v2816
    %3120 = vmatpush1.bf16.msra.mxu0 %v2815
    %3121 = vmatprep.subr.bf16.mxu0 %v2836
    %3122 = vmatpush1.bf16.msra.mxu0 %v2835
    %3123 = vmatprep.subr.bf16.mxu0 %v2856
    %3124 = vmatpush1.bf16.msra.mxu0 %v2855
    %3125 = vmatprep.subr.bf16.mxu0 0
    %3126 = vmatpush1.bf16.msra.mxu0 0
    %3127 = vmatprep.subr.bf16.mxu0 0
    %3128 = vmatpush1.bf16.msra.mxu0 0
    %3129 = vmatprep.subr.bf16.mxu0 0
    %3130 = vmatpush1.bf16.msra.mxu0 0
    %3131 = vmatprep.subr.bf16.mxu0 0
    %3132 = vmatpush1.bf16.msra.mxu0 0
    %3133 = vmatprep.subr.bf16.mxu0 0
    %3134 = vmatpush1.bf16.msra.mxu0 0
    %3135 = vmatprep.subr.bf16.mxu0 0
    %3136 = vmatpush1.bf16.msra.mxu0 0
    %3137 = vmatprep.subr.bf16.mxu0 0
    %3138 = vmatpush1.bf16.msra.mxu0 0
    %3139 = vmatprep.subr.bf16.mxu0 0
    %3140 = vmatpush1.bf16.msra.mxu0 0
    %3141 = vmatprep.mubr.bf16.mxu0 0
    %3142 = vmatmul.mubr.bf16.gmra.mrb[0].mxu0 %v2682
    %v3143 = vpop.f32.mrb[0].mxu0
    %v3144 = vadd.f32 0.0, %v3143
    %v3145 = vpop.f32.mrb[0].mxu0
    %v3146 = vadd.f32 0.0, %v3145
    %v3147 = vpop.f32.mrb[0].mxu0
    %v3148 = vpop.f32.mrb[0].mxu0
    %3149 = vdwg.mxu0
    %3150 = vmatprep.subr.bf16.mxu0 %v2718
    %3151 = vmatpush1.bf16.msra.mxu0 %v2717
    %3152 = vmatprep.subr.bf16.mxu0 %v2738
    %3153 = vmatpush1.bf16.msra.mxu0 %v2737
    %3154 = vmatprep.subr.bf16.mxu0 %v2758
    %3155 = vmatpush1.bf16.msra.mxu0 %v2757
    %3156 = vmatprep.subr.bf16.mxu0 %v2778
    %3157 = vmatpush1.bf16.msra.mxu0 %v2777
    %3158 = vmatprep.subr.bf16.mxu0 %v2798
    %3159 = vmatpush1.bf16.msra.mxu0 %v2797
    %3160 = vmatprep.subr.bf16.mxu0 %v2818
    %3161 = vmatpush1.bf16.msra.mxu0 %v2817
    %3162 = vmatprep.subr.bf16.mxu0 %v2838
    %3163 = vmatpush1.bf16.msra.mxu0 %v2837
    %3164 = vmatprep.subr.bf16.mxu0 %v2858
    %3165 = vmatpush1.bf16.msra.mxu0 %v2857
    %3166 = vmatprep.subr.bf16.mxu0 0
    %3167 = vmatpush1.bf16.msra.mxu0 0
    %3168 = vmatprep.subr.bf16.mxu0 0
    %3169 = vmatpush1.bf16.msra.mxu0 0
    %3170 = vmatprep.subr.bf16.mxu0 0
    %3171 = vmatpush1.bf16.msra.mxu0 0
    %3172 = vmatprep.subr.bf16.mxu0 0
    %3173 = vmatpush1.bf16.msra.mxu0 0
    %3174 = vmatprep.subr.bf16.mxu0 0
    %3175 = vmatpush1.bf16.msra.mxu0 0
    %3176 = vmatprep.subr.bf16.mxu0 0
    %3177 = vmatpush1.bf16.msra.mxu0 0
    %3178 = vmatprep.subr.bf16.mxu0 0
    %3179 = vmatpush1.bf16.msra.mxu0 0
    %3180 = vmatprep.subr.bf16.mxu0 0
    %3181 = vmatpush1.bf16.msra.mxu0 0
    %3182 = vmatprep.mubr.bf16.mxu0 0
    %3183 = vmatmul.mubr.bf16.gmra.mrb[0].mxu0 %v2682
    %v3184 = vpop.f32.mrb[0].mxu0
    %v3185 = vadd.f32 0.0, %v3184
    %v3186 = vpop.f32.mrb[0].mxu0
    %v3187 = vadd.f32 0.0, %v3186
    %v3188 = vpop.f32.mrb[0].mxu0
    %v3189 = vpop.f32.mrb[0].mxu0
    %3190 = vdwg.mxu0
    %3191 = vmatprep.subr.bf16.mxu0 %v2720
    %3192 = vmatpush1.bf16.msra.mxu0 %v2719
    %3193 = vmatprep.subr.bf16.mxu0 %v2740
    %3194 = vmatpush1.bf16.msra.mxu0 %v2739
    %3195 = vmatprep.subr.bf16.mxu0 %v2760
    %3196 = vmatpush1.bf16.msra.mxu0 %v2759
    %3197 = vmatprep.subr.bf16.mxu0 %v2780
    %3198 = vmatpush1.bf16.msra.mxu0 %v2779
    %3199 = vmatprep.subr.bf16.mxu0 %v2800
    %3200 = vmatpush1.bf16.msra.mxu0 %v2799
    %3201 = vmatprep.subr.bf16.mxu0 %v2820
    %3202 = vmatpush1.bf16.msra.mxu0 %v2819
    %3203 = vmatprep.subr.bf16.mxu0 %v2840
    %3204 = vmatpush1.bf16.msra.mxu0 %v2839
    %3205 = vmatprep.subr.bf16.mxu0 %v2860
    %3206 = vmatpush1.bf16.msra.mxu0 %v2859
    %3207 = vmatprep.subr.bf16.mxu0 0
    %3208 = vmatpush1.bf16.msra.mxu0 0
    %3209 = vmatprep.subr.bf16.mxu0 0
    %3210 = vmatpush1.bf16.msra.mxu0 0
    %3211 = vmatprep.subr.bf16.mxu0 0
    %3212 = vmatpush1.bf16.msra.mxu0 0
    %3213 = vmatprep.subr.bf16.mxu0 0
    %3214 = vmatpush1.bf16.msra.mxu0 0
    %3215 = vmatprep.subr.bf16.mxu0 0
    %3216 = vmatpush1.bf16.msra.mxu0 0
    %3217 = vmatprep.subr.bf16.mxu0 0
    %3218 = vmatpush1.bf16.msra.mxu0 0
    %3219 = vmatprep.subr.bf16.mxu0 0
    %3220 = vmatpush1.bf16.msra.mxu0 0
    %3221 = vmatprep.subr.bf16.mxu0 0
    %3222 = vmatpush1.bf16.msra.mxu0 0
    %3223 = vmatprep.mubr.bf16.mxu0 0
    %3224 = vmatmul.mubr.bf16.gmra.mrb[0].mxu0 %v2682
    %v3225 = vpop.f32.mrb[0].mxu0
    %v3226 = vadd.f32 0.0, %v3225
    %v3227 = vpop.f32.mrb[0].mxu0
    %v3228 = vadd.f32 0.0, %v3227
    %v3229 = vpop.f32.mrb[0].mxu0
    %v3230 = vpop.f32.mrb[0].mxu0
    %3231 = vdwg.mxu0
    %3232 = vmatprep.subr.bf16.mxu0 %v2722
    %3233 = vmatpush1.bf16.msra.mxu0 %v2721
    %3234 = vmatprep.subr.bf16.mxu0 %v2742
    %3235 = vmatpush1.bf16.msra.mxu0 %v2741
    %3236 = vmatprep.subr.bf16.mxu0 %v2762
    %3237 = vmatpush1.bf16.msra.mxu0 %v2761
    %3238 = vmatprep.subr.bf16.mxu0 %v2782
    %3239 = vmatpush1.bf16.msra.mxu0 %v2781
    %3240 = vmatprep.subr.bf16.mxu0 %v2802
    %3241 = vmatpush1.bf16.msra.mxu0 %v2801
    %3242 = vmatprep.subr.bf16.mxu0 %v2822
    %3243 = vmatpush1.bf16.msra.mxu0 %v2821
    %3244 = vmatprep.subr.bf16.mxu0 %v2842
    %3245 = vmatpush1.bf16.msra.mxu0 %v2841
    %3246 = vmatprep.subr.bf16.mxu0 %v2862
    %3247 = vmatpush1.bf16.msra.mxu0 %v2861
    %3248 = vmatprep.subr.bf16.mxu0 0
    %3249 = vmatpush1.bf16.msra.mxu0 0
    %3250 = vmatprep.subr.bf16.mxu0 0
    %3251 = vmatpush1.bf16.msra.mxu0 0
    %3252 = vmatprep.subr.bf16.mxu0 0
    %3253 = vmatpush1.bf16.msra.mxu0 0
    %3254 = vmatprep.subr.bf16.mxu0 0
    %3255 = vmatpush1.bf16.msra.mxu0 0
    %3256 = vmatprep.subr.bf16.mxu0 0
    %3257 = vmatpush1.bf16.msra.mxu0 0
    %3258 = vmatprep.subr.bf16.mxu0 0
    %3259 = vmatpush1.bf16.msra.mxu0 0
    %3260 = vmatprep.subr.bf16.mxu0 0
    %3261 = vmatpush1.bf16.msra.mxu0 0
    %3262 = vmatprep.subr.bf16.mxu0 0
    %3263 = vmatpush1.bf16.msra.mxu0 0
    %3264 = vmatprep.mubr.bf16.mxu0 0
    %3265 = vmatmul.mubr.bf16.gmra.mrb[0].mxu0 %v2682
    %v3266 = vpop.f32.mrb[0].mxu0
    %v3267 = vadd.f32 0.0, %v3266
    %v3268 = vpop.f32.mrb[0].mxu0
    %v3269 = vadd.f32 0.0, %v3268
    %v3270 = vpop.f32.mrb[0].mxu0
    %v3271 = vpop.f32.mrb[0].mxu0
    %3272 = vdwg.mxu0
    %v3273 = vadd.f32 %v2683, %v2898
    %v3274 = vadd.f32 %v2684, %v2900
    %v3275 = vadd.f32 %v2685, %v2939
    %v3276 = vadd.f32 %v2686, %v2941
    %v3277 = vadd.f32 %v2687, %v2980
    %v3278 = vadd.f32 %v2688, %v2982
    %v3279 = vadd.f32 %v2689, %v3021
    %v3280 = vadd.f32 %v2690, %v3023
    %v3281 = vadd.f32 %v2691, %v3062
    %v3282 = vadd.f32 %v2692, %v3064
    %v3283 = vadd.f32 %v2693, %v3103
    %v3284 = vadd.f32 %v2694, %v3105
    %v3285 = vadd.f32 %v2695, %v3144
    %v3286 = vadd.f32 %v2696, %v3146
    %v3287 = vadd.f32 %v2697, %v3185
    %v3288 = vadd.f32 %v2698, %v3187
    %v3289 = vadd.f32 %v2699, %v3226
    %v3290 = vadd.f32 %v2700, %v3228
    %v3291 = vadd.f32 %v2701, %v3267
    %v3292 = vadd.f32 %v2702, %v3269
    %v3293 = vmax.f32 %v3273, 0.0
    %v3294 = vmax.f32 %v3274, 0.0
    %v3295 = vmax.f32 %v3275, 0.0
    %v3296 = vmax.f32 %v3276, 0.0
    %v3297 = vmax.f32 %v3277, 0.0
    %v3298 = vmax.f32 %v3278, 0.0
    %v3299 = vmax.f32 %v3279, 0.0
    %v3300 = vmax.f32 %v3280, 0.0
    %v3301 = vmax.f32 %v3281, 0.0
    %v3302 = vmax.f32 %v3282, 0.0
    %v3303 = vmax.f32 %v3283, 0.0
    %v3304 = vmax.f32 %v3284, 0.0
    %v3305 = vmax.f32 %v3285, 0.0
    %v3306 = vmax.f32 %v3286, 0.0
    %v3307 = vmax.f32 %v3287, 0.0
    %v3308 = vmax.f32 %v3288, 0.0
    %v3309 = vmax.f32 %v3289, 0.0
    %v3310 = vmax.f32 %v3290, 0.0
    %v3311 = vmax.f32 %v3291, 0.0
    %v3312 = vmax.f32 %v3292, 0.0
    %v3313 = vpack.c.bf16 %v3293, %v3293
    %v3314 = vpack.c.bf16 %v3294, %v3294
    %v3315 = vpack.c.bf16 %v3295, %v3295
    %v3316 = vpack.c.bf16 %v3296, %v3296
    %v3317 = vpack.c.bf16 %v3297, %v3297
    %v3318 = vpack.c.bf16 %v3298, %v3298
    %v3319 = vpack.c.bf16 %v3299, %v3299
    %v3320 = vpack.c.bf16 %v3300, %v3300
    %v3321 = vpack.c.bf16 %v3301, %v3301
    %v3322 = vpack.c.bf16 %v3302, %v3302
    %v3323 = vpack.c.bf16 %v3303, %v3303
    %v3324 = vpack.c.bf16 %v3304, %v3304
    %v3325 = vpack.c.bf16 %v3305, %v3305
    %v3326 = vpack.c.bf16 %v3306, %v3306
    %v3327 = vpack.c.bf16 %v3307, %v3307
    %v3328 = vpack.c.bf16 %v3308, %v3308
    %v3329 = vpack.c.bf16 %v3309, %v3309
    %v3330 = vpack.c.bf16 %v3310, %v3310
    %v3331 = vpack.c.bf16 %v3311, %v3311
    %v3332 = vpack.c.bf16 %v3312, %v3312
    %s3333 = smul.u32 4, 320
    %s3334 = smul.u32 %s3333, 2
    %s3335 = sshll.u32 %s3334, 4
    %3336 = dma.done %s127, %s3335
    %v3337 = vld [vmem:[#allocation5] sm:$0xff]
    %v3338 = vld [vmem:[#allocation5 + $0x8] sm:$0xff]
    %v3339 = vld [vmem:[#allocation5 + $0x10] sm:$0xff]
    %v3340 = vld [vmem:[#allocation5 + $0x18] sm:$0xff]
    %v3341 = vld [vmem:[#allocation5 + $0x20] sm:$0xff]
    %v3342 = vld [vmem:[#allocation5 + $0x28] sm:$0xff]
    %v3343 = vld [vmem:[#allocation5 + $0x30] sm:$0xff]
    %v3344 = vld [vmem:[#allocation5 + $0x38] sm:$0xff]
    %v3345 = vld [vmem:[#allocation5 + $0x40] sm:$0xff]
    %v3346 = vld [vmem:[#allocation5 + $0x48] sm:$0xff]
    %v3347 = vld [vmem:[#allocation5 + $0x50] sm:$0xff]
    %v3348 = vld [vmem:[#allocation5 + $0x58] sm:$0xff]
    %v3349 = vld [vmem:[#allocation5 + $0x60] sm:$0xff]
    %v3350 = vld [vmem:[#allocation5 + $0x68] sm:$0xff]
    %v3351 = vld [vmem:[#allocation5 + $0x70] sm:$0xff]
    %v3352 = vld [vmem:[#allocation5 + $0x78] sm:$0xff]
    %v3353 = vld [vmem:[#allocation5 + $0x80] sm:$0xff]
    %v3354 = vld [vmem:[#allocation5 + $0x88] sm:$0xff]
    %v3355 = vld [vmem:[#allocation5 + $0x90] sm:$0xff]
    %v3356 = vld [vmem:[#allocation5 + $0x98] sm:$0xff]
    %v3357 = vld [vmem:[#allocation5 + $0xa0] sm:$0xff]
    %v3358 = vld [vmem:[#allocation5 + $0xa8] sm:$0xff]
    %v3359 = vld [vmem:[#allocation5 + $0xb0] sm:$0xff]
    %v3360 = vld [vmem:[#allocation5 + $0xb8] sm:$0xff]
    %v3361 = vld [vmem:[#allocation5 + $0xc0] sm:$0xff]
    %v3362 = vld [vmem:[#allocation5 + $0xc8] sm:$0xff]
    %v3363 = vld [vmem:[#allocation5 + $0xd0] sm:$0xff]
    %v3364 = vld [vmem:[#allocation5 + $0xd8] sm:$0xff]
    %v3365 = vld [vmem:[#allocation5 + $0xe0] sm:$0xff]
    %v3366 = vld [vmem:[#allocation5 + $0xe8] sm:$0xff]
    %v3367 = vld [vmem:[#allocation5 + $0xf0] sm:$0xff]
    %v3368 = vld [vmem:[#allocation5 + $0xf8] sm:$0xff]
    %v3369 = vld [vmem:[#allocation5 + $0x100] sm:$0xff]
    %v3370 = vld [vmem:[#allocation5 + $0x108] sm:$0xff]
    %v3371 = vld [vmem:[#allocation5 + $0x110] sm:$0xff]
    %v3372 = vld [vmem:[#allocation5 + $0x118] sm:$0xff]
    %v3373 = vld [vmem:[#allocation5 + $0x120] sm:$0xff]
    %v3374 = vld [vmem:[#allocation5 + $0x128] sm:$0xff]
    %v3375 = vld [vmem:[#allocation5 + $0x130] sm:$0xff]
    %v3376 = vld [vmem:[#allocation5 + $0x138] sm:$0xff]
    %v3377 = vld [vmem:[#allocation5 + $0x140] sm:$0xff]
    %v3378 = vld [vmem:[#allocation5 + $0x148] sm:$0xff]
    %v3379 = vld [vmem:[#allocation5 + $0x150] sm:$0xff]
    %v3380 = vld [vmem:[#allocation5 + $0x158] sm:$0xff]
    %v3381 = vld [vmem:[#allocation5 + $0x160] sm:$0xff]
    %v3382 = vld [vmem:[#allocation5 + $0x168] sm:$0xff]
    %v3383 = vld [vmem:[#allocation5 + $0x170] sm:$0xff]
    %v3384 = vld [vmem:[#allocation5 + $0x178] sm:$0xff]
    %v3385 = vld [vmem:[#allocation5 + $0x180] sm:$0xff]
    %v3386 = vld [vmem:[#allocation5 + $0x188] sm:$0xff]
    %v3387 = vld [vmem:[#allocation5 + $0x190] sm:$0xff]
    %v3388 = vld [vmem:[#allocation5 + $0x198] sm:$0xff]
    %v3389 = vld [vmem:[#allocation5 + $0x1a0] sm:$0xff]
    %v3390 = vld [vmem:[#allocation5 + $0x1a8] sm:$0xff]
    %v3391 = vld [vmem:[#allocation5 + $0x1b0] sm:$0xff]
    %v3392 = vld [vmem:[#allocation5 + $0x1b8] sm:$0xff]
    %v3393 = vld [vmem:[#allocation5 + $0x1c0] sm:$0xff]
    %v3394 = vld [vmem:[#allocation5 + $0x1c8] sm:$0xff]
    %v3395 = vld [vmem:[#allocation5 + $0x1d0] sm:$0xff]
    %v3396 = vld [vmem:[#allocation5 + $0x1d8] sm:$0xff]
    %v3397 = vld [vmem:[#allocation5 + $0x1e0] sm:$0xff]
    %v3398 = vld [vmem:[#allocation5 + $0x1e8] sm:$0xff]
    %v3399 = vld [vmem:[#allocation5 + $0x1f0] sm:$0xff]
    %v3400 = vld [vmem:[#allocation5 + $0x1f8] sm:$0xff]
    %v3401 = vld [vmem:[#allocation5 + $0x200] sm:$0xff]
    %v3402 = vld [vmem:[#allocation5 + $0x208] sm:$0xff]
    %v3403 = vld [vmem:[#allocation5 + $0x210] sm:$0xff]
    %v3404 = vld [vmem:[#allocation5 + $0x218] sm:$0xff]
    %v3405 = vld [vmem:[#allocation5 + $0x220] sm:$0xff]
    %v3406 = vld [vmem:[#allocation5 + $0x228] sm:$0xff]
    %v3407 = vld [vmem:[#allocation5 + $0x230] sm:$0xff]
    %v3408 = vld [vmem:[#allocation5 + $0x238] sm:$0xff]
    %v3409 = vld [vmem:[#allocation5 + $0x240] sm:$0xff]
    %v3410 = vld [vmem:[#allocation5 + $0x248] sm:$0xff]
    %v3411 = vld [vmem:[#allocation5 + $0x250] sm:$0xff]
    %v3412 = vld [vmem:[#allocation5 + $0x258] sm:$0xff]
    %v3413 = vld [vmem:[#allocation5 + $0x260] sm:$0xff]
    %v3414 = vld [vmem:[#allocation5 + $0x268] sm:$0xff]
    %v3415 = vld [vmem:[#allocation5 + $0x270] sm:$0xff]
    %v3416 = vld [vmem:[#allocation5 + $0x278] sm:$0xff]
    %v3417 = vld [vmem:[#allocation5 + $0x280] sm:$0xff]
    %v3418 = vld [vmem:[#allocation5 + $0x288] sm:$0xff]
    %v3419 = vld [vmem:[#allocation5 + $0x290] sm:$0xff]
    %v3420 = vld [vmem:[#allocation5 + $0x298] sm:$0xff]
    %v3421 = vld [vmem:[#allocation5 + $0x2a0] sm:$0xff]
    %v3422 = vld [vmem:[#allocation5 + $0x2a8] sm:$0xff]
    %v3423 = vld [vmem:[#allocation5 + $0x2b0] sm:$0xff]
    %v3424 = vld [vmem:[#allocation5 + $0x2b8] sm:$0xff]
    %v3425 = vld [vmem:[#allocation5 + $0x2c0] sm:$0xff]
    %v3426 = vld [vmem:[#allocation5 + $0x2c8] sm:$0xff]
    %v3427 = vld [vmem:[#allocation5 + $0x2d0] sm:$0xff]
    %v3428 = vld [vmem:[#allocation5 + $0x2d8] sm:$0xff]
    %v3429 = vld [vmem:[#allocation5 + $0x2e0] sm:$0xff]
    %v3430 = vld [vmem:[#allocation5 + $0x2e8] sm:$0xff]
    %v3431 = vld [vmem:[#allocation5 + $0x2f0] sm:$0xff]
    %v3432 = vld [vmem:[#allocation5 + $0x2f8] sm:$0xff]
    %v3433 = vld [vmem:[#allocation5 + $0x300] sm:$0xff]
    %v3434 = vld [vmem:[#allocation5 + $0x308] sm:$0xff]
    %v3435 = vld [vmem:[#allocation5 + $0x310] sm:$0xff]
    %v3436 = vld [vmem:[#allocation5 + $0x318] sm:$0xff]
    %v3437 = vld [vmem:[#allocation5 + $0x320] sm:$0xff]
    %v3438 = vld [vmem:[#allocation5 + $0x328] sm:$0xff]
    %v3439 = vld [vmem:[#allocation5 + $0x330] sm:$0xff]
    %v3440 = vld [vmem:[#allocation5 + $0x338] sm:$0xff]
    %v3441 = vld [vmem:[#allocation5 + $0x340] sm:$0xff]
    %v3442 = vld [vmem:[#allocation5 + $0x348] sm:$0xff]
    %v3443 = vld [vmem:[#allocation5 + $0x350] sm:$0xff]
    %v3444 = vld [vmem:[#allocation5 + $0x358] sm:$0xff]
    %v3445 = vld [vmem:[#allocation5 + $0x360] sm:$0xff]
    %v3446 = vld [vmem:[#allocation5 + $0x368] sm:$0xff]
    %v3447 = vld [vmem:[#allocation5 + $0x370] sm:$0xff]
    %v3448 = vld [vmem:[#allocation5 + $0x378] sm:$0xff]
    %v3449 = vld [vmem:[#allocation5 + $0x380] sm:$0xff]
    %v3450 = vld [vmem:[#allocation5 + $0x388] sm:$0xff]
    %v3451 = vld [vmem:[#allocation5 + $0x390] sm:$0xff]
    %v3452 = vld [vmem:[#allocation5 + $0x398] sm:$0xff]
    %v3453 = vld [vmem:[#allocation5 + $0x3a0] sm:$0xff]
    %v3454 = vld [vmem:[#allocation5 + $0x3a8] sm:$0xff]
    %v3455 = vld [vmem:[#allocation5 + $0x3b0] sm:$0xff]
    %v3456 = vld [vmem:[#allocation5 + $0x3b8] sm:$0xff]
    %v3457 = vld [vmem:[#allocation5 + $0x3c0] sm:$0xff]
    %v3458 = vld [vmem:[#allocation5 + $0x3c8] sm:$0xff]
    %v3459 = vld [vmem:[#allocation5 + $0x3d0] sm:$0xff]
    %v3460 = vld [vmem:[#allocation5 + $0x3d8] sm:$0xff]
    %v3461 = vld [vmem:[#allocation5 + $0x3e0] sm:$0xff]
    %v3462 = vld [vmem:[#allocation5 + $0x3e8] sm:$0xff]
    %v3463 = vld [vmem:[#allocation5 + $0x3f0] sm:$0xff]
    %v3464 = vld [vmem:[#allocation5 + $0x3f8] sm:$0xff]
    %v3465 = vld [vmem:[#allocation5 + $0x400] sm:$0xff]
    %v3466 = vld [vmem:[#allocation5 + $0x408] sm:$0xff]
    %v3467 = vld [vmem:[#allocation5 + $0x410] sm:$0xff]
    %v3468 = vld [vmem:[#allocation5 + $0x418] sm:$0xff]
    %v3469 = vld [vmem:[#allocation5 + $0x420] sm:$0xff]
    %v3470 = vld [vmem:[#allocation5 + $0x428] sm:$0xff]
    %v3471 = vld [vmem:[#allocation5 + $0x430] sm:$0xff]
    %v3472 = vld [vmem:[#allocation5 + $0x438] sm:$0xff]
    %v3473 = vld [vmem:[#allocation5 + $0x440] sm:$0xff]
    %v3474 = vld [vmem:[#allocation5 + $0x448] sm:$0xff]
    %v3475 = vld [vmem:[#allocation5 + $0x450] sm:$0xff]
    %v3476 = vld [vmem:[#allocation5 + $0x458] sm:$0xff]
    %v3477 = vld [vmem:[#allocation5 + $0x460] sm:$0xff]
    %v3478 = vld [vmem:[#allocation5 + $0x468] sm:$0xff]
    %v3479 = vld [vmem:[#allocation5 + $0x470] sm:$0xff]
    %v3480 = vld [vmem:[#allocation5 + $0x478] sm:$0xff]
    %v3481 = vld [vmem:[#allocation5 + $0x480] sm:$0xff]
    %v3482 = vld [vmem:[#allocation5 + $0x488] sm:$0xff]
    %v3483 = vld [vmem:[#allocation5 + $0x490] sm:$0xff]
    %v3484 = vld [vmem:[#allocation5 + $0x498] sm:$0xff]
    %v3485 = vld [vmem:[#allocation5 + $0x4a0] sm:$0xff]
    %v3486 = vld [vmem:[#allocation5 + $0x4a8] sm:$0xff]
    %v3487 = vld [vmem:[#allocation5 + $0x4b0] sm:$0xff]
    %v3488 = vld [vmem:[#allocation5 + $0x4b8] sm:$0xff]
    %v3489 = vld [vmem:[#allocation5 + $0x4c0] sm:$0xff]
    %v3490 = vld [vmem:[#allocation5 + $0x4c8] sm:$0xff]
    %v3491 = vld [vmem:[#allocation5 + $0x4d0] sm:$0xff]
    %v3492 = vld [vmem:[#allocation5 + $0x4d8] sm:$0xff]
    %v3493 = vld [vmem:[#allocation5 + $0x4e0] sm:$0xff]
    %v3494 = vld [vmem:[#allocation5 + $0x4e8] sm:$0xff]
    %v3495 = vld [vmem:[#allocation5 + $0x4f0] sm:$0xff]
    %v3496 = vld [vmem:[#allocation5 + $0x4f8] sm:$0xff]
    %v3497 = vld [vmem:[#allocation5 + $0x500] sm:$0xff]
    %v3498 = vld [vmem:[#allocation5 + $0x508] sm:$0xff]
    %v3499 = vld [vmem:[#allocation5 + $0x510] sm:$0xff]
    %v3500 = vld [vmem:[#allocation5 + $0x518] sm:$0xff]
    %v3501 = vld [vmem:[#allocation5 + $0x520] sm:$0xff]
    %v3502 = vld [vmem:[#allocation5 + $0x528] sm:$0xff]
    %v3503 = vld [vmem:[#allocation5 + $0x530] sm:$0xff]
    %v3504 = vld [vmem:[#allocation5 + $0x538] sm:$0xff]
    %v3505 = vld [vmem:[#allocation5 + $0x540] sm:$0xff]
    %v3506 = vld [vmem:[#allocation5 + $0x548] sm:$0xff]
    %v3507 = vld [vmem:[#allocation5 + $0x550] sm:$0xff]
    %v3508 = vld [vmem:[#allocation5 + $0x558] sm:$0xff]
    %v3509 = vld [vmem:[#allocation5 + $0x560] sm:$0xff]
    %v3510 = vld [vmem:[#allocation5 + $0x568] sm:$0xff]
    %v3511 = vld [vmem:[#allocation5 + $0x570] sm:$0xff]
    %v3512 = vld [vmem:[#allocation5 + $0x578] sm:$0xff]
    %v3513 = vld [vmem:[#allocation5 + $0x580] sm:$0xff]
    %v3514 = vld [vmem:[#allocation5 + $0x588] sm:$0xff]
    %v3515 = vld [vmem:[#allocation5 + $0x590] sm:$0xff]
    %v3516 = vld [vmem:[#allocation5 + $0x598] sm:$0xff]
    %v3517 = vld [vmem:[#allocation5 + $0x5a0] sm:$0xff]
    %v3518 = vld [vmem:[#allocation5 + $0x5a8] sm:$0xff]
    %v3519 = vld [vmem:[#allocation5 + $0x5b0] sm:$0xff]
    %v3520 = vld [vmem:[#allocation5 + $0x5b8] sm:$0xff]
    %v3521 = vld [vmem:[#allocation5 + $0x5c0] sm:$0xff]
    %v3522 = vld [vmem:[#allocation5 + $0x5c8] sm:$0xff]
    %v3523 = vld [vmem:[#allocation5 + $0x5d0] sm:$0xff]
    %v3524 = vld [vmem:[#allocation5 + $0x5d8] sm:$0xff]
    %v3525 = vld [vmem:[#allocation5 + $0x5e0] sm:$0xff]
    %v3526 = vld [vmem:[#allocation5 + $0x5e8] sm:$0xff]
    %v3527 = vld [vmem:[#allocation5 + $0x5f0] sm:$0xff]
    %v3528 = vld [vmem:[#allocation5 + $0x5f8] sm:$0xff]
    %v3529 = vld [vmem:[#allocation5 + $0x600] sm:$0xff]
    %v3530 = vld [vmem:[#allocation5 + $0x608] sm:$0xff]
    %v3531 = vld [vmem:[#allocation5 + $0x610] sm:$0xff]
    %v3532 = vld [vmem:[#allocation5 + $0x618] sm:$0xff]
    %v3533 = vld [vmem:[#allocation5 + $0x620] sm:$0xff]
    %v3534 = vld [vmem:[#allocation5 + $0x628] sm:$0xff]
    %v3535 = vld [vmem:[#allocation5 + $0x630] sm:$0xff]
    %v3536 = vld [vmem:[#allocation5 + $0x638] sm:$0xff]
    %v3537 = vld [vmem:[#allocation5 + $0x640] sm:$0xff]
    %v3538 = vld [vmem:[#allocation5 + $0x648] sm:$0xff]
    %v3539 = vld [vmem:[#allocation5 + $0x650] sm:$0xff]
    %v3540 = vld [vmem:[#allocation5 + $0x658] sm:$0xff]
    %v3541 = vld [vmem:[#allocation5 + $0x660] sm:$0xff]
    %v3542 = vld [vmem:[#allocation5 + $0x668] sm:$0xff]
    %v3543 = vld [vmem:[#allocation5 + $0x670] sm:$0xff]
    %v3544 = vld [vmem:[#allocation5 + $0x678] sm:$0xff]
    %v3545 = vld [vmem:[#allocation5 + $0x680] sm:$0xff]
    %v3546 = vld [vmem:[#allocation5 + $0x688] sm:$0xff]
    %v3547 = vld [vmem:[#allocation5 + $0x690] sm:$0xff]
    %v3548 = vld [vmem:[#allocation5 + $0x698] sm:$0xff]
    %v3549 = vld [vmem:[#allocation5 + $0x6a0] sm:$0xff]
    %v3550 = vld [vmem:[#allocation5 + $0x6a8] sm:$0xff]
    %v3551 = vld [vmem:[#allocation5 + $0x6b0] sm:$0xff]
    %v3552 = vld [vmem:[#allocation5 + $0x6b8] sm:$0xff]
    %v3553 = vld [vmem:[#allocation5 + $0x6c0] sm:$0xff]
    %v3554 = vld [vmem:[#allocation5 + $0x6c8] sm:$0xff]
    %v3555 = vld [vmem:[#allocation5 + $0x6d0] sm:$0xff]
    %v3556 = vld [vmem:[#allocation5 + $0x6d8] sm:$0xff]
    %v3557 = vld [vmem:[#allocation5 + $0x6e0] sm:$0xff]
    %v3558 = vld [vmem:[#allocation5 + $0x6e8] sm:$0xff]
    %v3559 = vld [vmem:[#allocation5 + $0x6f0] sm:$0xff]
    %v3560 = vld [vmem:[#allocation5 + $0x6f8] sm:$0xff]
    %v3561 = vld [vmem:[#allocation5 + $0x700] sm:$0xff]
    %v3562 = vld [vmem:[#allocation5 + $0x708] sm:$0xff]
    %v3563 = vld [vmem:[#allocation5 + $0x710] sm:$0xff]
    %v3564 = vld [vmem:[#allocation5 + $0x718] sm:$0xff]
    %v3565 = vld [vmem:[#allocation5 + $0x720] sm:$0xff]
    %v3566 = vld [vmem:[#allocation5 + $0x728] sm:$0xff]
    %v3567 = vld [vmem:[#allocation5 + $0x730] sm:$0xff]
    %v3568 = vld [vmem:[#allocation5 + $0x738] sm:$0xff]
    %v3569 = vld [vmem:[#allocation5 + $0x740] sm:$0xff]
    %v3570 = vld [vmem:[#allocation5 + $0x748] sm:$0xff]
    %v3571 = vld [vmem:[#allocation5 + $0x750] sm:$0xff]
    %v3572 = vld [vmem:[#allocation5 + $0x758] sm:$0xff]
    %v3573 = vld [vmem:[#allocation5 + $0x760] sm:$0xff]
    %v3574 = vld [vmem:[#allocation5 + $0x768] sm:$0xff]
    %v3575 = vld [vmem:[#allocation5 + $0x770] sm:$0xff]
    %v3576 = vld [vmem:[#allocation5 + $0x778] sm:$0xff]
    %v3577 = vld [vmem:[#allocation5 + $0x780] sm:$0xff]
    %v3578 = vld [vmem:[#allocation5 + $0x788] sm:$0xff]
    %v3579 = vld [vmem:[#allocation5 + $0x790] sm:$0xff]
    %v3580 = vld [vmem:[#allocation5 + $0x798] sm:$0xff]
    %v3581 = vld [vmem:[#allocation5 + $0x7a0] sm:$0xff]
    %v3582 = vld [vmem:[#allocation5 + $0x7a8] sm:$0xff]
    %v3583 = vld [vmem:[#allocation5 + $0x7b0] sm:$0xff]
    %v3584 = vld [vmem:[#allocation5 + $0x7b8] sm:$0xff]
    %v3585 = vld [vmem:[#allocation5 + $0x7c0] sm:$0xff]
    %v3586 = vld [vmem:[#allocation5 + $0x7c8] sm:$0xff]
    %v3587 = vld [vmem:[#allocation5 + $0x7d0] sm:$0xff]
    %v3588 = vld [vmem:[#allocation5 + $0x7d8] sm:$0xff]
    %v3589 = vld [vmem:[#allocation5 + $0x7e0] sm:$0xff]
    %v3590 = vld [vmem:[#allocation5 + $0x7e8] sm:$0xff]
    %v3591 = vld [vmem:[#allocation5 + $0x7f0] sm:$0xff]
    %v3592 = vld [vmem:[#allocation5 + $0x7f8] sm:$0xff]
    %v3593 = vld [vmem:[#allocation5 + $0x800] sm:$0xff]
    %v3594 = vld [vmem:[#allocation5 + $0x808] sm:$0xff]
    %v3595 = vld [vmem:[#allocation5 + $0x810] sm:$0xff]
    %v3596 = vld [vmem:[#allocation5 + $0x818] sm:$0xff]
    %v3597 = vld [vmem:[#allocation5 + $0x820] sm:$0xff]
    %v3598 = vld [vmem:[#allocation5 + $0x828] sm:$0xff]
    %v3599 = vld [vmem:[#allocation5 + $0x830] sm:$0xff]
    %v3600 = vld [vmem:[#allocation5 + $0x838] sm:$0xff]
    %v3601 = vld [vmem:[#allocation5 + $0x840] sm:$0xff]
    %v3602 = vld [vmem:[#allocation5 + $0x848] sm:$0xff]
    %v3603 = vld [vmem:[#allocation5 + $0x850] sm:$0xff]
    %v3604 = vld [vmem:[#allocation5 + $0x858] sm:$0xff]
    %v3605 = vld [vmem:[#allocation5 + $0x860] sm:$0xff]
    %v3606 = vld [vmem:[#allocation5 + $0x868] sm:$0xff]
    %v3607 = vld [vmem:[#allocation5 + $0x870] sm:$0xff]
    %v3608 = vld [vmem:[#allocation5 + $0x878] sm:$0xff]
    %v3609 = vld [vmem:[#allocation5 + $0x880] sm:$0xff]
    %v3610 = vld [vmem:[#allocation5 + $0x888] sm:$0xff]
    %v3611 = vld [vmem:[#allocation5 + $0x890] sm:$0xff]
    %v3612 = vld [vmem:[#allocation5 + $0x898] sm:$0xff]
    %v3613 = vld [vmem:[#allocation5 + $0x8a0] sm:$0xff]
    %v3614 = vld [vmem:[#allocation5 + $0x8a8] sm:$0xff]
    %v3615 = vld [vmem:[#allocation5 + $0x8b0] sm:$0xff]
    %v3616 = vld [vmem:[#allocation5 + $0x8b8] sm:$0xff]
    %v3617 = vld [vmem:[#allocation5 + $0x8c0] sm:$0xff]
    %v3618 = vld [vmem:[#allocation5 + $0x8c8] sm:$0xff]
    %v3619 = vld [vmem:[#allocation5 + $0x8d0] sm:$0xff]
    %v3620 = vld [vmem:[#allocation5 + $0x8d8] sm:$0xff]
    %v3621 = vld [vmem:[#allocation5 + $0x8e0] sm:$0xff]
    %v3622 = vld [vmem:[#allocation5 + $0x8e8] sm:$0xff]
    %v3623 = vld [vmem:[#allocation5 + $0x8f0] sm:$0xff]
    %v3624 = vld [vmem:[#allocation5 + $0x8f8] sm:$0xff]
    %v3625 = vld [vmem:[#allocation5 + $0x900] sm:$0xff]
    %v3626 = vld [vmem:[#allocation5 + $0x908] sm:$0xff]
    %v3627 = vld [vmem:[#allocation5 + $0x910] sm:$0xff]
    %v3628 = vld [vmem:[#allocation5 + $0x918] sm:$0xff]
    %v3629 = vld [vmem:[#allocation5 + $0x920] sm:$0xff]
    %v3630 = vld [vmem:[#allocation5 + $0x928] sm:$0xff]
    %v3631 = vld [vmem:[#allocation5 + $0x930] sm:$0xff]
    %v3632 = vld [vmem:[#allocation5 + $0x938] sm:$0xff]
    %v3633 = vld [vmem:[#allocation5 + $0x940] sm:$0xff]
    %v3634 = vld [vmem:[#allocation5 + $0x948] sm:$0xff]
    %v3635 = vld [vmem:[#allocation5 + $0x950] sm:$0xff]
    %v3636 = vld [vmem:[#allocation5 + $0x958] sm:$0xff]
    %v3637 = vld [vmem:[#allocation5 + $0x960] sm:$0xff]
    %v3638 = vld [vmem:[#allocation5 + $0x968] sm:$0xff]
    %v3639 = vld [vmem:[#allocation5 + $0x970] sm:$0xff]
    %v3640 = vld [vmem:[#allocation5 + $0x978] sm:$0xff]
    %v3641 = vld [vmem:[#allocation5 + $0x980] sm:$0xff]
    %v3642 = vld [vmem:[#allocation5 + $0x988] sm:$0xff]
    %v3643 = vld [vmem:[#allocation5 + $0x990] sm:$0xff]
    %v3644 = vld [vmem:[#allocation5 + $0x998] sm:$0xff]
    %v3645 = vld [vmem:[#allocation5 + $0x9a0] sm:$0xff]
    %v3646 = vld [vmem:[#allocation5 + $0x9a8] sm:$0xff]
    %v3647 = vld [vmem:[#allocation5 + $0x9b0] sm:$0xff]
    %v3648 = vld [vmem:[#allocation5 + $0x9b8] sm:$0xff]
    %v3649 = vld [vmem:[#allocation5 + $0x9c0] sm:$0xff]
    %v3650 = vld [vmem:[#allocation5 + $0x9c8] sm:$0xff]
    %v3651 = vld [vmem:[#allocation5 + $0x9d0] sm:$0xff]
    %v3652 = vld [vmem:[#allocation5 + $0x9d8] sm:$0xff]
    %v3653 = vld [vmem:[#allocation5 + $0x9e0] sm:$0xff]
    %v3654 = vld [vmem:[#allocation5 + $0x9e8] sm:$0xff]
    %v3655 = vld [vmem:[#allocation5 + $0x9f0] sm:$0xff]
    %v3656 = vld [vmem:[#allocation5 + $0x9f8] sm:$0xff]
    %v3657 = vld [vmem:[#allocation15] sm:$0x3]
    %v3659 = vlaneseq
    %v3660 = vshrl.u32 %v3659, 7
    %v3661 = vsub.s32 0, %v3660
    %v3662 = vrot.slane %v3657, %v3661
    %v3663 = vlaneseq
    %v3664 = vshrl.u32 %v3663, 7
    %v3665 = vsub.s32 1, %v3664
    %v3666 = vrot.slane %v3657, %v3665
    %3669 = vmatprep.subr.bf16.mxu0 %v3338
    %3670 = vmatpush1.bf16.msra.mxu0 %v3337
    %3671 = vmatprep.subr.bf16.mxu0 %v3340
    %3672 = vmatpush1.bf16.msra.mxu0 %v3339
    %3673 = vmatprep.subr.bf16.mxu0 %v3342
    %3674 = vmatpush1.bf16.msra.mxu0 %v3341
    %3675 = vmatprep.subr.bf16.mxu0 %v3344
    %3676 = vmatpush1.bf16.msra.mxu0 %v3343
    %3677 = vmatprep.subr.bf16.mxu0 %v3346
    %3678 = vmatpush1.bf16.msra.mxu0 %v3345
    %3679 = vmatprep.subr.bf16.mxu0 %v3348
    %3680 = vmatpush1.bf16.msra.mxu0 %v3347
    %3681 = vmatprep.subr.bf16.mxu0 %v3350
    %3682 = vmatpush1.bf16.msra.mxu0 %v3349
    %3683 = vmatprep.subr.bf16.mxu0 %v3352
    %3684 = vmatpush1.bf16.msra.mxu0 %v3351
    %3685 = vmatprep.subr.bf16.mxu0 %v3354
    %3686 = vmatpush1.bf16.msra.mxu0 %v3353
    %3687 = vmatprep.subr.bf16.mxu0 %v3356
    %3688 = vmatpush1.bf16.msra.mxu0 %v3355
    %3689 = vmatprep.subr.bf16.mxu0 %v3358
    %3690 = vmatpush1.bf16.msra.mxu0 %v3357
    %3691 = vmatprep.subr.bf16.mxu0 %v3360
    %3692 = vmatpush1.bf16.msra.mxu0 %v3359
    %3693 = vmatprep.subr.bf16.mxu0 %v3362
    %3694 = vmatpush1.bf16.msra.mxu0 %v3361
    %3695 = vmatprep.subr.bf16.mxu0 %v3364
    %3696 = vmatpush1.bf16.msra.mxu0 %v3363
    %3697 = vmatprep.subr.bf16.mxu0 %v3366
    %3698 = vmatpush1.bf16.msra.mxu0 %v3365
    %3699 = vmatprep.subr.bf16.mxu0 %v3368
    %3700 = vmatpush1.bf16.msra.mxu0 %v3367
    %3701 = vmatprep.mubr.bf16.mxu0 %v3314
    %3702 = vmatmul.mubr.bf16.gmra.mrb[0].mxu0 %v3313
    %v3703 = vpop.f32.mrb[0].mxu0
    %v3704 = vadd.f32 %v3662, %v3703
    %v3705 = vpop.f32.mrb[0].mxu0
    %v3706 = vadd.f32 %v3666, %v3705
    %v3707 = vpop.f32.mrb[0].mxu0
    %v3708 = vpop.f32.mrb[0].mxu0
    %3709 = vdwg.mxu0
    %3710 = vmatprep.subr.bf16.mxu0 %v3370
    %3711 = vmatpush1.bf16.msra.mxu0 %v3369
    %3712 = vmatprep.subr.bf16.mxu0 %v3372
    %3713 = vmatpush1.bf16.msra.mxu0 %v3371
    %3714 = vmatprep.subr.bf16.mxu0 %v3374
    %3715 = vmatpush1.bf16.msra.mxu0 %v3373
    %3716 = vmatprep.subr.bf16.mxu0 %v3376
    %3717 = vmatpush1.bf16.msra.mxu0 %v3375
    %3718 = vmatprep.subr.bf16.mxu0 %v3378
    %3719 = vmatpush1.bf16.msra.mxu0 %v3377
    %3720 = vmatprep.subr.bf16.mxu0 %v3380
    %3721 = vmatpush1.bf16.msra.mxu0 %v3379
    %3722 = vmatprep.subr.bf16.mxu0 %v3382
    %3723 = vmatpush1.bf16.msra.mxu0 %v3381
    %3724 = vmatprep.subr.bf16.mxu0 %v3384
    %3725 = vmatpush1.bf16.msra.mxu0 %v3383
    %3726 = vmatprep.subr.bf16.mxu0 %v3386
    %3727 = vmatpush1.bf16.msra.mxu0 %v3385
    %3728 = vmatprep.subr.bf16.mxu0 %v3388
    %3729 = vmatpush1.bf16.msra.mxu0 %v3387
    %3730 = vmatprep.subr.bf16.mxu0 %v3390
    %3731 = vmatpush1.bf16.msra.mxu0 %v3389
    %3732 = vmatprep.subr.bf16.mxu0 %v3392
    %3733 = vmatpush1.bf16.msra.mxu0 %v3391
    %3734 = vmatprep.subr.bf16.mxu0 %v3394
    %3735 = vmatpush1.bf16.msra.mxu0 %v3393
    %3736 = vmatprep.subr.bf16.mxu0 %v3396
    %3737 = vmatpush1.bf16.msra.mxu0 %v3395
    %3738 = vmatprep.subr.bf16.mxu0 %v3398
    %3739 = vmatpush1.bf16.msra.mxu0 %v3397
    %3740 = vmatprep.subr.bf16.mxu0 %v3400
    %3741 = vmatpush1.bf16.msra.mxu0 %v3399
    %3742 = vmatprep.mubr.bf16.mxu0 %v3316
    %3743 = vmatmul.mubr.bf16.gmra.mrb[0].mxu0 %v3315
    %v3744 = vpop.f32.mrb[0].mxu0
    %v3745 = vadd.f32 %v3704, %v3744
    %v3746 = vpop.f32.mrb[0].mxu0
    %v3747 = vadd.f32 %v3706, %v3746
    %v3748 = vpop.f32.mrb[0].mxu0
    %v3749 = vpop.f32.mrb[0].mxu0
    %3750 = vdwg.mxu0
    %3751 = vmatprep.subr.bf16.mxu0 %v3402
    %3752 = vmatpush1.bf16.msra.mxu0 %v3401
    %3753 = vmatprep.subr.bf16.mxu0 %v3404
    %3754 = vmatpush1.bf16.msra.mxu0 %v3403
    %3755 = vmatprep.subr.bf16.mxu0 %v3406
    %3756 = vmatpush1.bf16.msra.mxu0 %v3405
    %3757 = vmatprep.subr.bf16.mxu0 %v3408
    %3758 = vmatpush1.bf16.msra.mxu0 %v3407
    %3759 = vmatprep.subr.bf16.mxu0 %v3410
    %3760 = vmatpush1.bf16.msra.mxu0 %v3409
    %3761 = vmatprep.subr.bf16.mxu0 %v3412
    %3762 = vmatpush1.bf16.msra.mxu0 %v3411
    %3763 = vmatprep.subr.bf16.mxu0 %v3414
    %3764 = vmatpush1.bf16.msra.mxu0 %v3413
    %3765 = vmatprep.subr.bf16.mxu0 %v3416
    %3766 = vmatpush1.bf16.msra.mxu0 %v3415
    %3767 = vmatprep.subr.bf16.mxu0 %v3418
    %3768 = vmatpush1.bf16.msra.mxu0 %v3417
    %3769 = vmatprep.subr.bf16.mxu0 %v3420
    %3770 = vmatpush1.bf16.msra.mxu0 %v3419
    %3771 = vmatprep.subr.bf16.mxu0 %v3422
    %3772 = vmatpush1.bf16.msra.mxu0 %v3421
    %3773 = vmatprep.subr.bf16.mxu0 %v3424
    %3774 = vmatpush1.bf16.msra.mxu0 %v3423
    %3775 = vmatprep.subr.bf16.mxu0 %v3426
    %3776 = vmatpush1.bf16.msra.mxu0 %v3425
    %3777 = vmatprep.subr.bf16.mxu0 %v3428
    %3778 = vmatpush1.bf16.msra.mxu0 %v3427
    %3779 = vmatprep.subr.bf16.mxu0 %v3430
    %3780 = vmatpush1.bf16.msra.mxu0 %v3429
    %3781 = vmatprep.subr.bf16.mxu0 %v3432
    %3782 = vmatpush1.bf16.msra.mxu0 %v3431
    %3783 = vmatprep.mubr.bf16.mxu0 %v3318
    %3784 = vmatmul.mubr.bf16.gmra.mrb[0].mxu0 %v3317
    %v3785 = vpop.f32.mrb[0].mxu0
    %v3786 = vadd.f32 %v3745, %v3785
    %v3787 = vpop.f32.mrb[0].mxu0
    %v3788 = vadd.f32 %v3747, %v3787
    %v3789 = vpop.f32.mrb[0].mxu0
    %v3790 = vpop.f32.mrb[0].mxu0
    %3791 = vdwg.mxu0
    %3792 = vmatprep.subr.bf16.mxu0 %v3434
    %3793 = vmatpush1.bf16.msra.mxu0 %v3433
    %3794 = vmatprep.subr.bf16.mxu0 %v3436
    %3795 = vmatpush1.bf16.msra.mxu0 %v3435
    %3796 = vmatprep.subr.bf16.mxu0 %v3438
    %3797 = vmatpush1.bf16.msra.mxu0 %v3437
    %3798 = vmatprep.subr.bf16.mxu0 %v3440
    %3799 = vmatpush1.bf16.msra.mxu0 %v3439
    %3800 = vmatprep.subr.bf16.mxu0 %v3442
    %3801 = vmatpush1.bf16.msra.mxu0 %v3441
    %3802 = vmatprep.subr.bf16.mxu0 %v3444
    %3803 = vmatpush1.bf16.msra.mxu0 %v3443
    %3804 = vmatprep.subr.bf16.mxu0 %v3446
    %3805 = vmatpush1.bf16.msra.mxu0 %v3445
    %3806 = vmatprep.subr.bf16.mxu0 %v3448
    %3807 = vmatpush1.bf16.msra.mxu0 %v3447
    %3808 = vmatprep.subr.bf16.mxu0 %v3450
    %3809 = vmatpush1.bf16.msra.mxu0 %v3449
    %3810 = vmatprep.subr.bf16.mxu0 %v3452
    %3811 = vmatpush1.bf16.msra.mxu0 %v3451
    %3812 = vmatprep.subr.bf16.mxu0 %v3454
    %3813 = vmatpush1.bf16.msra.mxu0 %v3453
    %3814 = vmatprep.subr.bf16.mxu0 %v3456
    %3815 = vmatpush1.bf16.msra.mxu0 %v3455
    %3816 = vmatprep.subr.bf16.mxu0 %v3458
    %3817 = vmatpush1.bf16.msra.mxu0 %v3457
    %3818 = vmatprep.subr.bf16.mxu0 %v3460
    %3819 = vmatpush1.bf16.msra.mxu0 %v3459
    %3820 = vmatprep.subr.bf16.mxu0 %v3462
    %3821 = vmatpush1.bf16.msra.mxu0 %v3461
    %3822 = vmatprep.subr.bf16.mxu0 %v3464
    %3823 = vmatpush1.bf16.msra.mxu0 %v3463
    %3824 = vmatprep.mubr.bf16.mxu0 %v3320
    %3825 = vmatmul.mubr.bf16.gmra.mrb[0].mxu0 %v3319
    %v3826 = vpop.f32.mrb[0].mxu0
    %v3827 = vadd.f32 %v3786, %v3826
    %v3828 = vpop.f32.mrb[0].mxu0
    %v3829 = vadd.f32 %v3788, %v3828
    %v3830 = vpop.f32.mrb[0].mxu0
    %v3831 = vpop.f32.mrb[0].mxu0
    %3832 = vdwg.mxu0
    %3833 = vmatprep.subr.bf16.mxu0 %v3466
    %3834 = vmatpush1.bf16.msra.mxu0 %v3465
    %3835 = vmatprep.subr.bf16.mxu0 %v3468
    %3836 = vmatpush1.bf16.msra.mxu0 %v3467
    %3837 = vmatprep.subr.bf16.mxu0 %v3470
    %3838 = vmatpush1.bf16.msra.mxu0 %v3469
    %3839 = vmatprep.subr.bf16.mxu0 %v3472
    %3840 = vmatpush1.bf16.msra.mxu0 %v3471
    %3841 = vmatprep.subr.bf16.mxu0 %v3474
    %3842 = vmatpush1.bf16.msra.mxu0 %v3473
    %3843 = vmatprep.subr.bf16.mxu0 %v3476
    %3844 = vmatpush1.bf16.msra.mxu0 %v3475
    %3845 = vmatprep.subr.bf16.mxu0 %v3478
    %3846 = vmatpush1.bf16.msra.mxu0 %v3477
    %3847 = vmatprep.subr.bf16.mxu0 %v3480
    %3848 = vmatpush1.bf16.msra.mxu0 %v3479
    %3849 = vmatprep.subr.bf16.mxu0 %v3482
    %3850 = vmatpush1.bf16.msra.mxu0 %v3481
    %3851 = vmatprep.subr.bf16.mxu0 %v3484
    %3852 = vmatpush1.bf16.msra.mxu0 %v3483
    %3853 = vmatprep.subr.bf16.mxu0 %v3486
    %3854 = vmatpush1.bf16.msra.mxu0 %v3485
    %3855 = vmatprep.subr.bf16.mxu0 %v3488
    %3856 = vmatpush1.bf16.msra.mxu0 %v3487
    %3857 = vmatprep.subr.bf16.mxu0 %v3490
    %3858 = vmatpush1.bf16.msra.mxu0 %v3489
    %3859 = vmatprep.subr.bf16.mxu0 %v3492
    %3860 = vmatpush1.bf16.msra.mxu0 %v3491
    %3861 = vmatprep.subr.bf16.mxu0 %v3494
    %3862 = vmatpush1.bf16.msra.mxu0 %v3493
    %3863 = vmatprep.subr.bf16.mxu0 %v3496
    %3864 = vmatpush1.bf16.msra.mxu0 %v3495
    %3865 = vmatprep.mubr.bf16.mxu0 %v3322
    %3866 = vmatmul.mubr.bf16.gmra.mrb[0].mxu0 %v3321
    %v3867 = vpop.f32.mrb[0].mxu0
    %v3868 = vadd.f32 %v3827, %v3867
    %v3869 = vpop.f32.mrb[0].mxu0
    %v3870 = vadd.f32 %v3829, %v3869
    %v3871 = vpop.f32.mrb[0].mxu0
    %v3872 = vpop.f32.mrb[0].mxu0
    %3873 = vdwg.mxu0
    %3874 = vmatprep.subr.bf16.mxu0 %v3498
    %3875 = vmatpush1.bf16.msra.mxu0 %v3497
    %3876 = vmatprep.subr.bf16.mxu0 %v3500
    %3877 = vmatpush1.bf16.msra.mxu0 %v3499
    %3878 = vmatprep.subr.bf16.mxu0 %v3502
    %3879 = vmatpush1.bf16.msra.mxu0 %v3501
    %3880 = vmatprep.subr.bf16.mxu0 %v3504
    %3881 = vmatpush1.bf16.msra.mxu0 %v3503
    %3882 = vmatprep.subr.bf16.mxu0 %v3506
    %3883 = vmatpush1.bf16.msra.mxu0 %v3505
    %3884 = vmatprep.subr.bf16.mxu0 %v3508
    %3885 = vmatpush1.bf16.msra.mxu0 %v3507
    %3886 = vmatprep.subr.bf16.mxu0 %v3510
    %3887 = vmatpush1.bf16.msra.mxu0 %v3509
    %3888 = vmatprep.subr.bf16.mxu0 %v3512
    %3889 = vmatpush1.bf16.msra.mxu0 %v3511
    %3890 = vmatprep.subr.bf16.mxu0 %v3514
    %3891 = vmatpush1.bf16.msra.mxu0 %v3513
    %3892 = vmatprep.subr.bf16.mxu0 %v3516
    %3893 = vmatpush1.bf16.msra.mxu0 %v3515
    %3894 = vmatprep.subr.bf16.mxu0 %v3518
    %3895 = vmatpush1.bf16.msra.mxu0 %v3517
    %3896 = vmatprep.subr.bf16.mxu0 %v3520
    %3897 = vmatpush1.bf16.msra.mxu0 %v3519
    %3898 = vmatprep.subr.bf16.mxu0 %v3522
    %3899 = vmatpush1.bf16.msra.mxu0 %v3521
    %3900 = vmatprep.subr.bf16.mxu0 %v3524
    %3901 = vmatpush1.bf16.msra.mxu0 %v3523
    %3902 = vmatprep.subr.bf16.mxu0 %v3526
    %3903 = vmatpush1.bf16.msra.mxu0 %v3525
    %3904 = vmatprep.subr.bf16.mxu0 %v3528
    %3905 = vmatpush1.bf16.msra.mxu0 %v3527
    %3906 = vmatprep.mubr.bf16.mxu0 %v3324
    %3907 = vmatmul.mubr.bf16.gmra.mrb[0].mxu0 %v3323
    %v3908 = vpop.f32.mrb[0].mxu0
    %v3909 = vadd.f32 %v3868, %v3908
    %v3910 = vpop.f32.mrb[0].mxu0
    %v3911 = vadd.f32 %v3870, %v3910
    %v3912 = vpop.f32.mrb[0].mxu0
    %v3913 = vpop.f32.mrb[0].mxu0
    %3914 = vdwg.mxu0
    %3915 = vmatprep.subr.bf16.mxu0 %v3530
    %3916 = vmatpush1.bf16.msra.mxu0 %v3529
    %3917 = vmatprep.subr.bf16.mxu0 %v3532
    %3918 = vmatpush1.bf16.msra.mxu0 %v3531
    %3919 = vmatprep.subr.bf16.mxu0 %v3534
    %3920 = vmatpush1.bf16.msra.mxu0 %v3533
    %3921 = vmatprep.subr.bf16.mxu0 %v3536
    %3922 = vmatpush1.bf16.msra.mxu0 %v3535
    %3923 = vmatprep.subr.bf16.mxu0 %v3538
    %3924 = vmatpush1.bf16.msra.mxu0 %v3537
    %3925 = vmatprep.subr.bf16.mxu0 %v3540
    %3926 = vmatpush1.bf16.msra.mxu0 %v3539
    %3927 = vmatprep.subr.bf16.mxu0 %v3542
    %3928 = vmatpush1.bf16.msra.mxu0 %v3541
    %3929 = vmatprep.subr.bf16.mxu0 %v3544
    %3930 = vmatpush1.bf16.msra.mxu0 %v3543
    %3931 = vmatprep.subr.bf16.mxu0 %v3546
    %3932 = vmatpush1.bf16.msra.mxu0 %v3545
    %3933 = vmatprep.subr.bf16.mxu0 %v3548
    %3934 = vmatpush1.bf16.msra.mxu0 %v3547
    %3935 = vmatprep.subr.bf16.mxu0 %v3550
    %3936 = vmatpush1.bf16.msra.mxu0 %v3549
    %3937 = vmatprep.subr.bf16.mxu0 %v3552
    %3938 = vmatpush1.bf16.msra.mxu0 %v3551
    %3939 = vmatprep.subr.bf16.mxu0 %v3554
    %3940 = vmatpush1.bf16.msra.mxu0 %v3553
    %3941 = vmatprep.subr.bf16.mxu0 %v3556
    %3942 = vmatpush1.bf16.msra.mxu0 %v3555
    %3943 = vmatprep.subr.bf16.mxu0 %v3558
    %3944 = vmatpush1.bf16.msra.mxu0 %v3557
    %3945 = vmatprep.subr.bf16.mxu0 %v3560
    %3946 = vmatpush1.bf16.msra.mxu0 %v3559
    %3947 = vmatprep.mubr.bf16.mxu0 %v3326
    %3948 = vmatmul.mubr.bf16.gmra.mrb[0].mxu0 %v3325
    %v3949 = vpop.f32.mrb[0].mxu0
    %v3950 = vadd.f32 %v3909, %v3949
    %v3951 = vpop.f32.mrb[0].mxu0
    %v3952 = vadd.f32 %v3911, %v3951
    %v3953 = vpop.f32.mrb[0].mxu0
    %v3954 = vpop.f32.mrb[0].mxu0
    %3955 = vdwg.mxu0
    %3956 = vmatprep.subr.bf16.mxu0 %v3562
    %3957 = vmatpush1.bf16.msra.mxu0 %v3561
    %3958 = vmatprep.subr.bf16.mxu0 %v3564
    %3959 = vmatpush1.bf16.msra.mxu0 %v3563
    %3960 = vmatprep.subr.bf16.mxu0 %v3566
    %3961 = vmatpush1.bf16.msra.mxu0 %v3565
    %3962 = vmatprep.subr.bf16.mxu0 %v3568
    %3963 = vmatpush1.bf16.msra.mxu0 %v3567
    %3964 = vmatprep.subr.bf16.mxu0 %v3570
    %3965 = vmatpush1.bf16.msra.mxu0 %v3569
    %3966 = vmatprep.subr.bf16.mxu0 %v3572
    %3967 = vmatpush1.bf16.msra.mxu0 %v3571
    %3968 = vmatprep.subr.bf16.mxu0 %v3574
    %3969 = vmatpush1.bf16.msra.mxu0 %v3573
    %3970 = vmatprep.subr.bf16.mxu0 %v3576
    %3971 = vmatpush1.bf16.msra.mxu0 %v3575
    %3972 = vmatprep.subr.bf16.mxu0 %v3578
    %3973 = vmatpush1.bf16.msra.mxu0 %v3577
    %3974 = vmatprep.subr.bf16.mxu0 %v3580
    %3975 = vmatpush1.bf16.msra.mxu0 %v3579
    %3976 = vmatprep.subr.bf16.mxu0 %v3582
    %3977 = vmatpush1.bf16.msra.mxu0 %v3581
    %3978 = vmatprep.subr.bf16.mxu0 %v3584
    %3979 = vmatpush1.bf16.msra.mxu0 %v3583
    %3980 = vmatprep.subr.bf16.mxu0 %v3586
    %3981 = vmatpush1.bf16.msra.mxu0 %v3585
    %3982 = vmatprep.subr.bf16.mxu0 %v3588
    %3983 = vmatpush1.bf16.msra.mxu0 %v3587
    %3984 = vmatprep.subr.bf16.mxu0 %v3590
    %3985 = vmatpush1.bf16.msra.mxu0 %v3589
    %3986 = vmatprep.subr.bf16.mxu0 %v3592
    %3987 = vmatpush1.bf16.msra.mxu0 %v3591
    %3988 = vmatprep.mubr.bf16.mxu0 %v3328
    %3989 = vmatmul.mubr.bf16.gmra.mrb[0].mxu0 %v3327
    %v3990 = vpop.f32.mrb[0].mxu0
    %v3991 = vadd.f32 %v3950, %v3990
    %v3992 = vpop.f32.mrb[0].mxu0
    %v3993 = vadd.f32 %v3952, %v3992
    %v3994 = vpop.f32.mrb[0].mxu0
    %v3995 = vpop.f32.mrb[0].mxu0
    %3996 = vdwg.mxu0
    %3997 = vmatprep.subr.bf16.mxu0 %v3594
    %3998 = vmatpush1.bf16.msra.mxu0 %v3593
    %3999 = vmatprep.subr.bf16.mxu0 %v3596
    %4000 = vmatpush1.bf16.msra.mxu0 %v3595
    %4001 = vmatprep.subr.bf16.mxu0 %v3598
    %4002 = vmatpush1.bf16.msra.mxu0 %v3597
    %4003 = vmatprep.subr.bf16.mxu0 %v3600
    %4004 = vmatpush1.bf16.msra.mxu0 %v3599
    %4005 = vmatprep.subr.bf16.mxu0 %v3602
    %4006 = vmatpush1.bf16.msra.mxu0 %v3601
    %4007 = vmatprep.subr.bf16.mxu0 %v3604
    %4008 = vmatpush1.bf16.msra.mxu0 %v3603
    %4009 = vmatprep.subr.bf16.mxu0 %v3606
    %4010 = vmatpush1.bf16.msra.mxu0 %v3605
    %4011 = vmatprep.subr.bf16.mxu0 %v3608
    %4012 = vmatpush1.bf16.msra.mxu0 %v3607
    %4013 = vmatprep.subr.bf16.mxu0 %v3610
    %4014 = vmatpush1.bf16.msra.mxu0 %v3609
    %4015 = vmatprep.subr.bf16.mxu0 %v3612
    %4016 = vmatpush1.bf16.msra.mxu0 %v3611
    %4017 = vmatprep.subr.bf16.mxu0 %v3614
    %4018 = vmatpush1.bf16.msra.mxu0 %v3613
    %4019 = vmatprep.subr.bf16.mxu0 %v3616
    %4020 = vmatpush1.bf16.msra.mxu0 %v3615
    %4021 = vmatprep.subr.bf16.mxu0 %v3618
    %4022 = vmatpush1.bf16.msra.mxu0 %v3617
    %4023 = vmatprep.subr.bf16.mxu0 %v3620
    %4024 = vmatpush1.bf16.msra.mxu0 %v3619
    %4025 = vmatprep.subr.bf16.mxu0 %v3622
    %4026 = vmatpush1.bf16.msra.mxu0 %v3621
    %4027 = vmatprep.subr.bf16.mxu0 %v3624
    %4028 = vmatpush1.bf16.msra.mxu0 %v3623
    %4029 = vmatprep.mubr.bf16.mxu0 %v3330
    %4030 = vmatmul.mubr.bf16.gmra.mrb[0].mxu0 %v3329
    %v4031 = vpop.f32.mrb[0].mxu0
    %v4032 = vadd.f32 %v3991, %v4031
    %v4033 = vpop.f32.mrb[0].mxu0
    %v4034 = vadd.f32 %v3993, %v4033
    %v4035 = vpop.f32.mrb[0].mxu0
    %v4036 = vpop.f32.mrb[0].mxu0
    %4037 = vdwg.mxu0
    %4038 = vmatprep.subr.bf16.mxu0 %v3626
    %4039 = vmatpush1.bf16.msra.mxu0 %v3625
    %4040 = vmatprep.subr.bf16.mxu0 %v3628
    %4041 = vmatpush1.bf16.msra.mxu0 %v3627
    %4042 = vmatprep.subr.bf16.mxu0 %v3630
    %4043 = vmatpush1.bf16.msra.mxu0 %v3629
    %4044 = vmatprep.subr.bf16.mxu0 %v3632
    %4045 = vmatpush1.bf16.msra.mxu0 %v3631
    %4046 = vmatprep.subr.bf16.mxu0 %v3634
    %4047 = vmatpush1.bf16.msra.mxu0 %v3633
    %4048 = vmatprep.subr.bf16.mxu0 %v3636
    %4049 = vmatpush1.bf16.msra.mxu0 %v3635
    %4050 = vmatprep.subr.bf16.mxu0 %v3638
    %4051 = vmatpush1.bf16.msra.mxu0 %v3637
    %4052 = vmatprep.subr.bf16.mxu0 %v3640
    %4053 = vmatpush1.bf16.msra.mxu0 %v3639
    %4054 = vmatprep.subr.bf16.mxu0 %v3642
    %4055 = vmatpush1.bf16.msra.mxu0 %v3641
    %4056 = vmatprep.subr.bf16.mxu0 %v3644
    %4057 = vmatpush1.bf16.msra.mxu0 %v3643
    %4058 = vmatprep.subr.bf16.mxu0 %v3646
    %4059 = vmatpush1.bf16.msra.mxu0 %v3645
    %4060 = vmatprep.subr.bf16.mxu0 %v3648
    %4061 = vmatpush1.bf16.msra.mxu0 %v3647
    %4062 = vmatprep.subr.bf16.mxu0 %v3650
    %4063 = vmatpush1.bf16.msra.mxu0 %v3649
    %4064 = vmatprep.subr.bf16.mxu0 %v3652
    %4065 = vmatpush1.bf16.msra.mxu0 %v3651
    %4066 = vmatprep.subr.bf16.mxu0 %v3654
    %4067 = vmatpush1.bf16.msra.mxu0 %v3653
    %4068 = vmatprep.subr.bf16.mxu0 %v3656
    %4069 = vmatpush1.bf16.msra.mxu0 %v3655
    %4070 = vmatprep.mubr.bf16.mxu0 %v3332
    %4071 = vmatmul.mubr.bf16.gmra.mrb[0].mxu0 %v3331
    %v4072 = vpop.f32.mrb[0].mxu0
    %v4073 = vadd.f32 %v4032, %v4072
    %v4074 = vpop.f32.mrb[0].mxu0
    %v4075 = vadd.f32 %v4034, %v4074
    %v4076 = vpop.f32.mrb[0].mxu0
    %v4077 = vpop.f32.mrb[0].mxu0
    %4078 = vdwg.mxu0
    %4079 = vst [vmem:[#allocation16] sm:$0xff] %v4073
    %4080 = vst [vmem:[#allocation16 + $0x8] sm:$0xff] %v4075
    %s4081 = sshll.u32 %s3334, 4
    %4082 = dma.done %s164, %s4081
    %v4083 = vld [vmem:[%s163] sm:$0xff]
    %v4084 = vld [vmem:[%s163 + $0x8] sm:$0xff]
    %v4085 = vld [vmem:[%s163 + $0x10] sm:$0xff]
    %v4086 = vld [vmem:[%s163 + $0x18] sm:$0xff]
    %v4087 = vld [vmem:[%s163 + $0x20] sm:$0xff]
    %v4088 = vld [vmem:[%s163 + $0x28] sm:$0xff]
    %v4089 = vld [vmem:[%s163 + $0x30] sm:$0xff]
    %v4090 = vld [vmem:[%s163 + $0x38] sm:$0xff]
    %v4091 = vld [vmem:[%s163 + $0x40] sm:$0xff]
    %v4092 = vld [vmem:[%s163 + $0x48] sm:$0xff]
    %v4093 = vld [vmem:[%s163 + $0x50] sm:$0xff]
    %v4094 = vld [vmem:[%s163 + $0x58] sm:$0xff]
    %v4095 = vld [vmem:[%s163 + $0x60] sm:$0xff]
    %v4096 = vld [vmem:[%s163 + $0x68] sm:$0xff]
    %v4097 = vld [vmem:[%s163 + $0x70] sm:$0xff]
    %v4098 = vld [vmem:[%s163 + $0x78] sm:$0xff]
    %v4099 = vld [vmem:[%s163 + $0x80] sm:$0xff]
    %v4100 = vld [vmem:[%s163 + $0x88] sm:$0xff]
    %v4101 = vld [vmem:[%s163 + $0x90] sm:$0xff]
    %v4102 = vld [vmem:[%s163 + $0x98] sm:$0xff]
    %v4103 = vld [vmem:[%s163 + $0xa0] sm:$0xff]
    %v4104 = vld [vmem:[%s163 + $0xa8] sm:$0xff]
    %v4105 = vld [vmem:[%s163 + $0xb0] sm:$0xff]
    %v4106 = vld [vmem:[%s163 + $0xb8] sm:$0xff]
    %v4107 = vld [vmem:[%s163 + $0xc0] sm:$0xff]
    %v4108 = vld [vmem:[%s163 + $0xc8] sm:$0xff]
    %v4109 = vld [vmem:[%s163 + $0xd0] sm:$0xff]
    %v4110 = vld [vmem:[%s163 + $0xd8] sm:$0xff]
    %v4111 = vld [vmem:[%s163 + $0xe0] sm:$0xff]
    %v4112 = vld [vmem:[%s163 + $0xe8] sm:$0xff]
    %v4113 = vld [vmem:[%s163 + $0xf0] sm:$0xff]
    %v4114 = vld [vmem:[%s163 + $0xf8] sm:$0xff]
    %v4115 = vld [vmem:[%s163 + $0x100] sm:$0xff]
    %v4116 = vld [vmem:[%s163 + $0x108] sm:$0xff]
    %v4117 = vld [vmem:[%s163 + $0x110] sm:$0xff]
    %v4118 = vld [vmem:[%s163 + $0x118] sm:$0xff]
    %v4119 = vld [vmem:[%s163 + $0x120] sm:$0xff]
    %v4120 = vld [vmem:[%s163 + $0x128] sm:$0xff]
    %v4121 = vld [vmem:[%s163 + $0x130] sm:$0xff]
    %v4122 = vld [vmem:[%s163 + $0x138] sm:$0xff]
    %v4123 = vld [vmem:[%s163 + $0x140] sm:$0xff]
    %v4124 = vld [vmem:[%s163 + $0x148] sm:$0xff]
    %v4125 = vld [vmem:[%s163 + $0x150] sm:$0xff]
    %v4126 = vld [vmem:[%s163 + $0x158] sm:$0xff]
    %v4127 = vld [vmem:[%s163 + $0x160] sm:$0xff]
    %v4128 = vld [vmem:[%s163 + $0x168] sm:$0xff]
    %v4129 = vld [vmem:[%s163 + $0x170] sm:$0xff]
    %v4130 = vld [vmem:[%s163 + $0x178] sm:$0xff]
    %v4131 = vld [vmem:[%s163 + $0x180] sm:$0xff]
    %v4132 = vld [vmem:[%s163 + $0x188] sm:$0xff]
    %v4133 = vld [vmem:[%s163 + $0x190] sm:$0xff]
    %v4134 = vld [vmem:[%s163 + $0x198] sm:$0xff]
    %v4135 = vld [vmem:[%s163 + $0x1a0] sm:$0xff]
    %v4136 = vld [vmem:[%s163 + $0x1a8] sm:$0xff]
    %v4137 = vld [vmem:[%s163 + $0x1b0] sm:$0xff]
    %v4138 = vld [vmem:[%s163 + $0x1b8] sm:$0xff]
    %v4139 = vld [vmem:[%s163 + $0x1c0] sm:$0xff]
    %v4140 = vld [vmem:[%s163 + $0x1c8] sm:$0xff]
    %v4141 = vld [vmem:[%s163 + $0x1d0] sm:$0xff]
    %v4142 = vld [vmem:[%s163 + $0x1d8] sm:$0xff]
    %v4143 = vld [vmem:[%s163 + $0x1e0] sm:$0xff]
    %v4144 = vld [vmem:[%s163 + $0x1e8] sm:$0xff]
    %v4145 = vld [vmem:[%s163 + $0x1f0] sm:$0xff]
    %v4146 = vld [vmem:[%s163 + $0x1f8] sm:$0xff]
    %v4147 = vld [vmem:[%s163 + $0x200] sm:$0xff]
    %v4148 = vld [vmem:[%s163 + $0x208] sm:$0xff]
    %v4149 = vld [vmem:[%s163 + $0x210] sm:$0xff]
    %v4150 = vld [vmem:[%s163 + $0x218] sm:$0xff]
    %v4151 = vld [vmem:[%s163 + $0x220] sm:$0xff]
    %v4152 = vld [vmem:[%s163 + $0x228] sm:$0xff]
    %v4153 = vld [vmem:[%s163 + $0x230] sm:$0xff]
    %v4154 = vld [vmem:[%s163 + $0x238] sm:$0xff]
    %v4155 = vld [vmem:[%s163 + $0x240] sm:$0xff]
    %v4156 = vld [vmem:[%s163 + $0x248] sm:$0xff]
    %v4157 = vld [vmem:[%s163 + $0x250] sm:$0xff]
    %v4158 = vld [vmem:[%s163 + $0x258] sm:$0xff]
    %v4159 = vld [vmem:[%s163 + $0x260] sm:$0xff]
    %v4160 = vld [vmem:[%s163 + $0x268] sm:$0xff]
    %v4161 = vld [vmem:[%s163 + $0x270] sm:$0xff]
    %v4162 = vld [vmem:[%s163 + $0x278] sm:$0xff]
    %v4163 = vld [vmem:[%s163 + $0x280] sm:$0xff]
    %v4164 = vld [vmem:[%s163 + $0x288] sm:$0xff]
    %v4165 = vld [vmem:[%s163 + $0x290] sm:$0xff]
    %v4166 = vld [vmem:[%s163 + $0x298] sm:$0xff]
    %v4167 = vld [vmem:[%s163 + $0x2a0] sm:$0xff]
    %v4168 = vld [vmem:[%s163 + $0x2a8] sm:$0xff]
    %v4169 = vld [vmem:[%s163 + $0x2b0] sm:$0xff]
    %v4170 = vld [vmem:[%s163 + $0x2b8] sm:$0xff]
    %v4171 = vld [vmem:[%s163 + $0x2c0] sm:$0xff]
    %v4172 = vld [vmem:[%s163 + $0x2c8] sm:$0xff]
    %v4173 = vld [vmem:[%s163 + $0x2d0] sm:$0xff]
    %v4174 = vld [vmem:[%s163 + $0x2d8] sm:$0xff]
    %v4175 = vld [vmem:[%s163 + $0x2e0] sm:$0xff]
    %v4176 = vld [vmem:[%s163 + $0x2e8] sm:$0xff]
    %v4177 = vld [vmem:[%s163 + $0x2f0] sm:$0xff]
    %v4178 = vld [vmem:[%s163 + $0x2f8] sm:$0xff]
    %v4179 = vld [vmem:[%s163 + $0x300] sm:$0xff]
    %v4180 = vld [vmem:[%s163 + $0x308] sm:$0xff]
    %v4181 = vld [vmem:[%s163 + $0x310] sm:$0xff]
    %v4182 = vld [vmem:[%s163 + $0x318] sm:$0xff]
    %v4183 = vld [vmem:[%s163 + $0x320] sm:$0xff]
    %v4184 = vld [vmem:[%s163 + $0x328] sm:$0xff]
    %v4185 = vld [vmem:[%s163 + $0x330] sm:$0xff]
    %v4186 = vld [vmem:[%s163 + $0x338] sm:$0xff]
    %v4187 = vld [vmem:[%s163 + $0x340] sm:$0xff]
    %v4188 = vld [vmem:[%s163 + $0x348] sm:$0xff]
    %v4189 = vld [vmem:[%s163 + $0x350] sm:$0xff]
    %v4190 = vld [vmem:[%s163 + $0x358] sm:$0xff]
    %v4191 = vld [vmem:[%s163 + $0x360] sm:$0xff]
    %v4192 = vld [vmem:[%s163 + $0x368] sm:$0xff]
    %v4193 = vld [vmem:[%s163 + $0x370] sm:$0xff]
    %v4194 = vld [vmem:[%s163 + $0x378] sm:$0xff]
    %v4195 = vld [vmem:[%s163 + $0x380] sm:$0xff]
    %v4196 = vld [vmem:[%s163 + $0x388] sm:$0xff]
    %v4197 = vld [vmem:[%s163 + $0x390] sm:$0xff]
    %v4198 = vld [vmem:[%s163 + $0x398] sm:$0xff]
    %v4199 = vld [vmem:[%s163 + $0x3a0] sm:$0xff]
    %v4200 = vld [vmem:[%s163 + $0x3a8] sm:$0xff]
    %v4201 = vld [vmem:[%s163 + $0x3b0] sm:$0xff]
    %v4202 = vld [vmem:[%s163 + $0x3b8] sm:$0xff]
    %v4203 = vld [vmem:[%s163 + $0x3c0] sm:$0xff]
    %v4204 = vld [vmem:[%s163 + $0x3c8] sm:$0xff]
    %v4205 = vld [vmem:[%s163 + $0x3d0] sm:$0xff]
    %v4206 = vld [vmem:[%s163 + $0x3d8] sm:$0xff]
    %v4207 = vld [vmem:[%s163 + $0x3e0] sm:$0xff]
    %v4208 = vld [vmem:[%s163 + $0x3e8] sm:$0xff]
    %v4209 = vld [vmem:[%s163 + $0x3f0] sm:$0xff]
    %v4210 = vld [vmem:[%s163 + $0x3f8] sm:$0xff]
    %v4211 = vld [vmem:[%s163 + $0x400] sm:$0xff]
    %v4212 = vld [vmem:[%s163 + $0x408] sm:$0xff]
    %v4213 = vld [vmem:[%s163 + $0x410] sm:$0xff]
    %v4214 = vld [vmem:[%s163 + $0x418] sm:$0xff]
    %v4215 = vld [vmem:[%s163 + $0x420] sm:$0xff]
    %v4216 = vld [vmem:[%s163 + $0x428] sm:$0xff]
    %v4217 = vld [vmem:[%s163 + $0x430] sm:$0xff]
    %v4218 = vld [vmem:[%s163 + $0x438] sm:$0xff]
    %v4219 = vld [vmem:[%s163 + $0x440] sm:$0xff]
    %v4220 = vld [vmem:[%s163 + $0x448] sm:$0xff]
    %v4221 = vld [vmem:[%s163 + $0x450] sm:$0xff]
    %v4222 = vld [vmem:[%s163 + $0x458] sm:$0xff]
    %v4223 = vld [vmem:[%s163 + $0x460] sm:$0xff]
    %v4224 = vld [vmem:[%s163 + $0x468] sm:$0xff]
    %v4225 = vld [vmem:[%s163 + $0x470] sm:$0xff]
    %v4226 = vld [vmem:[%s163 + $0x478] sm:$0xff]
    %v4227 = vld [vmem:[%s163 + $0x480] sm:$0xff]
    %v4228 = vld [vmem:[%s163 + $0x488] sm:$0xff]
    %v4229 = vld [vmem:[%s163 + $0x490] sm:$0xff]
    %v4230 = vld [vmem:[%s163 + $0x498] sm:$0xff]
    %v4231 = vld [vmem:[%s163 + $0x4a0] sm:$0xff]
    %v4232 = vld [vmem:[%s163 + $0x4a8] sm:$0xff]
    %v4233 = vld [vmem:[%s163 + $0x4b0] sm:$0xff]
    %v4234 = vld [vmem:[%s163 + $0x4b8] sm:$0xff]
    %v4235 = vld [vmem:[%s163 + $0x4c0] sm:$0xff]
    %v4236 = vld [vmem:[%s163 + $0x4c8] sm:$0xff]
    %v4237 = vld [vmem:[%s163 + $0x4d0] sm:$0xff]
    %v4238 = vld [vmem:[%s163 + $0x4d8] sm:$0xff]
    %v4239 = vld [vmem:[%s163 + $0x4e0] sm:$0xff]
    %v4240 = vld [vmem:[%s163 + $0x4e8] sm:$0xff]
    %v4241 = vld [vmem:[%s163 + $0x4f0] sm:$0xff]
    %v4242 = vld [vmem:[%s163 + $0x4f8] sm:$0xff]
    %v4243 = vld [vmem:[%s163 + $0x500] sm:$0xff]
    %v4244 = vld [vmem:[%s163 + $0x508] sm:$0xff]
    %v4245 = vld [vmem:[%s163 + $0x510] sm:$0xff]
    %v4246 = vld [vmem:[%s163 + $0x518] sm:$0xff]
    %v4247 = vld [vmem:[%s163 + $0x520] sm:$0xff]
    %v4248 = vld [vmem:[%s163 + $0x528] sm:$0xff]
    %v4249 = vld [vmem:[%s163 + $0x530] sm:$0xff]
    %v4250 = vld [vmem:[%s163 + $0x538] sm:$0xff]
    %v4251 = vld [vmem:[%s163 + $0x540] sm:$0xff]
    %v4252 = vld [vmem:[%s163 + $0x548] sm:$0xff]
    %v4253 = vld [vmem:[%s163 + $0x550] sm:$0xff]
    %v4254 = vld [vmem:[%s163 + $0x558] sm:$0xff]
    %v4255 = vld [vmem:[%s163 + $0x560] sm:$0xff]
    %v4256 = vld [vmem:[%s163 + $0x568] sm:$0xff]
    %v4257 = vld [vmem:[%s163 + $0x570] sm:$0xff]
    %v4258 = vld [vmem:[%s163 + $0x578] sm:$0xff]
    %v4259 = vld [vmem:[%s163 + $0x580] sm:$0xff]
    %v4260 = vld [vmem:[%s163 + $0x588] sm:$0xff]
    %v4261 = vld [vmem:[%s163 + $0x590] sm:$0xff]
    %v4262 = vld [vmem:[%s163 + $0x598] sm:$0xff]
    %v4263 = vld [vmem:[%s163 + $0x5a0] sm:$0xff]
    %v4264 = vld [vmem:[%s163 + $0x5a8] sm:$0xff]
    %v4265 = vld [vmem:[%s163 + $0x5b0] sm:$0xff]
    %v4266 = vld [vmem:[%s163 + $0x5b8] sm:$0xff]
    %v4267 = vld [vmem:[%s163 + $0x5c0] sm:$0xff]
    %v4268 = vld [vmem:[%s163 + $0x5c8] sm:$0xff]
    %v4269 = vld [vmem:[%s163 + $0x5d0] sm:$0xff]
    %v4270 = vld [vmem:[%s163 + $0x5d8] sm:$0xff]
    %v4271 = vld [vmem:[%s163 + $0x5e0] sm:$0xff]
    %v4272 = vld [vmem:[%s163 + $0x5e8] sm:$0xff]
    %v4273 = vld [vmem:[%s163 + $0x5f0] sm:$0xff]
    %v4274 = vld [vmem:[%s163 + $0x5f8] sm:$0xff]
    %v4275 = vld [vmem:[%s163 + $0x600] sm:$0xff]
    %v4276 = vld [vmem:[%s163 + $0x608] sm:$0xff]
    %v4277 = vld [vmem:[%s163 + $0x610] sm:$0xff]
    %v4278 = vld [vmem:[%s163 + $0x618] sm:$0xff]
    %v4279 = vld [vmem:[%s163 + $0x620] sm:$0xff]
    %v4280 = vld [vmem:[%s163 + $0x628] sm:$0xff]
    %v4281 = vld [vmem:[%s163 + $0x630] sm:$0xff]
    %v4282 = vld [vmem:[%s163 + $0x638] sm:$0xff]
    %v4283 = vld [vmem:[%s163 + $0x640] sm:$0xff]
    %v4284 = vld [vmem:[%s163 + $0x648] sm:$0xff]
    %v4285 = vld [vmem:[%s163 + $0x650] sm:$0xff]
    %v4286 = vld [vmem:[%s163 + $0x658] sm:$0xff]
    %v4287 = vld [vmem:[%s163 + $0x660] sm:$0xff]
    %v4288 = vld [vmem:[%s163 + $0x668] sm:$0xff]
    %v4289 = vld [vmem:[%s163 + $0x670] sm:$0xff]
    %v4290 = vld [vmem:[%s163 + $0x678] sm:$0xff]
    %v4291 = vld [vmem:[%s163 + $0x680] sm:$0xff]
    %v4292 = vld [vmem:[%s163 + $0x688] sm:$0xff]
    %v4293 = vld [vmem:[%s163 + $0x690] sm:$0xff]
    %v4294 = vld [vmem:[%s163 + $0x698] sm:$0xff]
    %v4295 = vld [vmem:[%s163 + $0x6a0] sm:$0xff]
    %v4296 = vld [vmem:[%s163 + $0x6a8] sm:$0xff]
    %v4297 = vld [vmem:[%s163 + $0x6b0] sm:$0xff]
    %v4298 = vld [vmem:[%s163 + $0x6b8] sm:$0xff]
    %v4299 = vld [vmem:[%s163 + $0x6c0] sm:$0xff]
    %v4300 = vld [vmem:[%s163 + $0x6c8] sm:$0xff]
    %v4301 = vld [vmem:[%s163 + $0x6d0] sm:$0xff]
    %v4302 = vld [vmem:[%s163 + $0x6d8] sm:$0xff]
    %v4303 = vld [vmem:[%s163 + $0x6e0] sm:$0xff]
    %v4304 = vld [vmem:[%s163 + $0x6e8] sm:$0xff]
    %v4305 = vld [vmem:[%s163 + $0x6f0] sm:$0xff]
    %v4306 = vld [vmem:[%s163 + $0x6f8] sm:$0xff]
    %v4307 = vld [vmem:[%s163 + $0x700] sm:$0xff]
    %v4308 = vld [vmem:[%s163 + $0x708] sm:$0xff]
    %v4309 = vld [vmem:[%s163 + $0x710] sm:$0xff]
    %v4310 = vld [vmem:[%s163 + $0x718] sm:$0xff]
    %v4311 = vld [vmem:[%s163 + $0x720] sm:$0xff]
    %v4312 = vld [vmem:[%s163 + $0x728] sm:$0xff]
    %v4313 = vld [vmem:[%s163 + $0x730] sm:$0xff]
    %v4314 = vld [vmem:[%s163 + $0x738] sm:$0xff]
    %v4315 = vld [vmem:[%s163 + $0x740] sm:$0xff]
    %v4316 = vld [vmem:[%s163 + $0x748] sm:$0xff]
    %v4317 = vld [vmem:[%s163 + $0x750] sm:$0xff]
    %v4318 = vld [vmem:[%s163 + $0x758] sm:$0xff]
    %v4319 = vld [vmem:[%s163 + $0x760] sm:$0xff]
    %v4320 = vld [vmem:[%s163 + $0x768] sm:$0xff]
    %v4321 = vld [vmem:[%s163 + $0x770] sm:$0xff]
    %v4322 = vld [vmem:[%s163 + $0x778] sm:$0xff]
    %v4323 = vld [vmem:[%s163 + $0x780] sm:$0xff]
    %v4324 = vld [vmem:[%s163 + $0x788] sm:$0xff]
    %v4325 = vld [vmem:[%s163 + $0x790] sm:$0xff]
    %v4326 = vld [vmem:[%s163 + $0x798] sm:$0xff]
    %v4327 = vld [vmem:[%s163 + $0x7a0] sm:$0xff]
    %v4328 = vld [vmem:[%s163 + $0x7a8] sm:$0xff]
    %v4329 = vld [vmem:[%s163 + $0x7b0] sm:$0xff]
    %v4330 = vld [vmem:[%s163 + $0x7b8] sm:$0xff]
    %v4331 = vld [vmem:[%s163 + $0x7c0] sm:$0xff]
    %v4332 = vld [vmem:[%s163 + $0x7c8] sm:$0xff]
    %v4333 = vld [vmem:[%s163 + $0x7d0] sm:$0xff]
    %v4334 = vld [vmem:[%s163 + $0x7d8] sm:$0xff]
    %v4335 = vld [vmem:[%s163 + $0x7e0] sm:$0xff]
    %v4336 = vld [vmem:[%s163 + $0x7e8] sm:$0xff]
    %v4337 = vld [vmem:[%s163 + $0x7f0] sm:$0xff]
    %v4338 = vld [vmem:[%s163 + $0x7f8] sm:$0xff]
    %v4339 = vld [vmem:[%s163 + $0x800] sm:$0xff]
    %v4340 = vld [vmem:[%s163 + $0x808] sm:$0xff]
    %v4341 = vld [vmem:[%s163 + $0x810] sm:$0xff]
    %v4342 = vld [vmem:[%s163 + $0x818] sm:$0xff]
    %v4343 = vld [vmem:[%s163 + $0x820] sm:$0xff]
    %v4344 = vld [vmem:[%s163 + $0x828] sm:$0xff]
    %v4345 = vld [vmem:[%s163 + $0x830] sm:$0xff]
    %v4346 = vld [vmem:[%s163 + $0x838] sm:$0xff]
    %v4347 = vld [vmem:[%s163 + $0x840] sm:$0xff]
    %v4348 = vld [vmem:[%s163 + $0x848] sm:$0xff]
    %v4349 = vld [vmem:[%s163 + $0x850] sm:$0xff]
    %v4350 = vld [vmem:[%s163 + $0x858] sm:$0xff]
    %v4351 = vld [vmem:[%s163 + $0x860] sm:$0xff]
    %v4352 = vld [vmem:[%s163 + $0x868] sm:$0xff]
    %v4353 = vld [vmem:[%s163 + $0x870] sm:$0xff]
    %v4354 = vld [vmem:[%s163 + $0x878] sm:$0xff]
    %v4355 = vld [vmem:[%s163 + $0x880] sm:$0xff]
    %v4356 = vld [vmem:[%s163 + $0x888] sm:$0xff]
    %v4357 = vld [vmem:[%s163 + $0x890] sm:$0xff]
    %v4358 = vld [vmem:[%s163 + $0x898] sm:$0xff]
    %v4359 = vld [vmem:[%s163 + $0x8a0] sm:$0xff]
    %v4360 = vld [vmem:[%s163 + $0x8a8] sm:$0xff]
    %v4361 = vld [vmem:[%s163 + $0x8b0] sm:$0xff]
    %v4362 = vld [vmem:[%s163 + $0x8b8] sm:$0xff]
    %v4363 = vld [vmem:[%s163 + $0x8c0] sm:$0xff]
    %v4364 = vld [vmem:[%s163 + $0x8c8] sm:$0xff]
    %v4365 = vld [vmem:[%s163 + $0x8d0] sm:$0xff]
    %v4366 = vld [vmem:[%s163 + $0x8d8] sm:$0xff]
    %v4367 = vld [vmem:[%s163 + $0x8e0] sm:$0xff]
    %v4368 = vld [vmem:[%s163 + $0x8e8] sm:$0xff]
    %v4369 = vld [vmem:[%s163 + $0x8f0] sm:$0xff]
    %v4370 = vld [vmem:[%s163 + $0x8f8] sm:$0xff]
    %v4371 = vld [vmem:[%s163 + $0x900] sm:$0xff]
    %v4372 = vld [vmem:[%s163 + $0x908] sm:$0xff]
    %v4373 = vld [vmem:[%s163 + $0x910] sm:$0xff]
    %v4374 = vld [vmem:[%s163 + $0x918] sm:$0xff]
    %v4375 = vld [vmem:[%s163 + $0x920] sm:$0xff]
    %v4376 = vld [vmem:[%s163 + $0x928] sm:$0xff]
    %v4377 = vld [vmem:[%s163 + $0x930] sm:$0xff]
    %v4378 = vld [vmem:[%s163 + $0x938] sm:$0xff]
    %v4379 = vld [vmem:[%s163 + $0x940] sm:$0xff]
    %v4380 = vld [vmem:[%s163 + $0x948] sm:$0xff]
    %v4381 = vld [vmem:[%s163 + $0x950] sm:$0xff]
    %v4382 = vld [vmem:[%s163 + $0x958] sm:$0xff]
    %v4383 = vld [vmem:[%s163 + $0x960] sm:$0xff]
    %v4384 = vld [vmem:[%s163 + $0x968] sm:$0xff]
    %v4385 = vld [vmem:[%s163 + $0x970] sm:$0xff]
    %v4386 = vld [vmem:[%s163 + $0x978] sm:$0xff]
    %v4387 = vld [vmem:[%s163 + $0x980] sm:$0xff]
    %v4388 = vld [vmem:[%s163 + $0x988] sm:$0xff]
    %v4389 = vld [vmem:[%s163 + $0x990] sm:$0xff]
    %v4390 = vld [vmem:[%s163 + $0x998] sm:$0xff]
    %v4391 = vld [vmem:[%s163 + $0x9a0] sm:$0xff]
    %v4392 = vld [vmem:[%s163 + $0x9a8] sm:$0xff]
    %v4393 = vld [vmem:[%s163 + $0x9b0] sm:$0xff]
    %v4394 = vld [vmem:[%s163 + $0x9b8] sm:$0xff]
    %v4395 = vld [vmem:[%s163 + $0x9c0] sm:$0xff]
    %v4396 = vld [vmem:[%s163 + $0x9c8] sm:$0xff]
    %v4397 = vld [vmem:[%s163 + $0x9d0] sm:$0xff]
    %v4398 = vld [vmem:[%s163 + $0x9d8] sm:$0xff]
    %v4399 = vld [vmem:[%s163 + $0x9e0] sm:$0xff]
    %v4400 = vld [vmem:[%s163 + $0x9e8] sm:$0xff]
    %v4401 = vld [vmem:[%s163 + $0x9f0] sm:$0xff]
    %v4402 = vld [vmem:[%s163 + $0x9f8] sm:$0xff]
    %v4403 = vld [vmem:[#allocation15 + $0x2] sm:$0x3]
    %v4405 = vlaneseq
    %v4406 = vshrl.u32 %v4405, 7
    %v4407 = vsub.s32 0, %v4406
    %v4408 = vrot.slane %v4403, %v4407
    %v4409 = vlaneseq
    %v4410 = vshrl.u32 %v4409, 7
    %v4411 = vsub.s32 1, %v4410
    %v4412 = vrot.slane %v4403, %v4411
    %4415 = vmatprep.subr.bf16.mxu0 %v4084
    %4416 = vmatpush1.bf16.msra.mxu0 %v4083
    %4417 = vmatprep.subr.bf16.mxu0 %v4086
    %4418 = vmatpush1.bf16.msra.mxu0 %v4085
    %4419 = vmatprep.subr.bf16.mxu0 %v4088
    %4420 = vmatpush1.bf16.msra.mxu0 %v4087
    %4421 = vmatprep.subr.bf16.mxu0 %v4090
    %4422 = vmatpush1.bf16.msra.mxu0 %v4089
    %4423 = vmatprep.subr.bf16.mxu0 %v4092
    %4424 = vmatpush1.bf16.msra.mxu0 %v4091
    %4425 = vmatprep.subr.bf16.mxu0 %v4094
    %4426 = vmatpush1.bf16.msra.mxu0 %v4093
    %4427 = vmatprep.subr.bf16.mxu0 %v4096
    %4428 = vmatpush1.bf16.msra.mxu0 %v4095
    %4429 = vmatprep.subr.bf16.mxu0 %v4098
    %4430 = vmatpush1.bf16.msra.mxu0 %v4097
    %4431 = vmatprep.subr.bf16.mxu0 %v4100
    %4432 = vmatpush1.bf16.msra.mxu0 %v4099
    %4433 = vmatprep.subr.bf16.mxu0 %v4102
    %4434 = vmatpush1.bf16.msra.mxu0 %v4101
    %4435 = vmatprep.subr.bf16.mxu0 %v4104
    %4436 = vmatpush1.bf16.msra.mxu0 %v4103
    %4437 = vmatprep.subr.bf16.mxu0 %v4106
    %4438 = vmatpush1.bf16.msra.mxu0 %v4105
    %4439 = vmatprep.subr.bf16.mxu0 %v4108
    %4440 = vmatpush1.bf16.msra.mxu0 %v4107
    %4441 = vmatprep.subr.bf16.mxu0 %v4110
    %4442 = vmatpush1.bf16.msra.mxu0 %v4109
    %4443 = vmatprep.subr.bf16.mxu0 %v4112
    %4444 = vmatpush1.bf16.msra.mxu0 %v4111
    %4445 = vmatprep.subr.bf16.mxu0 %v4114
    %4446 = vmatpush1.bf16.msra.mxu0 %v4113
    %4447 = vmatprep.mubr.bf16.mxu0 %v3314
    %4448 = vmatmul.mubr.bf16.gmra.mrb[0].mxu0 %v3313
    %v4449 = vpop.f32.mrb[0].mxu0
    %v4450 = vadd.f32 %v4408, %v4449
    %v4451 = vpop.f32.mrb[0].mxu0
    %v4452 = vadd.f32 %v4412, %v4451
    %v4453 = vpop.f32.mrb[0].mxu0
    %v4454 = vpop.f32.mrb[0].mxu0
    %4455 = vdwg.mxu0
    %4456 = vmatprep.subr.bf16.mxu0 %v4116
    %4457 = vmatpush1.bf16.msra.mxu0 %v4115
    %4458 = vmatprep.subr.bf16.mxu0 %v4118
    %4459 = vmatpush1.bf16.msra.mxu0 %v4117
    %4460 = vmatprep.subr.bf16.mxu0 %v4120
    %4461 = vmatpush1.bf16.msra.mxu0 %v4119
    %4462 = vmatprep.subr.bf16.mxu0 %v4122
    %4463 = vmatpush1.bf16.msra.mxu0 %v4121
    %4464 = vmatprep.subr.bf16.mxu0 %v4124
    %4465 = vmatpush1.bf16.msra.mxu0 %v4123
    %4466 = vmatprep.subr.bf16.mxu0 %v4126
    %4467 = vmatpush1.bf16.msra.mxu0 %v4125
    %4468 = vmatprep.subr.bf16.mxu0 %v4128
    %4469 = vmatpush1.bf16.msra.mxu0 %v4127
    %4470 = vmatprep.subr.bf16.mxu0 %v4130
    %4471 = vmatpush1.bf16.msra.mxu0 %v4129
    %4472 = vmatprep.subr.bf16.mxu0 %v4132
    %4473 = vmatpush1.bf16.msra.mxu0 %v4131
    %4474 = vmatprep.subr.bf16.mxu0 %v4134
    %4475 = vmatpush1.bf16.msra.mxu0 %v4133
    %4476 = vmatprep.subr.bf16.mxu0 %v4136
    %4477 = vmatpush1.bf16.msra.mxu0 %v4135
    %4478 = vmatprep.subr.bf16.mxu0 %v4138
    %4479 = vmatpush1.bf16.msra.mxu0 %v4137
    %4480 = vmatprep.subr.bf16.mxu0 %v4140
    %4481 = vmatpush1.bf16.msra.mxu0 %v4139
    %4482 = vmatprep.subr.bf16.mxu0 %v4142
    %4483 = vmatpush1.bf16.msra.mxu0 %v4141
    %4484 = vmatprep.subr.bf16.mxu0 %v4144
    %4485 = vmatpush1.bf16.msra.mxu0 %v4143
    %4486 = vmatprep.subr.bf16.mxu0 %v4146
    %4487 = vmatpush1.bf16.msra.mxu0 %v4145
    %4488 = vmatprep.mubr.bf16.mxu0 %v3316
    %4489 = vmatmul.mubr.bf16.gmra.mrb[0].mxu0 %v3315
    %v4490 = vpop.f32.mrb[0].mxu0
    %v4491 = vadd.f32 %v4450, %v4490
    %v4492 = vpop.f32.mrb[0].mxu0
    %v4493 = vadd.f32 %v4452, %v4492
    %v4494 = vpop.f32.mrb[0].mxu0
    %v4495 = vpop.f32.mrb[0].mxu0
    %4496 = vdwg.mxu0
    %4497 = vmatprep.subr.bf16.mxu0 %v4148
    %4498 = vmatpush1.bf16.msra.mxu0 %v4147
    %4499 = vmatprep.subr.bf16.mxu0 %v4150
    %4500 = vmatpush1.bf16.msra.mxu0 %v4149
    %4501 = vmatprep.subr.bf16.mxu0 %v4152
    %4502 = vmatpush1.bf16.msra.mxu0 %v4151
    %4503 = vmatprep.subr.bf16.mxu0 %v4154
    %4504 = vmatpush1.bf16.msra.mxu0 %v4153
    %4505 = vmatprep.subr.bf16.mxu0 %v4156
    %4506 = vmatpush1.bf16.msra.mxu0 %v4155
    %4507 = vmatprep.subr.bf16.mxu0 %v4158
    %4508 = vmatpush1.bf16.msra.mxu0 %v4157
    %4509 = vmatprep.subr.bf16.mxu0 %v4160
    %4510 = vmatpush1.bf16.msra.mxu0 %v4159
    %4511 = vmatprep.subr.bf16.mxu0 %v4162
    %4512 = vmatpush1.bf16.msra.mxu0 %v4161
    %4513 = vmatprep.subr.bf16.mxu0 %v4164
    %4514 = vmatpush1.bf16.msra.mxu0 %v4163
    %4515 = vmatprep.subr.bf16.mxu0 %v4166
    %4516 = vmatpush1.bf16.msra.mxu0 %v4165
    %4517 = vmatprep.subr.bf16.mxu0 %v4168
    %4518 = vmatpush1.bf16.msra.mxu0 %v4167
    %4519 = vmatprep.subr.bf16.mxu0 %v4170
    %4520 = vmatpush1.bf16.msra.mxu0 %v4169
    %4521 = vmatprep.subr.bf16.mxu0 %v4172
    %4522 = vmatpush1.bf16.msra.mxu0 %v4171
    %4523 = vmatprep.subr.bf16.mxu0 %v4174
    %4524 = vmatpush1.bf16.msra.mxu0 %v4173
    %4525 = vmatprep.subr.bf16.mxu0 %v4176
    %4526 = vmatpush1.bf16.msra.mxu0 %v4175
    %4527 = vmatprep.subr.bf16.mxu0 %v4178
    %4528 = vmatpush1.bf16.msra.mxu0 %v4177
    %4529 = vmatprep.mubr.bf16.mxu0 %v3318
    %4530 = vmatmul.mubr.bf16.gmra.mrb[0].mxu0 %v3317
    %v4531 = vpop.f32.mrb[0].mxu0
    %v4532 = vadd.f32 %v4491, %v4531
    %v4533 = vpop.f32.mrb[0].mxu0
    %v4534 = vadd.f32 %v4493, %v4533
    %v4535 = vpop.f32.mrb[0].mxu0
    %v4536 = vpop.f32.mrb[0].mxu0
    %4537 = vdwg.mxu0
    %4538 = vmatprep.subr.bf16.mxu0 %v4180
    %4539 = vmatpush1.bf16.msra.mxu0 %v4179
    %4540 = vmatprep.subr.bf16.mxu0 %v4182
    %4541 = vmatpush1.bf16.msra.mxu0 %v4181
    %4542 = vmatprep.subr.bf16.mxu0 %v4184
    %4543 = vmatpush1.bf16.msra.mxu0 %v4183
    %4544 = vmatprep.subr.bf16.mxu0 %v4186
    %4545 = vmatpush1.bf16.msra.mxu0 %v4185
    %4546 = vmatprep.subr.bf16.mxu0 %v4188
    %4547 = vmatpush1.bf16.msra.mxu0 %v4187
    %4548 = vmatprep.subr.bf16.mxu0 %v4190
    %4549 = vmatpush1.bf16.msra.mxu0 %v4189
    %4550 = vmatprep.subr.bf16.mxu0 %v4192
    %4551 = vmatpush1.bf16.msra.mxu0 %v4191
    %4552 = vmatprep.subr.bf16.mxu0 %v4194
    %4553 = vmatpush1.bf16.msra.mxu0 %v4193
    %4554 = vmatprep.subr.bf16.mxu0 %v4196
    %4555 = vmatpush1.bf16.msra.mxu0 %v4195
    %4556 = vmatprep.subr.bf16.mxu0 %v4198
    %4557 = vmatpush1.bf16.msra.mxu0 %v4197
    %4558 = vmatprep.subr.bf16.mxu0 %v4200
    %4559 = vmatpush1.bf16.msra.mxu0 %v4199
    %4560 = vmatprep.subr.bf16.mxu0 %v4202
    %4561 = vmatpush1.bf16.msra.mxu0 %v4201
    %4562 = vmatprep.subr.bf16.mxu0 %v4204
    %4563 = vmatpush1.bf16.msra.mxu0 %v4203
    %4564 = vmatprep.subr.bf16.mxu0 %v4206
    %4565 = vmatpush1.bf16.msra.mxu0 %v4205
    %4566 = vmatprep.subr.bf16.mxu0 %v4208
    %4567 = vmatpush1.bf16.msra.mxu0 %v4207
    %4568 = vmatprep.subr.bf16.mxu0 %v4210
    %4569 = vmatpush1.bf16.msra.mxu0 %v4209
    %4570 = vmatprep.mubr.bf16.mxu0 %v3320
    %4571 = vmatmul.mubr.bf16.gmra.mrb[0].mxu0 %v3319
    %v4572 = vpop.f32.mrb[0].mxu0
    %v4573 = vadd.f32 %v4532, %v4572
    %v4574 = vpop.f32.mrb[0].mxu0
    %v4575 = vadd.f32 %v4534, %v4574
    %v4576 = vpop.f32.mrb[0].mxu0
    %v4577 = vpop.f32.mrb[0].mxu0
    %4578 = vdwg.mxu0
    %4579 = vmatprep.subr.bf16.mxu0 %v4212
    %4580 = vmatpush1.bf16.msra.mxu0 %v4211
    %4581 = vmatprep.subr.bf16.mxu0 %v4214
    %4582 = vmatpush1.bf16.msra.mxu0 %v4213
    %4583 = vmatprep.subr.bf16.mxu0 %v4216
    %4584 = vmatpush1.bf16.msra.mxu0 %v4215
    %4585 = vmatprep.subr.bf16.mxu0 %v4218
    %4586 = vmatpush1.bf16.msra.mxu0 %v4217
    %4587 = vmatprep.subr.bf16.mxu0 %v4220
    %4588 = vmatpush1.bf16.msra.mxu0 %v4219
    %4589 = vmatprep.subr.bf16.mxu0 %v4222
    %4590 = vmatpush1.bf16.msra.mxu0 %v4221
    %4591 = vmatprep.subr.bf16.mxu0 %v4224
    %4592 = vmatpush1.bf16.msra.mxu0 %v4223
    %4593 = vmatprep.subr.bf16.mxu0 %v4226
    %4594 = vmatpush1.bf16.msra.mxu0 %v4225
    %4595 = vmatprep.subr.bf16.mxu0 %v4228
    %4596 = vmatpush1.bf16.msra.mxu0 %v4227
    %4597 = vmatprep.subr.bf16.mxu0 %v4230
    %4598 = vmatpush1.bf16.msra.mxu0 %v4229
    %4599 = vmatprep.subr.bf16.mxu0 %v4232
    %4600 = vmatpush1.bf16.msra.mxu0 %v4231
    %4601 = vmatprep.subr.bf16.mxu0 %v4234
    %4602 = vmatpush1.bf16.msra.mxu0 %v4233
    %4603 = vmatprep.subr.bf16.mxu0 %v4236
    %4604 = vmatpush1.bf16.msra.mxu0 %v4235
    %4605 = vmatprep.subr.bf16.mxu0 %v4238
    %4606 = vmatpush1.bf16.msra.mxu0 %v4237
    %4607 = vmatprep.subr.bf16.mxu0 %v4240
    %4608 = vmatpush1.bf16.msra.mxu0 %v4239
    %4609 = vmatprep.subr.bf16.mxu0 %v4242
    %4610 = vmatpush1.bf16.msra.mxu0 %v4241
    %4611 = vmatprep.mubr.bf16.mxu0 %v3322
    %4612 = vmatmul.mubr.bf16.gmra.mrb[0].mxu0 %v3321
    %v4613 = vpop.f32.mrb[0].mxu0
    %v4614 = vadd.f32 %v4573, %v4613
    %v4615 = vpop.f32.mrb[0].mxu0
    %v4616 = vadd.f32 %v4575, %v4615
    %v4617 = vpop.f32.mrb[0].mxu0
    %v4618 = vpop.f32.mrb[0].mxu0
    %4619 = vdwg.mxu0
    %4620 = vmatprep.subr.bf16.mxu0 %v4244
    %4621 = vmatpush1.bf16.msra.mxu0 %v4243
    %4622 = vmatprep.subr.bf16.mxu0 %v4246
    %4623 = vmatpush1.bf16.msra.mxu0 %v4245
    %4624 = vmatprep.subr.bf16.mxu0 %v4248
    %4625 = vmatpush1.bf16.msra.mxu0 %v4247
    %4626 = vmatprep.subr.bf16.mxu0 %v4250
    %4627 = vmatpush1.bf16.msra.mxu0 %v4249
    %4628 = vmatprep.subr.bf16.mxu0 %v4252
    %4629 = vmatpush1.bf16.msra.mxu0 %v4251
    %4630 = vmatprep.subr.bf16.mxu0 %v4254
    %4631 = vmatpush1.bf16.msra.mxu0 %v4253
    %4632 = vmatprep.subr.bf16.mxu0 %v4256
    %4633 = vmatpush1.bf16.msra.mxu0 %v4255
    %4634 = vmatprep.subr.bf16.mxu0 %v4258
    %4635 = vmatpush1.bf16.msra.mxu0 %v4257
    %4636 = vmatprep.subr.bf16.mxu0 %v4260
    %4637 = vmatpush1.bf16.msra.mxu0 %v4259
    %4638 = vmatprep.subr.bf16.mxu0 %v4262
    %4639 = vmatpush1.bf16.msra.mxu0 %v4261
    %4640 = vmatprep.subr.bf16.mxu0 %v4264
    %4641 = vmatpush1.bf16.msra.mxu0 %v4263
    %4642 = vmatprep.subr.bf16.mxu0 %v4266
    %4643 = vmatpush1.bf16.msra.mxu0 %v4265
    %4644 = vmatprep.subr.bf16.mxu0 %v4268
    %4645 = vmatpush1.bf16.msra.mxu0 %v4267
    %4646 = vmatprep.subr.bf16.mxu0 %v4270
    %4647 = vmatpush1.bf16.msra.mxu0 %v4269
    %4648 = vmatprep.subr.bf16.mxu0 %v4272
    %4649 = vmatpush1.bf16.msra.mxu0 %v4271
    %4650 = vmatprep.subr.bf16.mxu0 %v4274
    %4651 = vmatpush1.bf16.msra.mxu0 %v4273
    %4652 = vmatprep.mubr.bf16.mxu0 %v3324
    %4653 = vmatmul.mubr.bf16.gmra.mrb[0].mxu0 %v3323
    %v4654 = vpop.f32.mrb[0].mxu0
    %v4655 = vadd.f32 %v4614, %v4654
    %v4656 = vpop.f32.mrb[0].mxu0
    %v4657 = vadd.f32 %v4616, %v4656
    %v4658 = vpop.f32.mrb[0].mxu0
    %v4659 = vpop.f32.mrb[0].mxu0
    %4660 = vdwg.mxu0
    %4661 = vmatprep.subr.bf16.mxu0 %v4276
    %4662 = vmatpush1.bf16.msra.mxu0 %v4275
    %4663 = vmatprep.subr.bf16.mxu0 %v4278
    %4664 = vmatpush1.bf16.msra.mxu0 %v4277
    %4665 = vmatprep.subr.bf16.mxu0 %v4280
    %4666 = vmatpush1.bf16.msra.mxu0 %v4279
    %4667 = vmatprep.subr.bf16.mxu0 %v4282
    %4668 = vmatpush1.bf16.msra.mxu0 %v4281
    %4669 = vmatprep.subr.bf16.mxu0 %v4284
    %4670 = vmatpush1.bf16.msra.mxu0 %v4283
    %4671 = vmatprep.subr.bf16.mxu0 %v4286
    %4672 = vmatpush1.bf16.msra.mxu0 %v4285
    %4673 = vmatprep.subr.bf16.mxu0 %v4288
    %4674 = vmatpush1.bf16.msra.mxu0 %v4287
    %4675 = vmatprep.subr.bf16.mxu0 %v4290
    %4676 = vmatpush1.bf16.msra.mxu0 %v4289
    %4677 = vmatprep.subr.bf16.mxu0 %v4292
    %4678 = vmatpush1.bf16.msra.mxu0 %v4291
    %4679 = vmatprep.subr.bf16.mxu0 %v4294
    %4680 = vmatpush1.bf16.msra.mxu0 %v4293
    %4681 = vmatprep.subr.bf16.mxu0 %v4296
    %4682 = vmatpush1.bf16.msra.mxu0 %v4295
    %4683 = vmatprep.subr.bf16.mxu0 %v4298
    %4684 = vmatpush1.bf16.msra.mxu0 %v4297
    %4685 = vmatprep.subr.bf16.mxu0 %v4300
    %4686 = vmatpush1.bf16.msra.mxu0 %v4299
    %4687 = vmatprep.subr.bf16.mxu0 %v4302
    %4688 = vmatpush1.bf16.msra.mxu0 %v4301
    %4689 = vmatprep.subr.bf16.mxu0 %v4304
    %4690 = vmatpush1.bf16.msra.mxu0 %v4303
    %4691 = vmatprep.subr.bf16.mxu0 %v4306
    %4692 = vmatpush1.bf16.msra.mxu0 %v4305
    %4693 = vmatprep.mubr.bf16.mxu0 %v3326
    %4694 = vmatmul.mubr.bf16.gmra.mrb[0].mxu0 %v3325
    %v4695 = vpop.f32.mrb[0].mxu0
    %v4696 = vadd.f32 %v4655, %v4695
    %v4697 = vpop.f32.mrb[0].mxu0
    %v4698 = vadd.f32 %v4657, %v4697
    %v4699 = vpop.f32.mrb[0].mxu0
    %v4700 = vpop.f32.mrb[0].mxu0
    %4701 = vdwg.mxu0
    %4702 = vmatprep.subr.bf16.mxu0 %v4308
    %4703 = vmatpush1.bf16.msra.mxu0 %v4307
    %4704 = vmatprep.subr.bf16.mxu0 %v4310
    %4705 = vmatpush1.bf16.msra.mxu0 %v4309
    %4706 = vmatprep.subr.bf16.mxu0 %v4312
    %4707 = vmatpush1.bf16.msra.mxu0 %v4311
    %4708 = vmatprep.subr.bf16.mxu0 %v4314
    %4709 = vmatpush1.bf16.msra.mxu0 %v4313
    %4710 = vmatprep.subr.bf16.mxu0 %v4316
    %4711 = vmatpush1.bf16.msra.mxu0 %v4315
    %4712 = vmatprep.subr.bf16.mxu0 %v4318
    %4713 = vmatpush1.bf16.msra.mxu0 %v4317
    %4714 = vmatprep.subr.bf16.mxu0 %v4320
    %4715 = vmatpush1.bf16.msra.mxu0 %v4319
    %4716 = vmatprep.subr.bf16.mxu0 %v4322
    %4717 = vmatpush1.bf16.msra.mxu0 %v4321
    %4718 = vmatprep.subr.bf16.mxu0 %v4324
    %4719 = vmatpush1.bf16.msra.mxu0 %v4323
    %4720 = vmatprep.subr.bf16.mxu0 %v4326
    %4721 = vmatpush1.bf16.msra.mxu0 %v4325
    %4722 = vmatprep.subr.bf16.mxu0 %v4328
    %4723 = vmatpush1.bf16.msra.mxu0 %v4327
    %4724 = vmatprep.subr.bf16.mxu0 %v4330
    %4725 = vmatpush1.bf16.msra.mxu0 %v4329
    %4726 = vmatprep.subr.bf16.mxu0 %v4332
    %4727 = vmatpush1.bf16.msra.mxu0 %v4331
    %4728 = vmatprep.subr.bf16.mxu0 %v4334
    %4729 = vmatpush1.bf16.msra.mxu0 %v4333
    %4730 = vmatprep.subr.bf16.mxu0 %v4336
    %4731 = vmatpush1.bf16.msra.mxu0 %v4335
    %4732 = vmatprep.subr.bf16.mxu0 %v4338
    %4733 = vmatpush1.bf16.msra.mxu0 %v4337
    %4734 = vmatprep.mubr.bf16.mxu0 %v3328
    %4735 = vmatmul.mubr.bf16.gmra.mrb[0].mxu0 %v3327
    %v4736 = vpop.f32.mrb[0].mxu0
    %v4737 = vadd.f32 %v4696, %v4736
    %v4738 = vpop.f32.mrb[0].mxu0
    %v4739 = vadd.f32 %v4698, %v4738
    %v4740 = vpop.f32.mrb[0].mxu0
    %v4741 = vpop.f32.mrb[0].mxu0
    %4742 = vdwg.mxu0
    %4743 = vmatprep.subr.bf16.mxu0 %v4340
    %4744 = vmatpush1.bf16.msra.mxu0 %v4339
    %4745 = vmatprep.subr.bf16.mxu0 %v4342
    %4746 = vmatpush1.bf16.msra.mxu0 %v4341
    %4747 = vmatprep.subr.bf16.mxu0 %v4344
    %4748 = vmatpush1.bf16.msra.mxu0 %v4343
    %4749 = vmatprep.subr.bf16.mxu0 %v4346
    %4750 = vmatpush1.bf16.msra.mxu0 %v4345
    %4751 = vmatprep.subr.bf16.mxu0 %v4348
    %4752 = vmatpush1.bf16.msra.mxu0 %v4347
    %4753 = vmatprep.subr.bf16.mxu0 %v4350
    %4754 = vmatpush1.bf16.msra.mxu0 %v4349
    %4755 = vmatprep.subr.bf16.mxu0 %v4352
    %4756 = vmatpush1.bf16.msra.mxu0 %v4351
    %4757 = vmatprep.subr.bf16.mxu0 %v4354
    %4758 = vmatpush1.bf16.msra.mxu0 %v4353
    %4759 = vmatprep.subr.bf16.mxu0 %v4356
    %4760 = vmatpush1.bf16.msra.mxu0 %v4355
    %4761 = vmatprep.subr.bf16.mxu0 %v4358
    %4762 = vmatpush1.bf16.msra.mxu0 %v4357
    %4763 = vmatprep.subr.bf16.mxu0 %v4360
    %4764 = vmatpush1.bf16.msra.mxu0 %v4359
    %4765 = vmatprep.subr.bf16.mxu0 %v4362
    %4766 = vmatpush1.bf16.msra.mxu0 %v4361
    %4767 = vmatprep.subr.bf16.mxu0 %v4364
    %4768 = vmatpush1.bf16.msra.mxu0 %v4363
    %4769 = vmatprep.subr.bf16.mxu0 %v4366
    %4770 = vmatpush1.bf16.msra.mxu0 %v4365
    %4771 = vmatprep.subr.bf16.mxu0 %v4368
    %4772 = vmatpush1.bf16.msra.mxu0 %v4367
    %4773 = vmatprep.subr.bf16.mxu0 %v4370
    %4774 = vmatpush1.bf16.msra.mxu0 %v4369
    %4775 = vmatprep.mubr.bf16.mxu0 %v3330
    %4776 = vmatmul.mubr.bf16.gmra.mrb[0].mxu0 %v3329
    %v4777 = vpop.f32.mrb[0].mxu0
    %v4778 = vadd.f32 %v4737, %v4777
    %v4779 = vpop.f32.mrb[0].mxu0
    %v4780 = vadd.f32 %v4739, %v4779
    %v4781 = vpop.f32.mrb[0].mxu0
    %v4782 = vpop.f32.mrb[0].mxu0
    %4783 = vdwg.mxu0
    %4784 = vmatprep.subr.bf16.mxu0 %v4372
    %4785 = vmatpush1.bf16.msra.mxu0 %v4371
    %4786 = vmatprep.subr.bf16.mxu0 %v4374
    %4787 = vmatpush1.bf16.msra.mxu0 %v4373
    %4788 = vmatprep.subr.bf16.mxu0 %v4376
    %4789 = vmatpush1.bf16.msra.mxu0 %v4375
    %4790 = vmatprep.subr.bf16.mxu0 %v4378
    %4791 = vmatpush1.bf16.msra.mxu0 %v4377
    %4792 = vmatprep.subr.bf16.mxu0 %v4380
    %4793 = vmatpush1.bf16.msra.mxu0 %v4379
    %4794 = vmatprep.subr.bf16.mxu0 %v4382
    %4795 = vmatpush1.bf16.msra.mxu0 %v4381
    %4796 = vmatprep.subr.bf16.mxu0 %v4384
    %4797 = vmatpush1.bf16.msra.mxu0 %v4383
    %4798 = vmatprep.subr.bf16.mxu0 %v4386
    %4799 = vmatpush1.bf16.msra.mxu0 %v4385
    %4800 = vmatprep.subr.bf16.mxu0 %v4388
    %4801 = vmatpush1.bf16.msra.mxu0 %v4387
    %4802 = vmatprep.subr.bf16.mxu0 %v4390
    %4803 = vmatpush1.bf16.msra.mxu0 %v4389
    %4804 = vmatprep.subr.bf16.mxu0 %v4392
    %4805 = vmatpush1.bf16.msra.mxu0 %v4391
    %4806 = vmatprep.subr.bf16.mxu0 %v4394
    %4807 = vmatpush1.bf16.msra.mxu0 %v4393
    %4808 = vmatprep.subr.bf16.mxu0 %v4396
    %4809 = vmatpush1.bf16.msra.mxu0 %v4395
    %4810 = vmatprep.subr.bf16.mxu0 %v4398
    %4811 = vmatpush1.bf16.msra.mxu0 %v4397
    %4812 = vmatprep.subr.bf16.mxu0 %v4400
    %4813 = vmatpush1.bf16.msra.mxu0 %v4399
    %4814 = vmatprep.subr.bf16.mxu0 %v4402
    %4815 = vmatpush1.bf16.msra.mxu0 %v4401
    %4816 = vmatprep.mubr.bf16.mxu0 %v3332
    %4817 = vmatmul.mubr.bf16.gmra.mrb[0].mxu0 %v3331
    %v4818 = vpop.f32.mrb[0].mxu0
    %v4819 = vadd.f32 %v4778, %v4818
    %v4820 = vpop.f32.mrb[0].mxu0
    %v4821 = vadd.f32 %v4780, %v4820
    %v4822 = vpop.f32.mrb[0].mxu0
    %v4823 = vpop.f32.mrb[0].mxu0
    %4824 = vdwg.mxu0
    %4825 = vst [vmem:[#allocation16 + $0x10] sm:$0xff] %v4819
    %4826 = vst [vmem:[#allocation16 + $0x18] sm:$0xff] %v4821
    %s4827 = sshll.u32 %s3334, 4
    %4828 = dma.done %s201, %s4827
    %v4829 = vld [vmem:[%s200] sm:$0xff]
    %v4830 = vld [vmem:[%s200 + $0x8] sm:$0xff]
    %v4831 = vld [vmem:[%s200 + $0x10] sm:$0xff]
    %v4832 = vld [vmem:[%s200 + $0x18] sm:$0xff]
    %v4833 = vld [vmem:[%s200 + $0x20] sm:$0xff]
    %v4834 = vld [vmem:[%s200 + $0x28] sm:$0xff]
    %v4835 = vld [vmem:[%s200 + $0x30] sm:$0xff]
    %v4836 = vld [vmem:[%s200 + $0x38] sm:$0xff]
    %v4837 = vld [vmem:[%s200 + $0x40] sm:$0xff]
    %v4838 = vld [vmem:[%s200 + $0x48] sm:$0xff]
    %v4839 = vld [vmem:[%s200 + $0x50] sm:$0xff]
    %v4840 = vld [vmem:[%s200 + $0x58] sm:$0xff]
    %v4841 = vld [vmem:[%s200 + $0x60] sm:$0xff]
    %v4842 = vld [vmem:[%s200 + $0x68] sm:$0xff]
    %v4843 = vld [vmem:[%s200 + $0x70] sm:$0xff]
    %v4844 = vld [vmem:[%s200 + $0x78] sm:$0xff]
    %v4845 = vld [vmem:[%s200 + $0x80] sm:$0xff]
    %v4846 = vld [vmem:[%s200 + $0x88] sm:$0xff]
    %v4847 = vld [vmem:[%s200 + $0x90] sm:$0xff]
    %v4848 = vld [vmem:[%s200 + $0x98] sm:$0xff]
    %v4849 = vld [vmem:[%s200 + $0xa0] sm:$0xff]
    %v4850 = vld [vmem:[%s200 + $0xa8] sm:$0xff]
    %v4851 = vld [vmem:[%s200 + $0xb0] sm:$0xff]
    %v4852 = vld [vmem:[%s200 + $0xb8] sm:$0xff]
    %v4853 = vld [vmem:[%s200 + $0xc0] sm:$0xff]
    %v4854 = vld [vmem:[%s200 + $0xc8] sm:$0xff]
    %v4855 = vld [vmem:[%s200 + $0xd0] sm:$0xff]
    %v4856 = vld [vmem:[%s200 + $0xd8] sm:$0xff]
    %v4857 = vld [vmem:[%s200 + $0xe0] sm:$0xff]
    %v4858 = vld [vmem:[%s200 + $0xe8] sm:$0xff]
    %v4859 = vld [vmem:[%s200 + $0xf0] sm:$0xff]
    %v4860 = vld [vmem:[%s200 + $0xf8] sm:$0xff]
    %v4861 = vld [vmem:[%s200 + $0x100] sm:$0xff]
    %v4862 = vld [vmem:[%s200 + $0x108] sm:$0xff]
    %v4863 = vld [vmem:[%s200 + $0x110] sm:$0xff]
    %v4864 = vld [vmem:[%s200 + $0x118] sm:$0xff]
    %v4865 = vld [vmem:[%s200 + $0x120] sm:$0xff]
    %v4866 = vld [vmem:[%s200 + $0x128] sm:$0xff]
    %v4867 = vld [vmem:[%s200 + $0x130] sm:$0xff]
    %v4868 = vld [vmem:[%s200 + $0x138] sm:$0xff]
    %v4869 = vld [vmem:[%s200 + $0x140] sm:$0xff]
    %v4870 = vld [vmem:[%s200 + $0x148] sm:$0xff]
    %v4871 = vld [vmem:[%s200 + $0x150] sm:$0xff]
    %v4872 = vld [vmem:[%s200 + $0x158] sm:$0xff]
    %v4873 = vld [vmem:[%s200 + $0x160] sm:$0xff]
    %v4874 = vld [vmem:[%s200 + $0x168] sm:$0xff]
    %v4875 = vld [vmem:[%s200 + $0x170] sm:$0xff]
    %v4876 = vld [vmem:[%s200 + $0x178] sm:$0xff]
    %v4877 = vld [vmem:[%s200 + $0x180] sm:$0xff]
    %v4878 = vld [vmem:[%s200 + $0x188] sm:$0xff]
    %v4879 = vld [vmem:[%s200 + $0x190] sm:$0xff]
    %v4880 = vld [vmem:[%s200 + $0x198] sm:$0xff]
    %v4881 = vld [vmem:[%s200 + $0x1a0] sm:$0xff]
    %v4882 = vld [vmem:[%s200 + $0x1a8] sm:$0xff]
    %v4883 = vld [vmem:[%s200 + $0x1b0] sm:$0xff]
    %v4884 = vld [vmem:[%s200 + $0x1b8] sm:$0xff]
    %v4885 = vld [vmem:[%s200 + $0x1c0] sm:$0xff]
    %v4886 = vld [vmem:[%s200 + $0x1c8] sm:$0xff]
    %v4887 = vld [vmem:[%s200 + $0x1d0] sm:$0xff]
    %v4888 = vld [vmem:[%s200 + $0x1d8] sm:$0xff]
    %v4889 = vld [vmem:[%s200 + $0x1e0] sm:$0xff]
    %v4890 = vld [vmem:[%s200 + $0x1e8] sm:$0xff]
    %v4891 = vld [vmem:[%s200 + $0x1f0] sm:$0xff]
    %v4892 = vld [vmem:[%s200 + $0x1f8] sm:$0xff]
    %v4893 = vld [vmem:[%s200 + $0x200] sm:$0xff]
    %v4894 = vld [vmem:[%s200 + $0x208] sm:$0xff]
    %v4895 = vld [vmem:[%s200 + $0x210] sm:$0xff]
    %v4896 = vld [vmem:[%s200 + $0x218] sm:$0xff]
    %v4897 = vld [vmem:[%s200 + $0x220] sm:$0xff]
    %v4898 = vld [vmem:[%s200 + $0x228] sm:$0xff]
    %v4899 = vld [vmem:[%s200 + $0x230] sm:$0xff]
    %v4900 = vld [vmem:[%s200 + $0x238] sm:$0xff]
    %v4901 = vld [vmem:[%s200 + $0x240] sm:$0xff]
    %v4902 = vld [vmem:[%s200 + $0x248] sm:$0xff]
    %v4903 = vld [vmem:[%s200 + $0x250] sm:$0xff]
    %v4904 = vld [vmem:[%s200 + $0x258] sm:$0xff]
    %v4905 = vld [vmem:[%s200 + $0x260] sm:$0xff]
    %v4906 = vld [vmem:[%s200 + $0x268] sm:$0xff]
    %v4907 = vld [vmem:[%s200 + $0x270] sm:$0xff]
    %v4908 = vld [vmem:[%s200 + $0x278] sm:$0xff]
    %v4909 = vld [vmem:[%s200 + $0x280] sm:$0xff]
    %v4910 = vld [vmem:[%s200 + $0x288] sm:$0xff]
    %v4911 = vld [vmem:[%s200 + $0x290] sm:$0xff]
    %v4912 = vld [vmem:[%s200 + $0x298] sm:$0xff]
    %v4913 = vld [vmem:[%s200 + $0x2a0] sm:$0xff]
    %v4914 = vld [vmem:[%s200 + $0x2a8] sm:$0xff]
    %v4915 = vld [vmem:[%s200 + $0x2b0] sm:$0xff]
    %v4916 = vld [vmem:[%s200 + $0x2b8] sm:$0xff]
    %v4917 = vld [vmem:[%s200 + $0x2c0] sm:$0xff]
    %v4918 = vld [vmem:[%s200 + $0x2c8] sm:$0xff]
    %v4919 = vld [vmem:[%s200 + $0x2d0] sm:$0xff]
    %v4920 = vld [vmem:[%s200 + $0x2d8] sm:$0xff]
    %v4921 = vld [vmem:[%s200 + $0x2e0] sm:$0xff]
    %v4922 = vld [vmem:[%s200 + $0x2e8] sm:$0xff]
    %v4923 = vld [vmem:[%s200 + $0x2f0] sm:$0xff]
    %v4924 = vld [vmem:[%s200 + $0x2f8] sm:$0xff]
    %v4925 = vld [vmem:[%s200 + $0x300] sm:$0xff]
    %v4926 = vld [vmem:[%s200 + $0x308] sm:$0xff]
    %v4927 = vld [vmem:[%s200 + $0x310] sm:$0xff]
    %v4928 = vld [vmem:[%s200 + $0x318] sm:$0xff]
    %v4929 = vld [vmem:[%s200 + $0x320] sm:$0xff]
    %v4930 = vld [vmem:[%s200 + $0x328] sm:$0xff]
    %v4931 = vld [vmem:[%s200 + $0x330] sm:$0xff]
    %v4932 = vld [vmem:[%s200 + $0x338] sm:$0xff]
    %v4933 = vld [vmem:[%s200 + $0x340] sm:$0xff]
    %v4934 = vld [vmem:[%s200 + $0x348] sm:$0xff]
    %v4935 = vld [vmem:[%s200 + $0x350] sm:$0xff]
    %v4936 = vld [vmem:[%s200 + $0x358] sm:$0xff]
    %v4937 = vld [vmem:[%s200 + $0x360] sm:$0xff]
    %v4938 = vld [vmem:[%s200 + $0x368] sm:$0xff]
    %v4939 = vld [vmem:[%s200 + $0x370] sm:$0xff]
    %v4940 = vld [vmem:[%s200 + $0x378] sm:$0xff]
    %v4941 = vld [vmem:[%s200 + $0x380] sm:$0xff]
    %v4942 = vld [vmem:[%s200 + $0x388] sm:$0xff]
    %v4943 = vld [vmem:[%s200 + $0x390] sm:$0xff]
    %v4944 = vld [vmem:[%s200 + $0x398] sm:$0xff]
    %v4945 = vld [vmem:[%s200 + $0x3a0] sm:$0xff]
    %v4946 = vld [vmem:[%s200 + $0x3a8] sm:$0xff]
    %v4947 = vld [vmem:[%s200 + $0x3b0] sm:$0xff]
    %v4948 = vld [vmem:[%s200 + $0x3b8] sm:$0xff]
    %v4949 = vld [vmem:[%s200 + $0x3c0] sm:$0xff]
    %v4950 = vld [vmem:[%s200 + $0x3c8] sm:$0xff]
    %v4951 = vld [vmem:[%s200 + $0x3d0] sm:$0xff]
    %v4952 = vld [vmem:[%s200 + $0x3d8] sm:$0xff]
    %v4953 = vld [vmem:[%s200 + $0x3e0] sm:$0xff]
    %v4954 = vld [vmem:[%s200 + $0x3e8] sm:$0xff]
    %v4955 = vld [vmem:[%s200 + $0x3f0] sm:$0xff]
    %v4956 = vld [vmem:[%s200 + $0x3f8] sm:$0xff]
    %v4957 = vld [vmem:[%s200 + $0x400] sm:$0xff]
    %v4958 = vld [vmem:[%s200 + $0x408] sm:$0xff]
    %v4959 = vld [vmem:[%s200 + $0x410] sm:$0xff]
    %v4960 = vld [vmem:[%s200 + $0x418] sm:$0xff]
    %v4961 = vld [vmem:[%s200 + $0x420] sm:$0xff]
    %v4962 = vld [vmem:[%s200 + $0x428] sm:$0xff]
    %v4963 = vld [vmem:[%s200 + $0x430] sm:$0xff]
    %v4964 = vld [vmem:[%s200 + $0x438] sm:$0xff]
    %v4965 = vld [vmem:[%s200 + $0x440] sm:$0xff]
    %v4966 = vld [vmem:[%s200 + $0x448] sm:$0xff]
    %v4967 = vld [vmem:[%s200 + $0x450] sm:$0xff]
    %v4968 = vld [vmem:[%s200 + $0x458] sm:$0xff]
    %v4969 = vld [vmem:[%s200 + $0x460] sm:$0xff]
    %v4970 = vld [vmem:[%s200 + $0x468] sm:$0xff]
    %v4971 = vld [vmem:[%s200 + $0x470] sm:$0xff]
    %v4972 = vld [vmem:[%s200 + $0x478] sm:$0xff]
    %v4973 = vld [vmem:[%s200 + $0x480] sm:$0xff]
    %v4974 = vld [vmem:[%s200 + $0x488] sm:$0xff]
    %v4975 = vld [vmem:[%s200 + $0x490] sm:$0xff]
    %v4976 = vld [vmem:[%s200 + $0x498] sm:$0xff]
    %v4977 = vld [vmem:[%s200 + $0x4a0] sm:$0xff]
    %v4978 = vld [vmem:[%s200 + $0x4a8] sm:$0xff]
    %v4979 = vld [vmem:[%s200 + $0x4b0] sm:$0xff]
    %v4980 = vld [vmem:[%s200 + $0x4b8] sm:$0xff]
    %v4981 = vld [vmem:[%s200 + $0x4c0] sm:$0xff]
    %v4982 = vld [vmem:[%s200 + $0x4c8] sm:$0xff]
    %v4983 = vld [vmem:[%s200 + $0x4d0] sm:$0xff]
    %v4984 = vld [vmem:[%s200 + $0x4d8] sm:$0xff]
    %v4985 = vld [vmem:[%s200 + $0x4e0] sm:$0xff]
    %v4986 = vld [vmem:[%s200 + $0x4e8] sm:$0xff]
    %v4987 = vld [vmem:[%s200 + $0x4f0] sm:$0xff]
    %v4988 = vld [vmem:[%s200 + $0x4f8] sm:$0xff]
    %v4989 = vld [vmem:[%s200 + $0x500] sm:$0xff]
    %v4990 = vld [vmem:[%s200 + $0x508] sm:$0xff]
    %v4991 = vld [vmem:[%s200 + $0x510] sm:$0xff]
    %v4992 = vld [vmem:[%s200 + $0x518] sm:$0xff]
    %v4993 = vld [vmem:[%s200 + $0x520] sm:$0xff]
    %v4994 = vld [vmem:[%s200 + $0x528] sm:$0xff]
    %v4995 = vld [vmem:[%s200 + $0x530] sm:$0xff]
    %v4996 = vld [vmem:[%s200 + $0x538] sm:$0xff]
    %v4997 = vld [vmem:[%s200 + $0x540] sm:$0xff]
    %v4998 = vld [vmem:[%s200 + $0x548] sm:$0xff]
    %v4999 = vld [vmem:[%s200 + $0x550] sm:$0xff]
    %v5000 = vld [vmem:[%s200 + $0x558] sm:$0xff]
    %v5001 = vld [vmem:[%s200 + $0x560] sm:$0xff]
    %v5002 = vld [vmem:[%s200 + $0x568] sm:$0xff]
    %v5003 = vld [vmem:[%s200 + $0x570] sm:$0xff]
    %v5004 = vld [vmem:[%s200 + $0x578] sm:$0xff]
    %v5005 = vld [vmem:[%s200 + $0x580] sm:$0xff]
    %v5006 = vld [vmem:[%s200 + $0x588] sm:$0xff]
    %v5007 = vld [vmem:[%s200 + $0x590] sm:$0xff]
    %v5008 = vld [vmem:[%s200 + $0x598] sm:$0xff]
    %v5009 = vld [vmem:[%s200 + $0x5a0] sm:$0xff]
    %v5010 = vld [vmem:[%s200 + $0x5a8] sm:$0xff]
    %v5011 = vld [vmem:[%s200 + $0x5b0] sm:$0xff]
    %v5012 = vld [vmem:[%s200 + $0x5b8] sm:$0xff]
    %v5013 = vld [vmem:[%s200 + $0x5c0] sm:$0xff]
    %v5014 = vld [vmem:[%s200 + $0x5c8] sm:$0xff]
    %v5015 = vld [vmem:[%s200 + $0x5d0] sm:$0xff]
    %v5016 = vld [vmem:[%s200 + $0x5d8] sm:$0xff]
    %v5017 = vld [vmem:[%s200 + $0x5e0] sm:$0xff]
    %v5018 = vld [vmem:[%s200 + $0x5e8] sm:$0xff]
    %v5019 = vld [vmem:[%s200 + $0x5f0] sm:$0xff]
    %v5020 = vld [vmem:[%s200 + $0x5f8] sm:$0xff]
    %v5021 = vld [vmem:[%s200 + $0x600] sm:$0xff]
    %v5022 = vld [vmem:[%s200 + $0x608] sm:$0xff]
    %v5023 = vld [vmem:[%s200 + $0x610] sm:$0xff]
    %v5024 = vld [vmem:[%s200 + $0x618] sm:$0xff]
    %v5025 = vld [vmem:[%s200 + $0x620] sm:$0xff]
    %v5026 = vld [vmem:[%s200 + $0x628] sm:$0xff]
    %v5027 = vld [vmem:[%s200 + $0x630] sm:$0xff]
    %v5028 = vld [vmem:[%s200 + $0x638] sm:$0xff]
    %v5029 = vld [vmem:[%s200 + $0x640] sm:$0xff]
    %v5030 = vld [vmem:[%s200 + $0x648] sm:$0xff]
    %v5031 = vld [vmem:[%s200 + $0x650] sm:$0xff]
    %v5032 = vld [vmem:[%s200 + $0x658] sm:$0xff]
    %v5033 = vld [vmem:[%s200 + $0x660] sm:$0xff]
    %v5034 = vld [vmem:[%s200 + $0x668] sm:$0xff]
    %v5035 = vld [vmem:[%s200 + $0x670] sm:$0xff]
    %v5036 = vld [vmem:[%s200 + $0x678] sm:$0xff]
    %v5037 = vld [vmem:[%s200 + $0x680] sm:$0xff]
    %v5038 = vld [vmem:[%s200 + $0x688] sm:$0xff]
    %v5039 = vld [vmem:[%s200 + $0x690] sm:$0xff]
    %v5040 = vld [vmem:[%s200 + $0x698] sm:$0xff]
    %v5041 = vld [vmem:[%s200 + $0x6a0] sm:$0xff]
    %v5042 = vld [vmem:[%s200 + $0x6a8] sm:$0xff]
    %v5043 = vld [vmem:[%s200 + $0x6b0] sm:$0xff]
    %v5044 = vld [vmem:[%s200 + $0x6b8] sm:$0xff]
    %v5045 = vld [vmem:[%s200 + $0x6c0] sm:$0xff]
    %v5046 = vld [vmem:[%s200 + $0x6c8] sm:$0xff]
    %v5047 = vld [vmem:[%s200 + $0x6d0] sm:$0xff]
    %v5048 = vld [vmem:[%s200 + $0x6d8] sm:$0xff]
    %v5049 = vld [vmem:[%s200 + $0x6e0] sm:$0xff]
    %v5050 = vld [vmem:[%s200 + $0x6e8] sm:$0xff]
    %v5051 = vld [vmem:[%s200 + $0x6f0] sm:$0xff]
    %v5052 = vld [vmem:[%s200 + $0x6f8] sm:$0xff]
    %v5053 = vld [vmem:[%s200 + $0x700] sm:$0xff]
    %v5054 = vld [vmem:[%s200 + $0x708] sm:$0xff]
    %v5055 = vld [vmem:[%s200 + $0x710] sm:$0xff]
    %v5056 = vld [vmem:[%s200 + $0x718] sm:$0xff]
    %v5057 = vld [vmem:[%s200 + $0x720] sm:$0xff]
    %v5058 = vld [vmem:[%s200 + $0x728] sm:$0xff]
    %v5059 = vld [vmem:[%s200 + $0x730] sm:$0xff]
    %v5060 = vld [vmem:[%s200 + $0x738] sm:$0xff]
    %v5061 = vld [vmem:[%s200 + $0x740] sm:$0xff]
    %v5062 = vld [vmem:[%s200 + $0x748] sm:$0xff]
    %v5063 = vld [vmem:[%s200 + $0x750] sm:$0xff]
    %v5064 = vld [vmem:[%s200 + $0x758] sm:$0xff]
    %v5065 = vld [vmem:[%s200 + $0x760] sm:$0xff]
    %v5066 = vld [vmem:[%s200 + $0x768] sm:$0xff]
    %v5067 = vld [vmem:[%s200 + $0x770] sm:$0xff]
    %v5068 = vld [vmem:[%s200 + $0x778] sm:$0xff]
    %v5069 = vld [vmem:[%s200 + $0x780] sm:$0xff]
    %v5070 = vld [vmem:[%s200 + $0x788] sm:$0xff]
    %v5071 = vld [vmem:[%s200 + $0x790] sm:$0xff]
    %v5072 = vld [vmem:[%s200 + $0x798] sm:$0xff]
    %v5073 = vld [vmem:[%s200 + $0x7a0] sm:$0xff]
    %v5074 = vld [vmem:[%s200 + $0x7a8] sm:$0xff]
    %v5075 = vld [vmem:[%s200 + $0x7b0] sm:$0xff]
    %v5076 = vld [vmem:[%s200 + $0x7b8] sm:$0xff]
    %v5077 = vld [vmem:[%s200 + $0x7c0] sm:$0xff]
    %v5078 = vld [vmem:[%s200 + $0x7c8] sm:$0xff]
    %v5079 = vld [vmem:[%s200 + $0x7d0] sm:$0xff]
    %v5080 = vld [vmem:[%s200 + $0x7d8] sm:$0xff]
    %v5081 = vld [vmem:[%s200 + $0x7e0] sm:$0xff]
    %v5082 = vld [vmem:[%s200 + $0x7e8] sm:$0xff]
    %v5083 = vld [vmem:[%s200 + $0x7f0] sm:$0xff]
    %v5084 = vld [vmem:[%s200 + $0x7f8] sm:$0xff]
    %v5085 = vld [vmem:[%s200 + $0x800] sm:$0xff]
    %v5086 = vld [vmem:[%s200 + $0x808] sm:$0xff]
    %v5087 = vld [vmem:[%s200 + $0x810] sm:$0xff]
    %v5088 = vld [vmem:[%s200 + $0x818] sm:$0xff]
    %v5089 = vld [vmem:[%s200 + $0x820] sm:$0xff]
    %v5090 = vld [vmem:[%s200 + $0x828] sm:$0xff]
    %v5091 = vld [vmem:[%s200 + $0x830] sm:$0xff]
    %v5092 = vld [vmem:[%s200 + $0x838] sm:$0xff]
    %v5093 = vld [vmem:[%s200 + $0x840] sm:$0xff]
    %v5094 = vld [vmem:[%s200 + $0x848] sm:$0xff]
    %v5095 = vld [vmem:[%s200 + $0x850] sm:$0xff]
    %v5096 = vld [vmem:[%s200 + $0x858] sm:$0xff]
    %v5097 = vld [vmem:[%s200 + $0x860] sm:$0xff]
    %v5098 = vld [vmem:[%s200 + $0x868] sm:$0xff]
    %v5099 = vld [vmem:[%s200 + $0x870] sm:$0xff]
    %v5100 = vld [vmem:[%s200 + $0x878] sm:$0xff]
    %v5101 = vld [vmem:[%s200 + $0x880] sm:$0xff]
    %v5102 = vld [vmem:[%s200 + $0x888] sm:$0xff]
    %v5103 = vld [vmem:[%s200 + $0x890] sm:$0xff]
    %v5104 = vld [vmem:[%s200 + $0x898] sm:$0xff]
    %v5105 = vld [vmem:[%s200 + $0x8a0] sm:$0xff]
    %v5106 = vld [vmem:[%s200 + $0x8a8] sm:$0xff]
    %v5107 = vld [vmem:[%s200 + $0x8b0] sm:$0xff]
    %v5108 = vld [vmem:[%s200 + $0x8b8] sm:$0xff]
    %v5109 = vld [vmem:[%s200 + $0x8c0] sm:$0xff]
    %v5110 = vld [vmem:[%s200 + $0x8c8] sm:$0xff]
    %v5111 = vld [vmem:[%s200 + $0x8d0] sm:$0xff]
    %v5112 = vld [vmem:[%s200 + $0x8d8] sm:$0xff]
    %v5113 = vld [vmem:[%s200 + $0x8e0] sm:$0xff]
    %v5114 = vld [vmem:[%s200 + $0x8e8] sm:$0xff]
    %v5115 = vld [vmem:[%s200 + $0x8f0] sm:$0xff]
    %v5116 = vld [vmem:[%s200 + $0x8f8] sm:$0xff]
    %v5117 = vld [vmem:[%s200 + $0x900] sm:$0xff]
    %v5118 = vld [vmem:[%s200 + $0x908] sm:$0xff]
    %v5119 = vld [vmem:[%s200 + $0x910] sm:$0xff]
    %v5120 = vld [vmem:[%s200 + $0x918] sm:$0xff]
    %v5121 = vld [vmem:[%s200 + $0x920] sm:$0xff]
    %v5122 = vld [vmem:[%s200 + $0x928] sm:$0xff]
    %v5123 = vld [vmem:[%s200 + $0x930] sm:$0xff]
    %v5124 = vld [vmem:[%s200 + $0x938] sm:$0xff]
    %v5125 = vld [vmem:[%s200 + $0x940] sm:$0xff]
    %v5126 = vld [vmem:[%s200 + $0x948] sm:$0xff]
    %v5127 = vld [vmem:[%s200 + $0x950] sm:$0xff]
    %v5128 = vld [vmem:[%s200 + $0x958] sm:$0xff]
    %v5129 = vld [vmem:[%s200 + $0x960] sm:$0xff]
    %v5130 = vld [vmem:[%s200 + $0x968] sm:$0xff]
    %v5131 = vld [vmem:[%s200 + $0x970] sm:$0xff]
    %v5132 = vld [vmem:[%s200 + $0x978] sm:$0xff]
    %v5133 = vld [vmem:[%s200 + $0x980] sm:$0xff]
    %v5134 = vld [vmem:[%s200 + $0x988] sm:$0xff]
    %v5135 = vld [vmem:[%s200 + $0x990] sm:$0xff]
    %v5136 = vld [vmem:[%s200 + $0x998] sm:$0xff]
    %v5137 = vld [vmem:[%s200 + $0x9a0] sm:$0xff]
    %v5138 = vld [vmem:[%s200 + $0x9a8] sm:$0xff]
    %v5139 = vld [vmem:[%s200 + $0x9b0] sm:$0xff]
    %v5140 = vld [vmem:[%s200 + $0x9b8] sm:$0xff]
    %v5141 = vld [vmem:[%s200 + $0x9c0] sm:$0xff]
    %v5142 = vld [vmem:[%s200 + $0x9c8] sm:$0xff]
    %v5143 = vld [vmem:[%s200 + $0x9d0] sm:$0xff]
    %v5144 = vld [vmem:[%s200 + $0x9d8] sm:$0xff]
    %v5145 = vld [vmem:[%s200 + $0x9e0] sm:$0xff]
    %v5146 = vld [vmem:[%s200 + $0x9e8] sm:$0xff]
    %v5147 = vld [vmem:[%s200 + $0x9f0] sm:$0xff]
    %v5148 = vld [vmem:[%s200 + $0x9f8] sm:$0xff]
    %v5149 = vld [vmem:[#allocation15 + $0x4] sm:$0x3]
    %v5151 = vlaneseq
    %v5152 = vshrl.u32 %v5151, 7
    %v5153 = vsub.s32 0, %v5152
    %v5154 = vrot.slane %v5149, %v5153
    %v5155 = vlaneseq
    %v5156 = vshrl.u32 %v5155, 7
    %v5157 = vsub.s32 1, %v5156
    %v5158 = vrot.slane %v5149, %v5157
    %5161 = vmatprep.subr.bf16.mxu0 %v4830
    %5162 = vmatpush1.bf16.msra.mxu0 %v4829
    %5163 = vmatprep.subr.bf16.mxu0 %v4832
    %5164 = vmatpush1.bf16.msra.mxu0 %v4831
    %5165 = vmatprep.subr.bf16.mxu0 %v4834
    %5166 = vmatpush1.bf16.msra.mxu0 %v4833
    %5167 = vmatprep.subr.bf16.mxu0 %v4836
    %5168 = vmatpush1.bf16.msra.mxu0 %v4835
    %5169 = vmatprep.subr.bf16.mxu0 %v4838
    %5170 = vmatpush1.bf16.msra.mxu0 %v4837
    %5171 = vmatprep.subr.bf16.mxu0 %v4840
    %5172 = vmatpush1.bf16.msra.mxu0 %v4839
    %5173 = vmatprep.subr.bf16.mxu0 %v4842
    %5174 = vmatpush1.bf16.msra.mxu0 %v4841
    %5175 = vmatprep.subr.bf16.mxu0 %v4844
    %5176 = vmatpush1.bf16.msra.mxu0 %v4843
    %5177 = vmatprep.subr.bf16.mxu0 %v4846
    %5178 = vmatpush1.bf16.msra.mxu0 %v4845
    %5179 = vmatprep.subr.bf16.mxu0 %v4848
    %5180 = vmatpush1.bf16.msra.mxu0 %v4847
    %5181 = vmatprep.subr.bf16.mxu0 %v4850
    %5182 = vmatpush1.bf16.msra.mxu0 %v4849
    %5183 = vmatprep.subr.bf16.mxu0 %v4852
    %5184 = vmatpush1.bf16.msra.mxu0 %v4851
    %5185 = vmatprep.subr.bf16.mxu0 %v4854
    %5186 = vmatpush1.bf16.msra.mxu0 %v4853
    %5187 = vmatprep.subr.bf16.mxu0 %v4856
    %5188 = vmatpush1.bf16.msra.mxu0 %v4855
    %5189 = vmatprep.subr.bf16.mxu0 %v4858
    %5190 = vmatpush1.bf16.msra.mxu0 %v4857
    %5191 = vmatprep.subr.bf16.mxu0 %v4860
    %5192 = vmatpush1.bf16.msra.mxu0 %v4859
    %5193 = vmatprep.mubr.bf16.mxu0 %v3314
    %5194 = vmatmul.mubr.bf16.gmra.mrb[0].mxu0 %v3313
    %v5195 = vpop.f32.mrb[0].mxu0
    %v5196 = vadd.f32 %v5154, %v5195
    %v5197 = vpop.f32.mrb[0].mxu0
    %v5198 = vadd.f32 %v5158, %v5197
    %v5199 = vpop.f32.mrb[0].mxu0
    %v5200 = vpop.f32.mrb[0].mxu0
    %5201 = vdwg.mxu0
    %5202 = vmatprep.subr.bf16.mxu0 %v4862
    %5203 = vmatpush1.bf16.msra.mxu0 %v4861
    %5204 = vmatprep.subr.bf16.mxu0 %v4864
    %5205 = vmatpush1.bf16.msra.mxu0 %v4863
    %5206 = vmatprep.subr.bf16.mxu0 %v4866
    %5207 = vmatpush1.bf16.msra.mxu0 %v4865
    %5208 = vmatprep.subr.bf16.mxu0 %v4868
    %5209 = vmatpush1.bf16.msra.mxu0 %v4867
    %5210 = vmatprep.subr.bf16.mxu0 %v4870
    %5211 = vmatpush1.bf16.msra.mxu0 %v4869
    %5212 = vmatprep.subr.bf16.mxu0 %v4872
    %5213 = vmatpush1.bf16.msra.mxu0 %v4871
    %5214 = vmatprep.subr.bf16.mxu0 %v4874
    %5215 = vmatpush1.bf16.msra.mxu0 %v4873
    %5216 = vmatprep.subr.bf16.mxu0 %v4876
    %5217 = vmatpush1.bf16.msra.mxu0 %v4875
    %5218 = vmatprep.subr.bf16.mxu0 %v4878
    %5219 = vmatpush1.bf16.msra.mxu0 %v4877
    %5220 = vmatprep.subr.bf16.mxu0 %v4880
    %5221 = vmatpush1.bf16.msra.mxu0 %v4879
    %5222 = vmatprep.subr.bf16.mxu0 %v4882
    %5223 = vmatpush1.bf16.msra.mxu0 %v4881
    %5224 = vmatprep.subr.bf16.mxu0 %v4884
    %5225 = vmatpush1.bf16.msra.mxu0 %v4883
    %5226 = vmatprep.subr.bf16.mxu0 %v4886
    %5227 = vmatpush1.bf16.msra.mxu0 %v4885
    %5228 = vmatprep.subr.bf16.mxu0 %v4888
    %5229 = vmatpush1.bf16.msra.mxu0 %v4887
    %5230 = vmatprep.subr.bf16.mxu0 %v4890
    %5231 = vmatpush1.bf16.msra.mxu0 %v4889
    %5232 = vmatprep.subr.bf16.mxu0 %v4892
    %5233 = vmatpush1.bf16.msra.mxu0 %v4891
    %5234 = vmatprep.mubr.bf16.mxu0 %v3316
    %5235 = vmatmul.mubr.bf16.gmra.mrb[0].mxu0 %v3315
    %v5236 = vpop.f32.mrb[0].mxu0
    %v5237 = vadd.f32 %v5196, %v5236
    %v5238 = vpop.f32.mrb[0].mxu0
    %v5239 = vadd.f32 %v5198, %v5238
    %v5240 = vpop.f32.mrb[0].mxu0
    %v5241 = vpop.f32.mrb[0].mxu0
    %5242 = vdwg.mxu0
    %5243 = vmatprep.subr.bf16.mxu0 %v4894
    %5244 = vmatpush1.bf16.msra.mxu0 %v4893
    %5245 = vmatprep.subr.bf16.mxu0 %v4896
    %5246 = vmatpush1.bf16.msra.mxu0 %v4895
    %5247 = vmatprep.subr.bf16.mxu0 %v4898
    %5248 = vmatpush1.bf16.msra.mxu0 %v4897
    %5249 = vmatprep.subr.bf16.mxu0 %v4900
    %5250 = vmatpush1.bf16.msra.mxu0 %v4899
    %5251 = vmatprep.subr.bf16.mxu0 %v4902
    %5252 = vmatpush1.bf16.msra.mxu0 %v4901
    %5253 = vmatprep.subr.bf16.mxu0 %v4904
    %5254 = vmatpush1.bf16.msra.mxu0 %v4903
    %5255 = vmatprep.subr.bf16.mxu0 %v4906
    %5256 = vmatpush1.bf16.msra.mxu0 %v4905
    %5257 = vmatprep.subr.bf16.mxu0 %v4908
    %5258 = vmatpush1.bf16.msra.mxu0 %v4907
    %5259 = vmatprep.subr.bf16.mxu0 %v4910
    %5260 = vmatpush1.bf16.msra.mxu0 %v4909
    %5261 = vmatprep.subr.bf16.mxu0 %v4912
    %5262 = vmatpush1.bf16.msra.mxu0 %v4911
    %5263 = vmatprep.subr.bf16.mxu0 %v4914
    %5264 = vmatpush1.bf16.msra.mxu0 %v4913
    %5265 = vmatprep.subr.bf16.mxu0 %v4916
    %5266 = vmatpush1.bf16.msra.mxu0 %v4915
    %5267 = vmatprep.subr.bf16.mxu0 %v4918
    %5268 = vmatpush1.bf16.msra.mxu0 %v4917
    %5269 = vmatprep.subr.bf16.mxu0 %v4920
    %5270 = vmatpush1.bf16.msra.mxu0 %v4919
    %5271 = vmatprep.subr.bf16.mxu0 %v4922
    %5272 = vmatpush1.bf16.msra.mxu0 %v4921
    %5273 = vmatprep.subr.bf16.mxu0 %v4924
    %5274 = vmatpush1.bf16.msra.mxu0 %v4923
    %5275 = vmatprep.mubr.bf16.mxu0 %v3318
    %5276 = vmatmul.mubr.bf16.gmra.mrb[0].mxu0 %v3317
    %v5277 = vpop.f32.mrb[0].mxu0
    %v5278 = vadd.f32 %v5237, %v5277
    %v5279 = vpop.f32.mrb[0].mxu0
    %v5280 = vadd.f32 %v5239, %v5279
    %v5281 = vpop.f32.mrb[0].mxu0
    %v5282 = vpop.f32.mrb[0].mxu0
    %5283 = vdwg.mxu0
    %5284 = vmatprep.subr.bf16.mxu0 %v4926
    %5285 = vmatpush1.bf16.msra.mxu0 %v4925
    %5286 = vmatprep.subr.bf16.mxu0 %v4928
    %5287 = vmatpush1.bf16.msra.mxu0 %v4927
    %5288 = vmatprep.subr.bf16.mxu0 %v4930
    %5289 = vmatpush1.bf16.msra.mxu0 %v4929
    %5290 = vmatprep.subr.bf16.mxu0 %v4932
    %5291 = vmatpush1.bf16.msra.mxu0 %v4931
    %5292 = vmatprep.subr.bf16.mxu0 %v4934
    %5293 = vmatpush1.bf16.msra.mxu0 %v4933
    %5294 = vmatprep.subr.bf16.mxu0 %v4936
    %5295 = vmatpush1.bf16.msra.mxu0 %v4935
    %5296 = vmatprep.subr.bf16.mxu0 %v4938
    %5297 = vmatpush1.bf16.msra.mxu0 %v4937
    %5298 = vmatprep.subr.bf16.mxu0 %v4940
    %5299 = vmatpush1.bf16.msra.mxu0 %v4939
    %5300 = vmatprep.subr.bf16.mxu0 %v4942
    %5301 = vmatpush1.bf16.msra.mxu0 %v4941
    %5302 = vmatprep.subr.bf16.mxu0 %v4944
    %5303 = vmatpush1.bf16.msra.mxu0 %v4943
    %5304 = vmatprep.subr.bf16.mxu0 %v4946
    %5305 = vmatpush1.bf16.msra.mxu0 %v4945
    %5306 = vmatprep.subr.bf16.mxu0 %v4948
    %5307 = vmatpush1.bf16.msra.mxu0 %v4947
    %5308 = vmatprep.subr.bf16.mxu0 %v4950
    %5309 = vmatpush1.bf16.msra.mxu0 %v4949
    %5310 = vmatprep.subr.bf16.mxu0 %v4952
    %5311 = vmatpush1.bf16.msra.mxu0 %v4951
    %5312 = vmatprep.subr.bf16.mxu0 %v4954
    %5313 = vmatpush1.bf16.msra.mxu0 %v4953
    %5314 = vmatprep.subr.bf16.mxu0 %v4956
    %5315 = vmatpush1.bf16.msra.mxu0 %v4955
    %5316 = vmatprep.mubr.bf16.mxu0 %v3320
    %5317 = vmatmul.mubr.bf16.gmra.mrb[0].mxu0 %v3319
    %v5318 = vpop.f32.mrb[0].mxu0
    %v5319 = vadd.f32 %v5278, %v5318
    %v5320 = vpop.f32.mrb[0].mxu0
    %v5321 = vadd.f32 %v5280, %v5320
    %v5322 = vpop.f32.mrb[0].mxu0
    %v5323 = vpop.f32.mrb[0].mxu0
    %5324 = vdwg.mxu0
    %5325 = vmatprep.subr.bf16.mxu0 %v4958
    %5326 = vmatpush1.bf16.msra.mxu0 %v4957
    %5327 = vmatprep.subr.bf16.mxu0 %v4960
    %5328 = vmatpush1.bf16.msra.mxu0 %v4959
    %5329 = vmatprep.subr.bf16.mxu0 %v4962
    %5330 = vmatpush1.bf16.msra.mxu0 %v4961
    %5331 = vmatprep.subr.bf16.mxu0 %v4964
    %5332 = vmatpush1.bf16.msra.mxu0 %v4963
    %5333 = vmatprep.subr.bf16.mxu0 %v4966
    %5334 = vmatpush1.bf16.msra.mxu0 %v4965
    %5335 = vmatprep.subr.bf16.mxu0 %v4968
    %5336 = vmatpush1.bf16.msra.mxu0 %v4967
    %5337 = vmatprep.subr.bf16.mxu0 %v4970
    %5338 = vmatpush1.bf16.msra.mxu0 %v4969
    %5339 = vmatprep.subr.bf16.mxu0 %v4972
    %5340 = vmatpush1.bf16.msra.mxu0 %v4971
    %5341 = vmatprep.subr.bf16.mxu0 %v4974
    %5342 = vmatpush1.bf16.msra.mxu0 %v4973
    %5343 = vmatprep.subr.bf16.mxu0 %v4976
    %5344 = vmatpush1.bf16.msra.mxu0 %v4975
    %5345 = vmatprep.subr.bf16.mxu0 %v4978
    %5346 = vmatpush1.bf16.msra.mxu0 %v4977
    %5347 = vmatprep.subr.bf16.mxu0 %v4980
    %5348 = vmatpush1.bf16.msra.mxu0 %v4979
    %5349 = vmatprep.subr.bf16.mxu0 %v4982
    %5350 = vmatpush1.bf16.msra.mxu0 %v4981
    %5351 = vmatprep.subr.bf16.mxu0 %v4984
    %5352 = vmatpush1.bf16.msra.mxu0 %v4983
    %5353 = vmatprep.subr.bf16.mxu0 %v4986
    %5354 = vmatpush1.bf16.msra.mxu0 %v4985
    %5355 = vmatprep.subr.bf16.mxu0 %v4988
    %5356 = vmatpush1.bf16.msra.mxu0 %v4987
    %5357 = vmatprep.mubr.bf16.mxu0 %v3322
    %5358 = vmatmul.mubr.bf16.gmra.mrb[0].mxu0 %v3321
    %v5359 = vpop.f32.mrb[0].mxu0
    %v5360 = vadd.f32 %v5319, %v5359
    %v5361 = vpop.f32.mrb[0].mxu0
    %v5362 = vadd.f32 %v5321, %v5361
    %v5363 = vpop.f32.mrb[0].mxu0
    %v5364 = vpop.f32.mrb[0].mxu0
    %5365 = vdwg.mxu0
    %5366 = vmatprep.subr.bf16.mxu0 %v4990
    %5367 = vmatpush1.bf16.msra.mxu0 %v4989
    %5368 = vmatprep.subr.bf16.mxu0 %v4992
    %5369 = vmatpush1.bf16.msra.mxu0 %v4991
    %5370 = vmatprep.subr.bf16.mxu0 %v4994
    %5371 = vmatpush1.bf16.msra.mxu0 %v4993
    %5372 = vmatprep.subr.bf16.mxu0 %v4996
    %5373 = vmatpush1.bf16.msra.mxu0 %v4995
    %5374 = vmatprep.subr.bf16.mxu0 %v4998
    %5375 = vmatpush1.bf16.msra.mxu0 %v4997
    %5376 = vmatprep.subr.bf16.mxu0 %v5000
    %5377 = vmatpush1.bf16.msra.mxu0 %v4999
    %5378 = vmatprep.subr.bf16.mxu0 %v5002
    %5379 = vmatpush1.bf16.msra.mxu0 %v5001
    %5380 = vmatprep.subr.bf16.mxu0 %v5004
    %5381 = vmatpush1.bf16.msra.mxu0 %v5003
    %5382 = vmatprep.subr.bf16.mxu0 %v5006
    %5383 = vmatpush1.bf16.msra.mxu0 %v5005
    %5384 = vmatprep.subr.bf16.mxu0 %v5008
    %5385 = vmatpush1.bf16.msra.mxu0 %v5007
    %5386 = vmatprep.subr.bf16.mxu0 %v5010
    %5387 = vmatpush1.bf16.msra.mxu0 %v5009
    %5388 = vmatprep.subr.bf16.mxu0 %v5012
    %5389 = vmatpush1.bf16.msra.mxu0 %v5011
    %5390 = vmatprep.subr.bf16.mxu0 %v5014
    %5391 = vmatpush1.bf16.msra.mxu0 %v5013
    %5392 = vmatprep.subr.bf16.mxu0 %v5016
    %5393 = vmatpush1.bf16.msra.mxu0 %v5015
    %5394 = vmatprep.subr.bf16.mxu0 %v5018
    %5395 = vmatpush1.bf16.msra.mxu0 %v5017
    %5396 = vmatprep.subr.bf16.mxu0 %v5020
    %5397 = vmatpush1.bf16.msra.mxu0 %v5019
    %5398 = vmatprep.mubr.bf16.mxu0 %v3324
    %5399 = vmatmul.mubr.bf16.gmra.mrb[0].mxu0 %v3323
    %v5400 = vpop.f32.mrb[0].mxu0
    %v5401 = vadd.f32 %v5360, %v5400
    %v5402 = vpop.f32.mrb[0].mxu0
    %v5403 = vadd.f32 %v5362, %v5402
    %v5404 = vpop.f32.mrb[0].mxu0
    %v5405 = vpop.f32.mrb[0].mxu0
    %5406 = vdwg.mxu0
    %5407 = vmatprep.subr.bf16.mxu0 %v5022
    %5408 = vmatpush1.bf16.msra.mxu0 %v5021
    %5409 = vmatprep.subr.bf16.mxu0 %v5024
    %5410 = vmatpush1.bf16.msra.mxu0 %v5023
    %5411 = vmatprep.subr.bf16.mxu0 %v5026
    %5412 = vmatpush1.bf16.msra.mxu0 %v5025
    %5413 = vmatprep.subr.bf16.mxu0 %v5028
    %5414 = vmatpush1.bf16.msra.mxu0 %v5027
    %5415 = vmatprep.subr.bf16.mxu0 %v5030
    %5416 = vmatpush1.bf16.msra.mxu0 %v5029
    %5417 = vmatprep.subr.bf16.mxu0 %v5032
    %5418 = vmatpush1.bf16.msra.mxu0 %v5031
    %5419 = vmatprep.subr.bf16.mxu0 %v5034
    %5420 = vmatpush1.bf16.msra.mxu0 %v5033
    %5421 = vmatprep.subr.bf16.mxu0 %v5036
    %5422 = vmatpush1.bf16.msra.mxu0 %v5035
    %5423 = vmatprep.subr.bf16.mxu0 %v5038
    %5424 = vmatpush1.bf16.msra.mxu0 %v5037
    %5425 = vmatprep.subr.bf16.mxu0 %v5040
    %5426 = vmatpush1.bf16.msra.mxu0 %v5039
    %5427 = vmatprep.subr.bf16.mxu0 %v5042
    %5428 = vmatpush1.bf16.msra.mxu0 %v5041
    %5429 = vmatprep.subr.bf16.mxu0 %v5044
    %5430 = vmatpush1.bf16.msra.mxu0 %v5043
    %5431 = vmatprep.subr.bf16.mxu0 %v5046
    %5432 = vmatpush1.bf16.msra.mxu0 %v5045
    %5433 = vmatprep.subr.bf16.mxu0 %v5048
    %5434 = vmatpush1.bf16.msra.mxu0 %v5047
    %5435 = vmatprep.subr.bf16.mxu0 %v5050
    %5436 = vmatpush1.bf16.msra.mxu0 %v5049
    %5437 = vmatprep.subr.bf16.mxu0 %v5052
    %5438 = vmatpush1.bf16.msra.mxu0 %v5051
    %5439 = vmatprep.mubr.bf16.mxu0 %v3326
    %5440 = vmatmul.mubr.bf16.gmra.mrb[0].mxu0 %v3325
    %v5441 = vpop.f32.mrb[0].mxu0
    %v5442 = vadd.f32 %v5401, %v5441
    %v5443 = vpop.f32.mrb[0].mxu0
    %v5444 = vadd.f32 %v5403, %v5443
    %v5445 = vpop.f32.mrb[0].mxu0
    %v5446 = vpop.f32.mrb[0].mxu0
    %5447 = vdwg.mxu0
    %5448 = vmatprep.subr.bf16.mxu0 %v5054
    %5449 = vmatpush1.bf16.msra.mxu0 %v5053
    %5450 = vmatprep.subr.bf16.mxu0 %v5056
    %5451 = vmatpush1.bf16.msra.mxu0 %v5055
    %5452 = vmatprep.subr.bf16.mxu0 %v5058
    %5453 = vmatpush1.bf16.msra.mxu0 %v5057
    %5454 = vmatprep.subr.bf16.mxu0 %v5060
    %5455 = vmatpush1.bf16.msra.mxu0 %v5059
    %5456 = vmatprep.subr.bf16.mxu0 %v5062
    %5457 = vmatpush1.bf16.msra.mxu0 %v5061
    %5458 = vmatprep.subr.bf16.mxu0 %v5064
    %5459 = vmatpush1.bf16.msra.mxu0 %v5063
    %5460 = vmatprep.subr.bf16.mxu0 %v5066
    %5461 = vmatpush1.bf16.msra.mxu0 %v5065
    %5462 = vmatprep.subr.bf16.mxu0 %v5068
    %5463 = vmatpush1.bf16.msra.mxu0 %v5067
    %5464 = vmatprep.subr.bf16.mxu0 %v5070
    %5465 = vmatpush1.bf16.msra.mxu0 %v5069
    %5466 = vmatprep.subr.bf16.mxu0 %v5072
    %5467 = vmatpush1.bf16.msra.mxu0 %v5071
    %5468 = vmatprep.subr.bf16.mxu0 %v5074
    %5469 = vmatpush1.bf16.msra.mxu0 %v5073
    %5470 = vmatprep.subr.bf16.mxu0 %v5076
    %5471 = vmatpush1.bf16.msra.mxu0 %v5075
    %5472 = vmatprep.subr.bf16.mxu0 %v5078
    %5473 = vmatpush1.bf16.msra.mxu0 %v5077
    %5474 = vmatprep.subr.bf16.mxu0 %v5080
    %5475 = vmatpush1.bf16.msra.mxu0 %v5079
    %5476 = vmatprep.subr.bf16.mxu0 %v5082
    %5477 = vmatpush1.bf16.msra.mxu0 %v5081
    %5478 = vmatprep.subr.bf16.mxu0 %v5084
    %5479 = vmatpush1.bf16.msra.mxu0 %v5083
    %5480 = vmatprep.mubr.bf16.mxu0 %v3328
    %5481 = vmatmul.mubr.bf16.gmra.mrb[0].mxu0 %v3327
    %v5482 = vpop.f32.mrb[0].mxu0
    %v5483 = vadd.f32 %v5442, %v5482
    %v5484 = vpop.f32.mrb[0].mxu0
    %v5485 = vadd.f32 %v5444, %v5484
    %v5486 = vpop.f32.mrb[0].mxu0
    %v5487 = vpop.f32.mrb[0].mxu0
    %5488 = vdwg.mxu0
    %5489 = vmatprep.subr.bf16.mxu0 %v5086
    %5490 = vmatpush1.bf16.msra.mxu0 %v5085
    %5491 = vmatprep.subr.bf16.mxu0 %v5088
    %5492 = vmatpush1.bf16.msra.mxu0 %v5087
    %5493 = vmatprep.subr.bf16.mxu0 %v5090
    %5494 = vmatpush1.bf16.msra.mxu0 %v5089
    %5495 = vmatprep.subr.bf16.mxu0 %v5092
    %5496 = vmatpush1.bf16.msra.mxu0 %v5091
    %5497 = vmatprep.subr.bf16.mxu0 %v5094
    %5498 = vmatpush1.bf16.msra.mxu0 %v5093
    %5499 = vmatprep.subr.bf16.mxu0 %v5096
    %5500 = vmatpush1.bf16.msra.mxu0 %v5095
    %5501 = vmatprep.subr.bf16.mxu0 %v5098
    %5502 = vmatpush1.bf16.msra.mxu0 %v5097
    %5503 = vmatprep.subr.bf16.mxu0 %v5100
    %5504 = vmatpush1.bf16.msra.mxu0 %v5099
    %5505 = vmatprep.subr.bf16.mxu0 %v5102
    %5506 = vmatpush1.bf16.msra.mxu0 %v5101
    %5507 = vmatprep.subr.bf16.mxu0 %v5104
    %5508 = vmatpush1.bf16.msra.mxu0 %v5103
    %5509 = vmatprep.subr.bf16.mxu0 %v5106
    %5510 = vmatpush1.bf16.msra.mxu0 %v5105
    %5511 = vmatprep.subr.bf16.mxu0 %v5108
    %5512 = vmatpush1.bf16.msra.mxu0 %v5107
    %5513 = vmatprep.subr.bf16.mxu0 %v5110
    %5514 = vmatpush1.bf16.msra.mxu0 %v5109
    %5515 = vmatprep.subr.bf16.mxu0 %v5112
    %5516 = vmatpush1.bf16.msra.mxu0 %v5111
    %5517 = vmatprep.subr.bf16.mxu0 %v5114
    %5518 = vmatpush1.bf16.msra.mxu0 %v5113
    %5519 = vmatprep.subr.bf16.mxu0 %v5116
    %5520 = vmatpush1.bf16.msra.mxu0 %v5115
    %5521 = vmatprep.mubr.bf16.mxu0 %v3330
    %5522 = vmatmul.mubr.bf16.gmra.mrb[0].mxu0 %v3329
    %v5523 = vpop.f32.mrb[0].mxu0
    %v5524 = vadd.f32 %v5483, %v5523
    %v5525 = vpop.f32.mrb[0].mxu0
    %v5526 = vadd.f32 %v5485, %v5525
    %v5527 = vpop.f32.mrb[0].mxu0
    %v5528 = vpop.f32.mrb[0].mxu0
    %5529 = vdwg.mxu0
    %5530 = vmatprep.subr.bf16.mxu0 %v5118
    %5531 = vmatpush1.bf16.msra.mxu0 %v5117
    %5532 = vmatprep.subr.bf16.mxu0 %v5120
    %5533 = vmatpush1.bf16.msra.mxu0 %v5119
    %5534 = vmatprep.subr.bf16.mxu0 %v5122
    %5535 = vmatpush1.bf16.msra.mxu0 %v5121
    %5536 = vmatprep.subr.bf16.mxu0 %v5124
    %5537 = vmatpush1.bf16.msra.mxu0 %v5123
    %5538 = vmatprep.subr.bf16.mxu0 %v5126
    %5539 = vmatpush1.bf16.msra.mxu0 %v5125
    %5540 = vmatprep.subr.bf16.mxu0 %v5128
    %5541 = vmatpush1.bf16.msra.mxu0 %v5127
    %5542 = vmatprep.subr.bf16.mxu0 %v5130
    %5543 = vmatpush1.bf16.msra.mxu0 %v5129
    %5544 = vmatprep.subr.bf16.mxu0 %v5132
    %5545 = vmatpush1.bf16.msra.mxu0 %v5131
    %5546 = vmatprep.subr.bf16.mxu0 %v5134
    %5547 = vmatpush1.bf16.msra.mxu0 %v5133
    %5548 = vmatprep.subr.bf16.mxu0 %v5136
    %5549 = vmatpush1.bf16.msra.mxu0 %v5135
    %5550 = vmatprep.subr.bf16.mxu0 %v5138
    %5551 = vmatpush1.bf16.msra.mxu0 %v5137
    %5552 = vmatprep.subr.bf16.mxu0 %v5140
    %5553 = vmatpush1.bf16.msra.mxu0 %v5139
    %5554 = vmatprep.subr.bf16.mxu0 %v5142
    %5555 = vmatpush1.bf16.msra.mxu0 %v5141
    %5556 = vmatprep.subr.bf16.mxu0 %v5144
    %5557 = vmatpush1.bf16.msra.mxu0 %v5143
    %5558 = vmatprep.subr.bf16.mxu0 %v5146
    %5559 = vmatpush1.bf16.msra.mxu0 %v5145
    %5560 = vmatprep.subr.bf16.mxu0 %v5148
    %5561 = vmatpush1.bf16.msra.mxu0 %v5147
    %5562 = vmatprep.mubr.bf16.mxu0 %v3332
    %5563 = vmatmul.mubr.bf16.gmra.mrb[0].mxu0 %v3331
    %v5564 = vpop.f32.mrb[0].mxu0
    %v5565 = vadd.f32 %v5524, %v5564
    %v5566 = vpop.f32.mrb[0].mxu0
    %v5567 = vadd.f32 %v5526, %v5566
    %v5568 = vpop.f32.mrb[0].mxu0
    %v5569 = vpop.f32.mrb[0].mxu0
    %5570 = vdwg.mxu0
    %5571 = vst [vmem:[#allocation16 + $0x20] sm:$0xff] %v5565
    %5572 = vst [vmem:[#allocation16 + $0x28] sm:$0xff] %v5567
    %s5573 = sshll.u32 %s3334, 4
    %5574 = dma.done %s238, %s5573
    %v5575 = vld [vmem:[%s237] sm:$0xff]
    %v5576 = vld [vmem:[%s237 + $0x8] sm:$0xff]
    %v5577 = vld [vmem:[%s237 + $0x10] sm:$0xff]
    %v5578 = vld [vmem:[%s237 + $0x18] sm:$0xff]
    %v5579 = vld [vmem:[%s237 + $0x20] sm:$0xff]
    %v5580 = vld [vmem:[%s237 + $0x28] sm:$0xff]
    %v5581 = vld [vmem:[%s237 + $0x30] sm:$0xff]
    %v5582 = vld [vmem:[%s237 + $0x38] sm:$0xff]
    %v5583 = vld [vmem:[%s237 + $0x40] sm:$0xff]
    %v5584 = vld [vmem:[%s237 + $0x48] sm:$0xff]
    %v5585 = vld [vmem:[%s237 + $0x50] sm:$0xff]
    %v5586 = vld [vmem:[%s237 + $0x58] sm:$0xff]
    %v5587 = vld [vmem:[%s237 + $0x60] sm:$0xff]
    %v5588 = vld [vmem:[%s237 + $0x68] sm:$0xff]
    %v5589 = vld [vmem:[%s237 + $0x70] sm:$0xff]
    %v5590 = vld [vmem:[%s237 + $0x78] sm:$0xff]
    %v5591 = vld [vmem:[%s237 + $0x80] sm:$0xff]
    %v5592 = vld [vmem:[%s237 + $0x88] sm:$0xff]
    %v5593 = vld [vmem:[%s237 + $0x90] sm:$0xff]
    %v5594 = vld [vmem:[%s237 + $0x98] sm:$0xff]
    %v5595 = vld [vmem:[%s237 + $0xa0] sm:$0xff]
    %v5596 = vld [vmem:[%s237 + $0xa8] sm:$0xff]
    %v5597 = vld [vmem:[%s237 + $0xb0] sm:$0xff]
    %v5598 = vld [vmem:[%s237 + $0xb8] sm:$0xff]
    %v5599 = vld [vmem:[%s237 + $0xc0] sm:$0xff]
    %v5600 = vld [vmem:[%s237 + $0xc8] sm:$0xff]
    %v5601 = vld [vmem:[%s237 + $0xd0] sm:$0xff]
    %v5602 = vld [vmem:[%s237 + $0xd8] sm:$0xff]
    %v5603 = vld [vmem:[%s237 + $0xe0] sm:$0xff]
    %v5604 = vld [vmem:[%s237 + $0xe8] sm:$0xff]
    %v5605 = vld [vmem:[%s237 + $0xf0] sm:$0xff]
    %v5606 = vld [vmem:[%s237 + $0xf8] sm:$0xff]
    %v5607 = vld [vmem:[%s237 + $0x100] sm:$0xff]
    %v5608 = vld [vmem:[%s237 + $0x108] sm:$0xff]
    %v5609 = vld [vmem:[%s237 + $0x110] sm:$0xff]
    %v5610 = vld [vmem:[%s237 + $0x118] sm:$0xff]
    %v5611 = vld [vmem:[%s237 + $0x120] sm:$0xff]
    %v5612 = vld [vmem:[%s237 + $0x128] sm:$0xff]
    %v5613 = vld [vmem:[%s237 + $0x130] sm:$0xff]
    %v5614 = vld [vmem:[%s237 + $0x138] sm:$0xff]
    %v5615 = vld [vmem:[%s237 + $0x140] sm:$0xff]
    %v5616 = vld [vmem:[%s237 + $0x148] sm:$0xff]
    %v5617 = vld [vmem:[%s237 + $0x150] sm:$0xff]
    %v5618 = vld [vmem:[%s237 + $0x158] sm:$0xff]
    %v5619 = vld [vmem:[%s237 + $0x160] sm:$0xff]
    %v5620 = vld [vmem:[%s237 + $0x168] sm:$0xff]
    %v5621 = vld [vmem:[%s237 + $0x170] sm:$0xff]
    %v5622 = vld [vmem:[%s237 + $0x178] sm:$0xff]
    %v5623 = vld [vmem:[%s237 + $0x180] sm:$0xff]
    %v5624 = vld [vmem:[%s237 + $0x188] sm:$0xff]
    %v5625 = vld [vmem:[%s237 + $0x190] sm:$0xff]
    %v5626 = vld [vmem:[%s237 + $0x198] sm:$0xff]
    %v5627 = vld [vmem:[%s237 + $0x1a0] sm:$0xff]
    %v5628 = vld [vmem:[%s237 + $0x1a8] sm:$0xff]
    %v5629 = vld [vmem:[%s237 + $0x1b0] sm:$0xff]
    %v5630 = vld [vmem:[%s237 + $0x1b8] sm:$0xff]
    %v5631 = vld [vmem:[%s237 + $0x1c0] sm:$0xff]
    %v5632 = vld [vmem:[%s237 + $0x1c8] sm:$0xff]
    %v5633 = vld [vmem:[%s237 + $0x1d0] sm:$0xff]
    %v5634 = vld [vmem:[%s237 + $0x1d8] sm:$0xff]
    %v5635 = vld [vmem:[%s237 + $0x1e0] sm:$0xff]
    %v5636 = vld [vmem:[%s237 + $0x1e8] sm:$0xff]
    %v5637 = vld [vmem:[%s237 + $0x1f0] sm:$0xff]
    %v5638 = vld [vmem:[%s237 + $0x1f8] sm:$0xff]
    %v5639 = vld [vmem:[%s237 + $0x200] sm:$0xff]
    %v5640 = vld [vmem:[%s237 + $0x208] sm:$0xff]
    %v5641 = vld [vmem:[%s237 + $0x210] sm:$0xff]
    %v5642 = vld [vmem:[%s237 + $0x218] sm:$0xff]
    %v5643 = vld [vmem:[%s237 + $0x220] sm:$0xff]
    %v5644 = vld [vmem:[%s237 + $0x228] sm:$0xff]
    %v5645 = vld [vmem:[%s237 + $0x230] sm:$0xff]
    %v5646 = vld [vmem:[%s237 + $0x238] sm:$0xff]
    %v5647 = vld [vmem:[%s237 + $0x240] sm:$0xff]
    %v5648 = vld [vmem:[%s237 + $0x248] sm:$0xff]
    %v5649 = vld [vmem:[%s237 + $0x250] sm:$0xff]
    %v5650 = vld [vmem:[%s237 + $0x258] sm:$0xff]
    %v5651 = vld [vmem:[%s237 + $0x260] sm:$0xff]
    %v5652 = vld [vmem:[%s237 + $0x268] sm:$0xff]
    %v5653 = vld [vmem:[%s237 + $0x270] sm:$0xff]
    %v5654 = vld [vmem:[%s237 + $0x278] sm:$0xff]
    %v5655 = vld [vmem:[%s237 + $0x280] sm:$0xff]
    %v5656 = vld [vmem:[%s237 + $0x288] sm:$0xff]
    %v5657 = vld [vmem:[%s237 + $0x290] sm:$0xff]
    %v5658 = vld [vmem:[%s237 + $0x298] sm:$0xff]
    %v5659 = vld [vmem:[%s237 + $0x2a0] sm:$0xff]
    %v5660 = vld [vmem:[%s237 + $0x2a8] sm:$0xff]
    %v5661 = vld [vmem:[%s237 + $0x2b0] sm:$0xff]
    %v5662 = vld [vmem:[%s237 + $0x2b8] sm:$0xff]
    %v5663 = vld [vmem:[%s237 + $0x2c0] sm:$0xff]
    %v5664 = vld [vmem:[%s237 + $0x2c8] sm:$0xff]
    %v5665 = vld [vmem:[%s237 + $0x2d0] sm:$0xff]
    %v5666 = vld [vmem:[%s237 + $0x2d8] sm:$0xff]
    %v5667 = vld [vmem:[%s237 + $0x2e0] sm:$0xff]
    %v5668 = vld [vmem:[%s237 + $0x2e8] sm:$0xff]
    %v5669 = vld [vmem:[%s237 + $0x2f0] sm:$0xff]
    %v5670 = vld [vmem:[%s237 + $0x2f8] sm:$0xff]
    %v5671 = vld [vmem:[%s237 + $0x300] sm:$0xff]
    %v5672 = vld [vmem:[%s237 + $0x308] sm:$0xff]
    %v5673 = vld [vmem:[%s237 + $0x310] sm:$0xff]
    %v5674 = vld [vmem:[%s237 + $0x318] sm:$0xff]
    %v5675 = vld [vmem:[%s237 + $0x320] sm:$0xff]
    %v5676 = vld [vmem:[%s237 + $0x328] sm:$0xff]
    %v5677 = vld [vmem:[%s237 + $0x330] sm:$0xff]
    %v5678 = vld [vmem:[%s237 + $0x338] sm:$0xff]
    %v5679 = vld [vmem:[%s237 + $0x340] sm:$0xff]
    %v5680 = vld [vmem:[%s237 + $0x348] sm:$0xff]
    %v5681 = vld [vmem:[%s237 + $0x350] sm:$0xff]
    %v5682 = vld [vmem:[%s237 + $0x358] sm:$0xff]
    %v5683 = vld [vmem:[%s237 + $0x360] sm:$0xff]
    %v5684 = vld [vmem:[%s237 + $0x368] sm:$0xff]
    %v5685 = vld [vmem:[%s237 + $0x370] sm:$0xff]
    %v5686 = vld [vmem:[%s237 + $0x378] sm:$0xff]
    %v5687 = vld [vmem:[%s237 + $0x380] sm:$0xff]
    %v5688 = vld [vmem:[%s237 + $0x388] sm:$0xff]
    %v5689 = vld [vmem:[%s237 + $0x390] sm:$0xff]
    %v5690 = vld [vmem:[%s237 + $0x398] sm:$0xff]
    %v5691 = vld [vmem:[%s237 + $0x3a0] sm:$0xff]
    %v5692 = vld [vmem:[%s237 + $0x3a8] sm:$0xff]
    %v5693 = vld [vmem:[%s237 + $0x3b0] sm:$0xff]
    %v5694 = vld [vmem:[%s237 + $0x3b8] sm:$0xff]
    %v5695 = vld [vmem:[%s237 + $0x3c0] sm:$0xff]
    %v5696 = vld [vmem:[%s237 + $0x3c8] sm:$0xff]
    %v5697 = vld [vmem:[%s237 + $0x3d0] sm:$0xff]
    %v5698 = vld [vmem:[%s237 + $0x3d8] sm:$0xff]
    %v5699 = vld [vmem:[%s237 + $0x3e0] sm:$0xff]
    %v5700 = vld [vmem:[%s237 + $0x3e8] sm:$0xff]
    %v5701 = vld [vmem:[%s237 + $0x3f0] sm:$0xff]
    %v5702 = vld [vmem:[%s237 + $0x3f8] sm:$0xff]
    %v5703 = vld [vmem:[%s237 + $0x400] sm:$0xff]
    %v5704 = vld [vmem:[%s237 + $0x408] sm:$0xff]
    %v5705 = vld [vmem:[%s237 + $0x410] sm:$0xff]
    %v5706 = vld [vmem:[%s237 + $0x418] sm:$0xff]
    %v5707 = vld [vmem:[%s237 + $0x420] sm:$0xff]
    %v5708 = vld [vmem:[%s237 + $0x428] sm:$0xff]
    %v5709 = vld [vmem:[%s237 + $0x430] sm:$0xff]
    %v5710 = vld [vmem:[%s237 + $0x438] sm:$0xff]
    %v5711 = vld [vmem:[%s237 + $0x440] sm:$0xff]
    %v5712 = vld [vmem:[%s237 + $0x448] sm:$0xff]
    %v5713 = vld [vmem:[%s237 + $0x450] sm:$0xff]
    %v5714 = vld [vmem:[%s237 + $0x458] sm:$0xff]
    %v5715 = vld [vmem:[%s237 + $0x460] sm:$0xff]
    %v5716 = vld [vmem:[%s237 + $0x468] sm:$0xff]
    %v5717 = vld [vmem:[%s237 + $0x470] sm:$0xff]
    %v5718 = vld [vmem:[%s237 + $0x478] sm:$0xff]
    %v5719 = vld [vmem:[%s237 + $0x480] sm:$0xff]
    %v5720 = vld [vmem:[%s237 + $0x488] sm:$0xff]
    %v5721 = vld [vmem:[%s237 + $0x490] sm:$0xff]
    %v5722 = vld [vmem:[%s237 + $0x498] sm:$0xff]
    %v5723 = vld [vmem:[%s237 + $0x4a0] sm:$0xff]
    %v5724 = vld [vmem:[%s237 + $0x4a8] sm:$0xff]
    %v5725 = vld [vmem:[%s237 + $0x4b0] sm:$0xff]
    %v5726 = vld [vmem:[%s237 + $0x4b8] sm:$0xff]
    %v5727 = vld [vmem:[%s237 + $0x4c0] sm:$0xff]
    %v5728 = vld [vmem:[%s237 + $0x4c8] sm:$0xff]
    %v5729 = vld [vmem:[%s237 + $0x4d0] sm:$0xff]
    %v5730 = vld [vmem:[%s237 + $0x4d8] sm:$0xff]
    %v5731 = vld [vmem:[%s237 + $0x4e0] sm:$0xff]
    %v5732 = vld [vmem:[%s237 + $0x4e8] sm:$0xff]
    %v5733 = vld [vmem:[%s237 + $0x4f0] sm:$0xff]
    %v5734 = vld [vmem:[%s237 + $0x4f8] sm:$0xff]
    %v5735 = vld [vmem:[%s237 + $0x500] sm:$0xff]
    %v5736 = vld [vmem:[%s237 + $0x508] sm:$0xff]
    %v5737 = vld [vmem:[%s237 + $0x510] sm:$0xff]
    %v5738 = vld [vmem:[%s237 + $0x518] sm:$0xff]
    %v5739 = vld [vmem:[%s237 + $0x520] sm:$0xff]
    %v5740 = vld [vmem:[%s237 + $0x528] sm:$0xff]
    %v5741 = vld [vmem:[%s237 + $0x530] sm:$0xff]
    %v5742 = vld [vmem:[%s237 + $0x538] sm:$0xff]
    %v5743 = vld [vmem:[%s237 + $0x540] sm:$0xff]
    %v5744 = vld [vmem:[%s237 + $0x548] sm:$0xff]
    %v5745 = vld [vmem:[%s237 + $0x550] sm:$0xff]
    %v5746 = vld [vmem:[%s237 + $0x558] sm:$0xff]
    %v5747 = vld [vmem:[%s237 + $0x560] sm:$0xff]
    %v5748 = vld [vmem:[%s237 + $0x568] sm:$0xff]
    %v5749 = vld [vmem:[%s237 + $0x570] sm:$0xff]
    %v5750 = vld [vmem:[%s237 + $0x578] sm:$0xff]
    %v5751 = vld [vmem:[%s237 + $0x580] sm:$0xff]
    %v5752 = vld [vmem:[%s237 + $0x588] sm:$0xff]
    %v5753 = vld [vmem:[%s237 + $0x590] sm:$0xff]
    %v5754 = vld [vmem:[%s237 + $0x598] sm:$0xff]
    %v5755 = vld [vmem:[%s237 + $0x5a0] sm:$0xff]
    %v5756 = vld [vmem:[%s237 + $0x5a8] sm:$0xff]
    %v5757 = vld [vmem:[%s237 + $0x5b0] sm:$0xff]
    %v5758 = vld [vmem:[%s237 + $0x5b8] sm:$0xff]
    %v5759 = vld [vmem:[%s237 + $0x5c0] sm:$0xff]
    %v5760 = vld [vmem:[%s237 + $0x5c8] sm:$0xff]
    %v5761 = vld [vmem:[%s237 + $0x5d0] sm:$0xff]
    %v5762 = vld [vmem:[%s237 + $0x5d8] sm:$0xff]
    %v5763 = vld [vmem:[%s237 + $0x5e0] sm:$0xff]
    %v5764 = vld [vmem:[%s237 + $0x5e8] sm:$0xff]
    %v5765 = vld [vmem:[%s237 + $0x5f0] sm:$0xff]
    %v5766 = vld [vmem:[%s237 + $0x5f8] sm:$0xff]
    %v5767 = vld [vmem:[%s237 + $0x600] sm:$0xff]
    %v5768 = vld [vmem:[%s237 + $0x608] sm:$0xff]
    %v5769 = vld [vmem:[%s237 + $0x610] sm:$0xff]
    %v5770 = vld [vmem:[%s237 + $0x618] sm:$0xff]
    %v5771 = vld [vmem:[%s237 + $0x620] sm:$0xff]
    %v5772 = vld [vmem:[%s237 + $0x628] sm:$0xff]
    %v5773 = vld [vmem:[%s237 + $0x630] sm:$0xff]
    %v5774 = vld [vmem:[%s237 + $0x638] sm:$0xff]
    %v5775 = vld [vmem:[%s237 + $0x640] sm:$0xff]
    %v5776 = vld [vmem:[%s237 + $0x648] sm:$0xff]
    %v5777 = vld [vmem:[%s237 + $0x650] sm:$0xff]
    %v5778 = vld [vmem:[%s237 + $0x658] sm:$0xff]
    %v5779 = vld [vmem:[%s237 + $0x660] sm:$0xff]
    %v5780 = vld [vmem:[%s237 + $0x668] sm:$0xff]
    %v5781 = vld [vmem:[%s237 + $0x670] sm:$0xff]
    %v5782 = vld [vmem:[%s237 + $0x678] sm:$0xff]
    %v5783 = vld [vmem:[%s237 + $0x680] sm:$0xff]
    %v5784 = vld [vmem:[%s237 + $0x688] sm:$0xff]
    %v5785 = vld [vmem:[%s237 + $0x690] sm:$0xff]
    %v5786 = vld [vmem:[%s237 + $0x698] sm:$0xff]
    %v5787 = vld [vmem:[%s237 + $0x6a0] sm:$0xff]
    %v5788 = vld [vmem:[%s237 + $0x6a8] sm:$0xff]
    %v5789 = vld [vmem:[%s237 + $0x6b0] sm:$0xff]
    %v5790 = vld [vmem:[%s237 + $0x6b8] sm:$0xff]
    %v5791 = vld [vmem:[%s237 + $0x6c0] sm:$0xff]
    %v5792 = vld [vmem:[%s237 + $0x6c8] sm:$0xff]
    %v5793 = vld [vmem:[%s237 + $0x6d0] sm:$0xff]
    %v5794 = vld [vmem:[%s237 + $0x6d8] sm:$0xff]
    %v5795 = vld [vmem:[%s237 + $0x6e0] sm:$0xff]
    %v5796 = vld [vmem:[%s237 + $0x6e8] sm:$0xff]
    %v5797 = vld [vmem:[%s237 + $0x6f0] sm:$0xff]
    %v5798 = vld [vmem:[%s237 + $0x6f8] sm:$0xff]
    %v5799 = vld [vmem:[%s237 + $0x700] sm:$0xff]
    %v5800 = vld [vmem:[%s237 + $0x708] sm:$0xff]
    %v5801 = vld [vmem:[%s237 + $0x710] sm:$0xff]
    %v5802 = vld [vmem:[%s237 + $0x718] sm:$0xff]
    %v5803 = vld [vmem:[%s237 + $0x720] sm:$0xff]
    %v5804 = vld [vmem:[%s237 + $0x728] sm:$0xff]
    %v5805 = vld [vmem:[%s237 + $0x730] sm:$0xff]
    %v5806 = vld [vmem:[%s237 + $0x738] sm:$0xff]
    %v5807 = vld [vmem:[%s237 + $0x740] sm:$0xff]
    %v5808 = vld [vmem:[%s237 + $0x748] sm:$0xff]
    %v5809 = vld [vmem:[%s237 + $0x750] sm:$0xff]
    %v5810 = vld [vmem:[%s237 + $0x758] sm:$0xff]
    %v5811 = vld [vmem:[%s237 + $0x760] sm:$0xff]
    %v5812 = vld [vmem:[%s237 + $0x768] sm:$0xff]
    %v5813 = vld [vmem:[%s237 + $0x770] sm:$0xff]
    %v5814 = vld [vmem:[%s237 + $0x778] sm:$0xff]
    %v5815 = vld [vmem:[%s237 + $0x780] sm:$0xff]
    %v5816 = vld [vmem:[%s237 + $0x788] sm:$0xff]
    %v5817 = vld [vmem:[%s237 + $0x790] sm:$0xff]
    %v5818 = vld [vmem:[%s237 + $0x798] sm:$0xff]
    %v5819 = vld [vmem:[%s237 + $0x7a0] sm:$0xff]
    %v5820 = vld [vmem:[%s237 + $0x7a8] sm:$0xff]
    %v5821 = vld [vmem:[%s237 + $0x7b0] sm:$0xff]
    %v5822 = vld [vmem:[%s237 + $0x7b8] sm:$0xff]
    %v5823 = vld [vmem:[%s237 + $0x7c0] sm:$0xff]
    %v5824 = vld [vmem:[%s237 + $0x7c8] sm:$0xff]
    %v5825 = vld [vmem:[%s237 + $0x7d0] sm:$0xff]
    %v5826 = vld [vmem:[%s237 + $0x7d8] sm:$0xff]
    %v5827 = vld [vmem:[%s237 + $0x7e0] sm:$0xff]
    %v5828 = vld [vmem:[%s237 + $0x7e8] sm:$0xff]
    %v5829 = vld [vmem:[%s237 + $0x7f0] sm:$0xff]
    %v5830 = vld [vmem:[%s237 + $0x7f8] sm:$0xff]
    %v5831 = vld [vmem:[%s237 + $0x800] sm:$0xff]
    %v5832 = vld [vmem:[%s237 + $0x808] sm:$0xff]
    %v5833 = vld [vmem:[%s237 + $0x810] sm:$0xff]
    %v5834 = vld [vmem:[%s237 + $0x818] sm:$0xff]
    %v5835 = vld [vmem:[%s237 + $0x820] sm:$0xff]
    %v5836 = vld [vmem:[%s237 + $0x828] sm:$0xff]
    %v5837 = vld [vmem:[%s237 + $0x830] sm:$0xff]
    %v5838 = vld [vmem:[%s237 + $0x838] sm:$0xff]
    %v5839 = vld [vmem:[%s237 + $0x840] sm:$0xff]
    %v5840 = vld [vmem:[%s237 + $0x848] sm:$0xff]
    %v5841 = vld [vmem:[%s237 + $0x850] sm:$0xff]
    %v5842 = vld [vmem:[%s237 + $0x858] sm:$0xff]
    %v5843 = vld [vmem:[%s237 + $0x860] sm:$0xff]
    %v5844 = vld [vmem:[%s237 + $0x868] sm:$0xff]
    %v5845 = vld [vmem:[%s237 + $0x870] sm:$0xff]
    %v5846 = vld [vmem:[%s237 + $0x878] sm:$0xff]
    %v5847 = vld [vmem:[%s237 + $0x880] sm:$0xff]
    %v5848 = vld [vmem:[%s237 + $0x888] sm:$0xff]
    %v5849 = vld [vmem:[%s237 + $0x890] sm:$0xff]
    %v5850 = vld [vmem:[%s237 + $0x898] sm:$0xff]
    %v5851 = vld [vmem:[%s237 + $0x8a0] sm:$0xff]
    %v5852 = vld [vmem:[%s237 + $0x8a8] sm:$0xff]
    %v5853 = vld [vmem:[%s237 + $0x8b0] sm:$0xff]
    %v5854 = vld [vmem:[%s237 + $0x8b8] sm:$0xff]
    %v5855 = vld [vmem:[%s237 + $0x8c0] sm:$0xff]
    %v5856 = vld [vmem:[%s237 + $0x8c8] sm:$0xff]
    %v5857 = vld [vmem:[%s237 + $0x8d0] sm:$0xff]
    %v5858 = vld [vmem:[%s237 + $0x8d8] sm:$0xff]
    %v5859 = vld [vmem:[%s237 + $0x8e0] sm:$0xff]
    %v5860 = vld [vmem:[%s237 + $0x8e8] sm:$0xff]
    %v5861 = vld [vmem:[%s237 + $0x8f0] sm:$0xff]
    %v5862 = vld [vmem:[%s237 + $0x8f8] sm:$0xff]
    %v5863 = vld [vmem:[%s237 + $0x900] sm:$0xff]
    %v5864 = vld [vmem:[%s237 + $0x908] sm:$0xff]
    %v5865 = vld [vmem:[%s237 + $0x910] sm:$0xff]
    %v5866 = vld [vmem:[%s237 + $0x918] sm:$0xff]
    %v5867 = vld [vmem:[%s237 + $0x920] sm:$0xff]
    %v5868 = vld [vmem:[%s237 + $0x928] sm:$0xff]
    %v5869 = vld [vmem:[%s237 + $0x930] sm:$0xff]
    %v5870 = vld [vmem:[%s237 + $0x938] sm:$0xff]
    %v5871 = vld [vmem:[%s237 + $0x940] sm:$0xff]
    %v5872 = vld [vmem:[%s237 + $0x948] sm:$0xff]
    %v5873 = vld [vmem:[%s237 + $0x950] sm:$0xff]
    %v5874 = vld [vmem:[%s237 + $0x958] sm:$0xff]
    %v5875 = vld [vmem:[%s237 + $0x960] sm:$0xff]
    %v5876 = vld [vmem:[%s237 + $0x968] sm:$0xff]
    %v5877 = vld [vmem:[%s237 + $0x970] sm:$0xff]
    %v5878 = vld [vmem:[%s237 + $0x978] sm:$0xff]
    %v5879 = vld [vmem:[%s237 + $0x980] sm:$0xff]
    %v5880 = vld [vmem:[%s237 + $0x988] sm:$0xff]
    %v5881 = vld [vmem:[%s237 + $0x990] sm:$0xff]
    %v5882 = vld [vmem:[%s237 + $0x998] sm:$0xff]
    %v5883 = vld [vmem:[%s237 + $0x9a0] sm:$0xff]
    %v5884 = vld [vmem:[%s237 + $0x9a8] sm:$0xff]
    %v5885 = vld [vmem:[%s237 + $0x9b0] sm:$0xff]
    %v5886 = vld [vmem:[%s237 + $0x9b8] sm:$0xff]
    %v5887 = vld [vmem:[%s237 + $0x9c0] sm:$0xff]
    %v5888 = vld [vmem:[%s237 + $0x9c8] sm:$0xff]
    %v5889 = vld [vmem:[%s237 + $0x9d0] sm:$0xff]
    %v5890 = vld [vmem:[%s237 + $0x9d8] sm:$0xff]
    %v5891 = vld [vmem:[%s237 + $0x9e0] sm:$0xff]
    %v5892 = vld [vmem:[%s237 + $0x9e8] sm:$0xff]
    %v5893 = vld [vmem:[%s237 + $0x9f0] sm:$0xff]
    %v5894 = vld [vmem:[%s237 + $0x9f8] sm:$0xff]
    %v5895 = vld [vmem:[#allocation15 + $0x6] sm:$0x3]
    %v5897 = vlaneseq
    %v5898 = vshrl.u32 %v5897, 7
    %v5899 = vsub.s32 0, %v5898
    %v5900 = vrot.slane %v5895, %v5899
    %v5901 = vlaneseq
    %v5902 = vshrl.u32 %v5901, 7
    %v5903 = vsub.s32 1, %v5902
    %v5904 = vrot.slane %v5895, %v5903
    %5907 = vmatprep.subr.bf16.mxu0 %v5576
    %5908 = vmatpush1.bf16.msra.mxu0 %v5575
    %5909 = vmatprep.subr.bf16.mxu0 %v5578
    %5910 = vmatpush1.bf16.msra.mxu0 %v5577
    %5911 = vmatprep.subr.bf16.mxu0 %v5580
    %5912 = vmatpush1.bf16.msra.mxu0 %v5579
    %5913 = vmatprep.subr.bf16.mxu0 %v5582
    %5914 = vmatpush1.bf16.msra.mxu0 %v5581
    %5915 = vmatprep.subr.bf16.mxu0 %v5584
    %5916 = vmatpush1.bf16.msra.mxu0 %v5583
    %5917 = vmatprep.subr.bf16.mxu0 %v5586
    %5918 = vmatpush1.bf16.msra.mxu0 %v5585
    %5919 = vmatprep.subr.bf16.mxu0 %v5588
    %5920 = vmatpush1.bf16.msra.mxu0 %v5587
    %5921 = vmatprep.subr.bf16.mxu0 %v5590
    %5922 = vmatpush1.bf16.msra.mxu0 %v5589
    %5923 = vmatprep.subr.bf16.mxu0 %v5592
    %5924 = vmatpush1.bf16.msra.mxu0 %v5591
    %5925 = vmatprep.subr.bf16.mxu0 %v5594
    %5926 = vmatpush1.bf16.msra.mxu0 %v5593
    %5927 = vmatprep.subr.bf16.mxu0 %v5596
    %5928 = vmatpush1.bf16.msra.mxu0 %v5595
    %5929 = vmatprep.subr.bf16.mxu0 %v5598
    %5930 = vmatpush1.bf16.msra.mxu0 %v5597
    %5931 = vmatprep.subr.bf16.mxu0 %v5600
    %5932 = vmatpush1.bf16.msra.mxu0 %v5599
    %5933 = vmatprep.subr.bf16.mxu0 %v5602
    %5934 = vmatpush1.bf16.msra.mxu0 %v5601
    %5935 = vmatprep.subr.bf16.mxu0 %v5604
    %5936 = vmatpush1.bf16.msra.mxu0 %v5603
    %5937 = vmatprep.subr.bf16.mxu0 %v5606
    %5938 = vmatpush1.bf16.msra.mxu0 %v5605
    %5939 = vmatprep.mubr.bf16.mxu0 %v3314
    %5940 = vmatmul.mubr.bf16.gmra.mrb[0].mxu0 %v3313
    %v5941 = vpop.f32.mrb[0].mxu0
    %v5942 = vadd.f32 %v5900, %v5941
    %v5943 = vpop.f32.mrb[0].mxu0
    %v5944 = vadd.f32 %v5904, %v5943
    %v5945 = vpop.f32.mrb[0].mxu0
    %v5946 = vpop.f32.mrb[0].mxu0
    %5947 = vdwg.mxu0
    %5948 = vmatprep.subr.bf16.mxu0 %v5608
    %5949 = vmatpush1.bf16.msra.mxu0 %v5607
    %5950 = vmatprep.subr.bf16.mxu0 %v5610
    %5951 = vmatpush1.bf16.msra.mxu0 %v5609
    %5952 = vmatprep.subr.bf16.mxu0 %v5612
    %5953 = vmatpush1.bf16.msra.mxu0 %v5611
    %5954 = vmatprep.subr.bf16.mxu0 %v5614
    %5955 = vmatpush1.bf16.msra.mxu0 %v5613
    %5956 = vmatprep.subr.bf16.mxu0 %v5616
    %5957 = vmatpush1.bf16.msra.mxu0 %v5615
    %5958 = vmatprep.subr.bf16.mxu0 %v5618
    %5959 = vmatpush1.bf16.msra.mxu0 %v5617
    %5960 = vmatprep.subr.bf16.mxu0 %v5620
    %5961 = vmatpush1.bf16.msra.mxu0 %v5619
    %5962 = vmatprep.subr.bf16.mxu0 %v5622
    %5963 = vmatpush1.bf16.msra.mxu0 %v5621
    %5964 = vmatprep.subr.bf16.mxu0 %v5624
    %5965 = vmatpush1.bf16.msra.mxu0 %v5623
    %5966 = vmatprep.subr.bf16.mxu0 %v5626
    %5967 = vmatpush1.bf16.msra.mxu0 %v5625
    %5968 = vmatprep.subr.bf16.mxu0 %v5628
    %5969 = vmatpush1.bf16.msra.mxu0 %v5627
    %5970 = vmatprep.subr.bf16.mxu0 %v5630
    %5971 = vmatpush1.bf16.msra.mxu0 %v5629
    %5972 = vmatprep.subr.bf16.mxu0 %v5632
    %5973 = vmatpush1.bf16.msra.mxu0 %v5631
    %5974 = vmatprep.subr.bf16.mxu0 %v5634
    %5975 = vmatpush1.bf16.msra.mxu0 %v5633
    %5976 = vmatprep.subr.bf16.mxu0 %v5636
    %5977 = vmatpush1.bf16.msra.mxu0 %v5635
    %5978 = vmatprep.subr.bf16.mxu0 %v5638
    %5979 = vmatpush1.bf16.msra.mxu0 %v5637
    %5980 = vmatprep.mubr.bf16.mxu0 %v3316
    %5981 = vmatmul.mubr.bf16.gmra.mrb[0].mxu0 %v3315
    %v5982 = vpop.f32.mrb[0].mxu0
    %v5983 = vadd.f32 %v5942, %v5982
    %v5984 = vpop.f32.mrb[0].mxu0
    %v5985 = vadd.f32 %v5944, %v5984
    %v5986 = vpop.f32.mrb[0].mxu0
    %v5987 = vpop.f32.mrb[0].mxu0
    %5988 = vdwg.mxu0
    %5989 = vmatprep.subr.bf16.mxu0 %v5640
    %5990 = vmatpush1.bf16.msra.mxu0 %v5639
    %5991 = vmatprep.subr.bf16.mxu0 %v5642
    %5992 = vmatpush1.bf16.msra.mxu0 %v5641
    %5993 = vmatprep.subr.bf16.mxu0 %v5644
    %5994 = vmatpush1.bf16.msra.mxu0 %v5643
    %5995 = vmatprep.subr.bf16.mxu0 %v5646
    %5996 = vmatpush1.bf16.msra.mxu0 %v5645
    %5997 = vmatprep.subr.bf16.mxu0 %v5648
    %5998 = vmatpush1.bf16.msra.mxu0 %v5647
    %5999 = vmatprep.subr.bf16.mxu0 %v5650
    %6000 = vmatpush1.bf16.msra.mxu0 %v5649
    %6001 = vmatprep.subr.bf16.mxu0 %v5652
    %6002 = vmatpush1.bf16.msra.mxu0 %v5651
    %6003 = vmatprep.subr.bf16.mxu0 %v5654
    %6004 = vmatpush1.bf16.msra.mxu0 %v5653
    %6005 = vmatprep.subr.bf16.mxu0 %v5656
    %6006 = vmatpush1.bf16.msra.mxu0 %v5655
    %6007 = vmatprep.subr.bf16.mxu0 %v5658
    %6008 = vmatpush1.bf16.msra.mxu0 %v5657
    %6009 = vmatprep.subr.bf16.mxu0 %v5660
    %6010 = vmatpush1.bf16.msra.mxu0 %v5659
    %6011 = vmatprep.subr.bf16.mxu0 %v5662
    %6012 = vmatpush1.bf16.msra.mxu0 %v5661
    %6013 = vmatprep.subr.bf16.mxu0 %v5664
    %6014 = vmatpush1.bf16.msra.mxu0 %v5663
    %6015 = vmatprep.subr.bf16.mxu0 %v5666
    %6016 = vmatpush1.bf16.msra.mxu0 %v5665
    %6017 = vmatprep.subr.bf16.mxu0 %v5668
    %6018 = vmatpush1.bf16.msra.mxu0 %v5667
    %6019 = vmatprep.subr.bf16.mxu0 %v5670
    %6020 = vmatpush1.bf16.msra.mxu0 %v5669
    %6021 = vmatprep.mubr.bf16.mxu0 %v3318
    %6022 = vmatmul.mubr.bf16.gmra.mrb[0].mxu0 %v3317
    %v6023 = vpop.f32.mrb[0].mxu0
    %v6024 = vadd.f32 %v5983, %v6023
    %v6025 = vpop.f32.mrb[0].mxu0
    %v6026 = vadd.f32 %v5985, %v6025
    %v6027 = vpop.f32.mrb[0].mxu0
    %v6028 = vpop.f32.mrb[0].mxu0
    %6029 = vdwg.mxu0
    %6030 = vmatprep.subr.bf16.mxu0 %v5672
    %6031 = vmatpush1.bf16.msra.mxu0 %v5671
    %6032 = vmatprep.subr.bf16.mxu0 %v5674
    %6033 = vmatpush1.bf16.msra.mxu0 %v5673
    %6034 = vmatprep.subr.bf16.mxu0 %v5676
    %6035 = vmatpush1.bf16.msra.mxu0 %v5675
    %6036 = vmatprep.subr.bf16.mxu0 %v5678
    %6037 = vmatpush1.bf16.msra.mxu0 %v5677
    %6038 = vmatprep.subr.bf16.mxu0 %v5680
    %6039 = vmatpush1.bf16.msra.mxu0 %v5679
    %6040 = vmatprep.subr.bf16.mxu0 %v5682
    %6041 = vmatpush1.bf16.msra.mxu0 %v5681
    %6042 = vmatprep.subr.bf16.mxu0 %v5684
    %6043 = vmatpush1.bf16.msra.mxu0 %v5683
    %6044 = vmatprep.subr.bf16.mxu0 %v5686
    %6045 = vmatpush1.bf16.msra.mxu0 %v5685
    %6046 = vmatprep.subr.bf16.mxu0 %v5688
    %6047 = vmatpush1.bf16.msra.mxu0 %v5687
    %6048 = vmatprep.subr.bf16.mxu0 %v5690
    %6049 = vmatpush1.bf16.msra.mxu0 %v5689
    %6050 = vmatprep.subr.bf16.mxu0 %v5692
    %6051 = vmatpush1.bf16.msra.mxu0 %v5691
    %6052 = vmatprep.subr.bf16.mxu0 %v5694
    %6053 = vmatpush1.bf16.msra.mxu0 %v5693
    %6054 = vmatprep.subr.bf16.mxu0 %v5696
    %6055 = vmatpush1.bf16.msra.mxu0 %v5695
    %6056 = vmatprep.subr.bf16.mxu0 %v5698
    %6057 = vmatpush1.bf16.msra.mxu0 %v5697
    %6058 = vmatprep.subr.bf16.mxu0 %v5700
    %6059 = vmatpush1.bf16.msra.mxu0 %v5699
    %6060 = vmatprep.subr.bf16.mxu0 %v5702
    %6061 = vmatpush1.bf16.msra.mxu0 %v5701
    %6062 = vmatprep.mubr.bf16.mxu0 %v3320
    %6063 = vmatmul.mubr.bf16.gmra.mrb[0].mxu0 %v3319
    %v6064 = vpop.f32.mrb[0].mxu0
    %v6065 = vadd.f32 %v6024, %v6064
    %v6066 = vpop.f32.mrb[0].mxu0
    %v6067 = vadd.f32 %v6026, %v6066
    %v6068 = vpop.f32.mrb[0].mxu0
    %v6069 = vpop.f32.mrb[0].mxu0
    %6070 = vdwg.mxu0
    %6071 = vmatprep.subr.bf16.mxu0 %v5704
    %6072 = vmatpush1.bf16.msra.mxu0 %v5703
    %6073 = vmatprep.subr.bf16.mxu0 %v5706
    %6074 = vmatpush1.bf16.msra.mxu0 %v5705
    %6075 = vmatprep.subr.bf16.mxu0 %v5708
    %6076 = vmatpush1.bf16.msra.mxu0 %v5707
    %6077 = vmatprep.subr.bf16.mxu0 %v5710
    %6078 = vmatpush1.bf16.msra.mxu0 %v5709
    %6079 = vmatprep.subr.bf16.mxu0 %v5712
    %6080 = vmatpush1.bf16.msra.mxu0 %v5711
    %6081 = vmatprep.subr.bf16.mxu0 %v5714
    %6082 = vmatpush1.bf16.msra.mxu0 %v5713
    %6083 = vmatprep.subr.bf16.mxu0 %v5716
    %6084 = vmatpush1.bf16.msra.mxu0 %v5715
    %6085 = vmatprep.subr.bf16.mxu0 %v5718
    %6086 = vmatpush1.bf16.msra.mxu0 %v5717
    %6087 = vmatprep.subr.bf16.mxu0 %v5720
    %6088 = vmatpush1.bf16.msra.mxu0 %v5719
    %6089 = vmatprep.subr.bf16.mxu0 %v5722
    %6090 = vmatpush1.bf16.msra.mxu0 %v5721
    %6091 = vmatprep.subr.bf16.mxu0 %v5724
    %6092 = vmatpush1.bf16.msra.mxu0 %v5723
    %6093 = vmatprep.subr.bf16.mxu0 %v5726
    %6094 = vmatpush1.bf16.msra.mxu0 %v5725
    %6095 = vmatprep.subr.bf16.mxu0 %v5728
    %6096 = vmatpush1.bf16.msra.mxu0 %v5727
    %6097 = vmatprep.subr.bf16.mxu0 %v5730
    %6098 = vmatpush1.bf16.msra.mxu0 %v5729
    %6099 = vmatprep.subr.bf16.mxu0 %v5732
    %6100 = vmatpush1.bf16.msra.mxu0 %v5731
    %6101 = vmatprep.subr.bf16.mxu0 %v5734
    %6102 = vmatpush1.bf16.msra.mxu0 %v5733
    %6103 = vmatprep.mubr.bf16.mxu0 %v3322
    %6104 = vmatmul.mubr.bf16.gmra.mrb[0].mxu0 %v3321
    %v6105 = vpop.f32.mrb[0].mxu0
    %v6106 = vadd.f32 %v6065, %v6105
    %v6107 = vpop.f32.mrb[0].mxu0
    %v6108 = vadd.f32 %v6067, %v6107
    %v6109 = vpop.f32.mrb[0].mxu0
    %v6110 = vpop.f32.mrb[0].mxu0
    %6111 = vdwg.mxu0
    %6112 = vmatprep.subr.bf16.mxu0 %v5736
    %6113 = vmatpush1.bf16.msra.mxu0 %v5735
    %6114 = vmatprep.subr.bf16.mxu0 %v5738
    %6115 = vmatpush1.bf16.msra.mxu0 %v5737
    %6116 = vmatprep.subr.bf16.mxu0 %v5740
    %6117 = vmatpush1.bf16.msra.mxu0 %v5739
    %6118 = vmatprep.subr.bf16.mxu0 %v5742
    %6119 = vmatpush1.bf16.msra.mxu0 %v5741
    %6120 = vmatprep.subr.bf16.mxu0 %v5744
    %6121 = vmatpush1.bf16.msra.mxu0 %v5743
    %6122 = vmatprep.subr.bf16.mxu0 %v5746
    %6123 = vmatpush1.bf16.msra.mxu0 %v5745
    %6124 = vmatprep.subr.bf16.mxu0 %v5748
    %6125 = vmatpush1.bf16.msra.mxu0 %v5747
    %6126 = vmatprep.subr.bf16.mxu0 %v5750
    %6127 = vmatpush1.bf16.msra.mxu0 %v5749
    %6128 = vmatprep.subr.bf16.mxu0 %v5752
    %6129 = vmatpush1.bf16.msra.mxu0 %v5751
    %6130 = vmatprep.subr.bf16.mxu0 %v5754
    %6131 = vmatpush1.bf16.msra.mxu0 %v5753
    %6132 = vmatprep.subr.bf16.mxu0 %v5756
    %6133 = vmatpush1.bf16.msra.mxu0 %v5755
    %6134 = vmatprep.subr.bf16.mxu0 %v5758
    %6135 = vmatpush1.bf16.msra.mxu0 %v5757
    %6136 = vmatprep.subr.bf16.mxu0 %v5760
    %6137 = vmatpush1.bf16.msra.mxu0 %v5759
    %6138 = vmatprep.subr.bf16.mxu0 %v5762
    %6139 = vmatpush1.bf16.msra.mxu0 %v5761
    %6140 = vmatprep.subr.bf16.mxu0 %v5764
    %6141 = vmatpush1.bf16.msra.mxu0 %v5763
    %6142 = vmatprep.subr.bf16.mxu0 %v5766
    %6143 = vmatpush1.bf16.msra.mxu0 %v5765
    %6144 = vmatprep.mubr.bf16.mxu0 %v3324
    %6145 = vmatmul.mubr.bf16.gmra.mrb[0].mxu0 %v3323
    %v6146 = vpop.f32.mrb[0].mxu0
    %v6147 = vadd.f32 %v6106, %v6146
    %v6148 = vpop.f32.mrb[0].mxu0
    %v6149 = vadd.f32 %v6108, %v6148
    %v6150 = vpop.f32.mrb[0].mxu0
    %v6151 = vpop.f32.mrb[0].mxu0
    %6152 = vdwg.mxu0
    %6153 = vmatprep.subr.bf16.mxu0 %v5768
    %6154 = vmatpush1.bf16.msra.mxu0 %v5767
    %6155 = vmatprep.subr.bf16.mxu0 %v5770
    %6156 = vmatpush1.bf16.msra.mxu0 %v5769
    %6157 = vmatprep.subr.bf16.mxu0 %v5772
    %6158 = vmatpush1.bf16.msra.mxu0 %v5771
    %6159 = vmatprep.subr.bf16.mxu0 %v5774
    %6160 = vmatpush1.bf16.msra.mxu0 %v5773
    %6161 = vmatprep.subr.bf16.mxu0 %v5776
    %6162 = vmatpush1.bf16.msra.mxu0 %v5775
    %6163 = vmatprep.subr.bf16.mxu0 %v5778
    %6164 = vmatpush1.bf16.msra.mxu0 %v5777
    %6165 = vmatprep.subr.bf16.mxu0 %v5780
    %6166 = vmatpush1.bf16.msra.mxu0 %v5779
    %6167 = vmatprep.subr.bf16.mxu0 %v5782
    %6168 = vmatpush1.bf16.msra.mxu0 %v5781
    %6169 = vmatprep.subr.bf16.mxu0 %v5784
    %6170 = vmatpush1.bf16.msra.mxu0 %v5783
    %6171 = vmatprep.subr.bf16.mxu0 %v5786
    %6172 = vmatpush1.bf16.msra.mxu0 %v5785
    %6173 = vmatprep.subr.bf16.mxu0 %v5788
    %6174 = vmatpush1.bf16.msra.mxu0 %v5787
    %6175 = vmatprep.subr.bf16.mxu0 %v5790
    %6176 = vmatpush1.bf16.msra.mxu0 %v5789
    %6177 = vmatprep.subr.bf16.mxu0 %v5792
    %6178 = vmatpush1.bf16.msra.mxu0 %v5791
    %6179 = vmatprep.subr.bf16.mxu0 %v5794
    %6180 = vmatpush1.bf16.msra.mxu0 %v5793
    %6181 = vmatprep.subr.bf16.mxu0 %v5796
    %6182 = vmatpush1.bf16.msra.mxu0 %v5795
    %6183 = vmatprep.subr.bf16.mxu0 %v5798
    %6184 = vmatpush1.bf16.msra.mxu0 %v5797
    %6185 = vmatprep.mubr.bf16.mxu0 %v3326
    %6186 = vmatmul.mubr.bf16.gmra.mrb[0].mxu0 %v3325
    %v6187 = vpop.f32.mrb[0].mxu0
    %v6188 = vadd.f32 %v6147, %v6187
    %v6189 = vpop.f32.mrb[0].mxu0
    %v6190 = vadd.f32 %v6149, %v6189
    %v6191 = vpop.f32.mrb[0].mxu0
    %v6192 = vpop.f32.mrb[0].mxu0
    %6193 = vdwg.mxu0
    %6194 = vmatprep.subr.bf16.mxu0 %v5800
    %6195 = vmatpush1.bf16.msra.mxu0 %v5799
    %6196 = vmatprep.subr.bf16.mxu0 %v5802
    %6197 = vmatpush1.bf16.msra.mxu0 %v5801
    %6198 = vmatprep.subr.bf16.mxu0 %v5804
    %6199 = vmatpush1.bf16.msra.mxu0 %v5803
    %6200 = vmatprep.subr.bf16.mxu0 %v5806
    %6201 = vmatpush1.bf16.msra.mxu0 %v5805
    %6202 = vmatprep.subr.bf16.mxu0 %v5808
    %6203 = vmatpush1.bf16.msra.mxu0 %v5807
    %6204 = vmatprep.subr.bf16.mxu0 %v5810
    %6205 = vmatpush1.bf16.msra.mxu0 %v5809
    %6206 = vmatprep.subr.bf16.mxu0 %v5812
    %6207 = vmatpush1.bf16.msra.mxu0 %v5811
    %6208 = vmatprep.subr.bf16.mxu0 %v5814
    %6209 = vmatpush1.bf16.msra.mxu0 %v5813
    %6210 = vmatprep.subr.bf16.mxu0 %v5816
    %6211 = vmatpush1.bf16.msra.mxu0 %v5815
    %6212 = vmatprep.subr.bf16.mxu0 %v5818
    %6213 = vmatpush1.bf16.msra.mxu0 %v5817
    %6214 = vmatprep.subr.bf16.mxu0 %v5820
    %6215 = vmatpush1.bf16.msra.mxu0 %v5819
    %6216 = vmatprep.subr.bf16.mxu0 %v5822
    %6217 = vmatpush1.bf16.msra.mxu0 %v5821
    %6218 = vmatprep.subr.bf16.mxu0 %v5824
    %6219 = vmatpush1.bf16.msra.mxu0 %v5823
    %6220 = vmatprep.subr.bf16.mxu0 %v5826
    %6221 = vmatpush1.bf16.msra.mxu0 %v5825
    %6222 = vmatprep.subr.bf16.mxu0 %v5828
    %6223 = vmatpush1.bf16.msra.mxu0 %v5827
    %6224 = vmatprep.subr.bf16.mxu0 %v5830
    %6225 = vmatpush1.bf16.msra.mxu0 %v5829
    %6226 = vmatprep.mubr.bf16.mxu0 %v3328
    %6227 = vmatmul.mubr.bf16.gmra.mrb[0].mxu0 %v3327
    %v6228 = vpop.f32.mrb[0].mxu0
    %v6229 = vadd.f32 %v6188, %v6228
    %v6230 = vpop.f32.mrb[0].mxu0
    %v6231 = vadd.f32 %v6190, %v6230
    %v6232 = vpop.f32.mrb[0].mxu0
    %v6233 = vpop.f32.mrb[0].mxu0
    %6234 = vdwg.mxu0
    %6235 = vmatprep.subr.bf16.mxu0 %v5832
    %6236 = vmatpush1.bf16.msra.mxu0 %v5831
    %6237 = vmatprep.subr.bf16.mxu0 %v5834
    %6238 = vmatpush1.bf16.msra.mxu0 %v5833
    %6239 = vmatprep.subr.bf16.mxu0 %v5836
    %6240 = vmatpush1.bf16.msra.mxu0 %v5835
    %6241 = vmatprep.subr.bf16.mxu0 %v5838
    %6242 = vmatpush1.bf16.msra.mxu0 %v5837
    %6243 = vmatprep.subr.bf16.mxu0 %v5840
    %6244 = vmatpush1.bf16.msra.mxu0 %v5839
    %6245 = vmatprep.subr.bf16.mxu0 %v5842
    %6246 = vmatpush1.bf16.msra.mxu0 %v5841
    %6247 = vmatprep.subr.bf16.mxu0 %v5844
    %6248 = vmatpush1.bf16.msra.mxu0 %v5843
    %6249 = vmatprep.subr.bf16.mxu0 %v5846
    %6250 = vmatpush1.bf16.msra.mxu0 %v5845
    %6251 = vmatprep.subr.bf16.mxu0 %v5848
    %6252 = vmatpush1.bf16.msra.mxu0 %v5847
    %6253 = vmatprep.subr.bf16.mxu0 %v5850
    %6254 = vmatpush1.bf16.msra.mxu0 %v5849
    %6255 = vmatprep.subr.bf16.mxu0 %v5852
    %6256 = vmatpush1.bf16.msra.mxu0 %v5851
    %6257 = vmatprep.subr.bf16.mxu0 %v5854
    %6258 = vmatpush1.bf16.msra.mxu0 %v5853
    %6259 = vmatprep.subr.bf16.mxu0 %v5856
    %6260 = vmatpush1.bf16.msra.mxu0 %v5855
    %6261 = vmatprep.subr.bf16.mxu0 %v5858
    %6262 = vmatpush1.bf16.msra.mxu0 %v5857
    %6263 = vmatprep.subr.bf16.mxu0 %v5860
    %6264 = vmatpush1.bf16.msra.mxu0 %v5859
    %6265 = vmatprep.subr.bf16.mxu0 %v5862
    %6266 = vmatpush1.bf16.msra.mxu0 %v5861
    %6267 = vmatprep.mubr.bf16.mxu0 %v3330
    %6268 = vmatmul.mubr.bf16.gmra.mrb[0].mxu0 %v3329
    %v6269 = vpop.f32.mrb[0].mxu0
    %v6270 = vadd.f32 %v6229, %v6269
    %v6271 = vpop.f32.mrb[0].mxu0
    %v6272 = vadd.f32 %v6231, %v6271
    %v6273 = vpop.f32.mrb[0].mxu0
    %v6274 = vpop.f32.mrb[0].mxu0
    %6275 = vdwg.mxu0
    %6276 = vmatprep.subr.bf16.mxu0 %v5864
    %6277 = vmatpush1.bf16.msra.mxu0 %v5863
    %6278 = vmatprep.subr.bf16.mxu0 %v5866
    %6279 = vmatpush1.bf16.msra.mxu0 %v5865
    %6280 = vmatprep.subr.bf16.mxu0 %v5868
    %6281 = vmatpush1.bf16.msra.mxu0 %v5867
    %6282 = vmatprep.subr.bf16.mxu0 %v5870
    %6283 = vmatpush1.bf16.msra.mxu0 %v5869
    %6284 = vmatprep.subr.bf16.mxu0 %v5872
    %6285 = vmatpush1.bf16.msra.mxu0 %v5871
    %6286 = vmatprep.subr.bf16.mxu0 %v5874
    %6287 = vmatpush1.bf16.msra.mxu0 %v5873
    %6288 = vmatprep.subr.bf16.mxu0 %v5876
    %6289 = vmatpush1.bf16.msra.mxu0 %v5875
    %6290 = vmatprep.subr.bf16.mxu0 %v5878
    %6291 = vmatpush1.bf16.msra.mxu0 %v5877
    %6292 = vmatprep.subr.bf16.mxu0 %v5880
    %6293 = vmatpush1.bf16.msra.mxu0 %v5879
    %6294 = vmatprep.subr.bf16.mxu0 %v5882
    %6295 = vmatpush1.bf16.msra.mxu0 %v5881
    %6296 = vmatprep.subr.bf16.mxu0 %v5884
    %6297 = vmatpush1.bf16.msra.mxu0 %v5883
    %6298 = vmatprep.subr.bf16.mxu0 %v5886
    %6299 = vmatpush1.bf16.msra.mxu0 %v5885
    %6300 = vmatprep.subr.bf16.mxu0 %v5888
    %6301 = vmatpush1.bf16.msra.mxu0 %v5887
    %6302 = vmatprep.subr.bf16.mxu0 %v5890
    %6303 = vmatpush1.bf16.msra.mxu0 %v5889
    %6304 = vmatprep.subr.bf16.mxu0 %v5892
    %6305 = vmatpush1.bf16.msra.mxu0 %v5891
    %6306 = vmatprep.subr.bf16.mxu0 %v5894
    %6307 = vmatpush1.bf16.msra.mxu0 %v5893
    %6308 = vmatprep.mubr.bf16.mxu0 %v3332
    %6309 = vmatmul.mubr.bf16.gmra.mrb[0].mxu0 %v3331
    %v6310 = vpop.f32.mrb[0].mxu0
    %v6311 = vadd.f32 %v6270, %v6310
    %v6312 = vpop.f32.mrb[0].mxu0
    %v6313 = vadd.f32 %v6272, %v6312
    %v6314 = vpop.f32.mrb[0].mxu0
    %v6315 = vpop.f32.mrb[0].mxu0
    %6316 = vdwg.mxu0
    %6317 = vst [vmem:[#allocation16 + $0x30] sm:$0xff] %v6311
    %6318 = vst [vmem:[#allocation16 + $0x38] sm:$0xff] %v6313
    // Predicated region
    $region50: #{model_forward.1} parent=1 // pred_check
      _
    $region51: #{model_forward.1} parent=1 // pred_check_branch
      %6320 = sbr.rel (0) target = $region53
    $region52: #{model_forward.1} parent=1 // pred_region
      %s6322 = ssub.s32 1024, 1024
      %6323 = vsyncadd [#allocation9], %s6322
      %s6325 = sshll.u32 [#allocation16], 4
      %s6326 = int_to_ptr.vmem [resolvable:$true] %s6325
      %6328 = dma.vmem_to_hbm [thread:$0]  %s6326, 1024, %s9, [#allocation9]
    $region53: #{model_forward.1} parent=1 // pred_fallthru
      _
    // Predicated region
    $region54: #{model_forward.1} parent=1 // pred_check
      _
    $region55: #{model_forward.1} parent=1 // pred_check_branch
      %6330 = sbr.rel (0) target = $region57
    $region56: #{model_forward.1} parent=1 // pred_region
      %6331 = dma.done [#allocation9], 1024
    $region57: #{model_forward.1} parent=1 // pred_fallthru
      _
    %6332 = vsyncpa [#allocation8], 1
    %6333 = vsyncpa [#allocation11], 1
    %6334 = vsyncpa [#allocation14], 1
    %6335 = vsyncpa [#allocation9], 1
  %6336 = vsyncmov [#allocation6]
  %s6337 = vpop.sfrf %6336
  %p6338 = scmp.eq.s32.totalorder %s6337, 0
  %p6339 = pneg %p6338
  %6341 = shalt.err (%p6339)
  %s6342 = scalar_lea.sflag [#allocation6], 1
  %6343 = vsyncmov %s6342
  %s6344 = vpop.sfrf %6343
  %p6345 = scmp.eq.s32.totalorder %s6344, 0
  %p6346 = pneg %p6345
  %6348 = shalt.err (%p6346)
  %s6349 = scalar_lea.sflag [#allocation6], 2
  %6350 = vsyncmov %s6349
  %s6351 = vpop.sfrf %6350
  %p6352 = scmp.eq.s32.totalorder %s6351, 0
  %p6353 = pneg %p6352
  %6355 = shalt.err (%p6353)
  %s6356 = scalar_lea.sflag [#allocation6], 3
  %6357 = vsyncmov %s6356
  %s6358 = vpop.sfrf %6357
  %p6359 = scmp.eq.s32.totalorder %s6358, 0
  %p6360 = pneg %p6359
  %6362 = shalt.err (%p6360)
  %s6363 = scalar_lea.sflag [#allocation6], 4
  %6364 = vsyncmov %s6363
  %s6365 = vpop.sfrf %6364
  %p6366 = scmp.eq.s32.totalorder %s6365, 0
  %p6367 = pneg %p6366
  %6369 = shalt.err (%p6367)

</llo_original>
